<compile_context>
chip_gen: v5e
topology: v5e:2x2
jax: 0.10.0
libtpu: 0.0.40
codegen_flags: <defaults>
</compile_context>

<pallas_src>
import functools

import jax
import jax.numpy as jnp
from jax.experimental import pallas as pl
from jax.experimental.pallas import tpu as pltpu


# M-tile target (rows).  Sweep knob: v6e (128 MiB VMEM) tolerates much larger
# tiles (2k-4k rows); v7x (64 MiB VMEM, 32 MiB scoped default) and v5e are
# happier around 512.  >=512-row tiles already reach ~85% of HBM roofline per
# measured tiling sweeps, so 512 is a safe generation-neutral default.
_M_TILE = 512


def _pick_m_tile(M, target=_M_TILE):
    """Largest divisor of M that is <= target and vreg-aligned; else full M."""
    if M <= target:
        return M
    for tm in range(target - target % 16, 15, -16):   # prefer 16-row alignment
        if M % tm == 0:
            return tm
    for tm in range(target - target % 8, 7, -8):
        if M % tm == 0:
            return tm
    return M


# ----------------------------------------------------------------------------
# Pallas kernels
# ----------------------------------------------------------------------------
def _fused_layer_kernel(x_ref, w_ref, b_ref, g_ref, bb_ref, o_ref, *scratch,
                        single_block: bool):
    """out = BatchNorm(relu(x @ w + b)); BN stats over ALL M rows (training mode)."""
    # MXU: bf16 x bf16 -> f32 accumulate
    y = jnp.dot(x_ref[...], w_ref[...], preferred_element_type=jnp.float32)
    y = jnp.maximum(y + b_ref[...], 0.0)

    if single_block:
        # Whole layer resident in one block: stats + normalize inline.
        inv_m = 1.0 / float(y.shape[0])
        mean = jnp.sum(y, axis=0, keepdims=True) * inv_m
        var = jnp.sum(y * y, axis=0, keepdims=True) * inv_m - mean * mean
        inv = jax.lax.rsqrt(var + 1e-5)
        o_ref[...] = ((y - mean) * (inv * g_ref[...]) + bb_ref[...]).astype(o_ref.dtype)
        return

    acc_ref, sum_ref, ssq_ref = scratch
    i = pl.program_id(0)
    tm = x_ref.shape[0]

    @pl.when(i == 0)
    def _init():
        sum_ref[...] = jnp.zeros_like(sum_ref)
        ssq_ref[...] = jnp.zeros_like(ssq_ref)

    # One-pass statistics (var = E[x^2] - E[x]^2) accumulated across M tiles.
    sum_ref[...] += jnp.sum(y, axis=0, keepdims=True)
    ssq_ref[...] += jnp.sum(y * y, axis=0, keepdims=True)

    start = pl.multiple_of(i * tm, 8)          # tm is a multiple of 8 on this path
    acc_ref[pl.ds(start, tm), :] = y

    @pl.when(i == pl.num_programs(0) - 1)
    def _finalize():
        inv_m = 1.0 / float(acc_ref.shape[0])
        mean = sum_ref[...] * inv_m
        var = ssq_ref[...] * inv_m - mean * mean
        inv = jax.lax.rsqrt(var + 1e-5)
        o_ref[...] = ((acc_ref[...] - mean) * (inv * g_ref[...])
                      + bb_ref[...]).astype(o_ref.dtype)


def _fc_softmax_kernel(x_ref, w_ref, b_ref, o_ref):
    # out = softmax(x @ w + b, axis=-1)
    logits = jnp.dot(x_ref[...], w_ref[...], preferred_element_type=jnp.float32)
    logits = logits + b_ref[...]
    m = jnp.max(logits, axis=-1, keepdims=True)
    e = jnp.exp(logits - m)
    o_ref[...] = e * pl.reciprocal(jnp.sum(e, axis=-1, keepdims=True), approx=False)


_VMEM_SPEC = pl.BlockSpec(memory_space=pltpu.MemorySpace.VMEM)


# ----------------------------------------------------------------------------
# Pallas wrappers
# ----------------------------------------------------------------------------
def _fused_layer(x, w, b, gamma, beta, out_dtype=jnp.bfloat16):
    """x:(M,K) bf16, w:(K,N) bf16, b/gamma/beta:(1,N) f32 -> BN(relu(xw+b)) (M,N)."""
    M, K = x.shape
    N = w.shape[1]
    tm = _pick_m_tile(M)
    single = tm == M
    grid = (M // tm,)

    kernel = functools.partial(_fused_layer_kernel, single_block=single)
    scratch = () if single else (
        pltpu.VMEM((M, N), jnp.float32),     # pre-BN activation (resident, f32)
        pltpu.VMEM((1, N), jnp.float32),     # per-channel running sum
        pltpu.VMEM((1, N), jnp.float32),     # per-channel running sum of squares
    )
    cost = pl.CostEstimate(
        flops=2 * M * K * N,
        transcendentals=0,
        bytes_accessed=(M * K * x.dtype.itemsize + K * N * w.dtype.itemsize
                        + M * N * jnp.dtype(out_dtype).itemsize + 3 * N * 4),
    )
    return pl.pallas_call(
        kernel,
        out_shape=jax.ShapeDtypeStruct((M, N), out_dtype),
        grid_spec=pltpu.PrefetchScalarGridSpec(
            num_scalar_prefetch=0,
            grid=grid,
            in_specs=[
                pl.BlockSpec((tm, K), lambda i: (i, 0)),   # patch tile (pipelined DMA)
                pl.BlockSpec((K, N), lambda i: (0, 0)),    # packed weight (resident)
                pl.BlockSpec((1, N), lambda i: (0, 0)),    # bias
                pl.BlockSpec((1, N), lambda i: (0, 0)),    # BN gamma
                pl.BlockSpec((1, N), lambda i: (0, 0)),    # BN beta
            ],
            out_specs=pl.BlockSpec((M, N), lambda i: (0, 0)),  # resident output block
            scratch_shapes=scratch,
        ),
        compiler_params=pltpu.CompilerParams(
            # BN statistics carry across the M tiles -> reduction-like axis.
            dimension_semantics=("arbitrary",),
            vmem_limit_bytes=32 * 1024 * 1024,
        ),
        cost_estimate=cost,
    )(x, w, b, gamma, beta)


def _fc_softmax(x, w, b):
    """x:(B,K) bf16, w:(K,A) bf16, b:(1,A) f32 -> softmax(xw+b) (B,A) f32."""
    B = x.shape[0]
    A = w.shape[1]
    return pl.pallas_call(
        _fc_softmax_kernel,
        out_shape=jax.ShapeDtypeStruct((B, A), jnp.float32),
        in_specs=[_VMEM_SPEC, _VMEM_SPEC, _VMEM_SPEC],
        out_specs=_VMEM_SPEC,
    )(x, w, b)


# ----------------------------------------------------------------------------
# Plain-JAX glue: im2col patch extraction (trace-time static loops, bf16)
# ----------------------------------------------------------------------------
def _im2col(x_nhwc, kh, kw, stride):
    """x:(B,H,W,C) -> patches:(B*Ho*Wo, kh*kw*C) with (kh,kw,C) minor ordering."""
    # TODO(synk): fold im2col into the conv kernel (sum of kh*kw shifted matmuls)
    # to avoid materializing the expanded patch tensor in HBM at large batch.
    B, H, W, C = x_nhwc.shape
    Ho = (H - kh) // stride + 1
    Wo = (W - kw) // stride + 1
    cols = []
    for i in range(kh):
        for j in range(kw):
            cols.append(x_nhwc[:, i:i + stride * Ho:stride,
                               j:j + stride * Wo:stride, :])   # (B,Ho,Wo,C)
    patches = jnp.stack(cols, axis=3)                           # (B,Ho,Wo,kh*kw,C)
    return patches.reshape(B * Ho * Wo, kh * kw * C), (B, Ho, Wo)


# ----------------------------------------------------------------------------
# Parameters: PyTorch-layout init + one-time packing (outside jit)
# ----------------------------------------------------------------------------
def init_params(key, obs_size, action_size):
    def u(key, shape, fan_in):
        bound = 1.0 / jnp.sqrt(jnp.float32(fan_in))
        return jax.random.uniform(key, shape, jnp.float32, -bound, bound)

    ks = jax.random.split(key, 10)
    p = {}
    p["conv1_w"] = u(ks[0], (32, obs_size, 8, 8), obs_size * 8 * 8)
    p["conv1_b"] = u(ks[1], (32,), obs_size * 8 * 8)
    p["conv2_w"] = u(ks[2], (64, 32, 4, 4), 32 * 4 * 4)
    p["conv2_b"] = u(ks[3], (64,), 32 * 4 * 4)
    p["conv3_w"] = u(ks[4], (64, 64, 3, 3), 64 * 3 * 3)
    p["conv3_b"] = u(ks[5], (64,), 64 * 3 * 3)
    p["fc1_w"] = u(ks[6], (512, 64 * 7 * 7), 64 * 7 * 7)
    p["fc1_b"] = u(ks[7], (512,), 64 * 7 * 7)
    p["fc2_w"] = u(ks[8], (action_size, 512), 512)
    p["fc2_b"] = u(ks[9], (action_size,), 512)
    # BatchNorm affine params: PyTorch default gamma=1, beta=0
    for name, c in (("bn1", 32), ("bn2", 64), ("bn3", 64), ("bn4", 512)):
        p[name + "_g"] = jnp.ones((c,), jnp.float32)
        p[name + "_b"] = jnp.zeros((c,), jnp.float32)
    return p


def prepare_params(p):
    """One-time weight packing (run outside jit, so it costs nothing per call)."""
    def convmat(w):   # (O, I, kh, kw) -> (kh*kw*I, O) bf16, matches _im2col order
        O, I, kh, kw = w.shape
        return jnp.transpose(w, (2, 3, 1, 0)).reshape(kh * kw * I, O).astype(jnp.bfloat16)

    prep = {
        "conv1_w": convmat(p["conv1_w"]),
        "conv2_w": convmat(p["conv2_w"]),
        "conv3_w": convmat(p["conv3_w"]),
        "fc2_w": jnp.transpose(p["fc2_w"], (1, 0)).astype(jnp.bfloat16),
    }
    # fc1: PyTorch K ordering is (C=64, H=7, W=7); re-order rows to the NHWC
    # (H, W, C) flatten so the activation never needs a transpose.
    w = p["fc1_w"].reshape(-1, 64, 7, 7)
    w = jnp.transpose(w, (0, 2, 3, 1)).reshape(-1, 7 * 7 * 64)
    prep["fc1_w"] = jnp.transpose(w, (1, 0)).astype(jnp.bfloat16)

    for name in ("conv1_b", "conv2_b", "conv3_b", "fc1_b", "fc2_b",
                 "bn1_g", "bn1_b", "bn2_g", "bn2_b",
                 "bn3_g", "bn3_b", "bn4_g", "bn4_b"):
        prep[name] = p[name].reshape(1, -1).astype(jnp.float32)
    return prep


# ----------------------------------------------------------------------------
# Forward pass
# ----------------------------------------------------------------------------
@jax.jit
def net_forward(prep, x_nchw):
    # NCHW f32 -> NHWC bf16 (bf16 activations between layers; f32 accumulation
    # and f32 BN/softmax epilogues inside the kernels).
    x = jnp.transpose(x_nchw, (0, 2, 3, 1)).astype(jnp.bfloat16)

    # conv1 (k=8, s=4) + ReLU + BatchNorm2d(32), fused
    patches, (B, Ho, Wo) = _im2col(x, 8, 8, 4)
    y = _fused_layer(patches, prep["conv1_w"], prep["conv1_b"],
                     prep["bn1_g"], prep["bn1_b"])           # (B*20*20, 32)
    x = y.reshape(B, Ho, Wo, 32)

    # conv2 (k=4, s=2) + ReLU + BatchNorm2d(64), fused
    patches, (B, Ho, Wo) = _im2col(x, 4, 4, 2)
    y = _fused_layer(patches, prep["conv2_w"], prep["conv2_b"],
                     prep["bn2_g"], prep["bn2_b"])           # (B*9*9, 64)
    x = y.reshape(B, Ho, Wo, 64)

    # conv3 (k=3, s=1) + ReLU + BatchNorm2d(64), fused
    patches, (B, Ho, Wo) = _im2col(x, 3, 3, 1)
    y = _fused_layer(patches, prep["conv3_w"], prep["conv3_b"],
                     prep["bn3_g"], prep["bn3_b"])           # (B*7*7, 64)

    # NHWC flatten; fc1_w rows were pre-permuted to (H,W,C), so this reshape is
    # layout-free (no transpose).
    x = y.reshape(B, Ho * Wo * 64)                           # (B, 3136)

    # fc1 + ReLU + BatchNorm1d(512), fused
    y = _fused_layer(x, prep["fc1_w"], prep["fc1_b"],
                     prep["bn4_g"], prep["bn4_b"])           # (B, 512)

    # fc2 + softmax(dim=1), fused
    return _fc_softmax(y, prep["fc2_w"], prep["fc2_b"])


# ----------------------------------------------------------------------------
if __name__ == "__main__":
    OBS_SIZE = 4       # input channels
    ACTION_SIZE = 6
    BATCH = 2          # >1 so training-mode BatchNorm is well-defined
    # spatial size is fixed at 84 by the architecture (fc1 expects 64*7*7)
    key = jax.random.PRNGKey(0)
    k_param, k_x = jax.random.split(key)
    params = init_params(k_param, OBS_SIZE, ACTION_SIZE)
    prep = prepare_params(params)          # one-time packing, outside jit
    x = jax.random.normal(k_x, (BATCH, OBS_SIZE, 84, 84), jnp.float32)

    probs = net_forward(prep, x)
    jax.block_until_ready(probs)

    assert probs.shape == (BATCH, ACTION_SIZE)
    assert bool(jnp.all(jnp.isfinite(probs)))
    assert bool(jnp.all(jnp.abs(jnp.sum(probs, axis=1) - 1.0) < 1e-3))
    print("KERNEL_OK")
</pallas_src>

<mosaic_0001>
module attributes {stable_mosaic.version = 11 : i64} {
  func.func @_fused_layer_kernel(%arg0: i32, %arg1: memref<400x256xbf16, #tpu.memory_space<vmem>>, %arg2: memref<256x32xbf16, #tpu.memory_space<vmem>>, %arg3: memref<1x32xf32, #tpu.memory_space<vmem>>, %arg4: memref<1x32xf32, #tpu.memory_space<vmem>>, %arg5: memref<1x32xf32, #tpu.memory_space<vmem>>, %arg6: memref<800x32xbf16, #tpu.memory_space<vmem>>, %arg7: memref<800x32xf32, #tpu.memory_space<vmem>>, %arg8: memref<1x32xf32, #tpu.memory_space<vmem>>, %arg9: memref<1x32xf32, #tpu.memory_space<vmem>>) attributes {dimension_semantics = [#tpu.dimension_semantics<arbitrary>], iteration_bounds = array<i64: 2>, scalar_prefetch = 0 : i64, scratch_operands = 3 : i64, tpu.core_type = #tpu.core_type<tc>, window_params = [{transform_indices = @transform_0, window_bounds = array<i64: 400, 256>}, {pipeline_mode = #tpu.pipeline_mode<synchronous>, transform_indices = @transform_1, window_bounds = array<i64: 256, 32>}, {pipeline_mode = #tpu.pipeline_mode<synchronous>, transform_indices = @transform_2, window_bounds = array<i64: 1, 32>}, {pipeline_mode = #tpu.pipeline_mode<synchronous>, transform_indices = @transform_3, window_bounds = array<i64: 1, 32>}, {pipeline_mode = #tpu.pipeline_mode<synchronous>, transform_indices = @transform_4, window_bounds = array<i64: 1, 32>}, {pipeline_mode = #tpu.pipeline_mode<synchronous>, transform_indices = @transform_5, window_bounds = array<i64: 800, 32>}]} {
    %c0 = arith.constant 0 : index
    %c0_0 = arith.constant 0 : index
    %0 = vector.load %arg1[%c0, %c0_0] : memref<400x256xbf16, #tpu.memory_space<vmem>>, vector<400x256xbf16>
    %c0_1 = arith.constant 0 : index
    %c0_2 = arith.constant 0 : index
    %1 = vector.load %arg2[%c0_1, %c0_2] : memref<256x32xbf16, #tpu.memory_space<vmem>>, vector<256x32xbf16>
    %cst = arith.constant dense<0.000000e+00> : vector<400x32xf32>
    %2 = tpu.matmul %0, %1, %cst {dimension_numbers = #tpu.dot_dimension_numbers<[1], [0], [0], [1], [0, 0, 1, 1], [], []>} : vector<400x256xbf16>, vector<256x32xbf16>, vector<400x32xf32> -> vector<400x32xf32>
    %c0_3 = arith.constant 0 : index
    %c0_4 = arith.constant 0 : index
    %3 = vector.load %arg3[%c0_3, %c0_4] : memref<1x32xf32, #tpu.memory_space<vmem>>, vector<1x32xf32>
    %4 = vector.broadcast %3 : vector<1x32xf32> to vector<400x32xf32>
    %5 = arith.addf %2, %4 : vector<400x32xf32>
    %cst_5 = arith.constant 0.000000e+00 : f32
    %6 = vector.broadcast %cst_5 : f32 to vector<400x32xf32>
    %7 = arith.maximumf %5, %6 : vector<400x32xf32>
    %c0_i32 = arith.constant 0 : i32
    %8 = arith.cmpi eq, %arg0, %c0_i32 : i32
    %9 = arith.extui %8 : i1 to i32
    %c0_i32_6 = arith.constant 0 : i32
    %10 = arith.cmpi ne, %9, %c0_i32_6 : i32
    scf.if %10 {
      %cst_19 = arith.constant 0.000000e+00 : f32
      %29 = vector.broadcast %cst_19 : f32 to vector<1x32xf32>
      %c0_20 = arith.constant 0 : index
      %c0_21 = arith.constant 0 : index
      %30 = vector.load %arg8[%c0_20, %c0_21] : memref<1x32xf32, #tpu.memory_space<vmem>>, vector<1x32xf32>
      tpu.vector_store %arg8[%c0_20, %c0_21], %29 {strides = array<i32>} : memref<1x32xf32, #tpu.memory_space<vmem>>, vector<1x32xf32>,
      %cst_22 = arith.constant 0.000000e+00 : f32
      %31 = vector.broadcast %cst_22 : f32 to vector<1x32xf32>
      %c0_23 = arith.constant 0 : index
      %c0_24 = arith.constant 0 : index
      %32 = vector.load %arg9[%c0_23, %c0_24] : memref<1x32xf32, #tpu.memory_space<vmem>>, vector<1x32xf32>
      tpu.vector_store %arg9[%c0_23, %c0_24], %31 {strides = array<i32>} : memref<1x32xf32, #tpu.memory_space<vmem>>, vector<1x32xf32>,
    } else {
    }
    %c0_7 = arith.constant 0 : index
    %c0_8 = arith.constant 0 : index
    %11 = vector.load %arg8[%c0_7, %c0_8] : memref<1x32xf32, #tpu.memory_space<vmem>>, vector<1x32xf32>
    %cst_9 = arith.constant dense<0.000000e+00> : vector<32xf32>
    %12 = vector.multi_reduction <add>, %7, %cst_9 [0] : vector<400x32xf32> to vector<32xf32>
    %13 = vector.shape_cast %12 : vector<32xf32> to vector<1x32xf32>
    %14 = arith.addf %11, %13 : vector<1x32xf32>
    %c0_10 = arith.constant 0 : index
    %c0_11 = arith.constant 0 : index
    %15 = vector.load %arg8[%c0_10, %c0_11] : memref<1x32xf32, #tpu.memory_space<vmem>>, vector<1x32xf32>
    tpu.vector_store %arg8[%c0_10, %c0_11], %14 {strides = array<i32>} : memref<1x32xf32, #tpu.memory_space<vmem>>, vector<1x32xf32>,
    %c0_12 = arith.constant 0 : index
    %c0_13 = arith.constant 0 : index
    %16 = vector.load %arg9[%c0_12, %c0_13] : memref<1x32xf32, #tpu.memory_space<vmem>>, vector<1x32xf32>
    %17 = arith.mulf %7, %7 : vector<400x32xf32>
    %cst_14 = arith.constant dense<0.000000e+00> : vector<32xf32>
    %18 = vector.multi_reduction <add>, %17, %cst_14 [0] : vector<400x32xf32> to vector<32xf32>
    %19 = vector.shape_cast %18 : vector<32xf32> to vector<1x32xf32>
    %20 = arith.addf %16, %19 : vector<1x32xf32>
    %c0_15 = arith.constant 0 : index
    %c0_16 = arith.constant 0 : index
    %21 = vector.load %arg9[%c0_15, %c0_16] : memref<1x32xf32, #tpu.memory_space<vmem>>, vector<1x32xf32>
    tpu.vector_store %arg9[%c0_15, %c0_16], %20 {strides = array<i32>} : memref<1x32xf32, #tpu.memory_space<vmem>>, vector<1x32xf32>,
    %c400_i32 = arith.constant 400 : i32
    %22 = arith.muli %arg0, %c400_i32 : i32
    %23 = tpu.assume_multiple %22, 8 : i32
    %24 = arith.index_cast %23 : i32 to index
    %c0_17 = arith.constant 0 : index
    %25 = vector.load %arg7[%24, %c0_17] : memref<800x32xf32, #tpu.memory_space<vmem>>, vector<400x32xf32>
    tpu.vector_store %arg7[%24, %c0_17], %7 {strides = array<i32>} : memref<800x32xf32, #tpu.memory_space<vmem>>, vector<400x32xf32>,
    %c1_i32 = arith.constant 1 : i32
    %26 = arith.cmpi eq, %arg0, %c1_i32 : i32
    %27 = arith.extui %26 : i1 to i32
    %c0_i32_18 = arith.constant 0 : i32
    %28 = arith.cmpi ne, %27, %c0_i32_18 : i32
    scf.if %28 {
      %c0_19 = arith.constant 0 : index
      %c0_20 = arith.constant 0 : index
      %29 = vector.load %arg8[%c0_19, %c0_20] : memref<1x32xf32, #tpu.memory_space<vmem>>, vector<1x32xf32>
      %cst_21 = arith.constant 1.250000e-03 : f32
      %30 = vector.broadcast %cst_21 : f32 to vector<1x32xf32>
      %31 = arith.mulf %29, %30 : vector<1x32xf32>
      %c0_22 = arith.constant 0 : index
      %c0_23 = arith.constant 0 : index
      %32 = vector.load %arg9[%c0_22, %c0_23] : memref<1x32xf32, #tpu.memory_space<vmem>>, vector<1x32xf32>
      %cst_24 = arith.constant 1.250000e-03 : f32
      %33 = vector.broadcast %cst_24 : f32 to vector<1x32xf32>
      %34 = arith.mulf %32, %33 : vector<1x32xf32>
      %35 = arith.mulf %31, %31 : vector<1x32xf32>
      %36 = arith.subf %34, %35 : vector<1x32xf32>
      %cst_25 = arith.constant 9.99999974E-6 : f32
      %37 = vector.broadcast %cst_25 : f32 to vector<1x32xf32>
      %38 = arith.addf %36, %37 : vector<1x32xf32>
      %39 = math.rsqrt %38 : vector<1x32xf32>
      %c0_26 = arith.constant 0 : index
      %c0_27 = arith.constant 0 : index
      %40 = vector.load %arg7[%c0_26, %c0_27] : memref<800x32xf32, #tpu.memory_space<vmem>>, vector<800x32xf32>
      %41 = vector.broadcast %31 : vector<1x32xf32> to vector<800x32xf32>
      %42 = arith.subf %40, %41 : vector<800x32xf32>
      %c0_28 = arith.constant 0 : index
      %c0_29 = arith.constant 0 : index
      %43 = vector.load %arg4[%c0_28, %c0_29] : memref<1x32xf32, #tpu.memory_space<vmem>>, vector<1x32xf32>
      %44 = arith.mulf %39, %43 : vector<1x32xf32>
      %45 = vector.broadcast %44 : vector<1x32xf32> to vector<800x32xf32>
      %46 = arith.mulf %42, %45 : vector<800x32xf32>
      %c0_30 = arith.constant 0 : index
      %c0_31 = arith.constant 0 : index
      %47 = vector.load %arg5[%c0_30, %c0_31] : memref<1x32xf32, #tpu.memory_space<vmem>>, vector<1x32xf32>
      %48 = vector.broadcast %47 : vector<1x32xf32> to vector<800x32xf32>
      %49 = arith.addf %46, %48 : vector<800x32xf32>
      %50 = arith.truncf %49 : vector<800x32xf32> to vector<800x32xbf16>
      %c0_32 = arith.constant 0 : index
      %c0_33 = arith.constant 0 : index
      %51 = vector.load %arg6[%c0_32, %c0_33] : memref<800x32xbf16, #tpu.memory_space<vmem>>, vector<800x32xbf16>
      tpu.vector_store %arg6[%c0_32, %c0_33], %50 {strides = array<i32>} : memref<800x32xbf16, #tpu.memory_space<vmem>>, vector<800x32xbf16>,
    } else {
    }
    return
  }
  func.func @transform_0(%arg0: i32) -> (i32, i32) {
    %c0_i32 = arith.constant 0 : i32
    %c0_i32_0 = arith.constant 0 : i32
    return %arg0, %c0_i32 : i32, i32
  }
  func.func @transform_1(%arg0: i32) -> (i32, i32) {
    %c0_i32 = arith.constant 0 : i32
    %c0_i32_0 = arith.constant 0 : i32
    %c0_i32_1 = arith.constant 0 : i32
    return %c0_i32, %c0_i32_0 : i32, i32
  }
  func.func @transform_2(%arg0: i32) -> (i32, i32) {
    %c0_i32 = arith.constant 0 : i32
    %c0_i32_0 = arith.constant 0 : i32
    %c0_i32_1 = arith.constant 0 : i32
    return %c0_i32, %c0_i32_0 : i32, i32
  }
  func.func @transform_3(%arg0: i32) -> (i32, i32) {
    %c0_i32 = arith.constant 0 : i32
    %c0_i32_0 = arith.constant 0 : i32
    %c0_i32_1 = arith.constant 0 : i32
    return %c0_i32, %c0_i32_0 : i32, i32
  }
  func.func @transform_4(%arg0: i32) -> (i32, i32) {
    %c0_i32 = arith.constant 0 : i32
    %c0_i32_0 = arith.constant 0 : i32
    %c0_i32_1 = arith.constant 0 : i32
    return %c0_i32, %c0_i32_0 : i32, i32
  }
  func.func @transform_5(%arg0: i32) -> (i32, i32) {
    %c0_i32 = arith.constant 0 : i32
    %c0_i32_0 = arith.constant 0 : i32
    %c0_i32_1 = arith.constant 0 : i32
    return %c0_i32, %c0_i32_0 : i32, i32
  }
}

module attributes {stable_mosaic.version = 11 : i64} {
  func.func @_fused_layer_kernel(%arg0: i32, %arg1: memref<162x512xbf16, #tpu.memory_space<vmem>>, %arg2: memref<512x64xbf16, #tpu.memory_space<vmem>>, %arg3: memref<1x64xf32, #tpu.memory_space<vmem>>, %arg4: memref<1x64xf32, #tpu.memory_space<vmem>>, %arg5: memref<1x64xf32, #tpu.memory_space<vmem>>, %arg6: memref<162x64xbf16, #tpu.memory_space<vmem>>) attributes {dimension_semantics = [#tpu.dimension_semantics<arbitrary>], iteration_bounds = array<i64: 1>, scalar_prefetch = 0 : i64, scratch_operands = 0 : i64, tpu.core_type = #tpu.core_type<tc>, window_params = [{transform_indices = @transform_0, window_bounds = array<i64: 162, 512>}, {pipeline_mode = #tpu.pipeline_mode<synchronous>, transform_indices = @transform_1, window_bounds = array<i64: 512, 64>}, {pipeline_mode = #tpu.pipeline_mode<synchronous>, transform_indices = @transform_2, window_bounds = array<i64: 1, 64>}, {pipeline_mode = #tpu.pipeline_mode<synchronous>, transform_indices = @transform_3, window_bounds = array<i64: 1, 64>}, {pipeline_mode = #tpu.pipeline_mode<synchronous>, transform_indices = @transform_4, window_bounds = array<i64: 1, 64>}, {pipeline_mode = #tpu.pipeline_mode<synchronous>, transform_indices = @transform_5, window_bounds = array<i64: 162, 64>}]} {
    %c0 = arith.constant 0 : index
    %c0_0 = arith.constant 0 : index
    %0 = vector.load %arg1[%c0, %c0_0] : memref<162x512xbf16, #tpu.memory_space<vmem>>, vector<162x512xbf16>
    %c0_1 = arith.constant 0 : index
    %c0_2 = arith.constant 0 : index
    %1 = vector.load %arg2[%c0_1, %c0_2] : memref<512x64xbf16, #tpu.memory_space<vmem>>, vector<512x64xbf16>
    %cst = arith.constant dense<0.000000e+00> : vector<162x64xf32>
    %2 = tpu.matmul %0, %1, %cst {dimension_numbers = #tpu.dot_dimension_numbers<[1], [0], [0], [1], [0, 0, 1, 1], [], []>} : vector<162x512xbf16>, vector<512x64xbf16>, vector<162x64xf32> -> vector<162x64xf32>
    %c0_3 = arith.constant 0 : index
    %c0_4 = arith.constant 0 : index
    %3 = vector.load %arg3[%c0_3, %c0_4] : memref<1x64xf32, #tpu.memory_space<vmem>>, vector<1x64xf32>
    %4 = vector.broadcast %3 : vector<1x64xf32> to vector<162x64xf32>
    %5 = arith.addf %2, %4 : vector<162x64xf32>
    %cst_5 = arith.constant 0.000000e+00 : f32
    %6 = vector.broadcast %cst_5 : f32 to vector<162x64xf32>
    %7 = arith.maximumf %5, %6 : vector<162x64xf32>
    %cst_6 = arith.constant dense<0.000000e+00> : vector<64xf32>
    %8 = vector.multi_reduction <add>, %7, %cst_6 [0] : vector<162x64xf32> to vector<64xf32>
    %9 = vector.shape_cast %8 : vector<64xf32> to vector<1x64xf32>
    %cst_7 = arith.constant 0.00617283955 : f32
    %10 = vector.broadcast %cst_7 : f32 to vector<1x64xf32>
    %11 = arith.mulf %9, %10 : vector<1x64xf32>
    %12 = arith.mulf %7, %7 : vector<162x64xf32>
    %cst_8 = arith.constant dense<0.000000e+00> : vector<64xf32>
    %13 = vector.multi_reduction <add>, %12, %cst_8 [0] : vector<162x64xf32> to vector<64xf32>
    %14 = vector.shape_cast %13 : vector<64xf32> to vector<1x64xf32>
    %cst_9 = arith.constant 0.00617283955 : f32
    %15 = vector.broadcast %cst_9 : f32 to vector<1x64xf32>
    %16 = arith.mulf %14, %15 : vector<1x64xf32>
    %17 = arith.mulf %11, %11 : vector<1x64xf32>
    %18 = arith.subf %16, %17 : vector<1x64xf32>
    %cst_10 = arith.constant 9.99999974E-6 : f32
    %19 = vector.broadcast %cst_10 : f32 to vector<1x64xf32>
    %20 = arith.addf %18, %19 : vector<1x64xf32>
    %21 = math.rsqrt %20 : vector<1x64xf32>
    %22 = vector.broadcast %11 : vector<1x64xf32> to vector<162x64xf32>
    %23 = arith.subf %7, %22 : vector<162x64xf32>
    %c0_11 = arith.constant 0 : index
    %c0_12 = arith.constant 0 : index
    %24 = vector.load %arg4[%c0_11, %c0_12] : memref<1x64xf32, #tpu.memory_space<vmem>>, vector<1x64xf32>
    %25 = arith.mulf %21, %24 : vector<1x64xf32>
    %26 = vector.broadcast %25 : vector<1x64xf32> to vector<162x64xf32>
    %27 = arith.mulf %23, %26 : vector<162x64xf32>
    %c0_13 = arith.constant 0 : index
    %c0_14 = arith.constant 0 : index
    %28 = vector.load %arg5[%c0_13, %c0_14] : memref<1x64xf32, #tpu.memory_space<vmem>>, vector<1x64xf32>
    %29 = vector.broadcast %28 : vector<1x64xf32> to vector<162x64xf32>
    %30 = arith.addf %27, %29 : vector<162x64xf32>
    %31 = arith.truncf %30 : vector<162x64xf32> to vector<162x64xbf16>
    %c0_15 = arith.constant 0 : index
    %c0_16 = arith.constant 0 : index
    %32 = vector.load %arg6[%c0_15, %c0_16] : memref<162x64xbf16, #tpu.memory_space<vmem>>, vector<162x64xbf16>
    tpu.vector_store %arg6[%c0_15, %c0_16], %31 {strides = array<i32>} : memref<162x64xbf16, #tpu.memory_space<vmem>>, vector<162x64xbf16>,
    return
  }
  func.func @transform_0(%arg0: i32) -> (i32, i32) {
    %c0_i32 = arith.constant 0 : i32
    %c0_i32_0 = arith.constant 0 : i32
    return %arg0, %c0_i32 : i32, i32
  }
  func.func @transform_1(%arg0: i32) -> (i32, i32) {
    %c0_i32 = arith.constant 0 : i32
    %c0_i32_0 = arith.constant 0 : i32
    %c0_i32_1 = arith.constant 0 : i32
    return %c0_i32, %c0_i32_0 : i32, i32
  }
  func.func @transform_2(%arg0: i32) -> (i32, i32) {
    %c0_i32 = arith.constant 0 : i32
    %c0_i32_0 = arith.constant 0 : i32
    %c0_i32_1 = arith.constant 0 : i32
    return %c0_i32, %c0_i32_0 : i32, i32
  }
  func.func @transform_3(%arg0: i32) -> (i32, i32) {
    %c0_i32 = arith.constant 0 : i32
    %c0_i32_0 = arith.constant 0 : i32
    %c0_i32_1 = arith.constant 0 : i32
    return %c0_i32, %c0_i32_0 : i32, i32
  }
  func.func @transform_4(%arg0: i32) -> (i32, i32) {
    %c0_i32 = arith.constant 0 : i32
    %c0_i32_0 = arith.constant 0 : i32
    %c0_i32_1 = arith.constant 0 : i32
    return %c0_i32, %c0_i32_0 : i32, i32
  }
  func.func @transform_5(%arg0: i32) -> (i32, i32) {
    %c0_i32 = arith.constant 0 : i32
    %c0_i32_0 = arith.constant 0 : i32
    %c0_i32_1 = arith.constant 0 : i32
    return %c0_i32, %c0_i32_0 : i32, i32
  }
}

module attributes {stable_mosaic.version = 11 : i64} {
  func.func @_fused_layer_kernel(%arg0: i32, %arg1: memref<98x576xbf16, #tpu.memory_space<vmem>>, %arg2: memref<576x64xbf16, #tpu.memory_space<vmem>>, %arg3: memref<1x64xf32, #tpu.memory_space<vmem>>, %arg4: memref<1x64xf32, #tpu.memory_space<vmem>>, %arg5: memref<1x64xf32, #tpu.memory_space<vmem>>, %arg6: memref<98x64xbf16, #tpu.memory_space<vmem>>) attributes {dimension_semantics = [#tpu.dimension_semantics<arbitrary>], iteration_bounds = array<i64: 1>, scalar_prefetch = 0 : i64, scratch_operands = 0 : i64, tpu.core_type = #tpu.core_type<tc>, window_params = [{transform_indices = @transform_0, window_bounds = array<i64: 98, 576>}, {pipeline_mode = #tpu.pipeline_mode<synchronous>, transform_indices = @transform_1, window_bounds = array<i64: 576, 64>}, {pipeline_mode = #tpu.pipeline_mode<synchronous>, transform_indices = @transform_2, window_bounds = array<i64: 1, 64>}, {pipeline_mode = #tpu.pipeline_mode<synchronous>, transform_indices = @transform_3, window_bounds = array<i64: 1, 64>}, {pipeline_mode = #tpu.pipeline_mode<synchronous>, transform_indices = @transform_4, window_bounds = array<i64: 1, 64>}, {pipeline_mode = #tpu.pipeline_mode<synchronous>, transform_indices = @transform_5, window_bounds = array<i64: 98, 64>}]} {
    %c0 = arith.constant 0 : index
    %c0_0 = arith.constant 0 : index
    %0 = vector.load %arg1[%c0, %c0_0] : memref<98x576xbf16, #tpu.memory_space<vmem>>, vector<98x576xbf16>
    %c0_1 = arith.constant 0 : index
    %c0_2 = arith.constant 0 : index
    %1 = vector.load %arg2[%c0_1, %c0_2] : memref<576x64xbf16, #tpu.memory_space<vmem>>, vector<576x64xbf16>
    %cst = arith.constant dense<0.000000e+00> : vector<98x64xf32>
    %2 = tpu.matmul %0, %1, %cst {dimension_numbers = #tpu.dot_dimension_numbers<[1], [0], [0], [1], [0, 0, 1, 1], [], []>} : vector<98x576xbf16>, vector<576x64xbf16>, vector<98x64xf32> -> vector<98x64xf32>
    %c0_3 = arith.constant 0 : index
    %c0_4 = arith.constant 0 : index
    %3 = vector.load %arg3[%c0_3, %c0_4] : memref<1x64xf32, #tpu.memory_space<vmem>>, vector<1x64xf32>
    %4 = vector.broadcast %3 : vector<1x64xf32> to vector<98x64xf32>
    %5 = arith.addf %2, %4 : vector<98x64xf32>
    %cst_5 = arith.constant 0.000000e+00 : f32
    %6 = vector.broadcast %cst_5 : f32 to vector<98x64xf32>
    %7 = arith.maximumf %5, %6 : vector<98x64xf32>
    %cst_6 = arith.constant dense<0.000000e+00> : vector<64xf32>
    %8 = vector.multi_reduction <add>, %7, %cst_6 [0] : vector<98x64xf32> to vector<64xf32>
    %9 = vector.shape_cast %8 : vector<64xf32> to vector<1x64xf32>
    %cst_7 = arith.constant 0.0102040814 : f32
    %10 = vector.broadcast %cst_7 : f32 to vector<1x64xf32>
    %11 = arith.mulf %9, %10 : vector<1x64xf32>
    %12 = arith.mulf %7, %7 : vector<98x64xf32>
    %cst_8 = arith.constant dense<0.000000e+00> : vector<64xf32>
    %13 = vector.multi_reduction <add>, %12, %cst_8 [0] : vector<98x64xf32> to vector<64xf32>
    %14 = vector.shape_cast %13 : vector<64xf32> to vector<1x64xf32>
    %cst_9 = arith.constant 0.0102040814 : f32
    %15 = vector.broadcast %cst_9 : f32 to vector<1x64xf32>
    %16 = arith.mulf %14, %15 : vector<1x64xf32>
    %17 = arith.mulf %11, %11 : vector<1x64xf32>
    %18 = arith.subf %16, %17 : vector<1x64xf32>
    %cst_10 = arith.constant 9.99999974E-6 : f32
    %19 = vector.broadcast %cst_10 : f32 to vector<1x64xf32>
    %20 = arith.addf %18, %19 : vector<1x64xf32>
    %21 = math.rsqrt %20 : vector<1x64xf32>
    %22 = vector.broadcast %11 : vector<1x64xf32> to vector<98x64xf32>
    %23 = arith.subf %7, %22 : vector<98x64xf32>
    %c0_11 = arith.constant 0 : index
    %c0_12 = arith.constant 0 : index
    %24 = vector.load %arg4[%c0_11, %c0_12] : memref<1x64xf32, #tpu.memory_space<vmem>>, vector<1x64xf32>
    %25 = arith.mulf %21, %24 : vector<1x64xf32>
    %26 = vector.broadcast %25 : vector<1x64xf32> to vector<98x64xf32>
    %27 = arith.mulf %23, %26 : vector<98x64xf32>
    %c0_13 = arith.constant 0 : index
    %c0_14 = arith.constant 0 : index
    %28 = vector.load %arg5[%c0_13, %c0_14] : memref<1x64xf32, #tpu.memory_space<vmem>>, vector<1x64xf32>
    %29 = vector.broadcast %28 : vector<1x64xf32> to vector<98x64xf32>
    %30 = arith.addf %27, %29 : vector<98x64xf32>
    %31 = arith.truncf %30 : vector<98x64xf32> to vector<98x64xbf16>
    %c0_15 = arith.constant 0 : index
    %c0_16 = arith.constant 0 : index
    %32 = vector.load %arg6[%c0_15, %c0_16] : memref<98x64xbf16, #tpu.memory_space<vmem>>, vector<98x64xbf16>
    tpu.vector_store %arg6[%c0_15, %c0_16], %31 {strides = array<i32>} : memref<98x64xbf16, #tpu.memory_space<vmem>>, vector<98x64xbf16>,
    return
  }
  func.func @transform_0(%arg0: i32) -> (i32, i32) {
    %c0_i32 = arith.constant 0 : i32
    %c0_i32_0 = arith.constant 0 : i32
    return %arg0, %c0_i32 : i32, i32
  }
  func.func @transform_1(%arg0: i32) -> (i32, i32) {
    %c0_i32 = arith.constant 0 : i32
    %c0_i32_0 = arith.constant 0 : i32
    %c0_i32_1 = arith.constant 0 : i32
    return %c0_i32, %c0_i32_0 : i32, i32
  }
  func.func @transform_2(%arg0: i32) -> (i32, i32) {
    %c0_i32 = arith.constant 0 : i32
    %c0_i32_0 = arith.constant 0 : i32
    %c0_i32_1 = arith.constant 0 : i32
    return %c0_i32, %c0_i32_0 : i32, i32
  }
  func.func @transform_3(%arg0: i32) -> (i32, i32) {
    %c0_i32 = arith.constant 0 : i32
    %c0_i32_0 = arith.constant 0 : i32
    %c0_i32_1 = arith.constant 0 : i32
    return %c0_i32, %c0_i32_0 : i32, i32
  }
  func.func @transform_4(%arg0: i32) -> (i32, i32) {
    %c0_i32 = arith.constant 0 : i32
    %c0_i32_0 = arith.constant 0 : i32
    %c0_i32_1 = arith.constant 0 : i32
    return %c0_i32, %c0_i32_0 : i32, i32
  }
  func.func @transform_5(%arg0: i32) -> (i32, i32) {
    %c0_i32 = arith.constant 0 : i32
    %c0_i32_0 = arith.constant 0 : i32
    %c0_i32_1 = arith.constant 0 : i32
    return %c0_i32, %c0_i32_0 : i32, i32
  }
}

module attributes {stable_mosaic.version = 11 : i64} {
  func.func @_fused_layer_kernel(%arg0: i32, %arg1: memref<2x3136xbf16, #tpu.memory_space<vmem>>, %arg2: memref<3136x512xbf16, #tpu.memory_space<vmem>>, %arg3: memref<1x512xf32, #tpu.memory_space<vmem>>, %arg4: memref<1x512xf32, #tpu.memory_space<vmem>>, %arg5: memref<1x512xf32, #tpu.memory_space<vmem>>, %arg6: memref<2x512xbf16, #tpu.memory_space<vmem>>) attributes {dimension_semantics = [#tpu.dimension_semantics<arbitrary>], iteration_bounds = array<i64: 1>, scalar_prefetch = 0 : i64, scratch_operands = 0 : i64, tpu.core_type = #tpu.core_type<tc>, window_params = [{transform_indices = @transform_0, window_bounds = array<i64: 2, 3136>}, {pipeline_mode = #tpu.pipeline_mode<synchronous>, transform_indices = @transform_1, window_bounds = array<i64: 3136, 512>}, {pipeline_mode = #tpu.pipeline_mode<synchronous>, transform_indices = @transform_2, window_bounds = array<i64: 1, 512>}, {pipeline_mode = #tpu.pipeline_mode<synchronous>, transform_indices = @transform_3, window_bounds = array<i64: 1, 512>}, {pipeline_mode = #tpu.pipeline_mode<synchronous>, transform_indices = @transform_4, window_bounds = array<i64: 1, 512>}, {pipeline_mode = #tpu.pipeline_mode<synchronous>, transform_indices = @transform_5, window_bounds = array<i64: 2, 512>}]} {
    %c0 = arith.constant 0 : index
    %c0_0 = arith.constant 0 : index
    %0 = vector.load %arg1[%c0, %c0_0] : memref<2x3136xbf16, #tpu.memory_space<vmem>>, vector<2x3136xbf16>
    %c0_1 = arith.constant 0 : index
    %c0_2 = arith.constant 0 : index
    %1 = vector.load %arg2[%c0_1, %c0_2] : memref<3136x512xbf16, #tpu.memory_space<vmem>>, vector<3136x512xbf16>
    %cst = arith.constant dense<0.000000e+00> : vector<2x512xf32>
    %2 = tpu.matmul %0, %1, %cst {dimension_numbers = #tpu.dot_dimension_numbers<[1], [0], [0], [1], [0, 0, 1, 1], [], []>} : vector<2x3136xbf16>, vector<3136x512xbf16>, vector<2x512xf32> -> vector<2x512xf32>
    %c0_3 = arith.constant 0 : index
    %c0_4 = arith.constant 0 : index
    %3 = vector.load %arg3[%c0_3, %c0_4] : memref<1x512xf32, #tpu.memory_space<vmem>>, vector<1x512xf32>
    %4 = vector.broadcast %3 : vector<1x512xf32> to vector<2x512xf32>
    %5 = arith.addf %2, %4 : vector<2x512xf32>
    %cst_5 = arith.constant 0.000000e+00 : f32
    %6 = vector.broadcast %cst_5 : f32 to vector<2x512xf32>
    %7 = arith.maximumf %5, %6 : vector<2x512xf32>
    %cst_6 = arith.constant dense<0.000000e+00> : vector<512xf32>
    %8 = vector.multi_reduction <add>, %7, %cst_6 [0] : vector<2x512xf32> to vector<512xf32>
    %9 = vector.shape_cast %8 : vector<512xf32> to vector<1x512xf32>
    %cst_7 = arith.constant 5.000000e-01 : f32
    %10 = vector.broadcast %cst_7 : f32 to vector<1x512xf32>
    %11 = arith.mulf %9, %10 : vector<1x512xf32>
    %12 = arith.mulf %7, %7 : vector<2x512xf32>
    %cst_8 = arith.constant dense<0.000000e+00> : vector<512xf32>
    %13 = vector.multi_reduction <add>, %12, %cst_8 [0] : vector<2x512xf32> to vector<512xf32>
    %14 = vector.shape_cast %13 : vector<512xf32> to vector<1x512xf32>
    %cst_9 = arith.constant 5.000000e-01 : f32
    %15 = vector.broadcast %cst_9 : f32 to vector<1x512xf32>
    %16 = arith.mulf %14, %15 : vector<1x512xf32>
    %17 = arith.mulf %11, %11 : vector<1x512xf32>
    %18 = arith.subf %16, %17 : vector<1x512xf32>
    %cst_10 = arith.constant 9.99999974E-6 : f32
    %19 = vector.broadcast %cst_10 : f32 to vector<1x512xf32>
    %20 = arith.addf %18, %19 : vector<1x512xf32>
    %21 = math.rsqrt %20 : vector<1x512xf32>
    %22 = vector.broadcast %11 : vector<1x512xf32> to vector<2x512xf32>
    %23 = arith.subf %7, %22 : vector<2x512xf32>
    %c0_11 = arith.constant 0 : index
    %c0_12 = arith.constant 0 : index
    %24 = vector.load %arg4[%c0_11, %c0_12] : memref<1x512xf32, #tpu.memory_space<vmem>>, vector<1x512xf32>
    %25 = arith.mulf %21, %24 : vector<1x512xf32>
    %26 = vector.broadcast %25 : vector<1x512xf32> to vector<2x512xf32>
    %27 = arith.mulf %23, %26 : vector<2x512xf32>
    %c0_13 = arith.constant 0 : index
    %c0_14 = arith.constant 0 : index
    %28 = vector.load %arg5[%c0_13, %c0_14] : memref<1x512xf32, #tpu.memory_space<vmem>>, vector<1x512xf32>
    %29 = vector.broadcast %28 : vector<1x512xf32> to vector<2x512xf32>
    %30 = arith.addf %27, %29 : vector<2x512xf32>
    %31 = arith.truncf %30 : vector<2x512xf32> to vector<2x512xbf16>
    %c0_15 = arith.constant 0 : index
    %c0_16 = arith.constant 0 : index
    %32 = vector.load %arg6[%c0_15, %c0_16] : memref<2x512xbf16, #tpu.memory_space<vmem>>, vector<2x512xbf16>
    tpu.vector_store %arg6[%c0_15, %c0_16], %31 {strides = array<i32>} : memref<2x512xbf16, #tpu.memory_space<vmem>>, vector<2x512xbf16>,
    return
  }
  func.func @transform_0(%arg0: i32) -> (i32, i32) {
    %c0_i32 = arith.constant 0 : i32
    %c0_i32_0 = arith.constant 0 : i32
    return %arg0, %c0_i32 : i32, i32
  }
  func.func @transform_1(%arg0: i32) -> (i32, i32) {
    %c0_i32 = arith.constant 0 : i32
    %c0_i32_0 = arith.constant 0 : i32
    %c0_i32_1 = arith.constant 0 : i32
    return %c0_i32, %c0_i32_0 : i32, i32
  }
  func.func @transform_2(%arg0: i32) -> (i32, i32) {
    %c0_i32 = arith.constant 0 : i32
    %c0_i32_0 = arith.constant 0 : i32
    %c0_i32_1 = arith.constant 0 : i32
    return %c0_i32, %c0_i32_0 : i32, i32
  }
  func.func @transform_3(%arg0: i32) -> (i32, i32) {
    %c0_i32 = arith.constant 0 : i32
    %c0_i32_0 = arith.constant 0 : i32
    %c0_i32_1 = arith.constant 0 : i32
    return %c0_i32, %c0_i32_0 : i32, i32
  }
  func.func @transform_4(%arg0: i32) -> (i32, i32) {
    %c0_i32 = arith.constant 0 : i32
    %c0_i32_0 = arith.constant 0 : i32
    %c0_i32_1 = arith.constant 0 : i32
    return %c0_i32, %c0_i32_0 : i32, i32
  }
  func.func @transform_5(%arg0: i32) -> (i32, i32) {
    %c0_i32 = arith.constant 0 : i32
    %c0_i32_0 = arith.constant 0 : i32
    %c0_i32_1 = arith.constant 0 : i32
    return %c0_i32, %c0_i32_0 : i32, i32
  }
}

module attributes {stable_mosaic.version = 11 : i64} {
  func.func @_fc_softmax_kernel(%arg0: memref<2x512xbf16, #tpu.memory_space<vmem>>, %arg1: memref<512x6xbf16, #tpu.memory_space<vmem>>, %arg2: memref<1x6xf32, #tpu.memory_space<vmem>>, %arg3: memref<2x6xf32, #tpu.memory_space<vmem>>) attributes {dimension_semantics = [], scalar_prefetch = 0 : i64, scratch_operands = 0 : i64, tpu.core_type = #tpu.core_type<tc>} {
    %c0 = arith.constant 0 : index
    %c0_0 = arith.constant 0 : index
    %0 = vector.load %arg0[%c0, %c0_0] : memref<2x512xbf16, #tpu.memory_space<vmem>>, vector<2x512xbf16>
    %c0_1 = arith.constant 0 : index
    %c0_2 = arith.constant 0 : index
    %1 = vector.load %arg1[%c0_1, %c0_2] : memref<512x6xbf16, #tpu.memory_space<vmem>>, vector<512x6xbf16>
    %cst = arith.constant dense<0.000000e+00> : vector<2x6xf32>
    %2 = tpu.matmul %0, %1, %cst {dimension_numbers = #tpu.dot_dimension_numbers<[1], [0], [0], [1], [0, 0, 1, 1], [], []>} : vector<2x512xbf16>, vector<512x6xbf16>, vector<2x6xf32> -> vector<2x6xf32>
    %c0_3 = arith.constant 0 : index
    %c0_4 = arith.constant 0 : index
    %3 = vector.load %arg2[%c0_3, %c0_4] : memref<1x6xf32, #tpu.memory_space<vmem>>, vector<1x6xf32>
    %4 = vector.broadcast %3 : vector<1x6xf32> to vector<2x6xf32>
    %5 = arith.addf %2, %4 : vector<2x6xf32>
    %cst_5 = arith.constant dense<0xFF800000> : vector<2xf32>
    %6 = vector.multi_reduction <maximumf>, %5, %cst_5 [1] : vector<2x6xf32> to vector<2xf32>
    %7 = vector.shape_cast %6 : vector<2xf32> to vector<2x1xf32>
    %8 = vector.broadcast %7 : vector<2x1xf32> to vector<2x6xf32>
    %9 = arith.subf %5, %8 : vector<2x6xf32>
    %10 = math.exp %9 : vector<2x6xf32>
    %cst_6 = arith.constant dense<0.000000e+00> : vector<2xf32>
    %11 = vector.multi_reduction <add>, %10, %cst_6 [1] : vector<2x6xf32> to vector<2xf32>
    %12 = vector.shape_cast %11 : vector<2xf32> to vector<2x1xf32>
    %13 = tpu.reciprocal %12 : vector<2x1xf32> -> vector<2x1xf32>
    %14 = vector.broadcast %13 : vector<2x1xf32> to vector<2x6xf32>
    %15 = arith.mulf %10, %14 : vector<2x6xf32>
    %c0_7 = arith.constant 0 : index
    %c0_8 = arith.constant 0 : index
    %16 = vector.load %arg3[%c0_7, %c0_8] : memref<2x6xf32, #tpu.memory_space<vmem>>, vector<2x6xf32>
    tpu.vector_store %arg3[%c0_7, %c0_8], %15 {strides = array<i32>} : memref<2x6xf32, #tpu.memory_space<vmem>>, vector<2x6xf32>,
    return
  }
}

</mosaic_0001>

<llo_original>
// kernel: net_forward.5
$region0: #{net_forward.5}
  #allocation0 [shape = 'u32[]', space=smem, size = 0x4, offset = 0x4, fixed_abs, tag = 'smem constant byte address 0x4 - core index']
  #allocation1 [shape = 'u32[72,128]{1,0:T(1,128)}', space=vmem, size = 0x9000, scoped, tag = 'internal scratch']
  #allocation2 [shape = 'f32[800,32]{1,0:T(8,128)}', space=vmem, size = 0x64000, scoped, tag = 'scratch operand']
  #allocation3 [shape = 'f32[1,32]{1,0:T(1,128)}', space=vmem, size = 0x200, scoped, tag = 'scratch operand']
  #allocation4 [shape = 'f32[1,32]{1,0:T(1,128)}', space=vmem, size = 0x200, scoped, tag = 'scratch operand']
  %s0 = inlined_call_operand.vmem [shape: bf16[800,256], index: 0, kind: input, shape index: {}]
  %s1 = inlined_call_operand.vmem [shape: bf16[256,32], index: 1, kind: input, shape index: {}]
  %s2 = inlined_call_operand.vmem [shape: f32[1,32], index: 2, kind: input, shape index: {}]
  %s3 = inlined_call_operand.vmem [shape: f32[1,32], index: 3, kind: input, shape index: {}]
  %s4 = inlined_call_operand.vmem [shape: f32[1,32], index: 4, kind: input, shape index: {}]
  %s5 = inlined_call_operand.vmem [shape: bf16[800,32], index: 5, kind: output, shape index: {}]
  %s6 = sld [smem:[#allocation0]]
  $region61: #{net_forward.5} parent=0
    _
  %s8 = ssub.s32 1, %s6
  %s9 = scalar_select 0, %s8, %s6
  loop: start=0, step=1, limit=4
  $region2: #{net_forward.5} parent=0 // loop_pre_header
    _
  $region3: #{net_forward.5} parent=0 // loop_header
    %s11 = sphi 0, %s15
    %p12 = scmp.ge.s32.totalorder %s11, 4
    %s21 = sphi 0, %s23
    %s24 = sphi 0, %s21
    %s25 = sphi 0, %s24
    %s41 = sphi 0, %s25
    %s45 = sphi 0, %s45
    %s47 = sphi 0, %s45
    %s48 = sphi 0, %s47
    %s62 = sphi 0, %s48
    %s66 = sphi 0, %s66
    %s68 = sphi 0, %s66
    %s69 = sphi 0, %s68
    %s83 = sphi 0, %s69
    %s87 = sphi 0, %s87
    %s89 = sphi 0, %s87
    %s90 = sphi 0, %s89
    %s104 = sphi 0, %s90
    %s108 = sphi 0, %s108
    %s110 = sphi 0, %s108
    %s111 = sphi 0, %s110
    %s125 = sphi 0, %s111
    %s129 = sphi 0, %s129
    %s131 = sphi 0, %s129
    %s132 = sphi 0, %s131
    %s146 = sphi 0, %s132
  $region4: #{net_forward.5} parent=0 // loop_header_branch
    %14 = sbr.rel (%p12) target = $region8
  $region5: #{net_forward.5} parent=0 // loop_body
    %s16 = ssub.s32 %s11, 1
    %s17 = ssub.s32 %s11, 2
    %s18 = sadd.s32 %s11, 1
    %s19 = ssub.s32 %s11, %s18
    %p20 = scmp.eq.s32.totalorder %s19, 0
    %s22 = sadd.s32 %s21, 1
    %s23 = scalar_select %p20, %s21, %s22
    %p26 = pneg %p20
    %p27 = scmp.eq.s32.totalorder %s11, 1
    %p28 = por %p26, %p27
    %p29 = scmp.ne.s32.totalorder %s21, %s24
    %p30 = scmp.eq.s32.totalorder %s11, 0
    %p31 = por %p29, %p30
    %p32 = scmp.ne.s32.totalorder %s21, %s24
    %p33 = scmp.eq.s32.totalorder %s16, 1
    %p34 = por %p32, %p33
    %p35 = scmp.ne.s32.totalorder %s24, %s25
    %p36 = scmp.eq.s32.totalorder %s16, 0
    %p37 = por %p35, %p36
    %p38 = scmp.ne.s32.totalorder %s24, %s25
    %p39 = scmp.eq.s32.totalorder %s17, 1
    %p40 = por %p38, %p39
    %p42 = scmp.ne.s32.totalorder %s25, %s41
    %p43 = scmp.eq.s32.totalorder %s17, 0
    %p44 = por %p42, %p43
    %s46 = sadd.s32 %s45, 1
    %p49 = scmp.eq.s32.totalorder %s11, 1
    %p50 = scmp.ne.s32.totalorder %s45, %s47
    %p51 = scmp.eq.s32.totalorder %s11, 0
    %p52 = por %p50, %p51
    %p53 = scmp.ne.s32.totalorder %s45, %s47
    %p54 = scmp.eq.s32.totalorder %s16, 1
    %p55 = por %p53, %p54
    %p56 = scmp.ne.s32.totalorder %s47, %s48
    %p57 = scmp.eq.s32.totalorder %s16, 0
    %p58 = por %p56, %p57
    %p59 = scmp.ne.s32.totalorder %s47, %s48
    %p60 = scmp.eq.s32.totalorder %s17, 1
    %p61 = por %p59, %p60
    %p63 = scmp.ne.s32.totalorder %s48, %s62
    %p64 = scmp.eq.s32.totalorder %s17, 0
    %p65 = por %p63, %p64
    %s67 = sadd.s32 %s66, 1
    %p70 = scmp.eq.s32.totalorder %s11, 1
    %p71 = scmp.ne.s32.totalorder %s66, %s68
    %p72 = scmp.eq.s32.totalorder %s11, 0
    %p73 = por %p71, %p72
    %p74 = scmp.ne.s32.totalorder %s66, %s68
    %p75 = scmp.eq.s32.totalorder %s16, 1
    %p76 = por %p74, %p75
    %p77 = scmp.ne.s32.totalorder %s68, %s69
    %p78 = scmp.eq.s32.totalorder %s16, 0
    %p79 = por %p77, %p78
    %p80 = scmp.ne.s32.totalorder %s68, %s69
    %p81 = scmp.eq.s32.totalorder %s17, 1
    %p82 = por %p80, %p81
    %p84 = scmp.ne.s32.totalorder %s69, %s83
    %p85 = scmp.eq.s32.totalorder %s17, 0
    %p86 = por %p84, %p85
    %s88 = sadd.s32 %s87, 1
    %p91 = scmp.eq.s32.totalorder %s11, 1
    %p92 = scmp.ne.s32.totalorder %s87, %s89
    %p93 = scmp.eq.s32.totalorder %s11, 0
    %p94 = por %p92, %p93
    %p95 = scmp.ne.s32.totalorder %s87, %s89
    %p96 = scmp.eq.s32.totalorder %s16, 1
    %p97 = por %p95, %p96
    %p98 = scmp.ne.s32.totalorder %s89, %s90
    %p99 = scmp.eq.s32.totalorder %s16, 0
    %p100 = por %p98, %p99
    %p101 = scmp.ne.s32.totalorder %s89, %s90
    %p102 = scmp.eq.s32.totalorder %s17, 1
    %p103 = por %p101, %p102
    %p105 = scmp.ne.s32.totalorder %s90, %s104
    %p106 = scmp.eq.s32.totalorder %s17, 0
    %p107 = por %p105, %p106
    %s109 = sadd.s32 %s108, 1
    %p112 = scmp.eq.s32.totalorder %s11, 1
    %p113 = scmp.ne.s32.totalorder %s108, %s110
    %p114 = scmp.eq.s32.totalorder %s11, 0
    %p115 = por %p113, %p114
    %p116 = scmp.ne.s32.totalorder %s108, %s110
    %p117 = scmp.eq.s32.totalorder %s16, 1
    %p118 = por %p116, %p117
    %p119 = scmp.ne.s32.totalorder %s110, %s111
    %p120 = scmp.eq.s32.totalorder %s16, 0
    %p121 = por %p119, %p120
    %p122 = scmp.ne.s32.totalorder %s110, %s111
    %p123 = scmp.eq.s32.totalorder %s17, 1
    %p124 = por %p122, %p123
    %p126 = scmp.ne.s32.totalorder %s111, %s125
    %p127 = scmp.eq.s32.totalorder %s17, 0
    %p128 = por %p126, %p127
    %s130 = sadd.s32 %s129, 1
    %p133 = scmp.eq.s32.totalorder %s11, 1
    %p134 = scmp.ne.s32.totalorder %s129, %s131
    %p135 = scmp.eq.s32.totalorder %s11, 0
    %p136 = por %p134, %p135
    %p137 = scmp.ne.s32.totalorder %s129, %s131
    %p138 = scmp.eq.s32.totalorder %s16, 1
    %p139 = por %p137, %p138
    %p140 = scmp.ne.s32.totalorder %s131, %s132
    %p141 = scmp.eq.s32.totalorder %s16, 0
    %p142 = por %p140, %p141
    %p143 = scmp.ne.s32.totalorder %s131, %s132
    %p144 = scmp.eq.s32.totalorder %s17, 1
    %p145 = por %p143, %p144
    %p147 = scmp.ne.s32.totalorder %s132, %s146
    %p148 = scmp.eq.s32.totalorder %s17, 0
    %p149 = por %p147, %p148
    %p150 = scmp.le.s32.totalorder 1, %s11
    %p151 = scmp.lt.s32.totalorder %s11, 3
    %p152 = pnand %p150, %p151
    %p153 = pneg %p152
    // Predicated region
    $region9: #{net_forward.5} parent=5 // pred_check
      _
    $region10: #{net_forward.5} parent=5 // pred_check_branch
      %155 = sbr.rel (%p152) target = $region12
    $region11: #{net_forward.5} parent=5 // pred_region
      %s156 = ssub.s32 %s11, 1
      // Predicated region
      $region13: #{net_forward.5} parent=11 // pred_check
        %p157 = pneg %p58
      $region14: #{net_forward.5} parent=11 // pred_check_branch
        %159 = sbr.rel (%p157) target = $region16
      $region15: #{net_forward.5} parent=11 // pred_region
        _
      $region16: #{net_forward.5} parent=11 // pred_fallthru
        _
      // Predicated region
      $region17: #{net_forward.5} parent=11 // pred_check
        %p160 = pneg %p79
      $region18: #{net_forward.5} parent=11 // pred_check_branch
        %162 = sbr.rel (%p160) target = $region20
      $region19: #{net_forward.5} parent=11 // pred_region
        _
      $region20: #{net_forward.5} parent=11 // pred_fallthru
        _
      // Predicated region
      $region21: #{net_forward.5} parent=11 // pred_check
        %p163 = pneg %p100
      $region22: #{net_forward.5} parent=11 // pred_check_branch
        %165 = sbr.rel (%p163) target = $region24
      $region23: #{net_forward.5} parent=11 // pred_region
        _
      $region24: #{net_forward.5} parent=11 // pred_fallthru
        _
      // Predicated region
      $region25: #{net_forward.5} parent=11 // pred_check
        %p166 = pneg %p121
      $region26: #{net_forward.5} parent=11 // pred_check_branch
        %168 = sbr.rel (%p166) target = $region28
      $region27: #{net_forward.5} parent=11 // pred_region
        _
      $region28: #{net_forward.5} parent=11 // pred_fallthru
        _
    $region12: #{net_forward.5} parent=5 // pred_fallthru
      _
    %p169 = scmp.lt.s32.totalorder %s11, 2
    // Predicated region
    $region29: #{net_forward.5} parent=5 // pred_check
      %p170 = pneg %p169
    $region30: #{net_forward.5} parent=5 // pred_check_branch
      %172 = sbr.rel (%p170) target = $region32
    $region31: #{net_forward.5} parent=5 // pred_region
      // Predicated region
      $region33: #{net_forward.5} parent=31 // pred_check
        %p173 = pneg %p31
      $region34: #{net_forward.5} parent=31 // pred_check_branch
        %175 = sbr.rel (%p173) target = $region36
      $region35: #{net_forward.5} parent=31 // pred_region
        %s176 = smul.u32 50, %s11
        %p177 = scmp.lt.s32.totalorder %s176, 99
        %s178 = scalar_select %p177, %s176, 99
        %s179 = smul.addr %s178, 2
        %s180 = smul.addr %s179, 4
        %s181 = scalar_lea.vmem %s0, %s180
        %s182 = smul.u32 50, %s11
      $region36: #{net_forward.5} parent=31 // pred_fallthru
        _
    $region32: #{net_forward.5} parent=5 // pred_fallthru
      _
    %p183 = scmp.le.s32.totalorder 1, %s11
    %p184 = scmp.lt.s32.totalorder %s11, 3
    %p185 = pnand %p183, %p184
    %p186 = pneg %p185
    // Predicated region
    $region37: #{net_forward.5} parent=5 // pred_check
      _
    $region38: #{net_forward.5} parent=5 // pred_check_branch
      %188 = sbr.rel (%p185) target = $region40
    $region39: #{net_forward.5} parent=5 // pred_region
      %s189 = ssub.s32 %s11, 1
      %s190 = smul.u32 50, %s16
      %p191 = scmp.lt.s32.totalorder %s190, 99
      %s192 = scalar_select %p191, %s190, 99
      %s193 = smul.addr %s192, 2
      %s194 = smul.addr %s193, 4
      %s195 = scalar_lea.vmem %s0, %s194
      %p196 = pneg %p37
      %p197 = pneg %p34
      %p198 = pneg %p58
      %p199 = pneg %p55
      %p200 = pneg %p79
      %p201 = pneg %p76
      %p202 = pneg %p100
      %p203 = pneg %p97
      %p204 = pneg %p121
      %p205 = pneg %p118
      %p206 = pneg %p142
      %p207 = pneg %p139
      %s208 = smul.u32 50, %s16
      %p209 = scmp.lt.s32.totalorder %s208, 99
      %s210 = scalar_select %p209, %s208, 99
      %s211 = smul.addr %s210, 2
      %s212 = smul.addr %s211, 4
      %s213 = scalar_lea.vmem %s0, %s212
      %s214 = smul.u32 50, %s16
      %v215 = vld [vmem:[%s213] sm:$0xff]
      %v216 = vld [vmem:[%s213 + $0x8] sm:$0xff]
      %v217 = vld [vmem:[%s213 + $0x10] sm:$0xff]
      %v218 = vld [vmem:[%s213 + $0x18] sm:$0xff]
      %v219 = vld [vmem:[%s213 + $0x20] sm:$0xff]
      %v220 = vld [vmem:[%s213 + $0x28] sm:$0xff]
      %v221 = vld [vmem:[%s213 + $0x30] sm:$0xff]
      %v222 = vld [vmem:[%s213 + $0x38] sm:$0xff]
      %v223 = vld [vmem:[%s213 + $0x40] sm:$0xff]
      %v224 = vld [vmem:[%s213 + $0x48] sm:$0xff]
      %v225 = vld [vmem:[%s213 + $0x50] sm:$0xff]
      %v226 = vld [vmem:[%s213 + $0x58] sm:$0xff]
      %v227 = vld [vmem:[%s213 + $0x60] sm:$0xff]
      %v228 = vld [vmem:[%s213 + $0x68] sm:$0xff]
      %v229 = vld [vmem:[%s213 + $0x70] sm:$0xff]
      %v230 = vld [vmem:[%s213 + $0x78] sm:$0xff]
      %v231 = vld [vmem:[%s213 + $0x80] sm:$0xff]
      %v232 = vld [vmem:[%s213 + $0x88] sm:$0xff]
      %v233 = vld [vmem:[%s213 + $0x90] sm:$0xff]
      %v234 = vld [vmem:[%s213 + $0x98] sm:$0xff]
      %v235 = vld [vmem:[%s213 + $0xa0] sm:$0xff]
      %v236 = vld [vmem:[%s213 + $0xa8] sm:$0xff]
      %v237 = vld [vmem:[%s213 + $0xb0] sm:$0xff]
      %v238 = vld [vmem:[%s213 + $0xb8] sm:$0xff]
      %v239 = vld [vmem:[%s213 + $0xc0] sm:$0xff]
      %v240 = vld [vmem:[%s213 + $0xc8] sm:$0xff]
      %v241 = vld [vmem:[%s213 + $0xd0] sm:$0xff]
      %v242 = vld [vmem:[%s213 + $0xd8] sm:$0xff]
      %v243 = vld [vmem:[%s213 + $0xe0] sm:$0xff]
      %v244 = vld [vmem:[%s213 + $0xe8] sm:$0xff]
      %v245 = vld [vmem:[%s213 + $0xf0] sm:$0xff]
      %v246 = vld [vmem:[%s213 + $0xf8] sm:$0xff]
      %v247 = vld [vmem:[%s213 + $0x100] sm:$0xff]
      %v248 = vld [vmem:[%s213 + $0x108] sm:$0xff]
      %v249 = vld [vmem:[%s213 + $0x110] sm:$0xff]
      %v250 = vld [vmem:[%s213 + $0x118] sm:$0xff]
      %v251 = vld [vmem:[%s213 + $0x120] sm:$0xff]
      %v252 = vld [vmem:[%s213 + $0x128] sm:$0xff]
      %v253 = vld [vmem:[%s213 + $0x130] sm:$0xff]
      %v254 = vld [vmem:[%s213 + $0x138] sm:$0xff]
      %v255 = vld [vmem:[%s213 + $0x140] sm:$0xff]
      %v256 = vld [vmem:[%s213 + $0x148] sm:$0xff]
      %v257 = vld [vmem:[%s213 + $0x150] sm:$0xff]
      %v258 = vld [vmem:[%s213 + $0x158] sm:$0xff]
      %v259 = vld [vmem:[%s213 + $0x160] sm:$0xff]
      %v260 = vld [vmem:[%s213 + $0x168] sm:$0xff]
      %v261 = vld [vmem:[%s213 + $0x170] sm:$0xff]
      %v262 = vld [vmem:[%s213 + $0x178] sm:$0xff]
      %v263 = vld [vmem:[%s213 + $0x180] sm:$0xff]
      %v264 = vld [vmem:[%s213 + $0x188] sm:$0xff]
      %v265 = vld [vmem:[%s1] sm:$0xf]
      %v266 = vld [vmem:[%s1 + $0x4] sm:$0xf]
      %v267 = vld [vmem:[%s1 + $0x8] sm:$0xf]
      %v268 = vld [vmem:[%s1 + $0xc] sm:$0xf]
      %v269 = vld [vmem:[%s1 + $0x10] sm:$0xf]
      %v270 = vld [vmem:[%s1 + $0x14] sm:$0xf]
      %v271 = vld [vmem:[%s1 + $0x18] sm:$0xf]
      %v272 = vld [vmem:[%s1 + $0x1c] sm:$0xf]
      %v273 = vld [vmem:[%s1 + $0x20] sm:$0xf]
      %v274 = vld [vmem:[%s1 + $0x24] sm:$0xf]
      %v275 = vld [vmem:[%s1 + $0x28] sm:$0xf]
      %v276 = vld [vmem:[%s1 + $0x2c] sm:$0xf]
      %v277 = vld [vmem:[%s1 + $0x30] sm:$0xf]
      %v278 = vld [vmem:[%s1 + $0x34] sm:$0xf]
      %v279 = vld [vmem:[%s1 + $0x38] sm:$0xf]
      %v280 = vld [vmem:[%s1 + $0x3c] sm:$0xf]
      %v281 = vld [vmem:[%s1 + $0x40] sm:$0xf]
      %v282 = vld [vmem:[%s1 + $0x44] sm:$0xf]
      %v283 = vld [vmem:[%s1 + $0x48] sm:$0xf]
      %v284 = vld [vmem:[%s1 + $0x4c] sm:$0xf]
      %v285 = vld [vmem:[%s1 + $0x50] sm:$0xf]
      %v286 = vld [vmem:[%s1 + $0x54] sm:$0xf]
      %v287 = vld [vmem:[%s1 + $0x58] sm:$0xf]
      %v288 = vld [vmem:[%s1 + $0x5c] sm:$0xf]
      %v289 = vld [vmem:[%s1 + $0x60] sm:$0xf]
      %v290 = vld [vmem:[%s1 + $0x64] sm:$0xf]
      %v291 = vld [vmem:[%s1 + $0x68] sm:$0xf]
      %v292 = vld [vmem:[%s1 + $0x6c] sm:$0xf]
      %v293 = vld [vmem:[%s1 + $0x70] sm:$0xf]
      %v294 = vld [vmem:[%s1 + $0x74] sm:$0xf]
      %v295 = vld [vmem:[%s1 + $0x78] sm:$0xf]
      %v296 = vld [vmem:[%s1 + $0x7c] sm:$0xf]
      %v297 = vld [vmem:[%s2] sm:$0x1]
      %v299 = vperm.slane %v297, 0
      %v351 = vunpack.c.l.b16 %v215
      %v352 = vunpack.c.h.b16 %v215
      %v353 = vunpack.c.l.b16 %v216
      %v354 = vunpack.c.h.b16 %v216
      %v355 = vunpack.c.l.b16 %v217
      %v356 = vunpack.c.h.b16 %v217
      %v357 = vunpack.c.l.b16 %v218
      %v358 = vunpack.c.h.b16 %v218
      %v359 = vunpack.c.l.b16 %v219
      %v360 = vunpack.c.h.b16 %v219
      %v361 = vunpack.c.l.b16 %v220
      %v362 = vunpack.c.h.b16 %v220
      %v363 = vunpack.c.l.b16 %v221
      %v364 = vunpack.c.h.b16 %v221
      %v365 = vunpack.c.l.b16 %v222
      %v366 = vunpack.c.h.b16 %v222
      %v367 = vunpack.c.l.b16 %v223
      %v368 = vunpack.c.h.b16 %v223
      %v369 = vunpack.c.l.b16 %v224
      %v370 = vunpack.c.h.b16 %v224
      %v371 = vunpack.c.l.b16 %v225
      %v372 = vunpack.c.h.b16 %v225
      %v373 = vunpack.c.l.b16 %v226
      %v374 = vunpack.c.h.b16 %v226
      %v375 = vunpack.c.l.b16 %v227
      %v376 = vunpack.c.h.b16 %v227
      %v377 = vunpack.c.l.b16 %v228
      %v378 = vunpack.c.h.b16 %v228
      %v379 = vunpack.c.l.b16 %v229
      %v380 = vunpack.c.h.b16 %v229
      %v381 = vunpack.c.l.b16 %v230
      %v382 = vunpack.c.h.b16 %v230
      %v383 = vunpack.c.l.b16 %v231
      %v384 = vunpack.c.h.b16 %v231
      %v385 = vunpack.c.l.b16 %v232
      %v386 = vunpack.c.h.b16 %v232
      %v387 = vunpack.c.l.b16 %v233
      %v388 = vunpack.c.h.b16 %v233
      %v389 = vunpack.c.l.b16 %v234
      %v390 = vunpack.c.h.b16 %v234
      %v391 = vunpack.c.l.b16 %v235
      %v392 = vunpack.c.h.b16 %v235
      %v393 = vunpack.c.l.b16 %v236
      %v394 = vunpack.c.h.b16 %v236
      %v395 = vunpack.c.l.b16 %v237
      %v396 = vunpack.c.h.b16 %v237
      %v397 = vunpack.c.l.b16 %v238
      %v398 = vunpack.c.h.b16 %v238
      %v399 = vunpack.c.l.b16 %v239
      %v400 = vunpack.c.h.b16 %v239
      %v401 = vunpack.c.l.b16 %v240
      %v402 = vunpack.c.h.b16 %v240
      %v403 = vunpack.c.l.b16 %v241
      %v404 = vunpack.c.h.b16 %v241
      %v405 = vunpack.c.l.b16 %v242
      %v406 = vunpack.c.h.b16 %v242
      %v407 = vunpack.c.l.b16 %v243
      %v408 = vunpack.c.h.b16 %v243
      %v409 = vunpack.c.l.b16 %v244
      %v410 = vunpack.c.h.b16 %v244
      %v411 = vunpack.c.l.b16 %v245
      %v412 = vunpack.c.h.b16 %v245
      %v413 = vunpack.c.l.b16 %v246
      %v414 = vunpack.c.h.b16 %v246
      %v415 = vunpack.c.l.b16 %v247
      %v416 = vunpack.c.h.b16 %v247
      %v417 = vunpack.c.l.b16 %v248
      %v418 = vunpack.c.h.b16 %v248
      %v419 = vunpack.c.l.b16 %v249
      %v420 = vunpack.c.h.b16 %v249
      %v421 = vunpack.c.l.b16 %v250
      %v422 = vunpack.c.h.b16 %v250
      %v423 = vunpack.c.l.b16 %v251
      %v424 = vunpack.c.h.b16 %v251
      %v425 = vunpack.c.l.b16 %v252
      %v426 = vunpack.c.h.b16 %v252
      %v427 = vunpack.c.l.b16 %v253
      %v428 = vunpack.c.h.b16 %v253
      %v429 = vunpack.c.l.b16 %v254
      %v430 = vunpack.c.h.b16 %v254
      %v431 = vunpack.c.l.b16 %v255
      %v432 = vunpack.c.h.b16 %v255
      %v433 = vunpack.c.l.b16 %v256
      %v434 = vunpack.c.h.b16 %v256
      %v435 = vunpack.c.l.b16 %v257
      %v436 = vunpack.c.h.b16 %v257
      %v437 = vunpack.c.l.b16 %v258
      %v438 = vunpack.c.h.b16 %v258
      %v439 = vunpack.c.l.b16 %v259
      %v440 = vunpack.c.h.b16 %v259
      %v441 = vunpack.c.l.b16 %v260
      %v442 = vunpack.c.h.b16 %v260
      %v443 = vunpack.c.l.b16 %v261
      %v444 = vunpack.c.h.b16 %v261
      %v445 = vunpack.c.l.b16 %v262
      %v446 = vunpack.c.h.b16 %v262
      %v447 = vunpack.c.l.b16 %v263
      %v448 = vunpack.c.h.b16 %v263
      %v449 = vunpack.c.l.b16 %v264
      %v450 = vunpack.c.h.b16 %v264
      %v451 = vpack.c.b16 %v353, %v351
      %v452 = vpack.c.b16 %v354, %v352
      %v453 = vpack.c.b16 %v357, %v355
      %v454 = vpack.c.b16 %v358, %v356
      %v455 = vpack.c.b16 %v361, %v359
      %v456 = vpack.c.b16 %v362, %v360
      %v457 = vpack.c.b16 %v365, %v363
      %v458 = vpack.c.b16 %v366, %v364
      %v459 = vpack.c.b16 %v369, %v367
      %v460 = vpack.c.b16 %v370, %v368
      %v461 = vpack.c.b16 %v373, %v371
      %v462 = vpack.c.b16 %v374, %v372
      %v463 = vpack.c.b16 %v377, %v375
      %v464 = vpack.c.b16 %v378, %v376
      %v465 = vpack.c.b16 %v381, %v379
      %v466 = vpack.c.b16 %v382, %v380
      %v467 = vpack.c.b16 %v385, %v383
      %v468 = vpack.c.b16 %v386, %v384
      %v469 = vpack.c.b16 %v389, %v387
      %v470 = vpack.c.b16 %v390, %v388
      %v471 = vpack.c.b16 %v393, %v391
      %v472 = vpack.c.b16 %v394, %v392
      %v473 = vpack.c.b16 %v397, %v395
      %v474 = vpack.c.b16 %v398, %v396
      %v475 = vpack.c.b16 %v401, %v399
      %v476 = vpack.c.b16 %v402, %v400
      %v477 = vpack.c.b16 %v405, %v403
      %v478 = vpack.c.b16 %v406, %v404
      %v479 = vpack.c.b16 %v409, %v407
      %v480 = vpack.c.b16 %v410, %v408
      %v481 = vpack.c.b16 %v413, %v411
      %v482 = vpack.c.b16 %v414, %v412
      %v483 = vpack.c.b16 %v417, %v415
      %v484 = vpack.c.b16 %v418, %v416
      %v485 = vpack.c.b16 %v421, %v419
      %v486 = vpack.c.b16 %v422, %v420
      %v487 = vpack.c.b16 %v425, %v423
      %v488 = vpack.c.b16 %v426, %v424
      %v489 = vpack.c.b16 %v429, %v427
      %v490 = vpack.c.b16 %v430, %v428
      %v491 = vpack.c.b16 %v433, %v431
      %v492 = vpack.c.b16 %v434, %v432
      %v493 = vpack.c.b16 %v437, %v435
      %v494 = vpack.c.b16 %v438, %v436
      %v495 = vpack.c.b16 %v441, %v439
      %v496 = vpack.c.b16 %v442, %v440
      %v497 = vpack.c.b16 %v445, %v443
      %v498 = vpack.c.b16 %v446, %v444
      %v499 = vpack.c.b16 %v449, %v447
      %v500 = vpack.c.b16 %v450, %v448
      %v583 = vunpack.c.l.b16 %v265
      %v584 = vunpack.c.l.b16 %v266
      %v585 = vunpack.c.l.b16 %v267
      %v586 = vunpack.c.l.b16 %v268
      %v587 = vunpack.c.l.b16 %v269
      %v588 = vunpack.c.l.b16 %v270
      %v589 = vunpack.c.l.b16 %v271
      %v590 = vunpack.c.l.b16 %v272
      %v591 = vunpack.c.l.b16 %v273
      %v592 = vunpack.c.l.b16 %v274
      %v593 = vunpack.c.l.b16 %v275
      %v594 = vunpack.c.l.b16 %v276
      %v595 = vunpack.c.l.b16 %v277
      %v596 = vunpack.c.l.b16 %v278
      %v597 = vunpack.c.l.b16 %v279
      %v598 = vunpack.c.l.b16 %v280
      %v599 = vunpack.c.l.b16 %v281
      %v600 = vunpack.c.l.b16 %v282
      %v601 = vunpack.c.l.b16 %v283
      %v602 = vunpack.c.l.b16 %v284
      %v603 = vunpack.c.l.b16 %v285
      %v604 = vunpack.c.l.b16 %v286
      %v605 = vunpack.c.l.b16 %v287
      %v606 = vunpack.c.l.b16 %v288
      %v607 = vunpack.c.l.b16 %v289
      %v608 = vunpack.c.l.b16 %v290
      %v609 = vunpack.c.l.b16 %v291
      %v610 = vunpack.c.l.b16 %v292
      %v611 = vunpack.c.l.b16 %v293
      %v612 = vunpack.c.l.b16 %v294
      %v613 = vunpack.c.l.b16 %v295
      %v614 = vunpack.c.l.b16 %v296
      %v615 = vpack.c.b16 %v584, %v583
      %v616 = vpack.c.b16 %v586, %v585
      %v617 = vpack.c.b16 %v588, %v587
      %v618 = vpack.c.b16 %v590, %v589
      %v619 = vpack.c.b16 %v592, %v591
      %v620 = vpack.c.b16 %v594, %v593
      %v621 = vpack.c.b16 %v596, %v595
      %v622 = vpack.c.b16 %v598, %v597
      %v623 = vpack.c.b16 %v600, %v599
      %v624 = vpack.c.b16 %v602, %v601
      %v625 = vpack.c.b16 %v604, %v603
      %v626 = vpack.c.b16 %v606, %v605
      %v627 = vpack.c.b16 %v608, %v607
      %v628 = vpack.c.b16 %v610, %v609
      %v629 = vpack.c.b16 %v612, %v611
      %v630 = vpack.c.b16 %v614, %v613
      %647 = vmatpush.bf16.msra.mxu0 %v622
      %648 = vmatpush.bf16.msra.mxu0 %v621
      %649 = vmatpush.bf16.msra.mxu0 %v620
      %650 = vmatpush.bf16.msra.mxu0 %v619
      %651 = vmatpush.bf16.msra.mxu0 %v618
      %652 = vmatpush.bf16.msra.mxu0 %v617
      %653 = vmatpush.bf16.msra.mxu0 %v616
      %654 = vmatpush.bf16.msra.mxu0 %v615
      %655 = vmatmul.bf16.gmra.mxu0 %v451
      %v656 = vpop.f32.mrf.mxu0
      %v657 = vadd.f32 %v299, %v656
      %v658 = vpop.f32.mrf.mxu0
      %v659 = vadd.f32 %v299, %v658
      %660 = vmatmul.bf16.gmra.mxu0 %v453
      %v661 = vpop.f32.mrf.mxu0
      %v662 = vadd.f32 %v299, %v661
      %v663 = vpop.f32.mrf.mxu0
      %v664 = vadd.f32 %v299, %v663
      %665 = vmatmul.bf16.gmra.mxu0 %v455
      %v666 = vpop.f32.mrf.mxu0
      %v667 = vadd.f32 %v299, %v666
      %v668 = vpop.f32.mrf.mxu0
      %v669 = vadd.f32 %v299, %v668
      %670 = vmatmul.bf16.gmra.mxu0 %v457
      %v671 = vpop.f32.mrf.mxu0
      %v672 = vadd.f32 %v299, %v671
      %v673 = vpop.f32.mrf.mxu0
      %v674 = vadd.f32 %v299, %v673
      %675 = vmatmul.bf16.gmra.mxu0 %v459
      %v676 = vpop.f32.mrf.mxu0
      %v677 = vadd.f32 %v299, %v676
      %v678 = vpop.f32.mrf.mxu0
      %v679 = vadd.f32 %v299, %v678
      %680 = vmatmul.bf16.gmra.mxu0 %v461
      %v681 = vpop.f32.mrf.mxu0
      %v682 = vadd.f32 %v299, %v681
      %v683 = vpop.f32.mrf.mxu0
      %v684 = vadd.f32 %v299, %v683
      %685 = vmatmul.bf16.gmra.mxu0 %v463
      %v686 = vpop.f32.mrf.mxu0
      %v687 = vadd.f32 %v299, %v686
      %v688 = vpop.f32.mrf.mxu0
      %v689 = vadd.f32 %v299, %v688
      %690 = vmatmul.bf16.gmra.mxu0 %v465
      %v691 = vpop.f32.mrf.mxu0
      %v692 = vadd.f32 %v299, %v691
      %v693 = vpop.f32.mrf.mxu0
      %v694 = vadd.f32 %v299, %v693
      %695 = vmatmul.bf16.gmra.mxu0 %v467
      %v696 = vpop.f32.mrf.mxu0
      %v697 = vadd.f32 %v299, %v696
      %v698 = vpop.f32.mrf.mxu0
      %v699 = vadd.f32 %v299, %v698
      %700 = vmatmul.bf16.gmra.mxu0 %v469
      %v701 = vpop.f32.mrf.mxu0
      %v702 = vadd.f32 %v299, %v701
      %v703 = vpop.f32.mrf.mxu0
      %v704 = vadd.f32 %v299, %v703
      %705 = vmatmul.bf16.gmra.mxu0 %v471
      %v706 = vpop.f32.mrf.mxu0
      %v707 = vadd.f32 %v299, %v706
      %v708 = vpop.f32.mrf.mxu0
      %v709 = vadd.f32 %v299, %v708
      %710 = vmatmul.bf16.gmra.mxu0 %v473
      %v711 = vpop.f32.mrf.mxu0
      %v712 = vadd.f32 %v299, %v711
      %v713 = vpop.f32.mrf.mxu0
      %v714 = vadd.f32 %v299, %v713
      %715 = vmatmul.bf16.gmra.mxu0 %v475
      %v716 = vpop.f32.mrf.mxu0
      %v717 = vadd.f32 %v299, %v716
      %v718 = vpop.f32.mrf.mxu0
      %v719 = vadd.f32 %v299, %v718
      %720 = vmatmul.bf16.gmra.mxu0 %v477
      %v721 = vpop.f32.mrf.mxu0
      %v722 = vadd.f32 %v299, %v721
      %v723 = vpop.f32.mrf.mxu0
      %v724 = vadd.f32 %v299, %v723
      %725 = vmatmul.bf16.gmra.mxu0 %v479
      %v726 = vpop.f32.mrf.mxu0
      %v727 = vadd.f32 %v299, %v726
      %v728 = vpop.f32.mrf.mxu0
      %v729 = vadd.f32 %v299, %v728
      %730 = vmatmul.bf16.gmra.mxu0 %v481
      %v731 = vpop.f32.mrf.mxu0
      %v732 = vadd.f32 %v299, %v731
      %v733 = vpop.f32.mrf.mxu0
      %v734 = vadd.f32 %v299, %v733
      %735 = vmatmul.bf16.gmra.mxu0 %v483
      %v736 = vpop.f32.mrf.mxu0
      %v737 = vadd.f32 %v299, %v736
      %v738 = vpop.f32.mrf.mxu0
      %v739 = vadd.f32 %v299, %v738
      %740 = vmatmul.bf16.gmra.mxu0 %v485
      %v741 = vpop.f32.mrf.mxu0
      %v742 = vadd.f32 %v299, %v741
      %v743 = vpop.f32.mrf.mxu0
      %v744 = vadd.f32 %v299, %v743
      %745 = vmatmul.bf16.gmra.mxu0 %v487
      %v746 = vpop.f32.mrf.mxu0
      %v747 = vadd.f32 %v299, %v746
      %v748 = vpop.f32.mrf.mxu0
      %v749 = vadd.f32 %v299, %v748
      %750 = vmatmul.bf16.gmra.mxu0 %v489
      %v751 = vpop.f32.mrf.mxu0
      %v752 = vadd.f32 %v299, %v751
      %v753 = vpop.f32.mrf.mxu0
      %v754 = vadd.f32 %v299, %v753
      %755 = vmatmul.bf16.gmra.mxu0 %v491
      %v756 = vpop.f32.mrf.mxu0
      %v757 = vadd.f32 %v299, %v756
      %v758 = vpop.f32.mrf.mxu0
      %v759 = vadd.f32 %v299, %v758
      %760 = vmatmul.bf16.gmra.mxu0 %v493
      %v761 = vpop.f32.mrf.mxu0
      %v762 = vadd.f32 %v299, %v761
      %v763 = vpop.f32.mrf.mxu0
      %v764 = vadd.f32 %v299, %v763
      %765 = vmatmul.bf16.gmra.mxu0 %v495
      %v766 = vpop.f32.mrf.mxu0
      %v767 = vadd.f32 %v299, %v766
      %v768 = vpop.f32.mrf.mxu0
      %v769 = vadd.f32 %v299, %v768
      %770 = vmatmul.bf16.gmra.mxu0 %v497
      %v771 = vpop.f32.mrf.mxu0
      %v772 = vadd.f32 %v299, %v771
      %v773 = vpop.f32.mrf.mxu0
      %v774 = vadd.f32 %v299, %v773
      %775 = vmatmul.bf16.gmra.mxu0 %v499
      %v776 = vpop.f32.mrf.mxu0
      %v777 = vadd.f32 %v299, %v776
      %v778 = vpop.f32.mrf.mxu0
      %v779 = vadd.f32 %v299, %v778
      %780 = vdwg.mxu0
      %781 = vmatpush.bf16.msra.mxu0 %v630
      %782 = vmatpush.bf16.msra.mxu0 %v629
      %783 = vmatpush.bf16.msra.mxu0 %v628
      %784 = vmatpush.bf16.msra.mxu0 %v627
      %785 = vmatpush.bf16.msra.mxu0 %v626
      %786 = vmatpush.bf16.msra.mxu0 %v625
      %787 = vmatpush.bf16.msra.mxu0 %v624
      %788 = vmatpush.bf16.msra.mxu0 %v623
      %789 = vmatmul.bf16.gmra.mxu0 %v452
      %v790 = vpop.f32.mrf.mxu0
      %v791 = vadd.f32 %v657, %v790
      %v792 = vpop.f32.mrf.mxu0
      %v793 = vadd.f32 %v659, %v792
      %794 = vmatmul.bf16.gmra.mxu0 %v454
      %v795 = vpop.f32.mrf.mxu0
      %v796 = vadd.f32 %v662, %v795
      %v797 = vpop.f32.mrf.mxu0
      %v798 = vadd.f32 %v664, %v797
      %799 = vmatmul.bf16.gmra.mxu0 %v456
      %v800 = vpop.f32.mrf.mxu0
      %v801 = vadd.f32 %v667, %v800
      %v802 = vpop.f32.mrf.mxu0
      %v803 = vadd.f32 %v669, %v802
      %804 = vmatmul.bf16.gmra.mxu0 %v458
      %v805 = vpop.f32.mrf.mxu0
      %v806 = vadd.f32 %v672, %v805
      %v807 = vpop.f32.mrf.mxu0
      %v808 = vadd.f32 %v674, %v807
      %809 = vmatmul.bf16.gmra.mxu0 %v460
      %v810 = vpop.f32.mrf.mxu0
      %v811 = vadd.f32 %v677, %v810
      %v812 = vpop.f32.mrf.mxu0
      %v813 = vadd.f32 %v679, %v812
      %814 = vmatmul.bf16.gmra.mxu0 %v462
      %v815 = vpop.f32.mrf.mxu0
      %v816 = vadd.f32 %v682, %v815
      %v817 = vpop.f32.mrf.mxu0
      %v818 = vadd.f32 %v684, %v817
      %819 = vmatmul.bf16.gmra.mxu0 %v464
      %v820 = vpop.f32.mrf.mxu0
      %v821 = vadd.f32 %v687, %v820
      %v822 = vpop.f32.mrf.mxu0
      %v823 = vadd.f32 %v689, %v822
      %824 = vmatmul.bf16.gmra.mxu0 %v466
      %v825 = vpop.f32.mrf.mxu0
      %v826 = vadd.f32 %v692, %v825
      %v827 = vpop.f32.mrf.mxu0
      %v828 = vadd.f32 %v694, %v827
      %829 = vmatmul.bf16.gmra.mxu0 %v468
      %v830 = vpop.f32.mrf.mxu0
      %v831 = vadd.f32 %v697, %v830
      %v832 = vpop.f32.mrf.mxu0
      %v833 = vadd.f32 %v699, %v832
      %834 = vmatmul.bf16.gmra.mxu0 %v470
      %v835 = vpop.f32.mrf.mxu0
      %v836 = vadd.f32 %v702, %v835
      %v837 = vpop.f32.mrf.mxu0
      %v838 = vadd.f32 %v704, %v837
      %839 = vmatmul.bf16.gmra.mxu0 %v472
      %v840 = vpop.f32.mrf.mxu0
      %v841 = vadd.f32 %v707, %v840
      %v842 = vpop.f32.mrf.mxu0
      %v843 = vadd.f32 %v709, %v842
      %844 = vmatmul.bf16.gmra.mxu0 %v474
      %v845 = vpop.f32.mrf.mxu0
      %v846 = vadd.f32 %v712, %v845
      %v847 = vpop.f32.mrf.mxu0
      %v848 = vadd.f32 %v714, %v847
      %849 = vmatmul.bf16.gmra.mxu0 %v476
      %v850 = vpop.f32.mrf.mxu0
      %v851 = vadd.f32 %v717, %v850
      %v852 = vpop.f32.mrf.mxu0
      %v853 = vadd.f32 %v719, %v852
      %854 = vmatmul.bf16.gmra.mxu0 %v478
      %v855 = vpop.f32.mrf.mxu0
      %v856 = vadd.f32 %v722, %v855
      %v857 = vpop.f32.mrf.mxu0
      %v858 = vadd.f32 %v724, %v857
      %859 = vmatmul.bf16.gmra.mxu0 %v480
      %v860 = vpop.f32.mrf.mxu0
      %v861 = vadd.f32 %v727, %v860
      %v862 = vpop.f32.mrf.mxu0
      %v863 = vadd.f32 %v729, %v862
      %864 = vmatmul.bf16.gmra.mxu0 %v482
      %v865 = vpop.f32.mrf.mxu0
      %v866 = vadd.f32 %v732, %v865
      %v867 = vpop.f32.mrf.mxu0
      %v868 = vadd.f32 %v734, %v867
      %869 = vmatmul.bf16.gmra.mxu0 %v484
      %v870 = vpop.f32.mrf.mxu0
      %v871 = vadd.f32 %v737, %v870
      %v872 = vpop.f32.mrf.mxu0
      %v873 = vadd.f32 %v739, %v872
      %874 = vmatmul.bf16.gmra.mxu0 %v486
      %v875 = vpop.f32.mrf.mxu0
      %v876 = vadd.f32 %v742, %v875
      %v877 = vpop.f32.mrf.mxu0
      %v878 = vadd.f32 %v744, %v877
      %879 = vmatmul.bf16.gmra.mxu0 %v488
      %v880 = vpop.f32.mrf.mxu0
      %v881 = vadd.f32 %v747, %v880
      %v882 = vpop.f32.mrf.mxu0
      %v883 = vadd.f32 %v749, %v882
      %884 = vmatmul.bf16.gmra.mxu0 %v490
      %v885 = vpop.f32.mrf.mxu0
      %v886 = vadd.f32 %v752, %v885
      %v887 = vpop.f32.mrf.mxu0
      %v888 = vadd.f32 %v754, %v887
      %889 = vmatmul.bf16.gmra.mxu0 %v492
      %v890 = vpop.f32.mrf.mxu0
      %v891 = vadd.f32 %v757, %v890
      %v892 = vpop.f32.mrf.mxu0
      %v893 = vadd.f32 %v759, %v892
      %894 = vmatmul.bf16.gmra.mxu0 %v494
      %v895 = vpop.f32.mrf.mxu0
      %v896 = vadd.f32 %v762, %v895
      %v897 = vpop.f32.mrf.mxu0
      %v898 = vadd.f32 %v764, %v897
      %899 = vmatmul.bf16.gmra.mxu0 %v496
      %v900 = vpop.f32.mrf.mxu0
      %v901 = vadd.f32 %v767, %v900
      %v902 = vpop.f32.mrf.mxu0
      %v903 = vadd.f32 %v769, %v902
      %904 = vmatmul.bf16.gmra.mxu0 %v498
      %v905 = vpop.f32.mrf.mxu0
      %v906 = vadd.f32 %v772, %v905
      %v907 = vpop.f32.mrf.mxu0
      %v908 = vadd.f32 %v774, %v907
      %909 = vmatmul.bf16.gmra.mxu0 %v500
      %v910 = vpop.f32.mrf.mxu0
      %v911 = vadd.f32 %v777, %v910
      %v912 = vpop.f32.mrf.mxu0
      %v913 = vadd.f32 %v779, %v912
      %914 = vdwg.mxu0
      %v915 = vmax.f32 %v791, 0.0
      %v916 = vmax.f32 %v793, 0.0
      %v917 = vmax.f32 %v796, 0.0
      %v918 = vmax.f32 %v798, 0.0
      %v919 = vmax.f32 %v801, 0.0
      %v920 = vmax.f32 %v803, 0.0
      %v921 = vmax.f32 %v806, 0.0
      %v922 = vmax.f32 %v808, 0.0
      %v923 = vmax.f32 %v811, 0.0
      %v924 = vmax.f32 %v813, 0.0
      %v925 = vmax.f32 %v816, 0.0
      %v926 = vmax.f32 %v818, 0.0
      %v927 = vmax.f32 %v821, 0.0
      %v928 = vmax.f32 %v823, 0.0
      %v929 = vmax.f32 %v826, 0.0
      %v930 = vmax.f32 %v828, 0.0
      %v931 = vmax.f32 %v831, 0.0
      %v932 = vmax.f32 %v833, 0.0
      %v933 = vmax.f32 %v836, 0.0
      %v934 = vmax.f32 %v838, 0.0
      %v935 = vmax.f32 %v841, 0.0
      %v936 = vmax.f32 %v843, 0.0
      %v937 = vmax.f32 %v846, 0.0
      %v938 = vmax.f32 %v848, 0.0
      %v939 = vmax.f32 %v851, 0.0
      %v940 = vmax.f32 %v853, 0.0
      %v941 = vmax.f32 %v856, 0.0
      %v942 = vmax.f32 %v858, 0.0
      %v943 = vmax.f32 %v861, 0.0
      %v944 = vmax.f32 %v863, 0.0
      %v945 = vmax.f32 %v866, 0.0
      %v946 = vmax.f32 %v868, 0.0
      %v947 = vmax.f32 %v871, 0.0
      %v948 = vmax.f32 %v873, 0.0
      %v949 = vmax.f32 %v876, 0.0
      %v950 = vmax.f32 %v878, 0.0
      %v951 = vmax.f32 %v881, 0.0
      %v952 = vmax.f32 %v883, 0.0
      %v953 = vmax.f32 %v886, 0.0
      %v954 = vmax.f32 %v888, 0.0
      %v955 = vmax.f32 %v891, 0.0
      %v956 = vmax.f32 %v893, 0.0
      %v957 = vmax.f32 %v896, 0.0
      %v958 = vmax.f32 %v898, 0.0
      %v959 = vmax.f32 %v901, 0.0
      %v960 = vmax.f32 %v903, 0.0
      %v961 = vmax.f32 %v906, 0.0
      %v962 = vmax.f32 %v908, 0.0
      %v963 = vmax.f32 %v911, 0.0
      %v964 = vmax.f32 %v913, 0.0
      %p965 = scmp.eq.s32.totalorder %s16, 0
      // Predicated region
      $region41: #{net_forward.5} parent=39 // pred_check
        %p966 = pneg %p965
      $region42: #{net_forward.5} parent=39 // pred_check_branch
        %968 = sbr.rel (%p966) target = $region44
      $region43: #{net_forward.5} parent=39 // pred_region
        %vm969 = vcmask 253952
        %970 = vst.msk [vmem:[#allocation3] sm:$0x1] %vm969, 0.0
        %971 = vst.msk [vmem:[#allocation4] sm:$0x1] %vm969, 0.0
      $region44: #{net_forward.5} parent=39 // pred_fallthru
        _
      %v972 = vld [vmem:[#allocation3] sm:$0x1]
      %vm973 = vcmask 261120
      %v974 = vsel %vm973, %v915, 0.0
      %v975 = vsel %vm973, %v916, 0.0
      %v976 = vadd.f32 %v974, %v975
      %v977 = vsel %vm973, %v917, 0.0
      %v978 = vadd.f32 %v976, %v977
      %v979 = vsel %vm973, %v918, 0.0
      %v980 = vadd.f32 %v978, %v979
      %v981 = vsel %vm973, %v919, 0.0
      %v982 = vadd.f32 %v980, %v981
      %v983 = vsel %vm973, %v920, 0.0
      %v984 = vadd.f32 %v982, %v983
      %v985 = vsel %vm973, %v921, 0.0
      %v986 = vadd.f32 %v984, %v985
      %v987 = vsel %vm973, %v922, 0.0
      %v988 = vadd.f32 %v986, %v987
      %v989 = vsel %vm973, %v923, 0.0
      %v990 = vadd.f32 %v988, %v989
      %v991 = vsel %vm973, %v924, 0.0
      %v992 = vadd.f32 %v990, %v991
      %v993 = vsel %vm973, %v925, 0.0
      %v994 = vadd.f32 %v992, %v993
      %v995 = vsel %vm973, %v926, 0.0
      %v996 = vadd.f32 %v994, %v995
      %v997 = vsel %vm973, %v927, 0.0
      %v998 = vadd.f32 %v996, %v997
      %v999 = vsel %vm973, %v928, 0.0
      %v1000 = vadd.f32 %v998, %v999
      %v1001 = vsel %vm973, %v929, 0.0
      %v1002 = vadd.f32 %v1000, %v1001
      %v1003 = vsel %vm973, %v930, 0.0
      %v1004 = vadd.f32 %v1002, %v1003
      %v1005 = vsel %vm973, %v931, 0.0
      %v1006 = vadd.f32 %v1004, %v1005
      %v1007 = vsel %vm973, %v932, 0.0
      %v1008 = vadd.f32 %v1006, %v1007
      %v1009 = vsel %vm973, %v933, 0.0
      %v1010 = vadd.f32 %v1008, %v1009
      %v1011 = vsel %vm973, %v934, 0.0
      %v1012 = vadd.f32 %v1010, %v1011
      %v1013 = vsel %vm973, %v935, 0.0
      %v1014 = vadd.f32 %v1012, %v1013
      %v1015 = vsel %vm973, %v936, 0.0
      %v1016 = vadd.f32 %v1014, %v1015
      %v1017 = vsel %vm973, %v937, 0.0
      %v1018 = vadd.f32 %v1016, %v1017
      %v1019 = vsel %vm973, %v938, 0.0
      %v1020 = vadd.f32 %v1018, %v1019
      %v1021 = vsel %vm973, %v939, 0.0
      %v1022 = vadd.f32 %v1020, %v1021
      %v1023 = vsel %vm973, %v940, 0.0
      %v1024 = vadd.f32 %v1022, %v1023
      %v1025 = vsel %vm973, %v941, 0.0
      %v1026 = vadd.f32 %v1024, %v1025
      %v1027 = vsel %vm973, %v942, 0.0
      %v1028 = vadd.f32 %v1026, %v1027
      %v1029 = vsel %vm973, %v943, 0.0
      %v1030 = vadd.f32 %v1028, %v1029
      %v1031 = vsel %vm973, %v944, 0.0
      %v1032 = vadd.f32 %v1030, %v1031
      %v1033 = vsel %vm973, %v945, 0.0
      %v1034 = vadd.f32 %v1032, %v1033
      %v1035 = vsel %vm973, %v946, 0.0
      %v1036 = vadd.f32 %v1034, %v1035
      %v1037 = vsel %vm973, %v947, 0.0
      %v1038 = vadd.f32 %v1036, %v1037
      %v1039 = vsel %vm973, %v948, 0.0
      %v1040 = vadd.f32 %v1038, %v1039
      %v1041 = vsel %vm973, %v949, 0.0
      %v1042 = vadd.f32 %v1040, %v1041
      %v1043 = vsel %vm973, %v950, 0.0
      %v1044 = vadd.f32 %v1042, %v1043
      %v1045 = vsel %vm973, %v951, 0.0
      %v1046 = vadd.f32 %v1044, %v1045
      %v1047 = vsel %vm973, %v952, 0.0
      %v1048 = vadd.f32 %v1046, %v1047
      %v1049 = vsel %vm973, %v953, 0.0
      %v1050 = vadd.f32 %v1048, %v1049
      %v1051 = vsel %vm973, %v954, 0.0
      %v1052 = vadd.f32 %v1050, %v1051
      %v1053 = vsel %vm973, %v955, 0.0
      %v1054 = vadd.f32 %v1052, %v1053
      %v1055 = vsel %vm973, %v956, 0.0
      %v1056 = vadd.f32 %v1054, %v1055
      %v1057 = vsel %vm973, %v957, 0.0
      %v1058 = vadd.f32 %v1056, %v1057
      %v1059 = vsel %vm973, %v958, 0.0
      %v1060 = vadd.f32 %v1058, %v1059
      %v1061 = vsel %vm973, %v959, 0.0
      %v1062 = vadd.f32 %v1060, %v1061
      %v1063 = vsel %vm973, %v960, 0.0
      %v1064 = vadd.f32 %v1062, %v1063
      %v1065 = vsel %vm973, %v961, 0.0
      %v1066 = vadd.f32 %v1064, %v1065
      %v1067 = vsel %vm973, %v962, 0.0
      %v1068 = vadd.f32 %v1066, %v1067
      %v1069 = vsel %vm973, %v963, 0.0
      %v1070 = vadd.f32 %v1068, %v1069
      %v1071 = vsel %vm973, %v964, 0.0
      %v1072 = vadd.f32 %v1070, %v1071
      %v1073 = vrot.slane %v1072, 4
      %v1074 = vadd.f32 %v1072, %v1073
      %v1075 = vrot.slane %v1074, 2
      %v1076 = vadd.f32 %v1074, %v1075
      %v1077 = vrot.slane %v1076, 1
      %v1078 = vadd.f32 %v1076, %v1077
      %v1079 = vadd.f32 %v972, %v1078
      %vm1080 = vcmask 253952
      %1081 = vst.msk [vmem:[#allocation3] sm:$0x1] %vm1080, %v1079
      %v1082 = vld [vmem:[#allocation4] sm:$0x1]
      %v1083 = vmul.f32 %v915, %v915
      %v1084 = vmul.f32 %v916, %v916
      %v1085 = vmul.f32 %v917, %v917
      %v1086 = vmul.f32 %v918, %v918
      %v1087 = vmul.f32 %v919, %v919
      %v1088 = vmul.f32 %v920, %v920
      %v1089 = vmul.f32 %v921, %v921
      %v1090 = vmul.f32 %v922, %v922
      %v1091 = vmul.f32 %v923, %v923
      %v1092 = vmul.f32 %v924, %v924
      %v1093 = vmul.f32 %v925, %v925
      %v1094 = vmul.f32 %v926, %v926
      %v1095 = vmul.f32 %v927, %v927
      %v1096 = vmul.f32 %v928, %v928
      %v1097 = vmul.f32 %v929, %v929
      %v1098 = vmul.f32 %v930, %v930
      %v1099 = vmul.f32 %v931, %v931
      %v1100 = vmul.f32 %v932, %v932
      %v1101 = vmul.f32 %v933, %v933
      %v1102 = vmul.f32 %v934, %v934
      %v1103 = vmul.f32 %v935, %v935
      %v1104 = vmul.f32 %v936, %v936
      %v1105 = vmul.f32 %v937, %v937
      %v1106 = vmul.f32 %v938, %v938
      %v1107 = vmul.f32 %v939, %v939
      %v1108 = vmul.f32 %v940, %v940
      %v1109 = vmul.f32 %v941, %v941
      %v1110 = vmul.f32 %v942, %v942
      %v1111 = vmul.f32 %v943, %v943
      %v1112 = vmul.f32 %v944, %v944
      %v1113 = vmul.f32 %v945, %v945
      %v1114 = vmul.f32 %v946, %v946
      %v1115 = vmul.f32 %v947, %v947
      %v1116 = vmul.f32 %v948, %v948
      %v1117 = vmul.f32 %v949, %v949
      %v1118 = vmul.f32 %v950, %v950
      %v1119 = vmul.f32 %v951, %v951
      %v1120 = vmul.f32 %v952, %v952
      %v1121 = vmul.f32 %v953, %v953
      %v1122 = vmul.f32 %v954, %v954
      %v1123 = vmul.f32 %v955, %v955
      %v1124 = vmul.f32 %v956, %v956
      %v1125 = vmul.f32 %v957, %v957
      %v1126 = vmul.f32 %v958, %v958
      %v1127 = vmul.f32 %v959, %v959
      %v1128 = vmul.f32 %v960, %v960
      %v1129 = vmul.f32 %v961, %v961
      %v1130 = vmul.f32 %v962, %v962
      %v1131 = vmul.f32 %v963, %v963
      %v1132 = vmul.f32 %v964, %v964
      %v1133 = vsel %vm973, %v1083, 0.0
      %v1134 = vsel %vm973, %v1084, 0.0
      %v1135 = vadd.f32 %v1133, %v1134
      %v1136 = vsel %vm973, %v1085, 0.0
      %v1137 = vadd.f32 %v1135, %v1136
      %v1138 = vsel %vm973, %v1086, 0.0
      %v1139 = vadd.f32 %v1137, %v1138
      %v1140 = vsel %vm973, %v1087, 0.0
      %v1141 = vadd.f32 %v1139, %v1140
      %v1142 = vsel %vm973, %v1088, 0.0
      %v1143 = vadd.f32 %v1141, %v1142
      %v1144 = vsel %vm973, %v1089, 0.0
      %v1145 = vadd.f32 %v1143, %v1144
      %v1146 = vsel %vm973, %v1090, 0.0
      %v1147 = vadd.f32 %v1145, %v1146
      %v1148 = vsel %vm973, %v1091, 0.0
      %v1149 = vadd.f32 %v1147, %v1148
      %v1150 = vsel %vm973, %v1092, 0.0
      %v1151 = vadd.f32 %v1149, %v1150
      %v1152 = vsel %vm973, %v1093, 0.0
      %v1153 = vadd.f32 %v1151, %v1152
      %v1154 = vsel %vm973, %v1094, 0.0
      %v1155 = vadd.f32 %v1153, %v1154
      %v1156 = vsel %vm973, %v1095, 0.0
      %v1157 = vadd.f32 %v1155, %v1156
      %v1158 = vsel %vm973, %v1096, 0.0
      %v1159 = vadd.f32 %v1157, %v1158
      %v1160 = vsel %vm973, %v1097, 0.0
      %v1161 = vadd.f32 %v1159, %v1160
      %v1162 = vsel %vm973, %v1098, 0.0
      %v1163 = vadd.f32 %v1161, %v1162
      %v1164 = vsel %vm973, %v1099, 0.0
      %v1165 = vadd.f32 %v1163, %v1164
      %v1166 = vsel %vm973, %v1100, 0.0
      %v1167 = vadd.f32 %v1165, %v1166
      %v1168 = vsel %vm973, %v1101, 0.0
      %v1169 = vadd.f32 %v1167, %v1168
      %v1170 = vsel %vm973, %v1102, 0.0
      %v1171 = vadd.f32 %v1169, %v1170
      %v1172 = vsel %vm973, %v1103, 0.0
      %v1173 = vadd.f32 %v1171, %v1172
      %v1174 = vsel %vm973, %v1104, 0.0
      %v1175 = vadd.f32 %v1173, %v1174
      %v1176 = vsel %vm973, %v1105, 0.0
      %v1177 = vadd.f32 %v1175, %v1176
      %v1178 = vsel %vm973, %v1106, 0.0
      %v1179 = vadd.f32 %v1177, %v1178
      %v1180 = vsel %vm973, %v1107, 0.0
      %v1181 = vadd.f32 %v1179, %v1180
      %v1182 = vsel %vm973, %v1108, 0.0
      %v1183 = vadd.f32 %v1181, %v1182
      %v1184 = vsel %vm973, %v1109, 0.0
      %v1185 = vadd.f32 %v1183, %v1184
      %v1186 = vsel %vm973, %v1110, 0.0
      %v1187 = vadd.f32 %v1185, %v1186
      %v1188 = vsel %vm973, %v1111, 0.0
      %v1189 = vadd.f32 %v1187, %v1188
      %v1190 = vsel %vm973, %v1112, 0.0
      %v1191 = vadd.f32 %v1189, %v1190
      %v1192 = vsel %vm973, %v1113, 0.0
      %v1193 = vadd.f32 %v1191, %v1192
      %v1194 = vsel %vm973, %v1114, 0.0
      %v1195 = vadd.f32 %v1193, %v1194
      %v1196 = vsel %vm973, %v1115, 0.0
      %v1197 = vadd.f32 %v1195, %v1196
      %v1198 = vsel %vm973, %v1116, 0.0
      %v1199 = vadd.f32 %v1197, %v1198
      %v1200 = vsel %vm973, %v1117, 0.0
      %v1201 = vadd.f32 %v1199, %v1200
      %v1202 = vsel %vm973, %v1118, 0.0
      %v1203 = vadd.f32 %v1201, %v1202
      %v1204 = vsel %vm973, %v1119, 0.0
      %v1205 = vadd.f32 %v1203, %v1204
      %v1206 = vsel %vm973, %v1120, 0.0
      %v1207 = vadd.f32 %v1205, %v1206
      %v1208 = vsel %vm973, %v1121, 0.0
      %v1209 = vadd.f32 %v1207, %v1208
      %v1210 = vsel %vm973, %v1122, 0.0
      %v1211 = vadd.f32 %v1209, %v1210
      %v1212 = vsel %vm973, %v1123, 0.0
      %v1213 = vadd.f32 %v1211, %v1212
      %v1214 = vsel %vm973, %v1124, 0.0
      %v1215 = vadd.f32 %v1213, %v1214
      %v1216 = vsel %vm973, %v1125, 0.0
      %v1217 = vadd.f32 %v1215, %v1216
      %v1218 = vsel %vm973, %v1126, 0.0
      %v1219 = vadd.f32 %v1217, %v1218
      %v1220 = vsel %vm973, %v1127, 0.0
      %v1221 = vadd.f32 %v1219, %v1220
      %v1222 = vsel %vm973, %v1128, 0.0
      %v1223 = vadd.f32 %v1221, %v1222
      %v1224 = vsel %vm973, %v1129, 0.0
      %v1225 = vadd.f32 %v1223, %v1224
      %v1226 = vsel %vm973, %v1130, 0.0
      %v1227 = vadd.f32 %v1225, %v1226
      %v1228 = vsel %vm973, %v1131, 0.0
      %v1229 = vadd.f32 %v1227, %v1228
      %v1230 = vsel %vm973, %v1132, 0.0
      %v1231 = vadd.f32 %v1229, %v1230
      %v1232 = vrot.slane %v1231, 4
      %v1233 = vadd.f32 %v1231, %v1232
      %v1234 = vrot.slane %v1233, 2
      %v1235 = vadd.f32 %v1233, %v1234
      %v1236 = vrot.slane %v1235, 1
      %v1237 = vadd.f32 %v1235, %v1236
      %v1238 = vadd.f32 %v1082, %v1237
      %1239 = vst.msk [vmem:[#allocation4] sm:$0x1] %vm1080, %v1238
      %s1240 = smul.u32 %s16, 400
      %s1241 = scalar_lea.vmem [#allocation2], %s1240
      %1242 = vst.msk [vmem:[%s1241] sm:$0xff] %vm973, %v915
      %1243 = vst.msk [vmem:[%s1241 + $0x8] sm:$0xff] %vm973, %v916
      %1244 = vst.msk [vmem:[%s1241 + $0x10] sm:$0xff] %vm973, %v917
      %1245 = vst.msk [vmem:[%s1241 + $0x18] sm:$0xff] %vm973, %v918
      %1246 = vst.msk [vmem:[%s1241 + $0x20] sm:$0xff] %vm973, %v919
      %1247 = vst.msk [vmem:[%s1241 + $0x28] sm:$0xff] %vm973, %v920
      %1248 = vst.msk [vmem:[%s1241 + $0x30] sm:$0xff] %vm973, %v921
      %1249 = vst.msk [vmem:[%s1241 + $0x38] sm:$0xff] %vm973, %v922
      %1250 = vst.msk [vmem:[%s1241 + $0x40] sm:$0xff] %vm973, %v923
      %1251 = vst.msk [vmem:[%s1241 + $0x48] sm:$0xff] %vm973, %v924
      %1252 = vst.msk [vmem:[%s1241 + $0x50] sm:$0xff] %vm973, %v925
      %1253 = vst.msk [vmem:[%s1241 + $0x58] sm:$0xff] %vm973, %v926
      %1254 = vst.msk [vmem:[%s1241 + $0x60] sm:$0xff] %vm973, %v927
      %1255 = vst.msk [vmem:[%s1241 + $0x68] sm:$0xff] %vm973, %v928
      %1256 = vst.msk [vmem:[%s1241 + $0x70] sm:$0xff] %vm973, %v929
      %1257 = vst.msk [vmem:[%s1241 + $0x78] sm:$0xff] %vm973, %v930
      %1258 = vst.msk [vmem:[%s1241 + $0x80] sm:$0xff] %vm973, %v931
      %1259 = vst.msk [vmem:[%s1241 + $0x88] sm:$0xff] %vm973, %v932
      %1260 = vst.msk [vmem:[%s1241 + $0x90] sm:$0xff] %vm973, %v933
      %1261 = vst.msk [vmem:[%s1241 + $0x98] sm:$0xff] %vm973, %v934
      %1262 = vst.msk [vmem:[%s1241 + $0xa0] sm:$0xff] %vm973, %v935
      %1263 = vst.msk [vmem:[%s1241 + $0xa8] sm:$0xff] %vm973, %v936
      %1264 = vst.msk [vmem:[%s1241 + $0xb0] sm:$0xff] %vm973, %v937
      %1265 = vst.msk [vmem:[%s1241 + $0xb8] sm:$0xff] %vm973, %v938
      %1266 = vst.msk [vmem:[%s1241 + $0xc0] sm:$0xff] %vm973, %v939
      %1267 = vst.msk [vmem:[%s1241 + $0xc8] sm:$0xff] %vm973, %v940
      %1268 = vst.msk [vmem:[%s1241 + $0xd0] sm:$0xff] %vm973, %v941
      %1269 = vst.msk [vmem:[%s1241 + $0xd8] sm:$0xff] %vm973, %v942
      %1270 = vst.msk [vmem:[%s1241 + $0xe0] sm:$0xff] %vm973, %v943
      %1271 = vst.msk [vmem:[%s1241 + $0xe8] sm:$0xff] %vm973, %v944
      %1272 = vst.msk [vmem:[%s1241 + $0xf0] sm:$0xff] %vm973, %v945
      %1273 = vst.msk [vmem:[%s1241 + $0xf8] sm:$0xff] %vm973, %v946
      %1274 = vst.msk [vmem:[%s1241 + $0x100] sm:$0xff] %vm973, %v947
      %1275 = vst.msk [vmem:[%s1241 + $0x108] sm:$0xff] %vm973, %v948
      %1276 = vst.msk [vmem:[%s1241 + $0x110] sm:$0xff] %vm973, %v949
      %1277 = vst.msk [vmem:[%s1241 + $0x118] sm:$0xff] %vm973, %v950
      %1278 = vst.msk [vmem:[%s1241 + $0x120] sm:$0xff] %vm973, %v951
      %1279 = vst.msk [vmem:[%s1241 + $0x128] sm:$0xff] %vm973, %v952
      %1280 = vst.msk [vmem:[%s1241 + $0x130] sm:$0xff] %vm973, %v953
      %1281 = vst.msk [vmem:[%s1241 + $0x138] sm:$0xff] %vm973, %v954
      %1282 = vst.msk [vmem:[%s1241 + $0x140] sm:$0xff] %vm973, %v955
      %1283 = vst.msk [vmem:[%s1241 + $0x148] sm:$0xff] %vm973, %v956
      %1284 = vst.msk [vmem:[%s1241 + $0x150] sm:$0xff] %vm973, %v957
      %1285 = vst.msk [vmem:[%s1241 + $0x158] sm:$0xff] %vm973, %v958
      %1286 = vst.msk [vmem:[%s1241 + $0x160] sm:$0xff] %vm973, %v959
      %1287 = vst.msk [vmem:[%s1241 + $0x168] sm:$0xff] %vm973, %v960
      %1288 = vst.msk [vmem:[%s1241 + $0x170] sm:$0xff] %vm973, %v961
      %1289 = vst.msk [vmem:[%s1241 + $0x178] sm:$0xff] %vm973, %v962
      %1290 = vst.msk [vmem:[%s1241 + $0x180] sm:$0xff] %vm973, %v963
      %1291 = vst.msk [vmem:[%s1241 + $0x188] sm:$0xff] %vm973, %v964
      %p1292 = scmp.eq.s32.totalorder %s16, 1
      // Predicated region
      $region45: #{net_forward.5} parent=39 // pred_check
        %p1293 = pneg %p1292
      $region46: #{net_forward.5} parent=39 // pred_check_branch
        %1295 = sbr.rel (%p1293) target = $region48
      $region47: #{net_forward.5} parent=39 // pred_region
        %v1296 = vld [vmem:[#allocation3] sm:$0x1]
        %v1297 = vmul.f32 %v1296, 0.00125
        %v1298 = vld [vmem:[#allocation4] sm:$0x1]
        %v1299 = vmul.f32 %v1298, 0.00125
        %v1300 = vmul.f32 %v1297, %v1297
        %v1301 = vsub.f32 %v1299, %v1300
        %v1302 = vadd.f32 %v1301, 1e-05
        %v1303 = vrsqrt.pop %v1302
        %v1304 = vmul.f32 %v1303, %v1302
        %v1305 = vmul.f32 %v1304, %v1303
        %v1306 = vmul.f32 0.5, %v1305
        %v1307 = vsub.f32 1.5, %v1306
        %v1308 = vmul.f32 %v1303, %v1307
        %vm1309 = vweird.f32 %v1302
        %vm1310 = vweird.f32 %v1303
        %vm1311 = vmor %vm1309, %vm1310
        %v1312 = vsel %vm1311, %v1303, %v1308
        %v1313 = vld [vmem:[#allocation2] sm:$0xff]
        %v1314 = vld [vmem:[#allocation2 + $0x8] sm:$0xff]
        %v1315 = vld [vmem:[#allocation2 + $0x10] sm:$0xff]
        %v1316 = vld [vmem:[#allocation2 + $0x18] sm:$0xff]
        %v1317 = vld [vmem:[#allocation2 + $0x20] sm:$0xff]
        %v1318 = vld [vmem:[#allocation2 + $0x28] sm:$0xff]
        %v1319 = vld [vmem:[#allocation2 + $0x30] sm:$0xff]
        %v1320 = vld [vmem:[#allocation2 + $0x38] sm:$0xff]
        %v1321 = vld [vmem:[#allocation2 + $0x40] sm:$0xff]
        %v1322 = vld [vmem:[#allocation2 + $0x48] sm:$0xff]
        %v1323 = vld [vmem:[#allocation2 + $0x50] sm:$0xff]
        %v1324 = vld [vmem:[#allocation2 + $0x58] sm:$0xff]
        %v1325 = vld [vmem:[#allocation2 + $0x60] sm:$0xff]
        %v1326 = vld [vmem:[#allocation2 + $0x68] sm:$0xff]
        %v1327 = vld [vmem:[#allocation2 + $0x70] sm:$0xff]
        %v1328 = vld [vmem:[#allocation2 + $0x78] sm:$0xff]
        %v1329 = vld [vmem:[#allocation2 + $0x80] sm:$0xff]
        %v1330 = vld [vmem:[#allocation2 + $0x88] sm:$0xff]
        %v1331 = vld [vmem:[#allocation2 + $0x90] sm:$0xff]
        %v1332 = vld [vmem:[#allocation2 + $0x98] sm:$0xff]
        %v1333 = vld [vmem:[#allocation2 + $0xa0] sm:$0xff]
        %v1334 = vld [vmem:[#allocation2 + $0xa8] sm:$0xff]
        %v1335 = vld [vmem:[#allocation2 + $0xb0] sm:$0xff]
        %v1336 = vld [vmem:[#allocation2 + $0xb8] sm:$0xff]
        %v1337 = vld [vmem:[#allocation2 + $0xc0] sm:$0xff]
        %v1338 = vld [vmem:[#allocation2 + $0xc8] sm:$0xff]
        %v1339 = vld [vmem:[#allocation2 + $0xd0] sm:$0xff]
        %v1340 = vld [vmem:[#allocation2 + $0xd8] sm:$0xff]
        %v1341 = vld [vmem:[#allocation2 + $0xe0] sm:$0xff]
        %v1342 = vld [vmem:[#allocation2 + $0xe8] sm:$0xff]
        %v1343 = vld [vmem:[#allocation2 + $0xf0] sm:$0xff]
        %v1344 = vld [vmem:[#allocation2 + $0xf8] sm:$0xff]
        %v1345 = vld [vmem:[#allocation2 + $0x100] sm:$0xff]
        %v1346 = vld [vmem:[#allocation2 + $0x108] sm:$0xff]
        %v1347 = vld [vmem:[#allocation2 + $0x110] sm:$0xff]
        %v1348 = vld [vmem:[#allocation2 + $0x118] sm:$0xff]
        %v1349 = vld [vmem:[#allocation2 + $0x120] sm:$0xff]
        %v1350 = vld [vmem:[#allocation2 + $0x128] sm:$0xff]
        %v1351 = vld [vmem:[#allocation2 + $0x130] sm:$0xff]
        %v1352 = vld [vmem:[#allocation2 + $0x138] sm:$0xff]
        %v1353 = vld [vmem:[#allocation2 + $0x140] sm:$0xff]
        %v1354 = vld [vmem:[#allocation2 + $0x148] sm:$0xff]
        %v1355 = vld [vmem:[#allocation2 + $0x150] sm:$0xff]
        %v1356 = vld [vmem:[#allocation2 + $0x158] sm:$0xff]
        %v1357 = vld [vmem:[#allocation2 + $0x160] sm:$0xff]
        %v1358 = vld [vmem:[#allocation2 + $0x168] sm:$0xff]
        %v1359 = vld [vmem:[#allocation2 + $0x170] sm:$0xff]
        %v1360 = vld [vmem:[#allocation2 + $0x178] sm:$0xff]
        %v1361 = vld [vmem:[#allocation2 + $0x180] sm:$0xff]
        %v1362 = vld [vmem:[#allocation2 + $0x188] sm:$0xff]
        %v1363 = vld [vmem:[#allocation2 + $0x190] sm:$0xff]
        %v1364 = vld [vmem:[#allocation2 + $0x198] sm:$0xff]
        %v1365 = vld [vmem:[#allocation2 + $0x1a0] sm:$0xff]
        %v1366 = vld [vmem:[#allocation2 + $0x1a8] sm:$0xff]
        %v1367 = vld [vmem:[#allocation2 + $0x1b0] sm:$0xff]
        %v1368 = vld [vmem:[#allocation2 + $0x1b8] sm:$0xff]
        %v1369 = vld [vmem:[#allocation2 + $0x1c0] sm:$0xff]
        %v1370 = vld [vmem:[#allocation2 + $0x1c8] sm:$0xff]
        %v1371 = vld [vmem:[#allocation2 + $0x1d0] sm:$0xff]
        %v1372 = vld [vmem:[#allocation2 + $0x1d8] sm:$0xff]
        %v1373 = vld [vmem:[#allocation2 + $0x1e0] sm:$0xff]
        %v1374 = vld [vmem:[#allocation2 + $0x1e8] sm:$0xff]
        %v1375 = vld [vmem:[#allocation2 + $0x1f0] sm:$0xff]
        %v1376 = vld [vmem:[#allocation2 + $0x1f8] sm:$0xff]
        %v1377 = vld [vmem:[#allocation2 + $0x200] sm:$0xff]
        %v1378 = vld [vmem:[#allocation2 + $0x208] sm:$0xff]
        %v1379 = vld [vmem:[#allocation2 + $0x210] sm:$0xff]
        %v1380 = vld [vmem:[#allocation2 + $0x218] sm:$0xff]
        %v1381 = vld [vmem:[#allocation2 + $0x220] sm:$0xff]
        %v1382 = vld [vmem:[#allocation2 + $0x228] sm:$0xff]
        %v1383 = vld [vmem:[#allocation2 + $0x230] sm:$0xff]
        %v1384 = vld [vmem:[#allocation2 + $0x238] sm:$0xff]
        %v1385 = vld [vmem:[#allocation2 + $0x240] sm:$0xff]
        %v1386 = vld [vmem:[#allocation2 + $0x248] sm:$0xff]
        %v1387 = vld [vmem:[#allocation2 + $0x250] sm:$0xff]
        %v1388 = vld [vmem:[#allocation2 + $0x258] sm:$0xff]
        %v1389 = vld [vmem:[#allocation2 + $0x260] sm:$0xff]
        %v1390 = vld [vmem:[#allocation2 + $0x268] sm:$0xff]
        %v1391 = vld [vmem:[#allocation2 + $0x270] sm:$0xff]
        %v1392 = vld [vmem:[#allocation2 + $0x278] sm:$0xff]
        %v1393 = vld [vmem:[#allocation2 + $0x280] sm:$0xff]
        %v1394 = vld [vmem:[#allocation2 + $0x288] sm:$0xff]
        %v1395 = vld [vmem:[#allocation2 + $0x290] sm:$0xff]
        %v1396 = vld [vmem:[#allocation2 + $0x298] sm:$0xff]
        %v1397 = vld [vmem:[#allocation2 + $0x2a0] sm:$0xff]
        %v1398 = vld [vmem:[#allocation2 + $0x2a8] sm:$0xff]
        %v1399 = vld [vmem:[#allocation2 + $0x2b0] sm:$0xff]
        %v1400 = vld [vmem:[#allocation2 + $0x2b8] sm:$0xff]
        %v1401 = vld [vmem:[#allocation2 + $0x2c0] sm:$0xff]
        %v1402 = vld [vmem:[#allocation2 + $0x2c8] sm:$0xff]
        %v1403 = vld [vmem:[#allocation2 + $0x2d0] sm:$0xff]
        %v1404 = vld [vmem:[#allocation2 + $0x2d8] sm:$0xff]
        %v1405 = vld [vmem:[#allocation2 + $0x2e0] sm:$0xff]
        %v1406 = vld [vmem:[#allocation2 + $0x2e8] sm:$0xff]
        %v1407 = vld [vmem:[#allocation2 + $0x2f0] sm:$0xff]
        %v1408 = vld [vmem:[#allocation2 + $0x2f8] sm:$0xff]
        %v1409 = vld [vmem:[#allocation2 + $0x300] sm:$0xff]
        %v1410 = vld [vmem:[#allocation2 + $0x308] sm:$0xff]
        %v1411 = vld [vmem:[#allocation2 + $0x310] sm:$0xff]
        %v1412 = vld [vmem:[#allocation2 + $0x318] sm:$0xff]
        %v1414 = vperm.slane %v1297, 0
        %v1416 = vsub.f32 %v1313, %v1414
        %v1417 = vsub.f32 %v1314, %v1414
        %v1418 = vsub.f32 %v1315, %v1414
        %v1419 = vsub.f32 %v1316, %v1414
        %v1420 = vsub.f32 %v1317, %v1414
        %v1421 = vsub.f32 %v1318, %v1414
        %v1422 = vsub.f32 %v1319, %v1414
        %v1423 = vsub.f32 %v1320, %v1414
        %v1424 = vsub.f32 %v1321, %v1414
        %v1425 = vsub.f32 %v1322, %v1414
        %v1426 = vsub.f32 %v1323, %v1414
        %v1427 = vsub.f32 %v1324, %v1414
        %v1428 = vsub.f32 %v1325, %v1414
        %v1429 = vsub.f32 %v1326, %v1414
        %v1430 = vsub.f32 %v1327, %v1414
        %v1431 = vsub.f32 %v1328, %v1414
        %v1432 = vsub.f32 %v1329, %v1414
        %v1433 = vsub.f32 %v1330, %v1414
        %v1434 = vsub.f32 %v1331, %v1414
        %v1435 = vsub.f32 %v1332, %v1414
        %v1436 = vsub.f32 %v1333, %v1414
        %v1437 = vsub.f32 %v1334, %v1414
        %v1438 = vsub.f32 %v1335, %v1414
        %v1439 = vsub.f32 %v1336, %v1414
        %v1440 = vsub.f32 %v1337, %v1414
        %v1441 = vsub.f32 %v1338, %v1414
        %v1442 = vsub.f32 %v1339, %v1414
        %v1443 = vsub.f32 %v1340, %v1414
        %v1444 = vsub.f32 %v1341, %v1414
        %v1445 = vsub.f32 %v1342, %v1414
        %v1446 = vsub.f32 %v1343, %v1414
        %v1447 = vsub.f32 %v1344, %v1414
        %v1448 = vsub.f32 %v1345, %v1414
        %v1449 = vsub.f32 %v1346, %v1414
        %v1450 = vsub.f32 %v1347, %v1414
        %v1451 = vsub.f32 %v1348, %v1414
        %v1452 = vsub.f32 %v1349, %v1414
        %v1453 = vsub.f32 %v1350, %v1414
        %v1454 = vsub.f32 %v1351, %v1414
        %v1455 = vsub.f32 %v1352, %v1414
        %v1456 = vsub.f32 %v1353, %v1414
        %v1457 = vsub.f32 %v1354, %v1414
        %v1458 = vsub.f32 %v1355, %v1414
        %v1459 = vsub.f32 %v1356, %v1414
        %v1460 = vsub.f32 %v1357, %v1414
        %v1461 = vsub.f32 %v1358, %v1414
        %v1462 = vsub.f32 %v1359, %v1414
        %v1463 = vsub.f32 %v1360, %v1414
        %v1464 = vsub.f32 %v1361, %v1414
        %v1465 = vsub.f32 %v1362, %v1414
        %v1466 = vsub.f32 %v1363, %v1414
        %v1467 = vsub.f32 %v1364, %v1414
        %v1468 = vsub.f32 %v1365, %v1414
        %v1469 = vsub.f32 %v1366, %v1414
        %v1470 = vsub.f32 %v1367, %v1414
        %v1471 = vsub.f32 %v1368, %v1414
        %v1472 = vsub.f32 %v1369, %v1414
        %v1473 = vsub.f32 %v1370, %v1414
        %v1474 = vsub.f32 %v1371, %v1414
        %v1475 = vsub.f32 %v1372, %v1414
        %v1476 = vsub.f32 %v1373, %v1414
        %v1477 = vsub.f32 %v1374, %v1414
        %v1478 = vsub.f32 %v1375, %v1414
        %v1479 = vsub.f32 %v1376, %v1414
        %v1480 = vsub.f32 %v1377, %v1414
        %v1481 = vsub.f32 %v1378, %v1414
        %v1482 = vsub.f32 %v1379, %v1414
        %v1483 = vsub.f32 %v1380, %v1414
        %v1484 = vsub.f32 %v1381, %v1414
        %v1485 = vsub.f32 %v1382, %v1414
        %v1486 = vsub.f32 %v1383, %v1414
        %v1487 = vsub.f32 %v1384, %v1414
        %v1488 = vsub.f32 %v1385, %v1414
        %v1489 = vsub.f32 %v1386, %v1414
        %v1490 = vsub.f32 %v1387, %v1414
        %v1491 = vsub.f32 %v1388, %v1414
        %v1492 = vsub.f32 %v1389, %v1414
        %v1493 = vsub.f32 %v1390, %v1414
        %v1494 = vsub.f32 %v1391, %v1414
        %v1495 = vsub.f32 %v1392, %v1414
        %v1496 = vsub.f32 %v1393, %v1414
        %v1497 = vsub.f32 %v1394, %v1414
        %v1498 = vsub.f32 %v1395, %v1414
        %v1499 = vsub.f32 %v1396, %v1414
        %v1500 = vsub.f32 %v1397, %v1414
        %v1501 = vsub.f32 %v1398, %v1414
        %v1502 = vsub.f32 %v1399, %v1414
        %v1503 = vsub.f32 %v1400, %v1414
        %v1504 = vsub.f32 %v1401, %v1414
        %v1505 = vsub.f32 %v1402, %v1414
        %v1506 = vsub.f32 %v1403, %v1414
        %v1507 = vsub.f32 %v1404, %v1414
        %v1508 = vsub.f32 %v1405, %v1414
        %v1509 = vsub.f32 %v1406, %v1414
        %v1510 = vsub.f32 %v1407, %v1414
        %v1511 = vsub.f32 %v1408, %v1414
        %v1512 = vsub.f32 %v1409, %v1414
        %v1513 = vsub.f32 %v1410, %v1414
        %v1514 = vsub.f32 %v1411, %v1414
        %v1515 = vsub.f32 %v1412, %v1414
        %v1516 = vld [vmem:[%s3] sm:$0x1]
        %v1517 = vmul.f32 %v1312, %v1516
        %v1519 = vperm.slane %v1517, 0
        %v1521 = vmul.f32 %v1416, %v1519
        %v1522 = vmul.f32 %v1417, %v1519
        %v1523 = vmul.f32 %v1418, %v1519
        %v1524 = vmul.f32 %v1419, %v1519
        %v1525 = vmul.f32 %v1420, %v1519
        %v1526 = vmul.f32 %v1421, %v1519
        %v1527 = vmul.f32 %v1422, %v1519
        %v1528 = vmul.f32 %v1423, %v1519
        %v1529 = vmul.f32 %v1424, %v1519
        %v1530 = vmul.f32 %v1425, %v1519
        %v1531 = vmul.f32 %v1426, %v1519
        %v1532 = vmul.f32 %v1427, %v1519
        %v1533 = vmul.f32 %v1428, %v1519
        %v1534 = vmul.f32 %v1429, %v1519
        %v1535 = vmul.f32 %v1430, %v1519
        %v1536 = vmul.f32 %v1431, %v1519
        %v1537 = vmul.f32 %v1432, %v1519
        %v1538 = vmul.f32 %v1433, %v1519
        %v1539 = vmul.f32 %v1434, %v1519
        %v1540 = vmul.f32 %v1435, %v1519
        %v1541 = vmul.f32 %v1436, %v1519
        %v1542 = vmul.f32 %v1437, %v1519
        %v1543 = vmul.f32 %v1438, %v1519
        %v1544 = vmul.f32 %v1439, %v1519
        %v1545 = vmul.f32 %v1440, %v1519
        %v1546 = vmul.f32 %v1441, %v1519
        %v1547 = vmul.f32 %v1442, %v1519
        %v1548 = vmul.f32 %v1443, %v1519
        %v1549 = vmul.f32 %v1444, %v1519
        %v1550 = vmul.f32 %v1445, %v1519
        %v1551 = vmul.f32 %v1446, %v1519
        %v1552 = vmul.f32 %v1447, %v1519
        %v1553 = vmul.f32 %v1448, %v1519
        %v1554 = vmul.f32 %v1449, %v1519
        %v1555 = vmul.f32 %v1450, %v1519
        %v1556 = vmul.f32 %v1451, %v1519
        %v1557 = vmul.f32 %v1452, %v1519
        %v1558 = vmul.f32 %v1453, %v1519
        %v1559 = vmul.f32 %v1454, %v1519
        %v1560 = vmul.f32 %v1455, %v1519
        %v1561 = vmul.f32 %v1456, %v1519
        %v1562 = vmul.f32 %v1457, %v1519
        %v1563 = vmul.f32 %v1458, %v1519
        %v1564 = vmul.f32 %v1459, %v1519
        %v1565 = vmul.f32 %v1460, %v1519
        %v1566 = vmul.f32 %v1461, %v1519
        %v1567 = vmul.f32 %v1462, %v1519
        %v1568 = vmul.f32 %v1463, %v1519
        %v1569 = vmul.f32 %v1464, %v1519
        %v1570 = vmul.f32 %v1465, %v1519
        %v1571 = vmul.f32 %v1466, %v1519
        %v1572 = vmul.f32 %v1467, %v1519
        %v1573 = vmul.f32 %v1468, %v1519
        %v1574 = vmul.f32 %v1469, %v1519
        %v1575 = vmul.f32 %v1470, %v1519
        %v1576 = vmul.f32 %v1471, %v1519
        %v1577 = vmul.f32 %v1472, %v1519
        %v1578 = vmul.f32 %v1473, %v1519
        %v1579 = vmul.f32 %v1474, %v1519
        %v1580 = vmul.f32 %v1475, %v1519
        %v1581 = vmul.f32 %v1476, %v1519
        %v1582 = vmul.f32 %v1477, %v1519
        %v1583 = vmul.f32 %v1478, %v1519
        %v1584 = vmul.f32 %v1479, %v1519
        %v1585 = vmul.f32 %v1480, %v1519
        %v1586 = vmul.f32 %v1481, %v1519
        %v1587 = vmul.f32 %v1482, %v1519
        %v1588 = vmul.f32 %v1483, %v1519
        %v1589 = vmul.f32 %v1484, %v1519
        %v1590 = vmul.f32 %v1485, %v1519
        %v1591 = vmul.f32 %v1486, %v1519
        %v1592 = vmul.f32 %v1487, %v1519
        %v1593 = vmul.f32 %v1488, %v1519
        %v1594 = vmul.f32 %v1489, %v1519
        %v1595 = vmul.f32 %v1490, %v1519
        %v1596 = vmul.f32 %v1491, %v1519
        %v1597 = vmul.f32 %v1492, %v1519
        %v1598 = vmul.f32 %v1493, %v1519
        %v1599 = vmul.f32 %v1494, %v1519
        %v1600 = vmul.f32 %v1495, %v1519
        %v1601 = vmul.f32 %v1496, %v1519
        %v1602 = vmul.f32 %v1497, %v1519
        %v1603 = vmul.f32 %v1498, %v1519
        %v1604 = vmul.f32 %v1499, %v1519
        %v1605 = vmul.f32 %v1500, %v1519
        %v1606 = vmul.f32 %v1501, %v1519
        %v1607 = vmul.f32 %v1502, %v1519
        %v1608 = vmul.f32 %v1503, %v1519
        %v1609 = vmul.f32 %v1504, %v1519
        %v1610 = vmul.f32 %v1505, %v1519
        %v1611 = vmul.f32 %v1506, %v1519
        %v1612 = vmul.f32 %v1507, %v1519
        %v1613 = vmul.f32 %v1508, %v1519
        %v1614 = vmul.f32 %v1509, %v1519
        %v1615 = vmul.f32 %v1510, %v1519
        %v1616 = vmul.f32 %v1511, %v1519
        %v1617 = vmul.f32 %v1512, %v1519
        %v1618 = vmul.f32 %v1513, %v1519
        %v1619 = vmul.f32 %v1514, %v1519
        %v1620 = vmul.f32 %v1515, %v1519
        %v1621 = vld [vmem:[%s4] sm:$0x1]
        %v1623 = vperm.slane %v1621, 0
        %v1625 = vadd.f32 %v1521, %v1623
        %v1626 = vadd.f32 %v1522, %v1623
        %v1627 = vadd.f32 %v1523, %v1623
        %v1628 = vadd.f32 %v1524, %v1623
        %v1629 = vadd.f32 %v1525, %v1623
        %v1630 = vadd.f32 %v1526, %v1623
        %v1631 = vadd.f32 %v1527, %v1623
        %v1632 = vadd.f32 %v1528, %v1623
        %v1633 = vadd.f32 %v1529, %v1623
        %v1634 = vadd.f32 %v1530, %v1623
        %v1635 = vadd.f32 %v1531, %v1623
        %v1636 = vadd.f32 %v1532, %v1623
        %v1637 = vadd.f32 %v1533, %v1623
        %v1638 = vadd.f32 %v1534, %v1623
        %v1639 = vadd.f32 %v1535, %v1623
        %v1640 = vadd.f32 %v1536, %v1623
        %v1641 = vadd.f32 %v1537, %v1623
        %v1642 = vadd.f32 %v1538, %v1623
        %v1643 = vadd.f32 %v1539, %v1623
        %v1644 = vadd.f32 %v1540, %v1623
        %v1645 = vadd.f32 %v1541, %v1623
        %v1646 = vadd.f32 %v1542, %v1623
        %v1647 = vadd.f32 %v1543, %v1623
        %v1648 = vadd.f32 %v1544, %v1623
        %v1649 = vadd.f32 %v1545, %v1623
        %v1650 = vadd.f32 %v1546, %v1623
        %v1651 = vadd.f32 %v1547, %v1623
        %v1652 = vadd.f32 %v1548, %v1623
        %v1653 = vadd.f32 %v1549, %v1623
        %v1654 = vadd.f32 %v1550, %v1623
        %v1655 = vadd.f32 %v1551, %v1623
        %v1656 = vadd.f32 %v1552, %v1623
        %v1657 = vadd.f32 %v1553, %v1623
        %v1658 = vadd.f32 %v1554, %v1623
        %v1659 = vadd.f32 %v1555, %v1623
        %v1660 = vadd.f32 %v1556, %v1623
        %v1661 = vadd.f32 %v1557, %v1623
        %v1662 = vadd.f32 %v1558, %v1623
        %v1663 = vadd.f32 %v1559, %v1623
        %v1664 = vadd.f32 %v1560, %v1623
        %v1665 = vadd.f32 %v1561, %v1623
        %v1666 = vadd.f32 %v1562, %v1623
        %v1667 = vadd.f32 %v1563, %v1623
        %v1668 = vadd.f32 %v1564, %v1623
        %v1669 = vadd.f32 %v1565, %v1623
        %v1670 = vadd.f32 %v1566, %v1623
        %v1671 = vadd.f32 %v1567, %v1623
        %v1672 = vadd.f32 %v1568, %v1623
        %v1673 = vadd.f32 %v1569, %v1623
        %v1674 = vadd.f32 %v1570, %v1623
        %v1675 = vadd.f32 %v1571, %v1623
        %v1676 = vadd.f32 %v1572, %v1623
        %v1677 = vadd.f32 %v1573, %v1623
        %v1678 = vadd.f32 %v1574, %v1623
        %v1679 = vadd.f32 %v1575, %v1623
        %v1680 = vadd.f32 %v1576, %v1623
        %v1681 = vadd.f32 %v1577, %v1623
        %v1682 = vadd.f32 %v1578, %v1623
        %v1683 = vadd.f32 %v1579, %v1623
        %v1684 = vadd.f32 %v1580, %v1623
        %v1685 = vadd.f32 %v1581, %v1623
        %v1686 = vadd.f32 %v1582, %v1623
        %v1687 = vadd.f32 %v1583, %v1623
        %v1688 = vadd.f32 %v1584, %v1623
        %v1689 = vadd.f32 %v1585, %v1623
        %v1690 = vadd.f32 %v1586, %v1623
        %v1691 = vadd.f32 %v1587, %v1623
        %v1692 = vadd.f32 %v1588, %v1623
        %v1693 = vadd.f32 %v1589, %v1623
        %v1694 = vadd.f32 %v1590, %v1623
        %v1695 = vadd.f32 %v1591, %v1623
        %v1696 = vadd.f32 %v1592, %v1623
        %v1697 = vadd.f32 %v1593, %v1623
        %v1698 = vadd.f32 %v1594, %v1623
        %v1699 = vadd.f32 %v1595, %v1623
        %v1700 = vadd.f32 %v1596, %v1623
        %v1701 = vadd.f32 %v1597, %v1623
        %v1702 = vadd.f32 %v1598, %v1623
        %v1703 = vadd.f32 %v1599, %v1623
        %v1704 = vadd.f32 %v1600, %v1623
        %v1705 = vadd.f32 %v1601, %v1623
        %v1706 = vadd.f32 %v1602, %v1623
        %v1707 = vadd.f32 %v1603, %v1623
        %v1708 = vadd.f32 %v1604, %v1623
        %v1709 = vadd.f32 %v1605, %v1623
        %v1710 = vadd.f32 %v1606, %v1623
        %v1711 = vadd.f32 %v1607, %v1623
        %v1712 = vadd.f32 %v1608, %v1623
        %v1713 = vadd.f32 %v1609, %v1623
        %v1714 = vadd.f32 %v1610, %v1623
        %v1715 = vadd.f32 %v1611, %v1623
        %v1716 = vadd.f32 %v1612, %v1623
        %v1717 = vadd.f32 %v1613, %v1623
        %v1718 = vadd.f32 %v1614, %v1623
        %v1719 = vadd.f32 %v1615, %v1623
        %v1720 = vadd.f32 %v1616, %v1623
        %v1721 = vadd.f32 %v1617, %v1623
        %v1722 = vadd.f32 %v1618, %v1623
        %v1723 = vadd.f32 %v1619, %v1623
        %v1724 = vadd.f32 %v1620, %v1623
        %v1725 = vpack.c.bf16 %v1625, %v1625
        %v1726 = vpack.c.bf16 %v1626, %v1626
        %v1727 = vpack.c.bf16 %v1627, %v1627
        %v1728 = vpack.c.bf16 %v1628, %v1628
        %v1729 = vpack.c.bf16 %v1629, %v1629
        %v1730 = vpack.c.bf16 %v1630, %v1630
        %v1731 = vpack.c.bf16 %v1631, %v1631
        %v1732 = vpack.c.bf16 %v1632, %v1632
        %v1733 = vpack.c.bf16 %v1633, %v1633
        %v1734 = vpack.c.bf16 %v1634, %v1634
        %v1735 = vpack.c.bf16 %v1635, %v1635
        %v1736 = vpack.c.bf16 %v1636, %v1636
        %v1737 = vpack.c.bf16 %v1637, %v1637
        %v1738 = vpack.c.bf16 %v1638, %v1638
        %v1739 = vpack.c.bf16 %v1639, %v1639
        %v1740 = vpack.c.bf16 %v1640, %v1640
        %v1741 = vpack.c.bf16 %v1641, %v1641
        %v1742 = vpack.c.bf16 %v1642, %v1642
        %v1743 = vpack.c.bf16 %v1643, %v1643
        %v1744 = vpack.c.bf16 %v1644, %v1644
        %v1745 = vpack.c.bf16 %v1645, %v1645
        %v1746 = vpack.c.bf16 %v1646, %v1646
        %v1747 = vpack.c.bf16 %v1647, %v1647
        %v1748 = vpack.c.bf16 %v1648, %v1648
        %v1749 = vpack.c.bf16 %v1649, %v1649
        %v1750 = vpack.c.bf16 %v1650, %v1650
        %v1751 = vpack.c.bf16 %v1651, %v1651
        %v1752 = vpack.c.bf16 %v1652, %v1652
        %v1753 = vpack.c.bf16 %v1653, %v1653
        %v1754 = vpack.c.bf16 %v1654, %v1654
        %v1755 = vpack.c.bf16 %v1655, %v1655
        %v1756 = vpack.c.bf16 %v1656, %v1656
        %v1757 = vpack.c.bf16 %v1657, %v1657
        %v1758 = vpack.c.bf16 %v1658, %v1658
        %v1759 = vpack.c.bf16 %v1659, %v1659
        %v1760 = vpack.c.bf16 %v1660, %v1660
        %v1761 = vpack.c.bf16 %v1661, %v1661
        %v1762 = vpack.c.bf16 %v1662, %v1662
        %v1763 = vpack.c.bf16 %v1663, %v1663
        %v1764 = vpack.c.bf16 %v1664, %v1664
        %v1765 = vpack.c.bf16 %v1665, %v1665
        %v1766 = vpack.c.bf16 %v1666, %v1666
        %v1767 = vpack.c.bf16 %v1667, %v1667
        %v1768 = vpack.c.bf16 %v1668, %v1668
        %v1769 = vpack.c.bf16 %v1669, %v1669
        %v1770 = vpack.c.bf16 %v1670, %v1670
        %v1771 = vpack.c.bf16 %v1671, %v1671
        %v1772 = vpack.c.bf16 %v1672, %v1672
        %v1773 = vpack.c.bf16 %v1673, %v1673
        %v1774 = vpack.c.bf16 %v1674, %v1674
        %v1775 = vpack.c.bf16 %v1675, %v1675
        %v1776 = vpack.c.bf16 %v1676, %v1676
        %v1777 = vpack.c.bf16 %v1677, %v1677
        %v1778 = vpack.c.bf16 %v1678, %v1678
        %v1779 = vpack.c.bf16 %v1679, %v1679
        %v1780 = vpack.c.bf16 %v1680, %v1680
        %v1781 = vpack.c.bf16 %v1681, %v1681
        %v1782 = vpack.c.bf16 %v1682, %v1682
        %v1783 = vpack.c.bf16 %v1683, %v1683
        %v1784 = vpack.c.bf16 %v1684, %v1684
        %v1785 = vpack.c.bf16 %v1685, %v1685
        %v1786 = vpack.c.bf16 %v1686, %v1686
        %v1787 = vpack.c.bf16 %v1687, %v1687
        %v1788 = vpack.c.bf16 %v1688, %v1688
        %v1789 = vpack.c.bf16 %v1689, %v1689
        %v1790 = vpack.c.bf16 %v1690, %v1690
        %v1791 = vpack.c.bf16 %v1691, %v1691
        %v1792 = vpack.c.bf16 %v1692, %v1692
        %v1793 = vpack.c.bf16 %v1693, %v1693
        %v1794 = vpack.c.bf16 %v1694, %v1694
        %v1795 = vpack.c.bf16 %v1695, %v1695
        %v1796 = vpack.c.bf16 %v1696, %v1696
        %v1797 = vpack.c.bf16 %v1697, %v1697
        %v1798 = vpack.c.bf16 %v1698, %v1698
        %v1799 = vpack.c.bf16 %v1699, %v1699
        %v1800 = vpack.c.bf16 %v1700, %v1700
        %v1801 = vpack.c.bf16 %v1701, %v1701
        %v1802 = vpack.c.bf16 %v1702, %v1702
        %v1803 = vpack.c.bf16 %v1703, %v1703
        %v1804 = vpack.c.bf16 %v1704, %v1704
        %v1805 = vpack.c.bf16 %v1705, %v1705
        %v1806 = vpack.c.bf16 %v1706, %v1706
        %v1807 = vpack.c.bf16 %v1707, %v1707
        %v1808 = vpack.c.bf16 %v1708, %v1708
        %v1809 = vpack.c.bf16 %v1709, %v1709
        %v1810 = vpack.c.bf16 %v1710, %v1710
        %v1811 = vpack.c.bf16 %v1711, %v1711
        %v1812 = vpack.c.bf16 %v1712, %v1712
        %v1813 = vpack.c.bf16 %v1713, %v1713
        %v1814 = vpack.c.bf16 %v1714, %v1714
        %v1815 = vpack.c.bf16 %v1715, %v1715
        %v1816 = vpack.c.bf16 %v1716, %v1716
        %v1817 = vpack.c.bf16 %v1717, %v1717
        %v1818 = vpack.c.bf16 %v1718, %v1718
        %v1819 = vpack.c.bf16 %v1719, %v1719
        %v1820 = vpack.c.bf16 %v1720, %v1720
        %v1821 = vpack.c.bf16 %v1721, %v1721
        %v1822 = vpack.c.bf16 %v1722, %v1722
        %v1823 = vpack.c.bf16 %v1723, %v1723
        %v1824 = vpack.c.bf16 %v1724, %v1724
        %vm1825 = vcmask 257024
        %1826 = vst.msk [vmem:[%s5] sm:$0xf] %vm1825, %v1725
        %1827 = vst.msk [vmem:[%s5 + $0x4] sm:$0xf] %vm1825, %v1726
        %1828 = vst.msk [vmem:[%s5 + $0x8] sm:$0xf] %vm1825, %v1727
        %1829 = vst.msk [vmem:[%s5 + $0xc] sm:$0xf] %vm1825, %v1728
        %1830 = vst.msk [vmem:[%s5 + $0x10] sm:$0xf] %vm1825, %v1729
        %1831 = vst.msk [vmem:[%s5 + $0x14] sm:$0xf] %vm1825, %v1730
        %1832 = vst.msk [vmem:[%s5 + $0x18] sm:$0xf] %vm1825, %v1731
        %1833 = vst.msk [vmem:[%s5 + $0x1c] sm:$0xf] %vm1825, %v1732
        %1834 = vst.msk [vmem:[%s5 + $0x20] sm:$0xf] %vm1825, %v1733
        %1835 = vst.msk [vmem:[%s5 + $0x24] sm:$0xf] %vm1825, %v1734
        %1836 = vst.msk [vmem:[%s5 + $0x28] sm:$0xf] %vm1825, %v1735
        %1837 = vst.msk [vmem:[%s5 + $0x2c] sm:$0xf] %vm1825, %v1736
        %1838 = vst.msk [vmem:[%s5 + $0x30] sm:$0xf] %vm1825, %v1737
        %1839 = vst.msk [vmem:[%s5 + $0x34] sm:$0xf] %vm1825, %v1738
        %1840 = vst.msk [vmem:[%s5 + $0x38] sm:$0xf] %vm1825, %v1739
        %1841 = vst.msk [vmem:[%s5 + $0x3c] sm:$0xf] %vm1825, %v1740
        %1842 = vst.msk [vmem:[%s5 + $0x40] sm:$0xf] %vm1825, %v1741
        %1843 = vst.msk [vmem:[%s5 + $0x44] sm:$0xf] %vm1825, %v1742
        %1844 = vst.msk [vmem:[%s5 + $0x48] sm:$0xf] %vm1825, %v1743
        %1845 = vst.msk [vmem:[%s5 + $0x4c] sm:$0xf] %vm1825, %v1744
        %1846 = vst.msk [vmem:[%s5 + $0x50] sm:$0xf] %vm1825, %v1745
        %1847 = vst.msk [vmem:[%s5 + $0x54] sm:$0xf] %vm1825, %v1746
        %1848 = vst.msk [vmem:[%s5 + $0x58] sm:$0xf] %vm1825, %v1747
        %1849 = vst.msk [vmem:[%s5 + $0x5c] sm:$0xf] %vm1825, %v1748
        %1850 = vst.msk [vmem:[%s5 + $0x60] sm:$0xf] %vm1825, %v1749
        %1851 = vst.msk [vmem:[%s5 + $0x64] sm:$0xf] %vm1825, %v1750
        %1852 = vst.msk [vmem:[%s5 + $0x68] sm:$0xf] %vm1825, %v1751
        %1853 = vst.msk [vmem:[%s5 + $0x6c] sm:$0xf] %vm1825, %v1752
        %1854 = vst.msk [vmem:[%s5 + $0x70] sm:$0xf] %vm1825, %v1753
        %1855 = vst.msk [vmem:[%s5 + $0x74] sm:$0xf] %vm1825, %v1754
        %1856 = vst.msk [vmem:[%s5 + $0x78] sm:$0xf] %vm1825, %v1755
        %1857 = vst.msk [vmem:[%s5 + $0x7c] sm:$0xf] %vm1825, %v1756
        %1858 = vst.msk [vmem:[%s5 + $0x80] sm:$0xf] %vm1825, %v1757
        %1859 = vst.msk [vmem:[%s5 + $0x84] sm:$0xf] %vm1825, %v1758
        %1860 = vst.msk [vmem:[%s5 + $0x88] sm:$0xf] %vm1825, %v1759
        %1861 = vst.msk [vmem:[%s5 + $0x8c] sm:$0xf] %vm1825, %v1760
        %1862 = vst.msk [vmem:[%s5 + $0x90] sm:$0xf] %vm1825, %v1761
        %1863 = vst.msk [vmem:[%s5 + $0x94] sm:$0xf] %vm1825, %v1762
        %1864 = vst.msk [vmem:[%s5 + $0x98] sm:$0xf] %vm1825, %v1763
        %1865 = vst.msk [vmem:[%s5 + $0x9c] sm:$0xf] %vm1825, %v1764
        %1866 = vst.msk [vmem:[%s5 + $0xa0] sm:$0xf] %vm1825, %v1765
        %1867 = vst.msk [vmem:[%s5 + $0xa4] sm:$0xf] %vm1825, %v1766
        %1868 = vst.msk [vmem:[%s5 + $0xa8] sm:$0xf] %vm1825, %v1767
        %1869 = vst.msk [vmem:[%s5 + $0xac] sm:$0xf] %vm1825, %v1768
        %1870 = vst.msk [vmem:[%s5 + $0xb0] sm:$0xf] %vm1825, %v1769
        %1871 = vst.msk [vmem:[%s5 + $0xb4] sm:$0xf] %vm1825, %v1770
        %1872 = vst.msk [vmem:[%s5 + $0xb8] sm:$0xf] %vm1825, %v1771
        %1873 = vst.msk [vmem:[%s5 + $0xbc] sm:$0xf] %vm1825, %v1772
        %1874 = vst.msk [vmem:[%s5 + $0xc0] sm:$0xf] %vm1825, %v1773
        %1875 = vst.msk [vmem:[%s5 + $0xc4] sm:$0xf] %vm1825, %v1774
        %1876 = vst.msk [vmem:[%s5 + $0xc8] sm:$0xf] %vm1825, %v1775
        %1877 = vst.msk [vmem:[%s5 + $0xcc] sm:$0xf] %vm1825, %v1776
        %1878 = vst.msk [vmem:[%s5 + $0xd0] sm:$0xf] %vm1825, %v1777
        %1879 = vst.msk [vmem:[%s5 + $0xd4] sm:$0xf] %vm1825, %v1778
        %1880 = vst.msk [vmem:[%s5 + $0xd8] sm:$0xf] %vm1825, %v1779
        %1881 = vst.msk [vmem:[%s5 + $0xdc] sm:$0xf] %vm1825, %v1780
        %1882 = vst.msk [vmem:[%s5 + $0xe0] sm:$0xf] %vm1825, %v1781
        %1883 = vst.msk [vmem:[%s5 + $0xe4] sm:$0xf] %vm1825, %v1782
        %1884 = vst.msk [vmem:[%s5 + $0xe8] sm:$0xf] %vm1825, %v1783
        %1885 = vst.msk [vmem:[%s5 + $0xec] sm:$0xf] %vm1825, %v1784
        %1886 = vst.msk [vmem:[%s5 + $0xf0] sm:$0xf] %vm1825, %v1785
        %1887 = vst.msk [vmem:[%s5 + $0xf4] sm:$0xf] %vm1825, %v1786
        %1888 = vst.msk [vmem:[%s5 + $0xf8] sm:$0xf] %vm1825, %v1787
        %1889 = vst.msk [vmem:[%s5 + $0xfc] sm:$0xf] %vm1825, %v1788
        %1890 = vst.msk [vmem:[%s5 + $0x100] sm:$0xf] %vm1825, %v1789
        %1891 = vst.msk [vmem:[%s5 + $0x104] sm:$0xf] %vm1825, %v1790
        %1892 = vst.msk [vmem:[%s5 + $0x108] sm:$0xf] %vm1825, %v1791
        %1893 = vst.msk [vmem:[%s5 + $0x10c] sm:$0xf] %vm1825, %v1792
        %1894 = vst.msk [vmem:[%s5 + $0x110] sm:$0xf] %vm1825, %v1793
        %1895 = vst.msk [vmem:[%s5 + $0x114] sm:$0xf] %vm1825, %v1794
        %1896 = vst.msk [vmem:[%s5 + $0x118] sm:$0xf] %vm1825, %v1795
        %1897 = vst.msk [vmem:[%s5 + $0x11c] sm:$0xf] %vm1825, %v1796
        %1898 = vst.msk [vmem:[%s5 + $0x120] sm:$0xf] %vm1825, %v1797
        %1899 = vst.msk [vmem:[%s5 + $0x124] sm:$0xf] %vm1825, %v1798
        %1900 = vst.msk [vmem:[%s5 + $0x128] sm:$0xf] %vm1825, %v1799
        %1901 = vst.msk [vmem:[%s5 + $0x12c] sm:$0xf] %vm1825, %v1800
        %1902 = vst.msk [vmem:[%s5 + $0x130] sm:$0xf] %vm1825, %v1801
        %1903 = vst.msk [vmem:[%s5 + $0x134] sm:$0xf] %vm1825, %v1802
        %1904 = vst.msk [vmem:[%s5 + $0x138] sm:$0xf] %vm1825, %v1803
        %1905 = vst.msk [vmem:[%s5 + $0x13c] sm:$0xf] %vm1825, %v1804
        %1906 = vst.msk [vmem:[%s5 + $0x140] sm:$0xf] %vm1825, %v1805
        %1907 = vst.msk [vmem:[%s5 + $0x144] sm:$0xf] %vm1825, %v1806
        %1908 = vst.msk [vmem:[%s5 + $0x148] sm:$0xf] %vm1825, %v1807
        %1909 = vst.msk [vmem:[%s5 + $0x14c] sm:$0xf] %vm1825, %v1808
        %1910 = vst.msk [vmem:[%s5 + $0x150] sm:$0xf] %vm1825, %v1809
        %1911 = vst.msk [vmem:[%s5 + $0x154] sm:$0xf] %vm1825, %v1810
        %1912 = vst.msk [vmem:[%s5 + $0x158] sm:$0xf] %vm1825, %v1811
        %1913 = vst.msk [vmem:[%s5 + $0x15c] sm:$0xf] %vm1825, %v1812
        %1914 = vst.msk [vmem:[%s5 + $0x160] sm:$0xf] %vm1825, %v1813
        %1915 = vst.msk [vmem:[%s5 + $0x164] sm:$0xf] %vm1825, %v1814
        %1916 = vst.msk [vmem:[%s5 + $0x168] sm:$0xf] %vm1825, %v1815
        %1917 = vst.msk [vmem:[%s5 + $0x16c] sm:$0xf] %vm1825, %v1816
        %1918 = vst.msk [vmem:[%s5 + $0x170] sm:$0xf] %vm1825, %v1817
        %1919 = vst.msk [vmem:[%s5 + $0x174] sm:$0xf] %vm1825, %v1818
        %1920 = vst.msk [vmem:[%s5 + $0x178] sm:$0xf] %vm1825, %v1819
        %1921 = vst.msk [vmem:[%s5 + $0x17c] sm:$0xf] %vm1825, %v1820
        %1922 = vst.msk [vmem:[%s5 + $0x180] sm:$0xf] %vm1825, %v1821
        %1923 = vst.msk [vmem:[%s5 + $0x184] sm:$0xf] %vm1825, %v1822
        %1924 = vst.msk [vmem:[%s5 + $0x188] sm:$0xf] %vm1825, %v1823
        %1925 = vst.msk [vmem:[%s5 + $0x18c] sm:$0xf] %vm1825, %v1824
      $region48: #{net_forward.5} parent=39 // pred_fallthru
        _
      // Predicated region
      $region49: #{net_forward.5} parent=39 // pred_check
        %p1926 = pneg %p139
      $region50: #{net_forward.5} parent=39 // pred_check_branch
        %1928 = sbr.rel (%p1926) target = $region52
      $region51: #{net_forward.5} parent=39 // pred_region
        _
      $region52: #{net_forward.5} parent=39 // pred_fallthru
        _
      // Predicated region
      $region53: #{net_forward.5} parent=39 // pred_check
        %p1929 = pneg %p139
      $region54: #{net_forward.5} parent=39 // pred_check_branch
        %1931 = sbr.rel (%p1929) target = $region56
      $region55: #{net_forward.5} parent=39 // pred_region
        _
      $region56: #{net_forward.5} parent=39 // pred_fallthru
        _
    $region40: #{net_forward.5} parent=5 // pred_fallthru
      _
    %p1932 = scmp.le.s32.totalorder 2, %s11
    // Predicated region
    $region57: #{net_forward.5} parent=5 // pred_check
      %p1933 = pneg %p1932
    $region58: #{net_forward.5} parent=5 // pred_check_branch
      %1935 = sbr.rel (%p1933) target = $region60
    $region59: #{net_forward.5} parent=5 // pred_region
      %s1936 = ssub.s32 %s11, 2
    $region60: #{net_forward.5} parent=5 // pred_fallthru
      _
  $region6: #{net_forward.5} parent=0 // loop_footer
    %s15 = sadd.s32 1, %s11
  $region7: #{net_forward.5} parent=0 // loop_footer_branch
    %10 = sbr.rel target = $region3
  $region8: #{net_forward.5} parent=0 // loop_exit
    _

// kernel: net_forward.6
$region0: #{net_forward.6}
  #allocation0 [shape = 'u32[]', space=smem, size = 0x4, offset = 0x4, fixed_abs, tag = 'smem constant byte address 0x4 - core index']
  #allocation1 [shape = 'u32[72,128]{1,0:T(1,128)}', space=vmem, size = 0x9000, scoped, tag = 'internal scratch']
  %s0 = inlined_call_operand.vmem [shape: bf16[162,512], index: 0, kind: input, shape index: {}]
  %s1 = inlined_call_operand.vmem [shape: bf16[512,64], index: 1, kind: input, shape index: {}]
  %s2 = inlined_call_operand.vmem [shape: f32[1,64], index: 2, kind: input, shape index: {}]
  %s3 = inlined_call_operand.vmem [shape: f32[1,64], index: 3, kind: input, shape index: {}]
  %s4 = inlined_call_operand.vmem [shape: f32[1,64], index: 4, kind: input, shape index: {}]
  %s5 = inlined_call_operand.vmem [shape: bf16[162,64], index: 5, kind: output, shape index: {}]
  %s6 = sld [smem:[#allocation0]]
  $region30: #{net_forward.6} parent=0
    _
  %s8 = ssub.s32 1, %s6
  %s9 = scalar_select 0, %s8, %s6
  // Predicated region
  $region2: #{net_forward.6} parent=0 // pred_check
    _
  $region3: #{net_forward.6} parent=0 // pred_check_branch
    %11 = sbr.rel (0) target = $region5
  $region4: #{net_forward.6} parent=0 // pred_region
    _
  $region5: #{net_forward.6} parent=0 // pred_fallthru
    _
  // Predicated region
  $region6: #{net_forward.6} parent=0 // pred_check
    _
  $region7: #{net_forward.6} parent=0 // pred_check_branch
    %13 = sbr.rel (0) target = $region9
  $region8: #{net_forward.6} parent=0 // pred_region
    _
  $region9: #{net_forward.6} parent=0 // pred_fallthru
    _
  // Predicated region
  $region10: #{net_forward.6} parent=0 // pred_check
    _
  $region11: #{net_forward.6} parent=0 // pred_check_branch
    %15 = sbr.rel (0) target = $region13
  $region12: #{net_forward.6} parent=0 // pred_region
    _
  $region13: #{net_forward.6} parent=0 // pred_fallthru
    _
  // Predicated region
  $region14: #{net_forward.6} parent=0 // pred_check
    _
  $region15: #{net_forward.6} parent=0 // pred_check_branch
    %17 = sbr.rel (0) target = $region17
  $region16: #{net_forward.6} parent=0 // pred_region
    _
  $region17: #{net_forward.6} parent=0 // pred_fallthru
    _
  // Predicated region
  $region18: #{net_forward.6} parent=0 // pred_check
    _
  $region19: #{net_forward.6} parent=0 // pred_check_branch
    %19 = sbr.rel (0) target = $region21
  $region20: #{net_forward.6} parent=0 // pred_region
    _
  $region21: #{net_forward.6} parent=0 // pred_fallthru
    _
  %v20 = vld [vmem:[%s0] sm:$0xff]
  %v21 = vld [vmem:[%s0 + $0x8] sm:$0xff]
  %v22 = vld [vmem:[%s0 + $0x10] sm:$0xff]
  %v23 = vld [vmem:[%s0 + $0x18] sm:$0xff]
  %v24 = vld [vmem:[%s0 + $0x20] sm:$0xff]
  %v25 = vld [vmem:[%s0 + $0x28] sm:$0xff]
  %v26 = vld [vmem:[%s0 + $0x30] sm:$0xff]
  %v27 = vld [vmem:[%s0 + $0x38] sm:$0xff]
  %v28 = vld [vmem:[%s0 + $0x40] sm:$0xff]
  %v29 = vld [vmem:[%s0 + $0x48] sm:$0xff]
  %v30 = vld [vmem:[%s0 + $0x50] sm:$0xff]
  %v31 = vld [vmem:[%s0 + $0x58] sm:$0xff]
  %v32 = vld [vmem:[%s0 + $0x60] sm:$0xff]
  %v33 = vld [vmem:[%s0 + $0x68] sm:$0xff]
  %v34 = vld [vmem:[%s0 + $0x70] sm:$0xff]
  %v35 = vld [vmem:[%s0 + $0x78] sm:$0xff]
  %v36 = vld [vmem:[%s0 + $0x80] sm:$0xff]
  %v37 = vld [vmem:[%s0 + $0x88] sm:$0xff]
  %v38 = vld [vmem:[%s0 + $0x90] sm:$0xff]
  %v39 = vld [vmem:[%s0 + $0x98] sm:$0xff]
  %v40 = vld [vmem:[%s0 + $0xa0] sm:$0xff]
  %v41 = vld [vmem:[%s0 + $0xa8] sm:$0xff]
  %v42 = vld [vmem:[%s0 + $0xb0] sm:$0xff]
  %v43 = vld [vmem:[%s0 + $0xb8] sm:$0xff]
  %v44 = vld [vmem:[%s0 + $0xc0] sm:$0xff]
  %v45 = vld [vmem:[%s0 + $0xc8] sm:$0xff]
  %v46 = vld [vmem:[%s0 + $0xd0] sm:$0xff]
  %v47 = vld [vmem:[%s0 + $0xd8] sm:$0xff]
  %v48 = vld [vmem:[%s0 + $0xe0] sm:$0xff]
  %v49 = vld [vmem:[%s0 + $0xe8] sm:$0xff]
  %v50 = vld [vmem:[%s0 + $0xf0] sm:$0xff]
  %v51 = vld [vmem:[%s0 + $0xf8] sm:$0xff]
  %v52 = vld [vmem:[%s0 + $0x100] sm:$0xff]
  %v53 = vld [vmem:[%s0 + $0x108] sm:$0xff]
  %v54 = vld [vmem:[%s0 + $0x110] sm:$0xff]
  %v55 = vld [vmem:[%s0 + $0x118] sm:$0xff]
  %v56 = vld [vmem:[%s0 + $0x120] sm:$0xff]
  %v57 = vld [vmem:[%s0 + $0x128] sm:$0xff]
  %v58 = vld [vmem:[%s0 + $0x130] sm:$0xff]
  %v59 = vld [vmem:[%s0 + $0x138] sm:$0xff]
  %v60 = vld [vmem:[%s0 + $0x140] sm:$0x11]
  %v61 = vld [vmem:[%s0 + $0x148] sm:$0x11]
  %v62 = vld [vmem:[%s1] sm:$0xf]
  %v63 = vld [vmem:[%s1 + $0x4] sm:$0xf]
  %v64 = vld [vmem:[%s1 + $0x8] sm:$0xf]
  %v65 = vld [vmem:[%s1 + $0xc] sm:$0xf]
  %v66 = vld [vmem:[%s1 + $0x10] sm:$0xf]
  %v67 = vld [vmem:[%s1 + $0x14] sm:$0xf]
  %v68 = vld [vmem:[%s1 + $0x18] sm:$0xf]
  %v69 = vld [vmem:[%s1 + $0x1c] sm:$0xf]
  %v70 = vld [vmem:[%s1 + $0x20] sm:$0xf]
  %v71 = vld [vmem:[%s1 + $0x24] sm:$0xf]
  %v72 = vld [vmem:[%s1 + $0x28] sm:$0xf]
  %v73 = vld [vmem:[%s1 + $0x2c] sm:$0xf]
  %v74 = vld [vmem:[%s1 + $0x30] sm:$0xf]
  %v75 = vld [vmem:[%s1 + $0x34] sm:$0xf]
  %v76 = vld [vmem:[%s1 + $0x38] sm:$0xf]
  %v77 = vld [vmem:[%s1 + $0x3c] sm:$0xf]
  %v78 = vld [vmem:[%s1 + $0x40] sm:$0xf]
  %v79 = vld [vmem:[%s1 + $0x44] sm:$0xf]
  %v80 = vld [vmem:[%s1 + $0x48] sm:$0xf]
  %v81 = vld [vmem:[%s1 + $0x4c] sm:$0xf]
  %v82 = vld [vmem:[%s1 + $0x50] sm:$0xf]
  %v83 = vld [vmem:[%s1 + $0x54] sm:$0xf]
  %v84 = vld [vmem:[%s1 + $0x58] sm:$0xf]
  %v85 = vld [vmem:[%s1 + $0x5c] sm:$0xf]
  %v86 = vld [vmem:[%s1 + $0x60] sm:$0xf]
  %v87 = vld [vmem:[%s1 + $0x64] sm:$0xf]
  %v88 = vld [vmem:[%s1 + $0x68] sm:$0xf]
  %v89 = vld [vmem:[%s1 + $0x6c] sm:$0xf]
  %v90 = vld [vmem:[%s1 + $0x70] sm:$0xf]
  %v91 = vld [vmem:[%s1 + $0x74] sm:$0xf]
  %v92 = vld [vmem:[%s1 + $0x78] sm:$0xf]
  %v93 = vld [vmem:[%s1 + $0x7c] sm:$0xf]
  %v94 = vld [vmem:[%s1 + $0x80] sm:$0xf]
  %v95 = vld [vmem:[%s1 + $0x84] sm:$0xf]
  %v96 = vld [vmem:[%s1 + $0x88] sm:$0xf]
  %v97 = vld [vmem:[%s1 + $0x8c] sm:$0xf]
  %v98 = vld [vmem:[%s1 + $0x90] sm:$0xf]
  %v99 = vld [vmem:[%s1 + $0x94] sm:$0xf]
  %v100 = vld [vmem:[%s1 + $0x98] sm:$0xf]
  %v101 = vld [vmem:[%s1 + $0x9c] sm:$0xf]
  %v102 = vld [vmem:[%s1 + $0xa0] sm:$0xf]
  %v103 = vld [vmem:[%s1 + $0xa4] sm:$0xf]
  %v104 = vld [vmem:[%s1 + $0xa8] sm:$0xf]
  %v105 = vld [vmem:[%s1 + $0xac] sm:$0xf]
  %v106 = vld [vmem:[%s1 + $0xb0] sm:$0xf]
  %v107 = vld [vmem:[%s1 + $0xb4] sm:$0xf]
  %v108 = vld [vmem:[%s1 + $0xb8] sm:$0xf]
  %v109 = vld [vmem:[%s1 + $0xbc] sm:$0xf]
  %v110 = vld [vmem:[%s1 + $0xc0] sm:$0xf]
  %v111 = vld [vmem:[%s1 + $0xc4] sm:$0xf]
  %v112 = vld [vmem:[%s1 + $0xc8] sm:$0xf]
  %v113 = vld [vmem:[%s1 + $0xcc] sm:$0xf]
  %v114 = vld [vmem:[%s1 + $0xd0] sm:$0xf]
  %v115 = vld [vmem:[%s1 + $0xd4] sm:$0xf]
  %v116 = vld [vmem:[%s1 + $0xd8] sm:$0xf]
  %v117 = vld [vmem:[%s1 + $0xdc] sm:$0xf]
  %v118 = vld [vmem:[%s1 + $0xe0] sm:$0xf]
  %v119 = vld [vmem:[%s1 + $0xe4] sm:$0xf]
  %v120 = vld [vmem:[%s1 + $0xe8] sm:$0xf]
  %v121 = vld [vmem:[%s1 + $0xec] sm:$0xf]
  %v122 = vld [vmem:[%s1 + $0xf0] sm:$0xf]
  %v123 = vld [vmem:[%s1 + $0xf4] sm:$0xf]
  %v124 = vld [vmem:[%s1 + $0xf8] sm:$0xf]
  %v125 = vld [vmem:[%s1 + $0xfc] sm:$0xf]
  %v126 = vld [vmem:[%s2] sm:$0x1]
  %v128 = vperm.slane %v126, 0
  %v172 = vunpack.c.l.b16 %v20
  %v173 = vunpack.c.h.b16 %v20
  %v174 = vunpack.c.l.b16 %v21
  %v175 = vunpack.c.h.b16 %v21
  %v176 = vunpack.c.l.b16 %v22
  %v177 = vunpack.c.h.b16 %v22
  %v178 = vunpack.c.l.b16 %v23
  %v179 = vunpack.c.h.b16 %v23
  %v180 = vunpack.c.l.b16 %v24
  %v181 = vunpack.c.h.b16 %v24
  %v182 = vunpack.c.l.b16 %v25
  %v183 = vunpack.c.h.b16 %v25
  %v184 = vunpack.c.l.b16 %v26
  %v185 = vunpack.c.h.b16 %v26
  %v186 = vunpack.c.l.b16 %v27
  %v187 = vunpack.c.h.b16 %v27
  %v188 = vunpack.c.l.b16 %v28
  %v189 = vunpack.c.h.b16 %v28
  %v190 = vunpack.c.l.b16 %v29
  %v191 = vunpack.c.h.b16 %v29
  %v192 = vunpack.c.l.b16 %v30
  %v193 = vunpack.c.h.b16 %v30
  %v194 = vunpack.c.l.b16 %v31
  %v195 = vunpack.c.h.b16 %v31
  %v196 = vunpack.c.l.b16 %v32
  %v197 = vunpack.c.h.b16 %v32
  %v198 = vunpack.c.l.b16 %v33
  %v199 = vunpack.c.h.b16 %v33
  %v200 = vunpack.c.l.b16 %v34
  %v201 = vunpack.c.h.b16 %v34
  %v202 = vunpack.c.l.b16 %v35
  %v203 = vunpack.c.h.b16 %v35
  %v204 = vunpack.c.l.b16 %v36
  %v205 = vunpack.c.h.b16 %v36
  %v206 = vunpack.c.l.b16 %v37
  %v207 = vunpack.c.h.b16 %v37
  %v208 = vunpack.c.l.b16 %v38
  %v209 = vunpack.c.h.b16 %v38
  %v210 = vunpack.c.l.b16 %v39
  %v211 = vunpack.c.h.b16 %v39
  %v212 = vunpack.c.l.b16 %v40
  %v213 = vunpack.c.h.b16 %v40
  %v214 = vunpack.c.l.b16 %v41
  %v215 = vunpack.c.h.b16 %v41
  %v216 = vunpack.c.l.b16 %v42
  %v217 = vunpack.c.h.b16 %v42
  %v218 = vunpack.c.l.b16 %v43
  %v219 = vunpack.c.h.b16 %v43
  %v220 = vunpack.c.l.b16 %v44
  %v221 = vunpack.c.h.b16 %v44
  %v222 = vunpack.c.l.b16 %v45
  %v223 = vunpack.c.h.b16 %v45
  %v224 = vunpack.c.l.b16 %v46
  %v225 = vunpack.c.h.b16 %v46
  %v226 = vunpack.c.l.b16 %v47
  %v227 = vunpack.c.h.b16 %v47
  %v228 = vunpack.c.l.b16 %v48
  %v229 = vunpack.c.h.b16 %v48
  %v230 = vunpack.c.l.b16 %v49
  %v231 = vunpack.c.h.b16 %v49
  %v232 = vunpack.c.l.b16 %v50
  %v233 = vunpack.c.h.b16 %v50
  %v234 = vunpack.c.l.b16 %v51
  %v235 = vunpack.c.h.b16 %v51
  %v236 = vunpack.c.l.b16 %v52
  %v237 = vunpack.c.h.b16 %v52
  %v238 = vunpack.c.l.b16 %v53
  %v239 = vunpack.c.h.b16 %v53
  %v240 = vunpack.c.l.b16 %v54
  %v241 = vunpack.c.h.b16 %v54
  %v242 = vunpack.c.l.b16 %v55
  %v243 = vunpack.c.h.b16 %v55
  %v244 = vunpack.c.l.b16 %v56
  %v245 = vunpack.c.h.b16 %v56
  %v246 = vunpack.c.l.b16 %v57
  %v247 = vunpack.c.h.b16 %v57
  %v248 = vunpack.c.l.b16 %v58
  %v249 = vunpack.c.h.b16 %v58
  %v250 = vunpack.c.l.b16 %v59
  %v251 = vunpack.c.h.b16 %v59
  %v252 = vunpack.c.l.b16 %v60
  %v253 = vunpack.c.h.b16 %v60
  %v254 = vunpack.c.l.b16 %v61
  %v255 = vunpack.c.h.b16 %v61
  %v256 = vpack.c.b16 %v176, %v172
  %v257 = vpack.c.b16 %v177, %v173
  %v258 = vpack.c.b16 %v178, %v174
  %v259 = vpack.c.b16 %v179, %v175
  %v260 = vpack.c.b16 %v184, %v180
  %v261 = vpack.c.b16 %v185, %v181
  %v262 = vpack.c.b16 %v186, %v182
  %v263 = vpack.c.b16 %v187, %v183
  %v264 = vpack.c.b16 %v192, %v188
  %v265 = vpack.c.b16 %v193, %v189
  %v266 = vpack.c.b16 %v194, %v190
  %v267 = vpack.c.b16 %v195, %v191
  %v268 = vpack.c.b16 %v200, %v196
  %v269 = vpack.c.b16 %v201, %v197
  %v270 = vpack.c.b16 %v202, %v198
  %v271 = vpack.c.b16 %v203, %v199
  %v272 = vpack.c.b16 %v208, %v204
  %v273 = vpack.c.b16 %v209, %v205
  %v274 = vpack.c.b16 %v210, %v206
  %v275 = vpack.c.b16 %v211, %v207
  %v276 = vpack.c.b16 %v216, %v212
  %v277 = vpack.c.b16 %v217, %v213
  %v278 = vpack.c.b16 %v218, %v214
  %v279 = vpack.c.b16 %v219, %v215
  %v280 = vpack.c.b16 %v224, %v220
  %v281 = vpack.c.b16 %v225, %v221
  %v282 = vpack.c.b16 %v226, %v222
  %v283 = vpack.c.b16 %v227, %v223
  %v284 = vpack.c.b16 %v232, %v228
  %v285 = vpack.c.b16 %v233, %v229
  %v286 = vpack.c.b16 %v234, %v230
  %v287 = vpack.c.b16 %v235, %v231
  %v288 = vpack.c.b16 %v240, %v236
  %v289 = vpack.c.b16 %v241, %v237
  %v290 = vpack.c.b16 %v242, %v238
  %v291 = vpack.c.b16 %v243, %v239
  %v292 = vpack.c.b16 %v248, %v244
  %v293 = vpack.c.b16 %v249, %v245
  %v294 = vpack.c.b16 %v250, %v246
  %v295 = vpack.c.b16 %v251, %v247
  %v296 = vpack.c.b16 %v252, %v252
  %v297 = vpack.c.b16 %v253, %v253
  %v298 = vpack.c.b16 %v254, %v254
  %v299 = vpack.c.b16 %v255, %v255
  %v408 = vunpack.c.l.b16 %v62
  %v409 = vunpack.c.l.b16 %v63
  %v410 = vunpack.c.l.b16 %v64
  %v411 = vunpack.c.l.b16 %v65
  %v412 = vunpack.c.l.b16 %v66
  %v413 = vunpack.c.l.b16 %v67
  %v414 = vunpack.c.l.b16 %v68
  %v415 = vunpack.c.l.b16 %v69
  %v416 = vunpack.c.l.b16 %v70
  %v417 = vunpack.c.l.b16 %v71
  %v418 = vunpack.c.l.b16 %v72
  %v419 = vunpack.c.l.b16 %v73
  %v420 = vunpack.c.l.b16 %v74
  %v421 = vunpack.c.l.b16 %v75
  %v422 = vunpack.c.l.b16 %v76
  %v423 = vunpack.c.l.b16 %v77
  %v424 = vunpack.c.l.b16 %v78
  %v425 = vunpack.c.l.b16 %v79
  %v426 = vunpack.c.l.b16 %v80
  %v427 = vunpack.c.l.b16 %v81
  %v428 = vunpack.c.l.b16 %v82
  %v429 = vunpack.c.l.b16 %v83
  %v430 = vunpack.c.l.b16 %v84
  %v431 = vunpack.c.l.b16 %v85
  %v432 = vunpack.c.l.b16 %v86
  %v433 = vunpack.c.l.b16 %v87
  %v434 = vunpack.c.l.b16 %v88
  %v435 = vunpack.c.l.b16 %v89
  %v436 = vunpack.c.l.b16 %v90
  %v437 = vunpack.c.l.b16 %v91
  %v438 = vunpack.c.l.b16 %v92
  %v439 = vunpack.c.l.b16 %v93
  %v440 = vunpack.c.l.b16 %v94
  %v441 = vunpack.c.l.b16 %v95
  %v442 = vunpack.c.l.b16 %v96
  %v443 = vunpack.c.l.b16 %v97
  %v444 = vunpack.c.l.b16 %v98
  %v445 = vunpack.c.l.b16 %v99
  %v446 = vunpack.c.l.b16 %v100
  %v447 = vunpack.c.l.b16 %v101
  %v448 = vunpack.c.l.b16 %v102
  %v449 = vunpack.c.l.b16 %v103
  %v450 = vunpack.c.l.b16 %v104
  %v451 = vunpack.c.l.b16 %v105
  %v452 = vunpack.c.l.b16 %v106
  %v453 = vunpack.c.l.b16 %v107
  %v454 = vunpack.c.l.b16 %v108
  %v455 = vunpack.c.l.b16 %v109
  %v456 = vunpack.c.l.b16 %v110
  %v457 = vunpack.c.l.b16 %v111
  %v458 = vunpack.c.l.b16 %v112
  %v459 = vunpack.c.l.b16 %v113
  %v460 = vunpack.c.l.b16 %v114
  %v461 = vunpack.c.l.b16 %v115
  %v462 = vunpack.c.l.b16 %v116
  %v463 = vunpack.c.l.b16 %v117
  %v464 = vunpack.c.l.b16 %v118
  %v465 = vunpack.c.l.b16 %v119
  %v466 = vunpack.c.l.b16 %v120
  %v467 = vunpack.c.l.b16 %v121
  %v468 = vunpack.c.l.b16 %v122
  %v469 = vunpack.c.l.b16 %v123
  %v470 = vunpack.c.l.b16 %v124
  %v471 = vunpack.c.l.b16 %v125
  %v472 = vpack.c.b16 %v409, %v408
  %v473 = vpack.c.b16 %v411, %v410
  %v474 = vpack.c.b16 %v413, %v412
  %v475 = vpack.c.b16 %v415, %v414
  %v476 = vpack.c.b16 %v417, %v416
  %v477 = vpack.c.b16 %v419, %v418
  %v478 = vpack.c.b16 %v421, %v420
  %v479 = vpack.c.b16 %v423, %v422
  %v480 = vpack.c.b16 %v425, %v424
  %v481 = vpack.c.b16 %v427, %v426
  %v482 = vpack.c.b16 %v429, %v428
  %v483 = vpack.c.b16 %v431, %v430
  %v484 = vpack.c.b16 %v433, %v432
  %v485 = vpack.c.b16 %v435, %v434
  %v486 = vpack.c.b16 %v437, %v436
  %v487 = vpack.c.b16 %v439, %v438
  %v488 = vpack.c.b16 %v441, %v440
  %v489 = vpack.c.b16 %v443, %v442
  %v490 = vpack.c.b16 %v445, %v444
  %v491 = vpack.c.b16 %v447, %v446
  %v492 = vpack.c.b16 %v449, %v448
  %v493 = vpack.c.b16 %v451, %v450
  %v494 = vpack.c.b16 %v453, %v452
  %v495 = vpack.c.b16 %v455, %v454
  %v496 = vpack.c.b16 %v457, %v456
  %v497 = vpack.c.b16 %v459, %v458
  %v498 = vpack.c.b16 %v461, %v460
  %v499 = vpack.c.b16 %v463, %v462
  %v500 = vpack.c.b16 %v465, %v464
  %v501 = vpack.c.b16 %v467, %v466
  %v502 = vpack.c.b16 %v469, %v468
  %v503 = vpack.c.b16 %v471, %v470
  %536 = vmatpush.bf16.msra.mxu0 %v479
  %537 = vmatpush.bf16.msra.mxu0 %v478
  %538 = vmatpush.bf16.msra.mxu0 %v477
  %539 = vmatpush.bf16.msra.mxu0 %v476
  %540 = vmatpush.bf16.msra.mxu0 %v475
  %541 = vmatpush.bf16.msra.mxu0 %v474
  %542 = vmatpush.bf16.msra.mxu0 %v473
  %543 = vmatpush.bf16.msra.mxu0 %v472
  %544 = vmatmul.bf16.gmra.mxu0 %v256
  %v545 = vpop.f32.mrf.mxu0
  %v546 = vadd.f32 %v128, %v545
  %v547 = vpop.f32.mrf.mxu0
  %v548 = vadd.f32 %v128, %v547
  %549 = vmatmul.bf16.gmra.mxu0 %v260
  %v550 = vpop.f32.mrf.mxu0
  %v551 = vadd.f32 %v128, %v550
  %v552 = vpop.f32.mrf.mxu0
  %v553 = vadd.f32 %v128, %v552
  %554 = vmatmul.bf16.gmra.mxu0 %v264
  %v555 = vpop.f32.mrf.mxu0
  %v556 = vadd.f32 %v128, %v555
  %v557 = vpop.f32.mrf.mxu0
  %v558 = vadd.f32 %v128, %v557
  %559 = vmatmul.bf16.gmra.mxu0 %v268
  %v560 = vpop.f32.mrf.mxu0
  %v561 = vadd.f32 %v128, %v560
  %v562 = vpop.f32.mrf.mxu0
  %v563 = vadd.f32 %v128, %v562
  %564 = vmatmul.bf16.gmra.mxu0 %v272
  %v565 = vpop.f32.mrf.mxu0
  %v566 = vadd.f32 %v128, %v565
  %v567 = vpop.f32.mrf.mxu0
  %v568 = vadd.f32 %v128, %v567
  %569 = vmatmul.bf16.gmra.mxu0 %v276
  %v570 = vpop.f32.mrf.mxu0
  %v571 = vadd.f32 %v128, %v570
  %v572 = vpop.f32.mrf.mxu0
  %v573 = vadd.f32 %v128, %v572
  %574 = vmatmul.bf16.gmra.mxu0 %v280
  %v575 = vpop.f32.mrf.mxu0
  %v576 = vadd.f32 %v128, %v575
  %v577 = vpop.f32.mrf.mxu0
  %v578 = vadd.f32 %v128, %v577
  %579 = vmatmul.bf16.gmra.mxu0 %v284
  %v580 = vpop.f32.mrf.mxu0
  %v581 = vadd.f32 %v128, %v580
  %v582 = vpop.f32.mrf.mxu0
  %v583 = vadd.f32 %v128, %v582
  %584 = vmatmul.bf16.gmra.mxu0 %v288
  %v585 = vpop.f32.mrf.mxu0
  %v586 = vadd.f32 %v128, %v585
  %v587 = vpop.f32.mrf.mxu0
  %v588 = vadd.f32 %v128, %v587
  %589 = vmatmul.bf16.gmra.mxu0 %v292
  %v590 = vpop.f32.mrf.mxu0
  %v591 = vadd.f32 %v128, %v590
  %v592 = vpop.f32.mrf.mxu0
  %v593 = vadd.f32 %v128, %v592
  %594 = vmatmul.bf16.gmra.mxu0 %v296
  %v595 = vpop.f32.mrf.mxu0
  %v596 = vadd.f32 %v128, %v595
  %v597 = vpop.f32.mrf.mxu0
  %598 = vdwg.mxu0
  %599 = vmatpush.bf16.msra.mxu0 %v487
  %600 = vmatpush.bf16.msra.mxu0 %v486
  %601 = vmatpush.bf16.msra.mxu0 %v485
  %602 = vmatpush.bf16.msra.mxu0 %v484
  %603 = vmatpush.bf16.msra.mxu0 %v483
  %604 = vmatpush.bf16.msra.mxu0 %v482
  %605 = vmatpush.bf16.msra.mxu0 %v481
  %606 = vmatpush.bf16.msra.mxu0 %v480
  %607 = vmatmul.bf16.gmra.mxu0 %v257
  %v608 = vpop.f32.mrf.mxu0
  %v609 = vadd.f32 %v546, %v608
  %v610 = vpop.f32.mrf.mxu0
  %v611 = vadd.f32 %v548, %v610
  %612 = vmatmul.bf16.gmra.mxu0 %v261
  %v613 = vpop.f32.mrf.mxu0
  %v614 = vadd.f32 %v551, %v613
  %v615 = vpop.f32.mrf.mxu0
  %v616 = vadd.f32 %v553, %v615
  %617 = vmatmul.bf16.gmra.mxu0 %v265
  %v618 = vpop.f32.mrf.mxu0
  %v619 = vadd.f32 %v556, %v618
  %v620 = vpop.f32.mrf.mxu0
  %v621 = vadd.f32 %v558, %v620
  %622 = vmatmul.bf16.gmra.mxu0 %v269
  %v623 = vpop.f32.mrf.mxu0
  %v624 = vadd.f32 %v561, %v623
  %v625 = vpop.f32.mrf.mxu0
  %v626 = vadd.f32 %v563, %v625
  %627 = vmatmul.bf16.gmra.mxu0 %v273
  %v628 = vpop.f32.mrf.mxu0
  %v629 = vadd.f32 %v566, %v628
  %v630 = vpop.f32.mrf.mxu0
  %v631 = vadd.f32 %v568, %v630
  %632 = vmatmul.bf16.gmra.mxu0 %v277
  %v633 = vpop.f32.mrf.mxu0
  %v634 = vadd.f32 %v571, %v633
  %v635 = vpop.f32.mrf.mxu0
  %v636 = vadd.f32 %v573, %v635
  %637 = vmatmul.bf16.gmra.mxu0 %v281
  %v638 = vpop.f32.mrf.mxu0
  %v639 = vadd.f32 %v576, %v638
  %v640 = vpop.f32.mrf.mxu0
  %v641 = vadd.f32 %v578, %v640
  %642 = vmatmul.bf16.gmra.mxu0 %v285
  %v643 = vpop.f32.mrf.mxu0
  %v644 = vadd.f32 %v581, %v643
  %v645 = vpop.f32.mrf.mxu0
  %v646 = vadd.f32 %v583, %v645
  %647 = vmatmul.bf16.gmra.mxu0 %v289
  %v648 = vpop.f32.mrf.mxu0
  %v649 = vadd.f32 %v586, %v648
  %v650 = vpop.f32.mrf.mxu0
  %v651 = vadd.f32 %v588, %v650
  %652 = vmatmul.bf16.gmra.mxu0 %v293
  %v653 = vpop.f32.mrf.mxu0
  %v654 = vadd.f32 %v591, %v653
  %v655 = vpop.f32.mrf.mxu0
  %v656 = vadd.f32 %v593, %v655
  %657 = vmatmul.bf16.gmra.mxu0 %v297
  %v658 = vpop.f32.mrf.mxu0
  %v659 = vadd.f32 %v596, %v658
  %v660 = vpop.f32.mrf.mxu0
  %661 = vdwg.mxu0
  %662 = vmatpush.bf16.msra.mxu0 %v495
  %663 = vmatpush.bf16.msra.mxu0 %v494
  %664 = vmatpush.bf16.msra.mxu0 %v493
  %665 = vmatpush.bf16.msra.mxu0 %v492
  %666 = vmatpush.bf16.msra.mxu0 %v491
  %667 = vmatpush.bf16.msra.mxu0 %v490
  %668 = vmatpush.bf16.msra.mxu0 %v489
  %669 = vmatpush.bf16.msra.mxu0 %v488
  %670 = vmatmul.bf16.gmra.mxu0 %v258
  %v671 = vpop.f32.mrf.mxu0
  %v672 = vadd.f32 %v609, %v671
  %v673 = vpop.f32.mrf.mxu0
  %v674 = vadd.f32 %v611, %v673
  %675 = vmatmul.bf16.gmra.mxu0 %v262
  %v676 = vpop.f32.mrf.mxu0
  %v677 = vadd.f32 %v614, %v676
  %v678 = vpop.f32.mrf.mxu0
  %v679 = vadd.f32 %v616, %v678
  %680 = vmatmul.bf16.gmra.mxu0 %v266
  %v681 = vpop.f32.mrf.mxu0
  %v682 = vadd.f32 %v619, %v681
  %v683 = vpop.f32.mrf.mxu0
  %v684 = vadd.f32 %v621, %v683
  %685 = vmatmul.bf16.gmra.mxu0 %v270
  %v686 = vpop.f32.mrf.mxu0
  %v687 = vadd.f32 %v624, %v686
  %v688 = vpop.f32.mrf.mxu0
  %v689 = vadd.f32 %v626, %v688
  %690 = vmatmul.bf16.gmra.mxu0 %v274
  %v691 = vpop.f32.mrf.mxu0
  %v692 = vadd.f32 %v629, %v691
  %v693 = vpop.f32.mrf.mxu0
  %v694 = vadd.f32 %v631, %v693
  %695 = vmatmul.bf16.gmra.mxu0 %v278
  %v696 = vpop.f32.mrf.mxu0
  %v697 = vadd.f32 %v634, %v696
  %v698 = vpop.f32.mrf.mxu0
  %v699 = vadd.f32 %v636, %v698
  %700 = vmatmul.bf16.gmra.mxu0 %v282
  %v701 = vpop.f32.mrf.mxu0
  %v702 = vadd.f32 %v639, %v701
  %v703 = vpop.f32.mrf.mxu0
  %v704 = vadd.f32 %v641, %v703
  %705 = vmatmul.bf16.gmra.mxu0 %v286
  %v706 = vpop.f32.mrf.mxu0
  %v707 = vadd.f32 %v644, %v706
  %v708 = vpop.f32.mrf.mxu0
  %v709 = vadd.f32 %v646, %v708
  %710 = vmatmul.bf16.gmra.mxu0 %v290
  %v711 = vpop.f32.mrf.mxu0
  %v712 = vadd.f32 %v649, %v711
  %v713 = vpop.f32.mrf.mxu0
  %v714 = vadd.f32 %v651, %v713
  %715 = vmatmul.bf16.gmra.mxu0 %v294
  %v716 = vpop.f32.mrf.mxu0
  %v717 = vadd.f32 %v654, %v716
  %v718 = vpop.f32.mrf.mxu0
  %v719 = vadd.f32 %v656, %v718
  %720 = vmatmul.bf16.gmra.mxu0 %v298
  %v721 = vpop.f32.mrf.mxu0
  %v722 = vadd.f32 %v659, %v721
  %v723 = vpop.f32.mrf.mxu0
  %724 = vdwg.mxu0
  %725 = vmatpush.bf16.msra.mxu0 %v503
  %726 = vmatpush.bf16.msra.mxu0 %v502
  %727 = vmatpush.bf16.msra.mxu0 %v501
  %728 = vmatpush.bf16.msra.mxu0 %v500
  %729 = vmatpush.bf16.msra.mxu0 %v499
  %730 = vmatpush.bf16.msra.mxu0 %v498
  %731 = vmatpush.bf16.msra.mxu0 %v497
  %732 = vmatpush.bf16.msra.mxu0 %v496
  %733 = vmatmul.bf16.gmra.mxu0 %v259
  %v734 = vpop.f32.mrf.mxu0
  %v735 = vadd.f32 %v672, %v734
  %v736 = vpop.f32.mrf.mxu0
  %v737 = vadd.f32 %v674, %v736
  %738 = vmatmul.bf16.gmra.mxu0 %v263
  %v739 = vpop.f32.mrf.mxu0
  %v740 = vadd.f32 %v677, %v739
  %v741 = vpop.f32.mrf.mxu0
  %v742 = vadd.f32 %v679, %v741
  %743 = vmatmul.bf16.gmra.mxu0 %v267
  %v744 = vpop.f32.mrf.mxu0
  %v745 = vadd.f32 %v682, %v744
  %v746 = vpop.f32.mrf.mxu0
  %v747 = vadd.f32 %v684, %v746
  %748 = vmatmul.bf16.gmra.mxu0 %v271
  %v749 = vpop.f32.mrf.mxu0
  %v750 = vadd.f32 %v687, %v749
  %v751 = vpop.f32.mrf.mxu0
  %v752 = vadd.f32 %v689, %v751
  %753 = vmatmul.bf16.gmra.mxu0 %v275
  %v754 = vpop.f32.mrf.mxu0
  %v755 = vadd.f32 %v692, %v754
  %v756 = vpop.f32.mrf.mxu0
  %v757 = vadd.f32 %v694, %v756
  %758 = vmatmul.bf16.gmra.mxu0 %v279
  %v759 = vpop.f32.mrf.mxu0
  %v760 = vadd.f32 %v697, %v759
  %v761 = vpop.f32.mrf.mxu0
  %v762 = vadd.f32 %v699, %v761
  %763 = vmatmul.bf16.gmra.mxu0 %v283
  %v764 = vpop.f32.mrf.mxu0
  %v765 = vadd.f32 %v702, %v764
  %v766 = vpop.f32.mrf.mxu0
  %v767 = vadd.f32 %v704, %v766
  %768 = vmatmul.bf16.gmra.mxu0 %v287
  %v769 = vpop.f32.mrf.mxu0
  %v770 = vadd.f32 %v707, %v769
  %v771 = vpop.f32.mrf.mxu0
  %v772 = vadd.f32 %v709, %v771
  %773 = vmatmul.bf16.gmra.mxu0 %v291
  %v774 = vpop.f32.mrf.mxu0
  %v775 = vadd.f32 %v712, %v774
  %v776 = vpop.f32.mrf.mxu0
  %v777 = vadd.f32 %v714, %v776
  %778 = vmatmul.bf16.gmra.mxu0 %v295
  %v779 = vpop.f32.mrf.mxu0
  %v780 = vadd.f32 %v717, %v779
  %v781 = vpop.f32.mrf.mxu0
  %v782 = vadd.f32 %v719, %v781
  %783 = vmatmul.bf16.gmra.mxu0 %v299
  %v784 = vpop.f32.mrf.mxu0
  %v785 = vadd.f32 %v722, %v784
  %v786 = vpop.f32.mrf.mxu0
  %787 = vdwg.mxu0
  %v788 = vmax.f32 %v735, 0.0
  %v789 = vmax.f32 %v737, 0.0
  %v790 = vmax.f32 %v740, 0.0
  %v791 = vmax.f32 %v742, 0.0
  %v792 = vmax.f32 %v745, 0.0
  %v793 = vmax.f32 %v747, 0.0
  %v794 = vmax.f32 %v750, 0.0
  %v795 = vmax.f32 %v752, 0.0
  %v796 = vmax.f32 %v755, 0.0
  %v797 = vmax.f32 %v757, 0.0
  %v798 = vmax.f32 %v760, 0.0
  %v799 = vmax.f32 %v762, 0.0
  %v800 = vmax.f32 %v765, 0.0
  %v801 = vmax.f32 %v767, 0.0
  %v802 = vmax.f32 %v770, 0.0
  %v803 = vmax.f32 %v772, 0.0
  %v804 = vmax.f32 %v775, 0.0
  %v805 = vmax.f32 %v777, 0.0
  %v806 = vmax.f32 %v780, 0.0
  %v807 = vmax.f32 %v782, 0.0
  %v808 = vmax.f32 %v785, 0.0
  %vm809 = vcmask 523264
  %v810 = vsel %vm809, %v788, 0.0
  %v811 = vsel %vm809, %v789, 0.0
  %v812 = vadd.f32 %v810, %v811
  %v813 = vsel %vm809, %v790, 0.0
  %v814 = vadd.f32 %v812, %v813
  %v815 = vsel %vm809, %v791, 0.0
  %v816 = vadd.f32 %v814, %v815
  %v817 = vsel %vm809, %v792, 0.0
  %v818 = vadd.f32 %v816, %v817
  %v819 = vsel %vm809, %v793, 0.0
  %v820 = vadd.f32 %v818, %v819
  %v821 = vsel %vm809, %v794, 0.0
  %v822 = vadd.f32 %v820, %v821
  %v823 = vsel %vm809, %v795, 0.0
  %v824 = vadd.f32 %v822, %v823
  %v825 = vsel %vm809, %v796, 0.0
  %v826 = vadd.f32 %v824, %v825
  %v827 = vsel %vm809, %v797, 0.0
  %v828 = vadd.f32 %v826, %v827
  %v829 = vsel %vm809, %v798, 0.0
  %v830 = vadd.f32 %v828, %v829
  %v831 = vsel %vm809, %v799, 0.0
  %v832 = vadd.f32 %v830, %v831
  %v833 = vsel %vm809, %v800, 0.0
  %v834 = vadd.f32 %v832, %v833
  %v835 = vsel %vm809, %v801, 0.0
  %v836 = vadd.f32 %v834, %v835
  %v837 = vsel %vm809, %v802, 0.0
  %v838 = vadd.f32 %v836, %v837
  %v839 = vsel %vm809, %v803, 0.0
  %v840 = vadd.f32 %v838, %v839
  %v841 = vsel %vm809, %v804, 0.0
  %v842 = vadd.f32 %v840, %v841
  %v843 = vsel %vm809, %v805, 0.0
  %v844 = vadd.f32 %v842, %v843
  %v845 = vsel %vm809, %v806, 0.0
  %v846 = vadd.f32 %v844, %v845
  %v847 = vsel %vm809, %v807, 0.0
  %v848 = vadd.f32 %v846, %v847
  %vm849 = vcmask 517120
  %v850 = vsel %vm849, %v808, 0.0
  %v851 = vadd.f32 %v848, %v850
  %v852 = vrot.slane %v851, 4
  %v853 = vadd.f32 %v851, %v852
  %v854 = vrot.slane %v853, 2
  %v855 = vadd.f32 %v853, %v854
  %v856 = vrot.slane %v855, 1
  %v857 = vadd.f32 %v855, %v856
  %v858 = vmul.f32 %v857, 0.0061728396
  %v859 = vmul.f32 %v788, %v788
  %v860 = vmul.f32 %v789, %v789
  %v861 = vmul.f32 %v790, %v790
  %v862 = vmul.f32 %v791, %v791
  %v863 = vmul.f32 %v792, %v792
  %v864 = vmul.f32 %v793, %v793
  %v865 = vmul.f32 %v794, %v794
  %v866 = vmul.f32 %v795, %v795
  %v867 = vmul.f32 %v796, %v796
  %v868 = vmul.f32 %v797, %v797
  %v869 = vmul.f32 %v798, %v798
  %v870 = vmul.f32 %v799, %v799
  %v871 = vmul.f32 %v800, %v800
  %v872 = vmul.f32 %v801, %v801
  %v873 = vmul.f32 %v802, %v802
  %v874 = vmul.f32 %v803, %v803
  %v875 = vmul.f32 %v804, %v804
  %v876 = vmul.f32 %v805, %v805
  %v877 = vmul.f32 %v806, %v806
  %v878 = vmul.f32 %v807, %v807
  %v879 = vmul.f32 %v808, %v808
  %v880 = vsel %vm809, %v859, 0.0
  %v881 = vsel %vm809, %v860, 0.0
  %v882 = vadd.f32 %v880, %v881
  %v883 = vsel %vm809, %v861, 0.0
  %v884 = vadd.f32 %v882, %v883
  %v885 = vsel %vm809, %v862, 0.0
  %v886 = vadd.f32 %v884, %v885
  %v887 = vsel %vm809, %v863, 0.0
  %v888 = vadd.f32 %v886, %v887
  %v889 = vsel %vm809, %v864, 0.0
  %v890 = vadd.f32 %v888, %v889
  %v891 = vsel %vm809, %v865, 0.0
  %v892 = vadd.f32 %v890, %v891
  %v893 = vsel %vm809, %v866, 0.0
  %v894 = vadd.f32 %v892, %v893
  %v895 = vsel %vm809, %v867, 0.0
  %v896 = vadd.f32 %v894, %v895
  %v897 = vsel %vm809, %v868, 0.0
  %v898 = vadd.f32 %v896, %v897
  %v899 = vsel %vm809, %v869, 0.0
  %v900 = vadd.f32 %v898, %v899
  %v901 = vsel %vm809, %v870, 0.0
  %v902 = vadd.f32 %v900, %v901
  %v903 = vsel %vm809, %v871, 0.0
  %v904 = vadd.f32 %v902, %v903
  %v905 = vsel %vm809, %v872, 0.0
  %v906 = vadd.f32 %v904, %v905
  %v907 = vsel %vm809, %v873, 0.0
  %v908 = vadd.f32 %v906, %v907
  %v909 = vsel %vm809, %v874, 0.0
  %v910 = vadd.f32 %v908, %v909
  %v911 = vsel %vm809, %v875, 0.0
  %v912 = vadd.f32 %v910, %v911
  %v913 = vsel %vm809, %v876, 0.0
  %v914 = vadd.f32 %v912, %v913
  %v915 = vsel %vm809, %v877, 0.0
  %v916 = vadd.f32 %v914, %v915
  %v917 = vsel %vm809, %v878, 0.0
  %v918 = vadd.f32 %v916, %v917
  %v919 = vsel %vm849, %v879, 0.0
  %v920 = vadd.f32 %v918, %v919
  %v921 = vrot.slane %v920, 4
  %v922 = vadd.f32 %v920, %v921
  %v923 = vrot.slane %v922, 2
  %v924 = vadd.f32 %v922, %v923
  %v925 = vrot.slane %v924, 1
  %v926 = vadd.f32 %v924, %v925
  %v927 = vmul.f32 %v926, 0.0061728396
  %v928 = vmul.f32 %v858, %v858
  %v929 = vsub.f32 %v927, %v928
  %v930 = vadd.f32 %v929, 1e-05
  %v931 = vrsqrt.pop %v930
  %v932 = vmul.f32 %v931, %v930
  %v933 = vmul.f32 %v932, %v931
  %v934 = vmul.f32 0.5, %v933
  %v935 = vsub.f32 1.5, %v934
  %v936 = vmul.f32 %v931, %v935
  %vm937 = vweird.f32 %v930
  %vm938 = vweird.f32 %v931
  %vm939 = vmor %vm937, %vm938
  %v940 = vsel %vm939, %v931, %v936
  %v941 = vsub.f32 %v788, %v858
  %v942 = vsub.f32 %v789, %v858
  %v943 = vsub.f32 %v790, %v858
  %v944 = vsub.f32 %v791, %v858
  %v945 = vsub.f32 %v792, %v858
  %v946 = vsub.f32 %v793, %v858
  %v947 = vsub.f32 %v794, %v858
  %v948 = vsub.f32 %v795, %v858
  %v949 = vsub.f32 %v796, %v858
  %v950 = vsub.f32 %v797, %v858
  %v951 = vsub.f32 %v798, %v858
  %v952 = vsub.f32 %v799, %v858
  %v953 = vsub.f32 %v800, %v858
  %v954 = vsub.f32 %v801, %v858
  %v955 = vsub.f32 %v802, %v858
  %v956 = vsub.f32 %v803, %v858
  %v957 = vsub.f32 %v804, %v858
  %v958 = vsub.f32 %v805, %v858
  %v959 = vsub.f32 %v806, %v858
  %v960 = vsub.f32 %v807, %v858
  %v961 = vsub.f32 %v808, %v858
  %v962 = vld [vmem:[%s3] sm:$0x1]
  %v963 = vmul.f32 %v940, %v962
  %v964 = vperm.slane %v963, 0
  %v965 = vmul.f32 %v941, %v964
  %v966 = vmul.f32 %v942, %v964
  %v967 = vmul.f32 %v943, %v964
  %v968 = vmul.f32 %v944, %v964
  %v969 = vmul.f32 %v945, %v964
  %v970 = vmul.f32 %v946, %v964
  %v971 = vmul.f32 %v947, %v964
  %v972 = vmul.f32 %v948, %v964
  %v973 = vmul.f32 %v949, %v964
  %v974 = vmul.f32 %v950, %v964
  %v975 = vmul.f32 %v951, %v964
  %v976 = vmul.f32 %v952, %v964
  %v977 = vmul.f32 %v953, %v964
  %v978 = vmul.f32 %v954, %v964
  %v979 = vmul.f32 %v955, %v964
  %v980 = vmul.f32 %v956, %v964
  %v981 = vmul.f32 %v957, %v964
  %v982 = vmul.f32 %v958, %v964
  %v983 = vmul.f32 %v959, %v964
  %v984 = vmul.f32 %v960, %v964
  %v985 = vmul.f32 %v961, %v964
  %v986 = vld [vmem:[%s4] sm:$0x1]
  %v988 = vperm.slane %v986, 0
  %v990 = vadd.f32 %v965, %v988
  %v991 = vadd.f32 %v966, %v988
  %v992 = vadd.f32 %v967, %v988
  %v993 = vadd.f32 %v968, %v988
  %v994 = vadd.f32 %v969, %v988
  %v995 = vadd.f32 %v970, %v988
  %v996 = vadd.f32 %v971, %v988
  %v997 = vadd.f32 %v972, %v988
  %v998 = vadd.f32 %v973, %v988
  %v999 = vadd.f32 %v974, %v988
  %v1000 = vadd.f32 %v975, %v988
  %v1001 = vadd.f32 %v976, %v988
  %v1002 = vadd.f32 %v977, %v988
  %v1003 = vadd.f32 %v978, %v988
  %v1004 = vadd.f32 %v979, %v988
  %v1005 = vadd.f32 %v980, %v988
  %v1006 = vadd.f32 %v981, %v988
  %v1007 = vadd.f32 %v982, %v988
  %v1008 = vadd.f32 %v983, %v988
  %v1009 = vadd.f32 %v984, %v988
  %v1010 = vadd.f32 %v985, %v988
  %v1011 = vpack.c.bf16 %v990, %v990
  %v1012 = vpack.c.bf16 %v991, %v991
  %v1013 = vpack.c.bf16 %v992, %v992
  %v1014 = vpack.c.bf16 %v993, %v993
  %v1015 = vpack.c.bf16 %v994, %v994
  %v1016 = vpack.c.bf16 %v995, %v995
  %v1017 = vpack.c.bf16 %v996, %v996
  %v1018 = vpack.c.bf16 %v997, %v997
  %v1019 = vpack.c.bf16 %v998, %v998
  %v1020 = vpack.c.bf16 %v999, %v999
  %v1021 = vpack.c.bf16 %v1000, %v1000
  %v1022 = vpack.c.bf16 %v1001, %v1001
  %v1023 = vpack.c.bf16 %v1002, %v1002
  %v1024 = vpack.c.bf16 %v1003, %v1003
  %v1025 = vpack.c.bf16 %v1004, %v1004
  %v1026 = vpack.c.bf16 %v1005, %v1005
  %v1027 = vpack.c.bf16 %v1006, %v1006
  %v1028 = vpack.c.bf16 %v1007, %v1007
  %v1029 = vpack.c.bf16 %v1008, %v1008
  %v1030 = vpack.c.bf16 %v1009, %v1009
  %v1031 = vpack.c.bf16 %v1010, %v1010
  %vm1032 = vcmask 519168
  %1033 = vst.msk [vmem:[%s5] sm:$0xf] %vm1032, %v1011
  %1034 = vst.msk [vmem:[%s5 + $0x4] sm:$0xf] %vm1032, %v1012
  %1035 = vst.msk [vmem:[%s5 + $0x8] sm:$0xf] %vm1032, %v1013
  %1036 = vst.msk [vmem:[%s5 + $0xc] sm:$0xf] %vm1032, %v1014
  %1037 = vst.msk [vmem:[%s5 + $0x10] sm:$0xf] %vm1032, %v1015
  %1038 = vst.msk [vmem:[%s5 + $0x14] sm:$0xf] %vm1032, %v1016
  %1039 = vst.msk [vmem:[%s5 + $0x18] sm:$0xf] %vm1032, %v1017
  %1040 = vst.msk [vmem:[%s5 + $0x1c] sm:$0xf] %vm1032, %v1018
  %1041 = vst.msk [vmem:[%s5 + $0x20] sm:$0xf] %vm1032, %v1019
  %1042 = vst.msk [vmem:[%s5 + $0x24] sm:$0xf] %vm1032, %v1020
  %1043 = vst.msk [vmem:[%s5 + $0x28] sm:$0xf] %vm1032, %v1021
  %1044 = vst.msk [vmem:[%s5 + $0x2c] sm:$0xf] %vm1032, %v1022
  %1045 = vst.msk [vmem:[%s5 + $0x30] sm:$0xf] %vm1032, %v1023
  %1046 = vst.msk [vmem:[%s5 + $0x34] sm:$0xf] %vm1032, %v1024
  %1047 = vst.msk [vmem:[%s5 + $0x38] sm:$0xf] %vm1032, %v1025
  %1048 = vst.msk [vmem:[%s5 + $0x3c] sm:$0xf] %vm1032, %v1026
  %1049 = vst.msk [vmem:[%s5 + $0x40] sm:$0xf] %vm1032, %v1027
  %1050 = vst.msk [vmem:[%s5 + $0x44] sm:$0xf] %vm1032, %v1028
  %1051 = vst.msk [vmem:[%s5 + $0x48] sm:$0xf] %vm1032, %v1029
  %1052 = vst.msk [vmem:[%s5 + $0x4c] sm:$0xf] %vm1032, %v1030
  %vm1053 = vcmask 516096
  %1054 = vst.msk [vmem:[%s5 + $0x50] sm:$0x1] %vm1053, %v1031
  // Predicated region
  $region22: #{net_forward.6} parent=0 // pred_check
    _
  $region23: #{net_forward.6} parent=0 // pred_check_branch
    %1056 = sbr.rel (0) target = $region25
  $region24: #{net_forward.6} parent=0 // pred_region
    _
  $region25: #{net_forward.6} parent=0 // pred_fallthru
    _
  // Predicated region
  $region26: #{net_forward.6} parent=0 // pred_check
    _
  $region27: #{net_forward.6} parent=0 // pred_check_branch
    %1058 = sbr.rel (0) target = $region29
  $region28: #{net_forward.6} parent=0 // pred_region
    _
  $region29: #{net_forward.6} parent=0 // pred_fallthru
    _

// kernel: net_forward.7
$region0: #{net_forward.7}
  #allocation0 [shape = 'u32[]', space=smem, size = 0x4, offset = 0x4, fixed_abs, tag = 'smem constant byte address 0x4 - core index']
  #allocation1 [shape = 'u32[72,128]{1,0:T(1,128)}', space=vmem, size = 0x9000, scoped, tag = 'internal scratch']
  %s0 = inlined_call_operand.vmem [shape: bf16[98,576], index: 0, kind: input, shape index: {}]
  %s1 = inlined_call_operand.vmem [shape: bf16[576,64], index: 1, kind: input, shape index: {}]
  %s2 = inlined_call_operand.vmem [shape: f32[1,64], index: 2, kind: input, shape index: {}]
  %s3 = inlined_call_operand.vmem [shape: f32[1,64], index: 3, kind: input, shape index: {}]
  %s4 = inlined_call_operand.vmem [shape: f32[1,64], index: 4, kind: input, shape index: {}]
  %s5 = inlined_call_operand.vmem [shape: bf16[98,64], index: 5, kind: output, shape index: {}]
  %s6 = sld [smem:[#allocation0]]
  $region30: #{net_forward.7} parent=0
    _
  %s8 = ssub.s32 1, %s6
  %s9 = scalar_select 0, %s8, %s6
  // Predicated region
  $region2: #{net_forward.7} parent=0 // pred_check
    _
  $region3: #{net_forward.7} parent=0 // pred_check_branch
    %11 = sbr.rel (0) target = $region5
  $region4: #{net_forward.7} parent=0 // pred_region
    _
  $region5: #{net_forward.7} parent=0 // pred_fallthru
    _
  // Predicated region
  $region6: #{net_forward.7} parent=0 // pred_check
    _
  $region7: #{net_forward.7} parent=0 // pred_check_branch
    %13 = sbr.rel (0) target = $region9
  $region8: #{net_forward.7} parent=0 // pred_region
    _
  $region9: #{net_forward.7} parent=0 // pred_fallthru
    _
  // Predicated region
  $region10: #{net_forward.7} parent=0 // pred_check
    _
  $region11: #{net_forward.7} parent=0 // pred_check_branch
    %15 = sbr.rel (0) target = $region13
  $region12: #{net_forward.7} parent=0 // pred_region
    _
  $region13: #{net_forward.7} parent=0 // pred_fallthru
    _
  // Predicated region
  $region14: #{net_forward.7} parent=0 // pred_check
    _
  $region15: #{net_forward.7} parent=0 // pred_check_branch
    %17 = sbr.rel (0) target = $region17
  $region16: #{net_forward.7} parent=0 // pred_region
    _
  $region17: #{net_forward.7} parent=0 // pred_fallthru
    _
  // Predicated region
  $region18: #{net_forward.7} parent=0 // pred_check
    _
  $region19: #{net_forward.7} parent=0 // pred_check_branch
    %19 = sbr.rel (0) target = $region21
  $region20: #{net_forward.7} parent=0 // pred_region
    _
  $region21: #{net_forward.7} parent=0 // pred_fallthru
    _
  %v21 = vld [vmem:[%s0] sm:$0xff]
  %v22 = vld [vmem:[%s0 + $0x8] sm:$0xff]
  %v23 = vld [vmem:[%s0 + $0x10] sm:$0xf]
  %v24 = vld [vmem:[%s0 + $0x14] sm:$0xff]
  %v25 = vld [vmem:[%s0 + $0x1c] sm:$0xff]
  %v26 = vld [vmem:[%s0 + $0x24] sm:$0xf]
  %v27 = vld [vmem:[%s0 + $0x28] sm:$0xff]
  %v28 = vld [vmem:[%s0 + $0x30] sm:$0xff]
  %v29 = vld [vmem:[%s0 + $0x38] sm:$0xf]
  %v30 = vld [vmem:[%s0 + $0x3c] sm:$0xff]
  %v31 = vld [vmem:[%s0 + $0x44] sm:$0xff]
  %v32 = vld [vmem:[%s0 + $0x4c] sm:$0xf]
  %v33 = vld [vmem:[%s0 + $0x50] sm:$0xff]
  %v34 = vld [vmem:[%s0 + $0x58] sm:$0xff]
  %v35 = vld [vmem:[%s0 + $0x60] sm:$0xf]
  %v36 = vld [vmem:[%s0 + $0x64] sm:$0xff]
  %v37 = vld [vmem:[%s0 + $0x6c] sm:$0xff]
  %v38 = vld [vmem:[%s0 + $0x74] sm:$0xf]
  %v39 = vld [vmem:[%s0 + $0x78] sm:$0xff]
  %v40 = vld [vmem:[%s0 + $0x80] sm:$0xff]
  %v41 = vld [vmem:[%s0 + $0x88] sm:$0xf]
  %v42 = vld [vmem:[%s0 + $0x8c] sm:$0xff]
  %v43 = vld [vmem:[%s0 + $0x94] sm:$0xff]
  %v44 = vld [vmem:[%s0 + $0x9c] sm:$0xf]
  %v45 = vld [vmem:[%s0 + $0xa0] sm:$0xff]
  %v46 = vld [vmem:[%s0 + $0xa8] sm:$0xff]
  %v47 = vld [vmem:[%s0 + $0xb0] sm:$0xf]
  %v48 = vld [vmem:[%s0 + $0xb4] sm:$0xff]
  %v49 = vld [vmem:[%s0 + $0xbc] sm:$0xff]
  %v50 = vld [vmem:[%s0 + $0xc4] sm:$0xf]
  %v51 = vld [vmem:[%s0 + $0xc8] sm:$0xff]
  %v52 = vld [vmem:[%s0 + $0xd0] sm:$0xff]
  %v53 = vld [vmem:[%s0 + $0xd8] sm:$0xf]
  %v54 = vld [vmem:[%s0 + $0xdc] sm:$0xff]
  %v55 = vld [vmem:[%s0 + $0xe4] sm:$0xff]
  %v56 = vld [vmem:[%s0 + $0xec] sm:$0xf]
  %v57 = vld [vmem:[%s0 + $0xf0] sm:$0x11]
  %v58 = vld [vmem:[%s0 + $0xf8] sm:$0x11]
  %v59 = vld [vmem:[%s0 + $0x100] sm:$0x1]
  %v60 = vld [vmem:[%s1] sm:$0xf]
  %v61 = vld [vmem:[%s1 + $0x4] sm:$0xf]
  %v62 = vld [vmem:[%s1 + $0x8] sm:$0xf]
  %v63 = vld [vmem:[%s1 + $0xc] sm:$0xf]
  %v64 = vld [vmem:[%s1 + $0x10] sm:$0xf]
  %v65 = vld [vmem:[%s1 + $0x14] sm:$0xf]
  %v66 = vld [vmem:[%s1 + $0x18] sm:$0xf]
  %v67 = vld [vmem:[%s1 + $0x1c] sm:$0xf]
  %v68 = vld [vmem:[%s1 + $0x20] sm:$0xf]
  %v69 = vld [vmem:[%s1 + $0x24] sm:$0xf]
  %v70 = vld [vmem:[%s1 + $0x28] sm:$0xf]
  %v71 = vld [vmem:[%s1 + $0x2c] sm:$0xf]
  %v72 = vld [vmem:[%s1 + $0x30] sm:$0xf]
  %v73 = vld [vmem:[%s1 + $0x34] sm:$0xf]
  %v74 = vld [vmem:[%s1 + $0x38] sm:$0xf]
  %v75 = vld [vmem:[%s1 + $0x3c] sm:$0xf]
  %v76 = vld [vmem:[%s1 + $0x40] sm:$0xf]
  %v77 = vld [vmem:[%s1 + $0x44] sm:$0xf]
  %v78 = vld [vmem:[%s1 + $0x48] sm:$0xf]
  %v79 = vld [vmem:[%s1 + $0x4c] sm:$0xf]
  %v80 = vld [vmem:[%s1 + $0x50] sm:$0xf]
  %v81 = vld [vmem:[%s1 + $0x54] sm:$0xf]
  %v82 = vld [vmem:[%s1 + $0x58] sm:$0xf]
  %v83 = vld [vmem:[%s1 + $0x5c] sm:$0xf]
  %v84 = vld [vmem:[%s1 + $0x60] sm:$0xf]
  %v85 = vld [vmem:[%s1 + $0x64] sm:$0xf]
  %v86 = vld [vmem:[%s1 + $0x68] sm:$0xf]
  %v87 = vld [vmem:[%s1 + $0x6c] sm:$0xf]
  %v88 = vld [vmem:[%s1 + $0x70] sm:$0xf]
  %v89 = vld [vmem:[%s1 + $0x74] sm:$0xf]
  %v90 = vld [vmem:[%s1 + $0x78] sm:$0xf]
  %v91 = vld [vmem:[%s1 + $0x7c] sm:$0xf]
  %v92 = vld [vmem:[%s1 + $0x80] sm:$0xf]
  %v93 = vld [vmem:[%s1 + $0x84] sm:$0xf]
  %v94 = vld [vmem:[%s1 + $0x88] sm:$0xf]
  %v95 = vld [vmem:[%s1 + $0x8c] sm:$0xf]
  %v96 = vld [vmem:[%s1 + $0x90] sm:$0xf]
  %v97 = vld [vmem:[%s1 + $0x94] sm:$0xf]
  %v98 = vld [vmem:[%s1 + $0x98] sm:$0xf]
  %v99 = vld [vmem:[%s1 + $0x9c] sm:$0xf]
  %v100 = vld [vmem:[%s1 + $0xa0] sm:$0xf]
  %v101 = vld [vmem:[%s1 + $0xa4] sm:$0xf]
  %v102 = vld [vmem:[%s1 + $0xa8] sm:$0xf]
  %v103 = vld [vmem:[%s1 + $0xac] sm:$0xf]
  %v104 = vld [vmem:[%s1 + $0xb0] sm:$0xf]
  %v105 = vld [vmem:[%s1 + $0xb4] sm:$0xf]
  %v106 = vld [vmem:[%s1 + $0xb8] sm:$0xf]
  %v107 = vld [vmem:[%s1 + $0xbc] sm:$0xf]
  %v108 = vld [vmem:[%s1 + $0xc0] sm:$0xf]
  %v109 = vld [vmem:[%s1 + $0xc4] sm:$0xf]
  %v110 = vld [vmem:[%s1 + $0xc8] sm:$0xf]
  %v111 = vld [vmem:[%s1 + $0xcc] sm:$0xf]
  %v112 = vld [vmem:[%s1 + $0xd0] sm:$0xf]
  %v113 = vld [vmem:[%s1 + $0xd4] sm:$0xf]
  %v114 = vld [vmem:[%s1 + $0xd8] sm:$0xf]
  %v115 = vld [vmem:[%s1 + $0xdc] sm:$0xf]
  %v116 = vld [vmem:[%s1 + $0xe0] sm:$0xf]
  %v117 = vld [vmem:[%s1 + $0xe4] sm:$0xf]
  %v118 = vld [vmem:[%s1 + $0xe8] sm:$0xf]
  %v119 = vld [vmem:[%s1 + $0xec] sm:$0xf]
  %v120 = vld [vmem:[%s1 + $0xf0] sm:$0xf]
  %v121 = vld [vmem:[%s1 + $0xf4] sm:$0xf]
  %v122 = vld [vmem:[%s1 + $0xf8] sm:$0xf]
  %v123 = vld [vmem:[%s1 + $0xfc] sm:$0xf]
  %v124 = vld [vmem:[%s1 + $0x100] sm:$0xf]
  %v125 = vld [vmem:[%s1 + $0x104] sm:$0xf]
  %v126 = vld [vmem:[%s1 + $0x108] sm:$0xf]
  %v127 = vld [vmem:[%s1 + $0x10c] sm:$0xf]
  %v128 = vld [vmem:[%s1 + $0x110] sm:$0xf]
  %v129 = vld [vmem:[%s1 + $0x114] sm:$0xf]
  %v130 = vld [vmem:[%s1 + $0x118] sm:$0xf]
  %v131 = vld [vmem:[%s1 + $0x11c] sm:$0xf]
  %v132 = vld [vmem:[%s2] sm:$0x1]
  %v134 = vperm.slane %v132, 0
  %v175 = vunpack.c.l.b16 %v21
  %v176 = vunpack.c.h.b16 %v21
  %v177 = vunpack.c.l.b16 %v22
  %v178 = vunpack.c.h.b16 %v22
  %v179 = vunpack.c.l.b16 %v23
  %v180 = vunpack.c.l.b16 %v24
  %v181 = vunpack.c.h.b16 %v24
  %v182 = vunpack.c.l.b16 %v25
  %v183 = vunpack.c.h.b16 %v25
  %v184 = vunpack.c.l.b16 %v26
  %v185 = vunpack.c.l.b16 %v27
  %v186 = vunpack.c.h.b16 %v27
  %v187 = vunpack.c.l.b16 %v28
  %v188 = vunpack.c.h.b16 %v28
  %v189 = vunpack.c.l.b16 %v29
  %v190 = vunpack.c.l.b16 %v30
  %v191 = vunpack.c.h.b16 %v30
  %v192 = vunpack.c.l.b16 %v31
  %v193 = vunpack.c.h.b16 %v31
  %v194 = vunpack.c.l.b16 %v32
  %v195 = vunpack.c.l.b16 %v33
  %v196 = vunpack.c.h.b16 %v33
  %v197 = vunpack.c.l.b16 %v34
  %v198 = vunpack.c.h.b16 %v34
  %v199 = vunpack.c.l.b16 %v35
  %v200 = vunpack.c.l.b16 %v36
  %v201 = vunpack.c.h.b16 %v36
  %v202 = vunpack.c.l.b16 %v37
  %v203 = vunpack.c.h.b16 %v37
  %v204 = vunpack.c.l.b16 %v38
  %v205 = vunpack.c.l.b16 %v39
  %v206 = vunpack.c.h.b16 %v39
  %v207 = vunpack.c.l.b16 %v40
  %v208 = vunpack.c.h.b16 %v40
  %v209 = vunpack.c.l.b16 %v41
  %v210 = vunpack.c.l.b16 %v42
  %v211 = vunpack.c.h.b16 %v42
  %v212 = vunpack.c.l.b16 %v43
  %v213 = vunpack.c.h.b16 %v43
  %v214 = vunpack.c.l.b16 %v44
  %v215 = vunpack.c.l.b16 %v45
  %v216 = vunpack.c.h.b16 %v45
  %v217 = vunpack.c.l.b16 %v46
  %v218 = vunpack.c.h.b16 %v46
  %v219 = vunpack.c.l.b16 %v47
  %v220 = vunpack.c.l.b16 %v48
  %v221 = vunpack.c.h.b16 %v48
  %v222 = vunpack.c.l.b16 %v49
  %v223 = vunpack.c.h.b16 %v49
  %v224 = vunpack.c.l.b16 %v50
  %v225 = vunpack.c.l.b16 %v51
  %v226 = vunpack.c.h.b16 %v51
  %v227 = vunpack.c.l.b16 %v52
  %v228 = vunpack.c.h.b16 %v52
  %v229 = vunpack.c.l.b16 %v53
  %v230 = vunpack.c.l.b16 %v54
  %v231 = vunpack.c.h.b16 %v54
  %v232 = vunpack.c.l.b16 %v55
  %v233 = vunpack.c.h.b16 %v55
  %v234 = vunpack.c.l.b16 %v56
  %v235 = vunpack.c.l.b16 %v57
  %v236 = vunpack.c.h.b16 %v57
  %v237 = vunpack.c.l.b16 %v58
  %v238 = vunpack.c.h.b16 %v58
  %v239 = vunpack.c.l.b16 %v59
  %v240 = vpack.c.b16 %v180, %v175
  %v241 = vpack.c.b16 %v181, %v176
  %v242 = vpack.c.b16 %v182, %v177
  %v243 = vpack.c.b16 %v183, %v178
  %v244 = vpack.c.b16 %v184, %v179
  %v245 = vpack.c.b16 %v190, %v185
  %v246 = vpack.c.b16 %v191, %v186
  %v247 = vpack.c.b16 %v192, %v187
  %v248 = vpack.c.b16 %v193, %v188
  %v249 = vpack.c.b16 %v194, %v189
  %v250 = vpack.c.b16 %v200, %v195
  %v251 = vpack.c.b16 %v201, %v196
  %v252 = vpack.c.b16 %v202, %v197
  %v253 = vpack.c.b16 %v203, %v198
  %v254 = vpack.c.b16 %v204, %v199
  %v255 = vpack.c.b16 %v210, %v205
  %v256 = vpack.c.b16 %v211, %v206
  %v257 = vpack.c.b16 %v212, %v207
  %v258 = vpack.c.b16 %v213, %v208
  %v259 = vpack.c.b16 %v214, %v209
  %v260 = vpack.c.b16 %v220, %v215
  %v261 = vpack.c.b16 %v221, %v216
  %v262 = vpack.c.b16 %v222, %v217
  %v263 = vpack.c.b16 %v223, %v218
  %v264 = vpack.c.b16 %v224, %v219
  %v265 = vpack.c.b16 %v230, %v225
  %v266 = vpack.c.b16 %v231, %v226
  %v267 = vpack.c.b16 %v232, %v227
  %v268 = vpack.c.b16 %v233, %v228
  %v269 = vpack.c.b16 %v234, %v229
  %v270 = vpack.c.b16 %v235, %v235
  %v271 = vpack.c.b16 %v236, %v236
  %v272 = vpack.c.b16 %v237, %v237
  %v273 = vpack.c.b16 %v238, %v238
  %v274 = vpack.c.b16 %v239, %v239
  %v375 = vunpack.c.l.b16 %v60
  %v376 = vunpack.c.l.b16 %v61
  %v377 = vunpack.c.l.b16 %v62
  %v378 = vunpack.c.l.b16 %v63
  %v379 = vunpack.c.l.b16 %v64
  %v380 = vunpack.c.l.b16 %v65
  %v381 = vunpack.c.l.b16 %v66
  %v382 = vunpack.c.l.b16 %v67
  %v383 = vunpack.c.l.b16 %v68
  %v384 = vunpack.c.l.b16 %v69
  %v385 = vunpack.c.l.b16 %v70
  %v386 = vunpack.c.l.b16 %v71
  %v387 = vunpack.c.l.b16 %v72
  %v388 = vunpack.c.l.b16 %v73
  %v389 = vunpack.c.l.b16 %v74
  %v390 = vunpack.c.l.b16 %v75
  %v391 = vunpack.c.l.b16 %v76
  %v392 = vunpack.c.l.b16 %v77
  %v393 = vunpack.c.l.b16 %v78
  %v394 = vunpack.c.l.b16 %v79
  %v395 = vunpack.c.l.b16 %v80
  %v396 = vunpack.c.l.b16 %v81
  %v397 = vunpack.c.l.b16 %v82
  %v398 = vunpack.c.l.b16 %v83
  %v399 = vunpack.c.l.b16 %v84
  %v400 = vunpack.c.l.b16 %v85
  %v401 = vunpack.c.l.b16 %v86
  %v402 = vunpack.c.l.b16 %v87
  %v403 = vunpack.c.l.b16 %v88
  %v404 = vunpack.c.l.b16 %v89
  %v405 = vunpack.c.l.b16 %v90
  %v406 = vunpack.c.l.b16 %v91
  %v407 = vunpack.c.l.b16 %v92
  %v408 = vunpack.c.l.b16 %v93
  %v409 = vunpack.c.l.b16 %v94
  %v410 = vunpack.c.l.b16 %v95
  %v411 = vunpack.c.l.b16 %v96
  %v412 = vunpack.c.l.b16 %v97
  %v413 = vunpack.c.l.b16 %v98
  %v414 = vunpack.c.l.b16 %v99
  %v415 = vunpack.c.l.b16 %v100
  %v416 = vunpack.c.l.b16 %v101
  %v417 = vunpack.c.l.b16 %v102
  %v418 = vunpack.c.l.b16 %v103
  %v419 = vunpack.c.l.b16 %v104
  %v420 = vunpack.c.l.b16 %v105
  %v421 = vunpack.c.l.b16 %v106
  %v422 = vunpack.c.l.b16 %v107
  %v423 = vunpack.c.l.b16 %v108
  %v424 = vunpack.c.l.b16 %v109
  %v425 = vunpack.c.l.b16 %v110
  %v426 = vunpack.c.l.b16 %v111
  %v427 = vunpack.c.l.b16 %v112
  %v428 = vunpack.c.l.b16 %v113
  %v429 = vunpack.c.l.b16 %v114
  %v430 = vunpack.c.l.b16 %v115
  %v431 = vunpack.c.l.b16 %v116
  %v432 = vunpack.c.l.b16 %v117
  %v433 = vunpack.c.l.b16 %v118
  %v434 = vunpack.c.l.b16 %v119
  %v435 = vunpack.c.l.b16 %v120
  %v436 = vunpack.c.l.b16 %v121
  %v437 = vunpack.c.l.b16 %v122
  %v438 = vunpack.c.l.b16 %v123
  %v439 = vunpack.c.l.b16 %v124
  %v440 = vunpack.c.l.b16 %v125
  %v441 = vunpack.c.l.b16 %v126
  %v442 = vunpack.c.l.b16 %v127
  %v443 = vunpack.c.l.b16 %v128
  %v444 = vunpack.c.l.b16 %v129
  %v445 = vunpack.c.l.b16 %v130
  %v446 = vunpack.c.l.b16 %v131
  %v447 = vpack.c.b16 %v376, %v375
  %v448 = vpack.c.b16 %v378, %v377
  %v449 = vpack.c.b16 %v380, %v379
  %v450 = vpack.c.b16 %v382, %v381
  %v451 = vpack.c.b16 %v384, %v383
  %v452 = vpack.c.b16 %v386, %v385
  %v453 = vpack.c.b16 %v388, %v387
  %v454 = vpack.c.b16 %v390, %v389
  %v455 = vpack.c.b16 %v392, %v391
  %v456 = vpack.c.b16 %v394, %v393
  %v457 = vpack.c.b16 %v396, %v395
  %v458 = vpack.c.b16 %v398, %v397
  %v459 = vpack.c.b16 %v400, %v399
  %v460 = vpack.c.b16 %v402, %v401
  %v461 = vpack.c.b16 %v404, %v403
  %v462 = vpack.c.b16 %v406, %v405
  %v463 = vpack.c.b16 %v408, %v407
  %v464 = vpack.c.b16 %v410, %v409
  %v465 = vpack.c.b16 %v412, %v411
  %v466 = vpack.c.b16 %v414, %v413
  %v467 = vpack.c.b16 %v416, %v415
  %v468 = vpack.c.b16 %v418, %v417
  %v469 = vpack.c.b16 %v420, %v419
  %v470 = vpack.c.b16 %v422, %v421
  %v471 = vpack.c.b16 %v424, %v423
  %v472 = vpack.c.b16 %v426, %v425
  %v473 = vpack.c.b16 %v428, %v427
  %v474 = vpack.c.b16 %v430, %v429
  %v475 = vpack.c.b16 %v432, %v431
  %v476 = vpack.c.b16 %v434, %v433
  %v477 = vpack.c.b16 %v436, %v435
  %v478 = vpack.c.b16 %v438, %v437
  %v479 = vpack.c.b16 %v440, %v439
  %v480 = vpack.c.b16 %v442, %v441
  %v481 = vpack.c.b16 %v444, %v443
  %v482 = vpack.c.b16 %v446, %v445
  %vm519 = vcmask 523264
  %v521 = vsel %vm519, %v244, 0
  %v524 = vsel %vm519, %v249, 0
  %v527 = vsel %vm519, %v254, 0
  %v530 = vsel %vm519, %v259, 0
  %v533 = vsel %vm519, %v264, 0
  %v536 = vsel %vm519, %v269, 0
  %v539 = vsel %vm519, %v274, 0
  %541 = vmatpush.bf16.msra.mxu0 %v454
  %542 = vmatpush.bf16.msra.mxu0 %v453
  %543 = vmatpush.bf16.msra.mxu0 %v452
  %544 = vmatpush.bf16.msra.mxu0 %v451
  %545 = vmatpush.bf16.msra.mxu0 %v450
  %546 = vmatpush.bf16.msra.mxu0 %v449
  %547 = vmatpush.bf16.msra.mxu0 %v448
  %548 = vmatpush.bf16.msra.mxu0 %v447
  %549 = vmatmul.bf16.gmra.mxu0 %v240
  %v550 = vpop.f32.mrf.mxu0
  %v551 = vadd.f32 %v134, %v550
  %v552 = vpop.f32.mrf.mxu0
  %v553 = vadd.f32 %v134, %v552
  %554 = vmatmul.bf16.gmra.mxu0 %v245
  %v555 = vpop.f32.mrf.mxu0
  %v556 = vadd.f32 %v134, %v555
  %v557 = vpop.f32.mrf.mxu0
  %v558 = vadd.f32 %v134, %v557
  %559 = vmatmul.bf16.gmra.mxu0 %v250
  %v560 = vpop.f32.mrf.mxu0
  %v561 = vadd.f32 %v134, %v560
  %v562 = vpop.f32.mrf.mxu0
  %v563 = vadd.f32 %v134, %v562
  %564 = vmatmul.bf16.gmra.mxu0 %v255
  %v565 = vpop.f32.mrf.mxu0
  %v566 = vadd.f32 %v134, %v565
  %v567 = vpop.f32.mrf.mxu0
  %v568 = vadd.f32 %v134, %v567
  %569 = vmatmul.bf16.gmra.mxu0 %v260
  %v570 = vpop.f32.mrf.mxu0
  %v571 = vadd.f32 %v134, %v570
  %v572 = vpop.f32.mrf.mxu0
  %v573 = vadd.f32 %v134, %v572
  %574 = vmatmul.bf16.gmra.mxu0 %v265
  %v575 = vpop.f32.mrf.mxu0
  %v576 = vadd.f32 %v134, %v575
  %v577 = vpop.f32.mrf.mxu0
  %v578 = vadd.f32 %v134, %v577
  %579 = vmatmul.bf16.gmra.mxu0 %v270
  %v580 = vpop.f32.mrf.mxu0
  %v581 = vadd.f32 %v134, %v580
  %v582 = vpop.f32.mrf.mxu0
  %583 = vdwg.mxu0
  %584 = vmatpush.bf16.msra.mxu0 %v462
  %585 = vmatpush.bf16.msra.mxu0 %v461
  %586 = vmatpush.bf16.msra.mxu0 %v460
  %587 = vmatpush.bf16.msra.mxu0 %v459
  %588 = vmatpush.bf16.msra.mxu0 %v458
  %589 = vmatpush.bf16.msra.mxu0 %v457
  %590 = vmatpush.bf16.msra.mxu0 %v456
  %591 = vmatpush.bf16.msra.mxu0 %v455
  %592 = vmatmul.bf16.gmra.mxu0 %v241
  %v593 = vpop.f32.mrf.mxu0
  %v594 = vadd.f32 %v551, %v593
  %v595 = vpop.f32.mrf.mxu0
  %v596 = vadd.f32 %v553, %v595
  %597 = vmatmul.bf16.gmra.mxu0 %v246
  %v598 = vpop.f32.mrf.mxu0
  %v599 = vadd.f32 %v556, %v598
  %v600 = vpop.f32.mrf.mxu0
  %v601 = vadd.f32 %v558, %v600
  %602 = vmatmul.bf16.gmra.mxu0 %v251
  %v603 = vpop.f32.mrf.mxu0
  %v604 = vadd.f32 %v561, %v603
  %v605 = vpop.f32.mrf.mxu0
  %v606 = vadd.f32 %v563, %v605
  %607 = vmatmul.bf16.gmra.mxu0 %v256
  %v608 = vpop.f32.mrf.mxu0
  %v609 = vadd.f32 %v566, %v608
  %v610 = vpop.f32.mrf.mxu0
  %v611 = vadd.f32 %v568, %v610
  %612 = vmatmul.bf16.gmra.mxu0 %v261
  %v613 = vpop.f32.mrf.mxu0
  %v614 = vadd.f32 %v571, %v613
  %v615 = vpop.f32.mrf.mxu0
  %v616 = vadd.f32 %v573, %v615
  %617 = vmatmul.bf16.gmra.mxu0 %v266
  %v618 = vpop.f32.mrf.mxu0
  %v619 = vadd.f32 %v576, %v618
  %v620 = vpop.f32.mrf.mxu0
  %v621 = vadd.f32 %v578, %v620
  %622 = vmatmul.bf16.gmra.mxu0 %v271
  %v623 = vpop.f32.mrf.mxu0
  %v624 = vadd.f32 %v581, %v623
  %v625 = vpop.f32.mrf.mxu0
  %626 = vdwg.mxu0
  %627 = vmatpush.bf16.msra.mxu0 %v470
  %628 = vmatpush.bf16.msra.mxu0 %v469
  %629 = vmatpush.bf16.msra.mxu0 %v468
  %630 = vmatpush.bf16.msra.mxu0 %v467
  %631 = vmatpush.bf16.msra.mxu0 %v466
  %632 = vmatpush.bf16.msra.mxu0 %v465
  %633 = vmatpush.bf16.msra.mxu0 %v464
  %634 = vmatpush.bf16.msra.mxu0 %v463
  %635 = vmatmul.bf16.gmra.mxu0 %v242
  %v636 = vpop.f32.mrf.mxu0
  %v637 = vadd.f32 %v594, %v636
  %v638 = vpop.f32.mrf.mxu0
  %v639 = vadd.f32 %v596, %v638
  %640 = vmatmul.bf16.gmra.mxu0 %v247
  %v641 = vpop.f32.mrf.mxu0
  %v642 = vadd.f32 %v599, %v641
  %v643 = vpop.f32.mrf.mxu0
  %v644 = vadd.f32 %v601, %v643
  %645 = vmatmul.bf16.gmra.mxu0 %v252
  %v646 = vpop.f32.mrf.mxu0
  %v647 = vadd.f32 %v604, %v646
  %v648 = vpop.f32.mrf.mxu0
  %v649 = vadd.f32 %v606, %v648
  %650 = vmatmul.bf16.gmra.mxu0 %v257
  %v651 = vpop.f32.mrf.mxu0
  %v652 = vadd.f32 %v609, %v651
  %v653 = vpop.f32.mrf.mxu0
  %v654 = vadd.f32 %v611, %v653
  %655 = vmatmul.bf16.gmra.mxu0 %v262
  %v656 = vpop.f32.mrf.mxu0
  %v657 = vadd.f32 %v614, %v656
  %v658 = vpop.f32.mrf.mxu0
  %v659 = vadd.f32 %v616, %v658
  %660 = vmatmul.bf16.gmra.mxu0 %v267
  %v661 = vpop.f32.mrf.mxu0
  %v662 = vadd.f32 %v619, %v661
  %v663 = vpop.f32.mrf.mxu0
  %v664 = vadd.f32 %v621, %v663
  %665 = vmatmul.bf16.gmra.mxu0 %v272
  %v666 = vpop.f32.mrf.mxu0
  %v667 = vadd.f32 %v624, %v666
  %v668 = vpop.f32.mrf.mxu0
  %669 = vdwg.mxu0
  %670 = vmatpush.bf16.msra.mxu0 %v478
  %671 = vmatpush.bf16.msra.mxu0 %v477
  %672 = vmatpush.bf16.msra.mxu0 %v476
  %673 = vmatpush.bf16.msra.mxu0 %v475
  %674 = vmatpush.bf16.msra.mxu0 %v474
  %675 = vmatpush.bf16.msra.mxu0 %v473
  %676 = vmatpush.bf16.msra.mxu0 %v472
  %677 = vmatpush.bf16.msra.mxu0 %v471
  %678 = vmatmul.bf16.gmra.mxu0 %v243
  %v679 = vpop.f32.mrf.mxu0
  %v680 = vadd.f32 %v637, %v679
  %v681 = vpop.f32.mrf.mxu0
  %v682 = vadd.f32 %v639, %v681
  %683 = vmatmul.bf16.gmra.mxu0 %v248
  %v684 = vpop.f32.mrf.mxu0
  %v685 = vadd.f32 %v642, %v684
  %v686 = vpop.f32.mrf.mxu0
  %v687 = vadd.f32 %v644, %v686
  %688 = vmatmul.bf16.gmra.mxu0 %v253
  %v689 = vpop.f32.mrf.mxu0
  %v690 = vadd.f32 %v647, %v689
  %v691 = vpop.f32.mrf.mxu0
  %v692 = vadd.f32 %v649, %v691
  %693 = vmatmul.bf16.gmra.mxu0 %v258
  %v694 = vpop.f32.mrf.mxu0
  %v695 = vadd.f32 %v652, %v694
  %v696 = vpop.f32.mrf.mxu0
  %v697 = vadd.f32 %v654, %v696
  %698 = vmatmul.bf16.gmra.mxu0 %v263
  %v699 = vpop.f32.mrf.mxu0
  %v700 = vadd.f32 %v657, %v699
  %v701 = vpop.f32.mrf.mxu0
  %v702 = vadd.f32 %v659, %v701
  %703 = vmatmul.bf16.gmra.mxu0 %v268
  %v704 = vpop.f32.mrf.mxu0
  %v705 = vadd.f32 %v662, %v704
  %v706 = vpop.f32.mrf.mxu0
  %v707 = vadd.f32 %v664, %v706
  %708 = vmatmul.bf16.gmra.mxu0 %v273
  %v709 = vpop.f32.mrf.mxu0
  %v710 = vadd.f32 %v667, %v709
  %v711 = vpop.f32.mrf.mxu0
  %712 = vdwg.mxu0
  %713 = vmatpush.bf16.msra.mxu0 0
  %714 = vmatpush.bf16.msra.mxu0 0
  %715 = vmatpush.bf16.msra.mxu0 0
  %716 = vmatpush.bf16.msra.mxu0 0
  %717 = vmatpush.bf16.msra.mxu0 %v482
  %718 = vmatpush.bf16.msra.mxu0 %v481
  %719 = vmatpush.bf16.msra.mxu0 %v480
  %720 = vmatpush.bf16.msra.mxu0 %v479
  %721 = vmatmul.bf16.gmra.mxu0 %v521
  %v722 = vpop.f32.mrf.mxu0
  %v723 = vadd.f32 %v680, %v722
  %v724 = vpop.f32.mrf.mxu0
  %v725 = vadd.f32 %v682, %v724
  %726 = vmatmul.bf16.gmra.mxu0 %v524
  %v727 = vpop.f32.mrf.mxu0
  %v728 = vadd.f32 %v685, %v727
  %v729 = vpop.f32.mrf.mxu0
  %v730 = vadd.f32 %v687, %v729
  %731 = vmatmul.bf16.gmra.mxu0 %v527
  %v732 = vpop.f32.mrf.mxu0
  %v733 = vadd.f32 %v690, %v732
  %v734 = vpop.f32.mrf.mxu0
  %v735 = vadd.f32 %v692, %v734
  %736 = vmatmul.bf16.gmra.mxu0 %v530
  %v737 = vpop.f32.mrf.mxu0
  %v738 = vadd.f32 %v695, %v737
  %v739 = vpop.f32.mrf.mxu0
  %v740 = vadd.f32 %v697, %v739
  %741 = vmatmul.bf16.gmra.mxu0 %v533
  %v742 = vpop.f32.mrf.mxu0
  %v743 = vadd.f32 %v700, %v742
  %v744 = vpop.f32.mrf.mxu0
  %v745 = vadd.f32 %v702, %v744
  %746 = vmatmul.bf16.gmra.mxu0 %v536
  %v747 = vpop.f32.mrf.mxu0
  %v748 = vadd.f32 %v705, %v747
  %v749 = vpop.f32.mrf.mxu0
  %v750 = vadd.f32 %v707, %v749
  %751 = vmatmul.bf16.gmra.mxu0 %v539
  %v752 = vpop.f32.mrf.mxu0
  %v753 = vadd.f32 %v710, %v752
  %v754 = vpop.f32.mrf.mxu0
  %755 = vdwg.mxu0
  %v756 = vmax.f32 %v723, 0.0
  %v757 = vmax.f32 %v725, 0.0
  %v758 = vmax.f32 %v728, 0.0
  %v759 = vmax.f32 %v730, 0.0
  %v760 = vmax.f32 %v733, 0.0
  %v761 = vmax.f32 %v735, 0.0
  %v762 = vmax.f32 %v738, 0.0
  %v763 = vmax.f32 %v740, 0.0
  %v764 = vmax.f32 %v743, 0.0
  %v765 = vmax.f32 %v745, 0.0
  %v766 = vmax.f32 %v748, 0.0
  %v767 = vmax.f32 %v750, 0.0
  %v768 = vmax.f32 %v753, 0.0
  %v769 = vsel %vm519, %v756, 0.0
  %v770 = vsel %vm519, %v757, 0.0
  %v771 = vadd.f32 %v769, %v770
  %v772 = vsel %vm519, %v758, 0.0
  %v773 = vadd.f32 %v771, %v772
  %v774 = vsel %vm519, %v759, 0.0
  %v775 = vadd.f32 %v773, %v774
  %v776 = vsel %vm519, %v760, 0.0
  %v777 = vadd.f32 %v775, %v776
  %v778 = vsel %vm519, %v761, 0.0
  %v779 = vadd.f32 %v777, %v778
  %v780 = vsel %vm519, %v762, 0.0
  %v781 = vadd.f32 %v779, %v780
  %v782 = vsel %vm519, %v763, 0.0
  %v783 = vadd.f32 %v781, %v782
  %v784 = vsel %vm519, %v764, 0.0
  %v785 = vadd.f32 %v783, %v784
  %v786 = vsel %vm519, %v765, 0.0
  %v787 = vadd.f32 %v785, %v786
  %v788 = vsel %vm519, %v766, 0.0
  %v789 = vadd.f32 %v787, %v788
  %v790 = vsel %vm519, %v767, 0.0
  %v791 = vadd.f32 %v789, %v790
  %vm792 = vcmask 517120
  %v793 = vsel %vm792, %v768, 0.0
  %v794 = vadd.f32 %v791, %v793
  %v795 = vrot.slane %v794, 4
  %v796 = vadd.f32 %v794, %v795
  %v797 = vrot.slane %v796, 2
  %v798 = vadd.f32 %v796, %v797
  %v799 = vrot.slane %v798, 1
  %v800 = vadd.f32 %v798, %v799
  %v801 = vmul.f32 %v800, 0.010204081
  %v802 = vmul.f32 %v756, %v756
  %v803 = vmul.f32 %v757, %v757
  %v804 = vmul.f32 %v758, %v758
  %v805 = vmul.f32 %v759, %v759
  %v806 = vmul.f32 %v760, %v760
  %v807 = vmul.f32 %v761, %v761
  %v808 = vmul.f32 %v762, %v762
  %v809 = vmul.f32 %v763, %v763
  %v810 = vmul.f32 %v764, %v764
  %v811 = vmul.f32 %v765, %v765
  %v812 = vmul.f32 %v766, %v766
  %v813 = vmul.f32 %v767, %v767
  %v814 = vmul.f32 %v768, %v768
  %v815 = vsel %vm519, %v802, 0.0
  %v816 = vsel %vm519, %v803, 0.0
  %v817 = vadd.f32 %v815, %v816
  %v818 = vsel %vm519, %v804, 0.0
  %v819 = vadd.f32 %v817, %v818
  %v820 = vsel %vm519, %v805, 0.0
  %v821 = vadd.f32 %v819, %v820
  %v822 = vsel %vm519, %v806, 0.0
  %v823 = vadd.f32 %v821, %v822
  %v824 = vsel %vm519, %v807, 0.0
  %v825 = vadd.f32 %v823, %v824
  %v826 = vsel %vm519, %v808, 0.0
  %v827 = vadd.f32 %v825, %v826
  %v828 = vsel %vm519, %v809, 0.0
  %v829 = vadd.f32 %v827, %v828
  %v830 = vsel %vm519, %v810, 0.0
  %v831 = vadd.f32 %v829, %v830
  %v832 = vsel %vm519, %v811, 0.0
  %v833 = vadd.f32 %v831, %v832
  %v834 = vsel %vm519, %v812, 0.0
  %v835 = vadd.f32 %v833, %v834
  %v836 = vsel %vm519, %v813, 0.0
  %v837 = vadd.f32 %v835, %v836
  %v838 = vsel %vm792, %v814, 0.0
  %v839 = vadd.f32 %v837, %v838
  %v840 = vrot.slane %v839, 4
  %v841 = vadd.f32 %v839, %v840
  %v842 = vrot.slane %v841, 2
  %v843 = vadd.f32 %v841, %v842
  %v844 = vrot.slane %v843, 1
  %v845 = vadd.f32 %v843, %v844
  %v846 = vmul.f32 %v845, 0.010204081
  %v847 = vmul.f32 %v801, %v801
  %v848 = vsub.f32 %v846, %v847
  %v849 = vadd.f32 %v848, 1e-05
  %v850 = vrsqrt.pop %v849
  %v851 = vmul.f32 %v850, %v849
  %v852 = vmul.f32 %v851, %v850
  %v853 = vmul.f32 0.5, %v852
  %v854 = vsub.f32 1.5, %v853
  %v855 = vmul.f32 %v850, %v854
  %vm856 = vweird.f32 %v849
  %vm857 = vweird.f32 %v850
  %vm858 = vmor %vm856, %vm857
  %v859 = vsel %vm858, %v850, %v855
  %v860 = vsub.f32 %v756, %v801
  %v861 = vsub.f32 %v757, %v801
  %v862 = vsub.f32 %v758, %v801
  %v863 = vsub.f32 %v759, %v801
  %v864 = vsub.f32 %v760, %v801
  %v865 = vsub.f32 %v761, %v801
  %v866 = vsub.f32 %v762, %v801
  %v867 = vsub.f32 %v763, %v801
  %v868 = vsub.f32 %v764, %v801
  %v869 = vsub.f32 %v765, %v801
  %v870 = vsub.f32 %v766, %v801
  %v871 = vsub.f32 %v767, %v801
  %v872 = vsub.f32 %v768, %v801
  %v873 = vld [vmem:[%s3] sm:$0x1]
  %v874 = vmul.f32 %v859, %v873
  %v875 = vperm.slane %v874, 0
  %v876 = vmul.f32 %v860, %v875
  %v877 = vmul.f32 %v861, %v875
  %v878 = vmul.f32 %v862, %v875
  %v879 = vmul.f32 %v863, %v875
  %v880 = vmul.f32 %v864, %v875
  %v881 = vmul.f32 %v865, %v875
  %v882 = vmul.f32 %v866, %v875
  %v883 = vmul.f32 %v867, %v875
  %v884 = vmul.f32 %v868, %v875
  %v885 = vmul.f32 %v869, %v875
  %v886 = vmul.f32 %v870, %v875
  %v887 = vmul.f32 %v871, %v875
  %v888 = vmul.f32 %v872, %v875
  %v889 = vld [vmem:[%s4] sm:$0x1]
  %v891 = vperm.slane %v889, 0
  %v893 = vadd.f32 %v876, %v891
  %v894 = vadd.f32 %v877, %v891
  %v895 = vadd.f32 %v878, %v891
  %v896 = vadd.f32 %v879, %v891
  %v897 = vadd.f32 %v880, %v891
  %v898 = vadd.f32 %v881, %v891
  %v899 = vadd.f32 %v882, %v891
  %v900 = vadd.f32 %v883, %v891
  %v901 = vadd.f32 %v884, %v891
  %v902 = vadd.f32 %v885, %v891
  %v903 = vadd.f32 %v886, %v891
  %v904 = vadd.f32 %v887, %v891
  %v905 = vadd.f32 %v888, %v891
  %v906 = vpack.c.bf16 %v893, %v893
  %v907 = vpack.c.bf16 %v894, %v894
  %v908 = vpack.c.bf16 %v895, %v895
  %v909 = vpack.c.bf16 %v896, %v896
  %v910 = vpack.c.bf16 %v897, %v897
  %v911 = vpack.c.bf16 %v898, %v898
  %v912 = vpack.c.bf16 %v899, %v899
  %v913 = vpack.c.bf16 %v900, %v900
  %v914 = vpack.c.bf16 %v901, %v901
  %v915 = vpack.c.bf16 %v902, %v902
  %v916 = vpack.c.bf16 %v903, %v903
  %v917 = vpack.c.bf16 %v904, %v904
  %v918 = vpack.c.bf16 %v905, %v905
  %vm919 = vcmask 519168
  %920 = vst.msk [vmem:[%s5] sm:$0xf] %vm919, %v906
  %921 = vst.msk [vmem:[%s5 + $0x4] sm:$0xf] %vm919, %v907
  %922 = vst.msk [vmem:[%s5 + $0x8] sm:$0xf] %vm919, %v908
  %923 = vst.msk [vmem:[%s5 + $0xc] sm:$0xf] %vm919, %v909
  %924 = vst.msk [vmem:[%s5 + $0x10] sm:$0xf] %vm919, %v910
  %925 = vst.msk [vmem:[%s5 + $0x14] sm:$0xf] %vm919, %v911
  %926 = vst.msk [vmem:[%s5 + $0x18] sm:$0xf] %vm919, %v912
  %927 = vst.msk [vmem:[%s5 + $0x1c] sm:$0xf] %vm919, %v913
  %928 = vst.msk [vmem:[%s5 + $0x20] sm:$0xf] %vm919, %v914
  %929 = vst.msk [vmem:[%s5 + $0x24] sm:$0xf] %vm919, %v915
  %930 = vst.msk [vmem:[%s5 + $0x28] sm:$0xf] %vm919, %v916
  %931 = vst.msk [vmem:[%s5 + $0x2c] sm:$0xf] %vm919, %v917
  %vm932 = vcmask 516096
  %933 = vst.msk [vmem:[%s5 + $0x30] sm:$0x1] %vm932, %v918
  // Predicated region
  $region22: #{net_forward.7} parent=0 // pred_check
    _
  $region23: #{net_forward.7} parent=0 // pred_check_branch
    %935 = sbr.rel (0) target = $region25
  $region24: #{net_forward.7} parent=0 // pred_region
    _
  $region25: #{net_forward.7} parent=0 // pred_fallthru
    _
  // Predicated region
  $region26: #{net_forward.7} parent=0 // pred_check
    _
  $region27: #{net_forward.7} parent=0 // pred_check_branch
    %937 = sbr.rel (0) target = $region29
  $region28: #{net_forward.7} parent=0 // pred_region
    _
  $region29: #{net_forward.7} parent=0 // pred_fallthru
    _

// kernel: net_forward.9
$region0: #{net_forward.9}
  #allocation0 [shape = 'u32[]', space=smem, size = 0x4, offset = 0x4, fixed_abs, tag = 'smem constant byte address 0x4 - core index']
  #allocation1 [shape = 'u32[72,128]{1,0:T(1,128)}', space=vmem, size = 0x9000, scoped, tag = 'internal scratch']
  %s0 = inlined_call_operand.vmem [shape: bf16[2,512], index: 0, kind: input, shape index: {}]
  %s1 = inlined_call_operand.vmem [shape: bf16[512,6], index: 1, kind: input, shape index: {}]
  %s2 = inlined_call_operand.vmem [shape: f32[1,6], index: 2, kind: input, shape index: {}]
  %s3 = inlined_call_operand.hbm [shape: f32[2,6], index: 3, kind: output, shape index: {}]
  %s4 = sld [smem:[#allocation0]]
  $region22: #{net_forward.9} parent=0
    _
  %s6 = ssub.s32 1, %s4
  %s7 = scalar_select 0, %s6, %s4
  $region1: #{net_forward.9} parent=0
    #allocation2 [shape = 'u8[1024]{0}', space=vmem, size = 0x400, scoped, tag = 'output window, operand 0, single buffered']
    #allocation3 [shape = 's32[1]{0}', space=sflag, size = 0x4, scoped, tag = 'scoped memory for net_forward.9']
    %8 = vsyncpa [#allocation3], 0
    // Predicated region
    $region2: #{net_forward.9} parent=1 // pred_check
      _
    $region3: #{net_forward.9} parent=1 // pred_check_branch
      %10 = sbr.rel (0) target = $region5
    $region4: #{net_forward.9} parent=1 // pred_region
      _
    $region5: #{net_forward.9} parent=1 // pred_fallthru
      _
    // Predicated region
    $region6: #{net_forward.9} parent=1 // pred_check
      _
    $region7: #{net_forward.9} parent=1 // pred_check_branch
      %12 = sbr.rel (0) target = $region9
    $region8: #{net_forward.9} parent=1 // pred_region
      _
    $region9: #{net_forward.9} parent=1 // pred_fallthru
      _
    // Predicated region
    $region10: #{net_forward.9} parent=1 // pred_check
      _
    $region11: #{net_forward.9} parent=1 // pred_check_branch
      %14 = sbr.rel (0) target = $region13
    $region12: #{net_forward.9} parent=1 // pred_region
      _
    $region13: #{net_forward.9} parent=1 // pred_fallthru
      _
    %v15 = vld [vmem:[%s0] sm:$0xf]
    %v16 = vld [vmem:[%s1] sm:$0xf]
    %v17 = vld [vmem:[%s1 + $0x4] sm:$0xf]
    %v18 = vld [vmem:[%s1 + $0x8] sm:$0xf]
    %v19 = vld [vmem:[%s1 + $0xc] sm:$0xf]
    %v20 = vld [vmem:[%s1 + $0x10] sm:$0xf]
    %v21 = vld [vmem:[%s1 + $0x14] sm:$0xf]
    %v22 = vld [vmem:[%s1 + $0x18] sm:$0xf]
    %v23 = vld [vmem:[%s1 + $0x1c] sm:$0xf]
    %v24 = vld [vmem:[%s1 + $0x20] sm:$0xf]
    %v25 = vld [vmem:[%s1 + $0x24] sm:$0xf]
    %v26 = vld [vmem:[%s1 + $0x28] sm:$0xf]
    %v27 = vld [vmem:[%s1 + $0x2c] sm:$0xf]
    %v28 = vld [vmem:[%s1 + $0x30] sm:$0xf]
    %v29 = vld [vmem:[%s1 + $0x34] sm:$0xf]
    %v30 = vld [vmem:[%s1 + $0x38] sm:$0xf]
    %v31 = vld [vmem:[%s1 + $0x3c] sm:$0xf]
    %v32 = vld [vmem:[%s1 + $0x40] sm:$0xf]
    %v33 = vld [vmem:[%s1 + $0x44] sm:$0xf]
    %v34 = vld [vmem:[%s1 + $0x48] sm:$0xf]
    %v35 = vld [vmem:[%s1 + $0x4c] sm:$0xf]
    %v36 = vld [vmem:[%s1 + $0x50] sm:$0xf]
    %v37 = vld [vmem:[%s1 + $0x54] sm:$0xf]
    %v38 = vld [vmem:[%s1 + $0x58] sm:$0xf]
    %v39 = vld [vmem:[%s1 + $0x5c] sm:$0xf]
    %v40 = vld [vmem:[%s1 + $0x60] sm:$0xf]
    %v41 = vld [vmem:[%s1 + $0x64] sm:$0xf]
    %v42 = vld [vmem:[%s1 + $0x68] sm:$0xf]
    %v43 = vld [vmem:[%s1 + $0x6c] sm:$0xf]
    %v44 = vld [vmem:[%s1 + $0x70] sm:$0xf]
    %v45 = vld [vmem:[%s1 + $0x74] sm:$0xf]
    %v46 = vld [vmem:[%s1 + $0x78] sm:$0xf]
    %v47 = vld [vmem:[%s1 + $0x7c] sm:$0xf]
    %v48 = vld [vmem:[%s1 + $0x80] sm:$0xf]
    %v49 = vld [vmem:[%s1 + $0x84] sm:$0xf]
    %v50 = vld [vmem:[%s1 + $0x88] sm:$0xf]
    %v51 = vld [vmem:[%s1 + $0x8c] sm:$0xf]
    %v52 = vld [vmem:[%s1 + $0x90] sm:$0xf]
    %v53 = vld [vmem:[%s1 + $0x94] sm:$0xf]
    %v54 = vld [vmem:[%s1 + $0x98] sm:$0xf]
    %v55 = vld [vmem:[%s1 + $0x9c] sm:$0xf]
    %v56 = vld [vmem:[%s1 + $0xa0] sm:$0xf]
    %v57 = vld [vmem:[%s1 + $0xa4] sm:$0xf]
    %v58 = vld [vmem:[%s1 + $0xa8] sm:$0xf]
    %v59 = vld [vmem:[%s1 + $0xac] sm:$0xf]
    %v60 = vld [vmem:[%s1 + $0xb0] sm:$0xf]
    %v61 = vld [vmem:[%s1 + $0xb4] sm:$0xf]
    %v62 = vld [vmem:[%s1 + $0xb8] sm:$0xf]
    %v63 = vld [vmem:[%s1 + $0xbc] sm:$0xf]
    %v64 = vld [vmem:[%s1 + $0xc0] sm:$0xf]
    %v65 = vld [vmem:[%s1 + $0xc4] sm:$0xf]
    %v66 = vld [vmem:[%s1 + $0xc8] sm:$0xf]
    %v67 = vld [vmem:[%s1 + $0xcc] sm:$0xf]
    %v68 = vld [vmem:[%s1 + $0xd0] sm:$0xf]
    %v69 = vld [vmem:[%s1 + $0xd4] sm:$0xf]
    %v70 = vld [vmem:[%s1 + $0xd8] sm:$0xf]
    %v71 = vld [vmem:[%s1 + $0xdc] sm:$0xf]
    %v72 = vld [vmem:[%s1 + $0xe0] sm:$0xf]
    %v73 = vld [vmem:[%s1 + $0xe4] sm:$0xf]
    %v74 = vld [vmem:[%s1 + $0xe8] sm:$0xf]
    %v75 = vld [vmem:[%s1 + $0xec] sm:$0xf]
    %v76 = vld [vmem:[%s1 + $0xf0] sm:$0xf]
    %v77 = vld [vmem:[%s1 + $0xf4] sm:$0xf]
    %v78 = vld [vmem:[%s1 + $0xf8] sm:$0xf]
    %v79 = vld [vmem:[%s1 + $0xfc] sm:$0xf]
    %v80 = vld [vmem:[%s2] sm:$0x1]
    %v82 = vperm.slane %v80, 0
    %85 = vst [vmem:[#allocation1] ss:$9 sm:$0xff] %v15
    %v86 = vld [vmem:[#allocation1] sm:$0xff]
    %v87 = vld [vmem:[#allocation1 + $0x9] sm:$0xff]
    %v88 = vld [vmem:[#allocation1 + $0x12] sm:$0xff]
    %v89 = vld [vmem:[#allocation1 + $0x1b] sm:$0xff]
    %v158 = vunpack.c.l.b16 %v16
    %v159 = vunpack.c.l.b16 %v17
    %v160 = vunpack.c.l.b16 %v18
    %v161 = vunpack.c.l.b16 %v19
    %v162 = vunpack.c.l.b16 %v20
    %v163 = vunpack.c.l.b16 %v21
    %v164 = vunpack.c.l.b16 %v22
    %v165 = vunpack.c.l.b16 %v23
    %v166 = vunpack.c.l.b16 %v24
    %v167 = vunpack.c.l.b16 %v25
    %v168 = vunpack.c.l.b16 %v26
    %v169 = vunpack.c.l.b16 %v27
    %v170 = vunpack.c.l.b16 %v28
    %v171 = vunpack.c.l.b16 %v29
    %v172 = vunpack.c.l.b16 %v30
    %v173 = vunpack.c.l.b16 %v31
    %v174 = vunpack.c.l.b16 %v32
    %v175 = vunpack.c.l.b16 %v33
    %v176 = vunpack.c.l.b16 %v34
    %v177 = vunpack.c.l.b16 %v35
    %v178 = vunpack.c.l.b16 %v36
    %v179 = vunpack.c.l.b16 %v37
    %v180 = vunpack.c.l.b16 %v38
    %v181 = vunpack.c.l.b16 %v39
    %v182 = vunpack.c.l.b16 %v40
    %v183 = vunpack.c.l.b16 %v41
    %v184 = vunpack.c.l.b16 %v42
    %v185 = vunpack.c.l.b16 %v43
    %v186 = vunpack.c.l.b16 %v44
    %v187 = vunpack.c.l.b16 %v45
    %v188 = vunpack.c.l.b16 %v46
    %v189 = vunpack.c.l.b16 %v47
    %v190 = vunpack.c.l.b16 %v48
    %v191 = vunpack.c.l.b16 %v49
    %v192 = vunpack.c.l.b16 %v50
    %v193 = vunpack.c.l.b16 %v51
    %v194 = vunpack.c.l.b16 %v52
    %v195 = vunpack.c.l.b16 %v53
    %v196 = vunpack.c.l.b16 %v54
    %v197 = vunpack.c.l.b16 %v55
    %v198 = vunpack.c.l.b16 %v56
    %v199 = vunpack.c.l.b16 %v57
    %v200 = vunpack.c.l.b16 %v58
    %v201 = vunpack.c.l.b16 %v59
    %v202 = vunpack.c.l.b16 %v60
    %v203 = vunpack.c.l.b16 %v61
    %v204 = vunpack.c.l.b16 %v62
    %v205 = vunpack.c.l.b16 %v63
    %v206 = vunpack.c.l.b16 %v64
    %v207 = vunpack.c.l.b16 %v65
    %v208 = vunpack.c.l.b16 %v66
    %v209 = vunpack.c.l.b16 %v67
    %v210 = vunpack.c.l.b16 %v68
    %v211 = vunpack.c.l.b16 %v69
    %v212 = vunpack.c.l.b16 %v70
    %v213 = vunpack.c.l.b16 %v71
    %v214 = vunpack.c.l.b16 %v72
    %v215 = vunpack.c.l.b16 %v73
    %v216 = vunpack.c.l.b16 %v74
    %v217 = vunpack.c.l.b16 %v75
    %v218 = vunpack.c.l.b16 %v76
    %v219 = vunpack.c.l.b16 %v77
    %v220 = vunpack.c.l.b16 %v78
    %v221 = vunpack.c.l.b16 %v79
    %v222 = vpack.c.b16 %v159, %v158
    %v223 = vpack.c.b16 %v161, %v160
    %v224 = vpack.c.b16 %v163, %v162
    %v225 = vpack.c.b16 %v165, %v164
    %v226 = vpack.c.b16 %v167, %v166
    %v227 = vpack.c.b16 %v169, %v168
    %v228 = vpack.c.b16 %v171, %v170
    %v229 = vpack.c.b16 %v173, %v172
    %v230 = vpack.c.b16 %v175, %v174
    %v231 = vpack.c.b16 %v177, %v176
    %v232 = vpack.c.b16 %v179, %v178
    %v233 = vpack.c.b16 %v181, %v180
    %v234 = vpack.c.b16 %v183, %v182
    %v235 = vpack.c.b16 %v185, %v184
    %v236 = vpack.c.b16 %v187, %v186
    %v237 = vpack.c.b16 %v189, %v188
    %v238 = vpack.c.b16 %v191, %v190
    %v239 = vpack.c.b16 %v193, %v192
    %v240 = vpack.c.b16 %v195, %v194
    %v241 = vpack.c.b16 %v197, %v196
    %v242 = vpack.c.b16 %v199, %v198
    %v243 = vpack.c.b16 %v201, %v200
    %v244 = vpack.c.b16 %v203, %v202
    %v245 = vpack.c.b16 %v205, %v204
    %v246 = vpack.c.b16 %v207, %v206
    %v247 = vpack.c.b16 %v209, %v208
    %v248 = vpack.c.b16 %v211, %v210
    %v249 = vpack.c.b16 %v213, %v212
    %v250 = vpack.c.b16 %v215, %v214
    %v251 = vpack.c.b16 %v217, %v216
    %v252 = vpack.c.b16 %v219, %v218
    %v253 = vpack.c.b16 %v221, %v220
    %286 = vmatpush.bf16.msra.mxu0 %v229
    %287 = vmatpush.bf16.msra.mxu0 %v228
    %288 = vmatpush.bf16.msra.mxu0 %v227
    %289 = vmatpush.bf16.msra.mxu0 %v226
    %290 = vmatpush.bf16.msra.mxu0 %v225
    %291 = vmatpush.bf16.msra.mxu0 %v224
    %292 = vmatpush.bf16.msra.mxu0 %v223
    %293 = vmatpush.bf16.msra.mxu0 %v222
    %294 = vmatmul.bf16.gmra.mxu0 %v86
    %v295 = vpop.f32.mrf.mxu0
    %v296 = vadd.f32 %v82, %v295
    %v297 = vpop.f32.mrf.mxu0
    %298 = vdwg.mxu0
    %299 = vmatpush.bf16.msra.mxu0 %v237
    %300 = vmatpush.bf16.msra.mxu0 %v236
    %301 = vmatpush.bf16.msra.mxu0 %v235
    %302 = vmatpush.bf16.msra.mxu0 %v234
    %303 = vmatpush.bf16.msra.mxu0 %v233
    %304 = vmatpush.bf16.msra.mxu0 %v232
    %305 = vmatpush.bf16.msra.mxu0 %v231
    %306 = vmatpush.bf16.msra.mxu0 %v230
    %307 = vmatmul.bf16.gmra.mxu0 %v87
    %v308 = vpop.f32.mrf.mxu0
    %v309 = vadd.f32 %v296, %v308
    %v310 = vpop.f32.mrf.mxu0
    %311 = vdwg.mxu0
    %312 = vmatpush.bf16.msra.mxu0 %v245
    %313 = vmatpush.bf16.msra.mxu0 %v244
    %314 = vmatpush.bf16.msra.mxu0 %v243
    %315 = vmatpush.bf16.msra.mxu0 %v242
    %316 = vmatpush.bf16.msra.mxu0 %v241
    %317 = vmatpush.bf16.msra.mxu0 %v240
    %318 = vmatpush.bf16.msra.mxu0 %v239
    %319 = vmatpush.bf16.msra.mxu0 %v238
    %320 = vmatmul.bf16.gmra.mxu0 %v88
    %v321 = vpop.f32.mrf.mxu0
    %v322 = vadd.f32 %v309, %v321
    %v323 = vpop.f32.mrf.mxu0
    %324 = vdwg.mxu0
    %325 = vmatpush.bf16.msra.mxu0 %v253
    %326 = vmatpush.bf16.msra.mxu0 %v252
    %327 = vmatpush.bf16.msra.mxu0 %v251
    %328 = vmatpush.bf16.msra.mxu0 %v250
    %329 = vmatpush.bf16.msra.mxu0 %v249
    %330 = vmatpush.bf16.msra.mxu0 %v248
    %331 = vmatpush.bf16.msra.mxu0 %v247
    %332 = vmatpush.bf16.msra.mxu0 %v246
    %333 = vmatmul.bf16.gmra.mxu0 %v89
    %v334 = vpop.f32.mrf.mxu0
    %v335 = vadd.f32 %v322, %v334
    %v336 = vpop.f32.mrf.mxu0
    %337 = vdwg.mxu0
    %vm338 = vcmask 41984
    %v339 = vsel %vm338, %v335, -inf
    %340 = vmax.xlane.f32.xlu0 %v339
    %v341 = vpop.xlane.xlu0 %340
    %v342 = vsub.f32 %v335, %v341
    %v343 = vmul.f32 %v342, 1.442695
    %v344 = vpow.pop %v343
    %v345 = vsel %vm338, %v344, 0.0
    %346 = vadd.xlane.f32.xlu0 %v345
    %v347 = vpop.xlane.xlu0 %346
    %v348 = vrcp.pop %v347
    %v349 = vmul.f32 %v347, %v348
    %v350 = vsub.f32 1.0, %v349
    %v351 = vmul.f32 %v348, %v350
    %v352 = vadd.f32 %v348, %v351
    %vm353 = vweird.f32 %v347
    %vm354 = vweird.f32 %v348
    %vm355 = vmor %vm353, %vm354
    %v356 = vsel %vm355, %v348, %v352
    %v357 = vand.u32 2147483647, %v347
    %vm358 = vcmp.eq.f32.partialorder %v357, 8.507059e+37
    %v359 = vand.u32 %v347, 2147483648
    %v360 = vor.u32 1.1754944e-38, %v359
    %v361 = vsel %vm358, %v360, %v356
    %v362 = vmul.f32 %v344, %v361
    %363 = vst.msk [vmem:[#allocation2] sm:$0x3] %vm338, %v362
    // Predicated region
    $region14: #{net_forward.9} parent=1 // pred_check
      _
    $region15: #{net_forward.9} parent=1 // pred_check_branch
      %365 = sbr.rel (0) target = $region17
    $region16: #{net_forward.9} parent=1 // pred_region
      %367 = vsyncadd [#allocation3], 0
      %s369 = sshll.u32 [#allocation2], 4
      %s370 = int_to_ptr.vmem [resolvable:$true] %s369
      %s371 = sshll.u32 %s3, 4
      %s372 = int_to_ptr.hbm [resolvable:$true] %s371
      %374 = dma.vmem_to_hbm [thread:$0]  %s370, 32, %s372, [#allocation3]
    $region17: #{net_forward.9} parent=1 // pred_fallthru
      _
    // Predicated region
    $region18: #{net_forward.9} parent=1 // pred_check
      _
    $region19: #{net_forward.9} parent=1 // pred_check_branch
      %376 = sbr.rel (0) target = $region21
    $region20: #{net_forward.9} parent=1 // pred_region
      %378 = dma.done [#allocation3], 32
    $region21: #{net_forward.9} parent=1 // pred_fallthru
      _
    %379 = vsyncpa [#allocation3], 1

// kernel: net_forward.8
$region0: #{net_forward.8}
  #allocation0 [shape = 'u32[]', space=smem, size = 0x4, offset = 0x4, fixed_abs, tag = 'smem constant byte address 0x4 - core index']
  #allocation1 [shape = 'u32[72,128]{1,0:T(1,128)}', space=vmem, size = 0x9000, scoped, tag = 'internal scratch']
  %s0 = inlined_call_operand.vmem [shape: bf16[2,3136], index: 0, kind: input, shape index: {}]
  %s1 = inlined_call_operand.vmem [shape: bf16[3136,512], index: 1, kind: input, shape index: {}]
  %s2 = inlined_call_operand.vmem [shape: f32[1,512], index: 2, kind: input, shape index: {}]
  %s3 = inlined_call_operand.vmem [shape: f32[1,512], index: 3, kind: input, shape index: {}]
  %s4 = inlined_call_operand.vmem [shape: f32[1,512], index: 4, kind: input, shape index: {}]
  %s5 = inlined_call_operand.vmem [shape: bf16[2,512], index: 5, kind: output, shape index: {}]
  %s6 = sld [smem:[#allocation0]]
  $region30: #{net_forward.8} parent=0
    _
  %s8 = ssub.s32 1, %s6
  %s9 = scalar_select 0, %s8, %s6
  // Predicated region
  $region2: #{net_forward.8} parent=0 // pred_check
    _
  $region3: #{net_forward.8} parent=0 // pred_check_branch
    %11 = sbr.rel (0) target = $region5
  $region4: #{net_forward.8} parent=0 // pred_region
    _
  $region5: #{net_forward.8} parent=0 // pred_fallthru
    _
  // Predicated region
  $region6: #{net_forward.8} parent=0 // pred_check
    _
  $region7: #{net_forward.8} parent=0 // pred_check_branch
    %13 = sbr.rel (0) target = $region9
  $region8: #{net_forward.8} parent=0 // pred_region
    _
  $region9: #{net_forward.8} parent=0 // pred_fallthru
    _
  // Predicated region
  $region10: #{net_forward.8} parent=0 // pred_check
    _
  $region11: #{net_forward.8} parent=0 // pred_check_branch
    %15 = sbr.rel (0) target = $region13
  $region12: #{net_forward.8} parent=0 // pred_region
    _
  $region13: #{net_forward.8} parent=0 // pred_fallthru
    _
  // Predicated region
  $region14: #{net_forward.8} parent=0 // pred_check
    _
  $region15: #{net_forward.8} parent=0 // pred_check_branch
    %17 = sbr.rel (0) target = $region17
  $region16: #{net_forward.8} parent=0 // pred_region
    _
  $region17: #{net_forward.8} parent=0 // pred_fallthru
    _
  // Predicated region
  $region18: #{net_forward.8} parent=0 // pred_check
    _
  $region19: #{net_forward.8} parent=0 // pred_check_branch
    %19 = sbr.rel (0) target = $region21
  $region20: #{net_forward.8} parent=0 // pred_region
    _
  $region21: #{net_forward.8} parent=0 // pred_fallthru
    _
  %v21 = vld [vmem:[%s0] sm:$0xff]
  %v22 = vld [vmem:[%s0 + $0x8] sm:$0xff]
  %v23 = vld [vmem:[%s0 + $0x10] sm:$0xff]
  %v24 = vld [vmem:[%s0 + $0x18] sm:$0x1]
  %v25 = vld [vmem:[%s1] sm:$0xff]
  %v26 = vld [vmem:[%s1 + $0x8] sm:$0xff]
  %v27 = vld [vmem:[%s1 + $0x10] sm:$0xff]
  %v28 = vld [vmem:[%s1 + $0x18] sm:$0xff]
  %v29 = vld [vmem:[%s1 + $0x20] sm:$0xff]
  %v30 = vld [vmem:[%s1 + $0x28] sm:$0xff]
  %v31 = vld [vmem:[%s1 + $0x30] sm:$0xff]
  %v32 = vld [vmem:[%s1 + $0x38] sm:$0xff]
  %v33 = vld [vmem:[%s1 + $0x40] sm:$0xff]
  %v34 = vld [vmem:[%s1 + $0x48] sm:$0xff]
  %v35 = vld [vmem:[%s1 + $0x50] sm:$0xff]
  %v36 = vld [vmem:[%s1 + $0x58] sm:$0xff]
  %v37 = vld [vmem:[%s1 + $0x60] sm:$0xff]
  %v38 = vld [vmem:[%s1 + $0x68] sm:$0xff]
  %v39 = vld [vmem:[%s1 + $0x70] sm:$0xff]
  %v40 = vld [vmem:[%s1 + $0x78] sm:$0xff]
  %v41 = vld [vmem:[%s1 + $0x80] sm:$0xff]
  %v42 = vld [vmem:[%s1 + $0x88] sm:$0xff]
  %v43 = vld [vmem:[%s1 + $0x90] sm:$0xff]
  %v44 = vld [vmem:[%s1 + $0x98] sm:$0xff]
  %v45 = vld [vmem:[%s1 + $0xa0] sm:$0xff]
  %v46 = vld [vmem:[%s1 + $0xa8] sm:$0xff]
  %v47 = vld [vmem:[%s1 + $0xb0] sm:$0xff]
  %v48 = vld [vmem:[%s1 + $0xb8] sm:$0xff]
  %v49 = vld [vmem:[%s1 + $0xc0] sm:$0xff]
  %v50 = vld [vmem:[%s1 + $0xc8] sm:$0xff]
  %v51 = vld [vmem:[%s1 + $0xd0] sm:$0xff]
  %v52 = vld [vmem:[%s1 + $0xd8] sm:$0xff]
  %v53 = vld [vmem:[%s1 + $0xe0] sm:$0xff]
  %v54 = vld [vmem:[%s1 + $0xe8] sm:$0xff]
  %v55 = vld [vmem:[%s1 + $0xf0] sm:$0xff]
  %v56 = vld [vmem:[%s1 + $0xf8] sm:$0xff]
  %v57 = vld [vmem:[%s1 + $0x100] sm:$0xff]
  %v58 = vld [vmem:[%s1 + $0x108] sm:$0xff]
  %v59 = vld [vmem:[%s1 + $0x110] sm:$0xff]
  %v60 = vld [vmem:[%s1 + $0x118] sm:$0xff]
  %v61 = vld [vmem:[%s1 + $0x120] sm:$0xff]
  %v62 = vld [vmem:[%s1 + $0x128] sm:$0xff]
  %v63 = vld [vmem:[%s1 + $0x130] sm:$0xff]
  %v64 = vld [vmem:[%s1 + $0x138] sm:$0xff]
  %v65 = vld [vmem:[%s1 + $0x140] sm:$0xff]
  %v66 = vld [vmem:[%s1 + $0x148] sm:$0xff]
  %v67 = vld [vmem:[%s1 + $0x150] sm:$0xff]
  %v68 = vld [vmem:[%s1 + $0x158] sm:$0xff]
  %v69 = vld [vmem:[%s1 + $0x160] sm:$0xff]
  %v70 = vld [vmem:[%s1 + $0x168] sm:$0xff]
  %v71 = vld [vmem:[%s1 + $0x170] sm:$0xff]
  %v72 = vld [vmem:[%s1 + $0x178] sm:$0xff]
  %v73 = vld [vmem:[%s1 + $0x180] sm:$0xff]
  %v74 = vld [vmem:[%s1 + $0x188] sm:$0xff]
  %v75 = vld [vmem:[%s1 + $0x190] sm:$0xff]
  %v76 = vld [vmem:[%s1 + $0x198] sm:$0xff]
  %v77 = vld [vmem:[%s1 + $0x1a0] sm:$0xff]
  %v78 = vld [vmem:[%s1 + $0x1a8] sm:$0xff]
  %v79 = vld [vmem:[%s1 + $0x1b0] sm:$0xff]
  %v80 = vld [vmem:[%s1 + $0x1b8] sm:$0xff]
  %v81 = vld [vmem:[%s1 + $0x1c0] sm:$0xff]
  %v82 = vld [vmem:[%s1 + $0x1c8] sm:$0xff]
  %v83 = vld [vmem:[%s1 + $0x1d0] sm:$0xff]
  %v84 = vld [vmem:[%s1 + $0x1d8] sm:$0xff]
  %v85 = vld [vmem:[%s1 + $0x1e0] sm:$0xff]
  %v86 = vld [vmem:[%s1 + $0x1e8] sm:$0xff]
  %v87 = vld [vmem:[%s1 + $0x1f0] sm:$0xff]
  %v88 = vld [vmem:[%s1 + $0x1f8] sm:$0xff]
  %v89 = vld [vmem:[%s1 + $0x200] sm:$0xff]
  %v90 = vld [vmem:[%s1 + $0x208] sm:$0xff]
  %v91 = vld [vmem:[%s1 + $0x210] sm:$0xff]
  %v92 = vld [vmem:[%s1 + $0x218] sm:$0xff]
  %v93 = vld [vmem:[%s1 + $0x220] sm:$0xff]
  %v94 = vld [vmem:[%s1 + $0x228] sm:$0xff]
  %v95 = vld [vmem:[%s1 + $0x230] sm:$0xff]
  %v96 = vld [vmem:[%s1 + $0x238] sm:$0xff]
  %v97 = vld [vmem:[%s1 + $0x240] sm:$0xff]
  %v98 = vld [vmem:[%s1 + $0x248] sm:$0xff]
  %v99 = vld [vmem:[%s1 + $0x250] sm:$0xff]
  %v100 = vld [vmem:[%s1 + $0x258] sm:$0xff]
  %v101 = vld [vmem:[%s1 + $0x260] sm:$0xff]
  %v102 = vld [vmem:[%s1 + $0x268] sm:$0xff]
  %v103 = vld [vmem:[%s1 + $0x270] sm:$0xff]
  %v104 = vld [vmem:[%s1 + $0x278] sm:$0xff]
  %v105 = vld [vmem:[%s1 + $0x280] sm:$0xff]
  %v106 = vld [vmem:[%s1 + $0x288] sm:$0xff]
  %v107 = vld [vmem:[%s1 + $0x290] sm:$0xff]
  %v108 = vld [vmem:[%s1 + $0x298] sm:$0xff]
  %v109 = vld [vmem:[%s1 + $0x2a0] sm:$0xff]
  %v110 = vld [vmem:[%s1 + $0x2a8] sm:$0xff]
  %v111 = vld [vmem:[%s1 + $0x2b0] sm:$0xff]
  %v112 = vld [vmem:[%s1 + $0x2b8] sm:$0xff]
  %v113 = vld [vmem:[%s1 + $0x2c0] sm:$0xff]
  %v114 = vld [vmem:[%s1 + $0x2c8] sm:$0xff]
  %v115 = vld [vmem:[%s1 + $0x2d0] sm:$0xff]
  %v116 = vld [vmem:[%s1 + $0x2d8] sm:$0xff]
  %v117 = vld [vmem:[%s1 + $0x2e0] sm:$0xff]
  %v118 = vld [vmem:[%s1 + $0x2e8] sm:$0xff]
  %v119 = vld [vmem:[%s1 + $0x2f0] sm:$0xff]
  %v120 = vld [vmem:[%s1 + $0x2f8] sm:$0xff]
  %v121 = vld [vmem:[%s1 + $0x300] sm:$0xff]
  %v122 = vld [vmem:[%s1 + $0x308] sm:$0xff]
  %v123 = vld [vmem:[%s1 + $0x310] sm:$0xff]
  %v124 = vld [vmem:[%s1 + $0x318] sm:$0xff]
  %v125 = vld [vmem:[%s1 + $0x320] sm:$0xff]
  %v126 = vld [vmem:[%s1 + $0x328] sm:$0xff]
  %v127 = vld [vmem:[%s1 + $0x330] sm:$0xff]
  %v128 = vld [vmem:[%s1 + $0x338] sm:$0xff]
  %v129 = vld [vmem:[%s1 + $0x340] sm:$0xff]
  %v130 = vld [vmem:[%s1 + $0x348] sm:$0xff]
  %v131 = vld [vmem:[%s1 + $0x350] sm:$0xff]
  %v132 = vld [vmem:[%s1 + $0x358] sm:$0xff]
  %v133 = vld [vmem:[%s1 + $0x360] sm:$0xff]
  %v134 = vld [vmem:[%s1 + $0x368] sm:$0xff]
  %v135 = vld [vmem:[%s1 + $0x370] sm:$0xff]
  %v136 = vld [vmem:[%s1 + $0x378] sm:$0xff]
  %v137 = vld [vmem:[%s1 + $0x380] sm:$0xff]
  %v138 = vld [vmem:[%s1 + $0x388] sm:$0xff]
  %v139 = vld [vmem:[%s1 + $0x390] sm:$0xff]
  %v140 = vld [vmem:[%s1 + $0x398] sm:$0xff]
  %v141 = vld [vmem:[%s1 + $0x3a0] sm:$0xff]
  %v142 = vld [vmem:[%s1 + $0x3a8] sm:$0xff]
  %v143 = vld [vmem:[%s1 + $0x3b0] sm:$0xff]
  %v144 = vld [vmem:[%s1 + $0x3b8] sm:$0xff]
  %v145 = vld [vmem:[%s1 + $0x3c0] sm:$0xff]
  %v146 = vld [vmem:[%s1 + $0x3c8] sm:$0xff]
  %v147 = vld [vmem:[%s1 + $0x3d0] sm:$0xff]
  %v148 = vld [vmem:[%s1 + $0x3d8] sm:$0xff]
  %v149 = vld [vmem:[%s1 + $0x3e0] sm:$0xff]
  %v150 = vld [vmem:[%s1 + $0x3e8] sm:$0xff]
  %v151 = vld [vmem:[%s1 + $0x3f0] sm:$0xff]
  %v152 = vld [vmem:[%s1 + $0x3f8] sm:$0xff]
  %v153 = vld [vmem:[%s1 + $0x400] sm:$0xff]
  %v154 = vld [vmem:[%s1 + $0x408] sm:$0xff]
  %v155 = vld [vmem:[%s1 + $0x410] sm:$0xff]
  %v156 = vld [vmem:[%s1 + $0x418] sm:$0xff]
  %v157 = vld [vmem:[%s1 + $0x420] sm:$0xff]
  %v158 = vld [vmem:[%s1 + $0x428] sm:$0xff]
  %v159 = vld [vmem:[%s1 + $0x430] sm:$0xff]
  %v160 = vld [vmem:[%s1 + $0x438] sm:$0xff]
  %v161 = vld [vmem:[%s1 + $0x440] sm:$0xff]
  %v162 = vld [vmem:[%s1 + $0x448] sm:$0xff]
  %v163 = vld [vmem:[%s1 + $0x450] sm:$0xff]
  %v164 = vld [vmem:[%s1 + $0x458] sm:$0xff]
  %v165 = vld [vmem:[%s1 + $0x460] sm:$0xff]
  %v166 = vld [vmem:[%s1 + $0x468] sm:$0xff]
  %v167 = vld [vmem:[%s1 + $0x470] sm:$0xff]
  %v168 = vld [vmem:[%s1 + $0x478] sm:$0xff]
  %v169 = vld [vmem:[%s1 + $0x480] sm:$0xff]
  %v170 = vld [vmem:[%s1 + $0x488] sm:$0xff]
  %v171 = vld [vmem:[%s1 + $0x490] sm:$0xff]
  %v172 = vld [vmem:[%s1 + $0x498] sm:$0xff]
  %v173 = vld [vmem:[%s1 + $0x4a0] sm:$0xff]
  %v174 = vld [vmem:[%s1 + $0x4a8] sm:$0xff]
  %v175 = vld [vmem:[%s1 + $0x4b0] sm:$0xff]
  %v176 = vld [vmem:[%s1 + $0x4b8] sm:$0xff]
  %v177 = vld [vmem:[%s1 + $0x4c0] sm:$0xff]
  %v178 = vld [vmem:[%s1 + $0x4c8] sm:$0xff]
  %v179 = vld [vmem:[%s1 + $0x4d0] sm:$0xff]
  %v180 = vld [vmem:[%s1 + $0x4d8] sm:$0xff]
  %v181 = vld [vmem:[%s1 + $0x4e0] sm:$0xff]
  %v182 = vld [vmem:[%s1 + $0x4e8] sm:$0xff]
  %v183 = vld [vmem:[%s1 + $0x4f0] sm:$0xff]
  %v184 = vld [vmem:[%s1 + $0x4f8] sm:$0xff]
  %v185 = vld [vmem:[%s1 + $0x500] sm:$0xff]
  %v186 = vld [vmem:[%s1 + $0x508] sm:$0xff]
  %v187 = vld [vmem:[%s1 + $0x510] sm:$0xff]
  %v188 = vld [vmem:[%s1 + $0x518] sm:$0xff]
  %v189 = vld [vmem:[%s1 + $0x520] sm:$0xff]
  %v190 = vld [vmem:[%s1 + $0x528] sm:$0xff]
  %v191 = vld [vmem:[%s1 + $0x530] sm:$0xff]
  %v192 = vld [vmem:[%s1 + $0x538] sm:$0xff]
  %v193 = vld [vmem:[%s1 + $0x540] sm:$0xff]
  %v194 = vld [vmem:[%s1 + $0x548] sm:$0xff]
  %v195 = vld [vmem:[%s1 + $0x550] sm:$0xff]
  %v196 = vld [vmem:[%s1 + $0x558] sm:$0xff]
  %v197 = vld [vmem:[%s1 + $0x560] sm:$0xff]
  %v198 = vld [vmem:[%s1 + $0x568] sm:$0xff]
  %v199 = vld [vmem:[%s1 + $0x570] sm:$0xff]
  %v200 = vld [vmem:[%s1 + $0x578] sm:$0xff]
  %v201 = vld [vmem:[%s1 + $0x580] sm:$0xff]
  %v202 = vld [vmem:[%s1 + $0x588] sm:$0xff]
  %v203 = vld [vmem:[%s1 + $0x590] sm:$0xff]
  %v204 = vld [vmem:[%s1 + $0x598] sm:$0xff]
  %v205 = vld [vmem:[%s1 + $0x5a0] sm:$0xff]
  %v206 = vld [vmem:[%s1 + $0x5a8] sm:$0xff]
  %v207 = vld [vmem:[%s1 + $0x5b0] sm:$0xff]
  %v208 = vld [vmem:[%s1 + $0x5b8] sm:$0xff]
  %v209 = vld [vmem:[%s1 + $0x5c0] sm:$0xff]
  %v210 = vld [vmem:[%s1 + $0x5c8] sm:$0xff]
  %v211 = vld [vmem:[%s1 + $0x5d0] sm:$0xff]
  %v212 = vld [vmem:[%s1 + $0x5d8] sm:$0xff]
  %v213 = vld [vmem:[%s1 + $0x5e0] sm:$0xff]
  %v214 = vld [vmem:[%s1 + $0x5e8] sm:$0xff]
  %v215 = vld [vmem:[%s1 + $0x5f0] sm:$0xff]
  %v216 = vld [vmem:[%s1 + $0x5f8] sm:$0xff]
  %v217 = vld [vmem:[%s1 + $0x600] sm:$0xff]
  %v218 = vld [vmem:[%s1 + $0x608] sm:$0xff]
  %v219 = vld [vmem:[%s1 + $0x610] sm:$0xff]
  %v220 = vld [vmem:[%s1 + $0x618] sm:$0xff]
  %v221 = vld [vmem:[%s1 + $0x620] sm:$0xff]
  %v222 = vld [vmem:[%s1 + $0x628] sm:$0xff]
  %v223 = vld [vmem:[%s1 + $0x630] sm:$0xff]
  %v224 = vld [vmem:[%s1 + $0x638] sm:$0xff]
  %v225 = vld [vmem:[%s1 + $0x640] sm:$0xff]
  %v226 = vld [vmem:[%s1 + $0x648] sm:$0xff]
  %v227 = vld [vmem:[%s1 + $0x650] sm:$0xff]
  %v228 = vld [vmem:[%s1 + $0x658] sm:$0xff]
  %v229 = vld [vmem:[%s1 + $0x660] sm:$0xff]
  %v230 = vld [vmem:[%s1 + $0x668] sm:$0xff]
  %v231 = vld [vmem:[%s1 + $0x670] sm:$0xff]
  %v232 = vld [vmem:[%s1 + $0x678] sm:$0xff]
  %v233 = vld [vmem:[%s1 + $0x680] sm:$0xff]
  %v234 = vld [vmem:[%s1 + $0x688] sm:$0xff]
  %v235 = vld [vmem:[%s1 + $0x690] sm:$0xff]
  %v236 = vld [vmem:[%s1 + $0x698] sm:$0xff]
  %v237 = vld [vmem:[%s1 + $0x6a0] sm:$0xff]
  %v238 = vld [vmem:[%s1 + $0x6a8] sm:$0xff]
  %v239 = vld [vmem:[%s1 + $0x6b0] sm:$0xff]
  %v240 = vld [vmem:[%s1 + $0x6b8] sm:$0xff]
  %v241 = vld [vmem:[%s1 + $0x6c0] sm:$0xff]
  %v242 = vld [vmem:[%s1 + $0x6c8] sm:$0xff]
  %v243 = vld [vmem:[%s1 + $0x6d0] sm:$0xff]
  %v244 = vld [vmem:[%s1 + $0x6d8] sm:$0xff]
  %v245 = vld [vmem:[%s1 + $0x6e0] sm:$0xff]
  %v246 = vld [vmem:[%s1 + $0x6e8] sm:$0xff]
  %v247 = vld [vmem:[%s1 + $0x6f0] sm:$0xff]
  %v248 = vld [vmem:[%s1 + $0x6f8] sm:$0xff]
  %v249 = vld [vmem:[%s1 + $0x700] sm:$0xff]
  %v250 = vld [vmem:[%s1 + $0x708] sm:$0xff]
  %v251 = vld [vmem:[%s1 + $0x710] sm:$0xff]
  %v252 = vld [vmem:[%s1 + $0x718] sm:$0xff]
  %v253 = vld [vmem:[%s1 + $0x720] sm:$0xff]
  %v254 = vld [vmem:[%s1 + $0x728] sm:$0xff]
  %v255 = vld [vmem:[%s1 + $0x730] sm:$0xff]
  %v256 = vld [vmem:[%s1 + $0x738] sm:$0xff]
  %v257 = vld [vmem:[%s1 + $0x740] sm:$0xff]
  %v258 = vld [vmem:[%s1 + $0x748] sm:$0xff]
  %v259 = vld [vmem:[%s1 + $0x750] sm:$0xff]
  %v260 = vld [vmem:[%s1 + $0x758] sm:$0xff]
  %v261 = vld [vmem:[%s1 + $0x760] sm:$0xff]
  %v262 = vld [vmem:[%s1 + $0x768] sm:$0xff]
  %v263 = vld [vmem:[%s1 + $0x770] sm:$0xff]
  %v264 = vld [vmem:[%s1 + $0x778] sm:$0xff]
  %v265 = vld [vmem:[%s1 + $0x780] sm:$0xff]
  %v266 = vld [vmem:[%s1 + $0x788] sm:$0xff]
  %v267 = vld [vmem:[%s1 + $0x790] sm:$0xff]
  %v268 = vld [vmem:[%s1 + $0x798] sm:$0xff]
  %v269 = vld [vmem:[%s1 + $0x7a0] sm:$0xff]
  %v270 = vld [vmem:[%s1 + $0x7a8] sm:$0xff]
  %v271 = vld [vmem:[%s1 + $0x7b0] sm:$0xff]
  %v272 = vld [vmem:[%s1 + $0x7b8] sm:$0xff]
  %v273 = vld [vmem:[%s1 + $0x7c0] sm:$0xff]
  %v274 = vld [vmem:[%s1 + $0x7c8] sm:$0xff]
  %v275 = vld [vmem:[%s1 + $0x7d0] sm:$0xff]
  %v276 = vld [vmem:[%s1 + $0x7d8] sm:$0xff]
  %v277 = vld [vmem:[%s1 + $0x7e0] sm:$0xff]
  %v278 = vld [vmem:[%s1 + $0x7e8] sm:$0xff]
  %v279 = vld [vmem:[%s1 + $0x7f0] sm:$0xff]
  %v280 = vld [vmem:[%s1 + $0x7f8] sm:$0xff]
  %v281 = vld [vmem:[%s1 + $0x800] sm:$0xff]
  %v282 = vld [vmem:[%s1 + $0x808] sm:$0xff]
  %v283 = vld [vmem:[%s1 + $0x810] sm:$0xff]
  %v284 = vld [vmem:[%s1 + $0x818] sm:$0xff]
  %v285 = vld [vmem:[%s1 + $0x820] sm:$0xff]
  %v286 = vld [vmem:[%s1 + $0x828] sm:$0xff]
  %v287 = vld [vmem:[%s1 + $0x830] sm:$0xff]
  %v288 = vld [vmem:[%s1 + $0x838] sm:$0xff]
  %v289 = vld [vmem:[%s1 + $0x840] sm:$0xff]
  %v290 = vld [vmem:[%s1 + $0x848] sm:$0xff]
  %v291 = vld [vmem:[%s1 + $0x850] sm:$0xff]
  %v292 = vld [vmem:[%s1 + $0x858] sm:$0xff]
  %v293 = vld [vmem:[%s1 + $0x860] sm:$0xff]
  %v294 = vld [vmem:[%s1 + $0x868] sm:$0xff]
  %v295 = vld [vmem:[%s1 + $0x870] sm:$0xff]
  %v296 = vld [vmem:[%s1 + $0x878] sm:$0xff]
  %v297 = vld [vmem:[%s1 + $0x880] sm:$0xff]
  %v298 = vld [vmem:[%s1 + $0x888] sm:$0xff]
  %v299 = vld [vmem:[%s1 + $0x890] sm:$0xff]
  %v300 = vld [vmem:[%s1 + $0x898] sm:$0xff]
  %v301 = vld [vmem:[%s1 + $0x8a0] sm:$0xff]
  %v302 = vld [vmem:[%s1 + $0x8a8] sm:$0xff]
  %v303 = vld [vmem:[%s1 + $0x8b0] sm:$0xff]
  %v304 = vld [vmem:[%s1 + $0x8b8] sm:$0xff]
  %v305 = vld [vmem:[%s1 + $0x8c0] sm:$0xff]
  %v306 = vld [vmem:[%s1 + $0x8c8] sm:$0xff]
  %v307 = vld [vmem:[%s1 + $0x8d0] sm:$0xff]
  %v308 = vld [vmem:[%s1 + $0x8d8] sm:$0xff]
  %v309 = vld [vmem:[%s1 + $0x8e0] sm:$0xff]
  %v310 = vld [vmem:[%s1 + $0x8e8] sm:$0xff]
  %v311 = vld [vmem:[%s1 + $0x8f0] sm:$0xff]
  %v312 = vld [vmem:[%s1 + $0x8f8] sm:$0xff]
  %v313 = vld [vmem:[%s1 + $0x900] sm:$0xff]
  %v314 = vld [vmem:[%s1 + $0x908] sm:$0xff]
  %v315 = vld [vmem:[%s1 + $0x910] sm:$0xff]
  %v316 = vld [vmem:[%s1 + $0x918] sm:$0xff]
  %v317 = vld [vmem:[%s1 + $0x920] sm:$0xff]
  %v318 = vld [vmem:[%s1 + $0x928] sm:$0xff]
  %v319 = vld [vmem:[%s1 + $0x930] sm:$0xff]
  %v320 = vld [vmem:[%s1 + $0x938] sm:$0xff]
  %v321 = vld [vmem:[%s1 + $0x940] sm:$0xff]
  %v322 = vld [vmem:[%s1 + $0x948] sm:$0xff]
  %v323 = vld [vmem:[%s1 + $0x950] sm:$0xff]
  %v324 = vld [vmem:[%s1 + $0x958] sm:$0xff]
  %v325 = vld [vmem:[%s1 + $0x960] sm:$0xff]
  %v326 = vld [vmem:[%s1 + $0x968] sm:$0xff]
  %v327 = vld [vmem:[%s1 + $0x970] sm:$0xff]
  %v328 = vld [vmem:[%s1 + $0x978] sm:$0xff]
  %v329 = vld [vmem:[%s1 + $0x980] sm:$0xff]
  %v330 = vld [vmem:[%s1 + $0x988] sm:$0xff]
  %v331 = vld [vmem:[%s1 + $0x990] sm:$0xff]
  %v332 = vld [vmem:[%s1 + $0x998] sm:$0xff]
  %v333 = vld [vmem:[%s1 + $0x9a0] sm:$0xff]
  %v334 = vld [vmem:[%s1 + $0x9a8] sm:$0xff]
  %v335 = vld [vmem:[%s1 + $0x9b0] sm:$0xff]
  %v336 = vld [vmem:[%s1 + $0x9b8] sm:$0xff]
  %v337 = vld [vmem:[%s1 + $0x9c0] sm:$0xff]
  %v338 = vld [vmem:[%s1 + $0x9c8] sm:$0xff]
  %v339 = vld [vmem:[%s1 + $0x9d0] sm:$0xff]
  %v340 = vld [vmem:[%s1 + $0x9d8] sm:$0xff]
  %v341 = vld [vmem:[%s1 + $0x9e0] sm:$0xff]
  %v342 = vld [vmem:[%s1 + $0x9e8] sm:$0xff]
  %v343 = vld [vmem:[%s1 + $0x9f0] sm:$0xff]
  %v344 = vld [vmem:[%s1 + $0x9f8] sm:$0xff]
  %v345 = vld [vmem:[%s1 + $0xa00] sm:$0xff]
  %v346 = vld [vmem:[%s1 + $0xa08] sm:$0xff]
  %v347 = vld [vmem:[%s1 + $0xa10] sm:$0xff]
  %v348 = vld [vmem:[%s1 + $0xa18] sm:$0xff]
  %v349 = vld [vmem:[%s1 + $0xa20] sm:$0xff]
  %v350 = vld [vmem:[%s1 + $0xa28] sm:$0xff]
  %v351 = vld [vmem:[%s1 + $0xa30] sm:$0xff]
  %v352 = vld [vmem:[%s1 + $0xa38] sm:$0xff]
  %v353 = vld [vmem:[%s1 + $0xa40] sm:$0xff]
  %v354 = vld [vmem:[%s1 + $0xa48] sm:$0xff]
  %v355 = vld [vmem:[%s1 + $0xa50] sm:$0xff]
  %v356 = vld [vmem:[%s1 + $0xa58] sm:$0xff]
  %v357 = vld [vmem:[%s1 + $0xa60] sm:$0xff]
  %v358 = vld [vmem:[%s1 + $0xa68] sm:$0xff]
  %v359 = vld [vmem:[%s1 + $0xa70] sm:$0xff]
  %v360 = vld [vmem:[%s1 + $0xa78] sm:$0xff]
  %v361 = vld [vmem:[%s1 + $0xa80] sm:$0xff]
  %v362 = vld [vmem:[%s1 + $0xa88] sm:$0xff]
  %v363 = vld [vmem:[%s1 + $0xa90] sm:$0xff]
  %v364 = vld [vmem:[%s1 + $0xa98] sm:$0xff]
  %v365 = vld [vmem:[%s1 + $0xaa0] sm:$0xff]
  %v366 = vld [vmem:[%s1 + $0xaa8] sm:$0xff]
  %v367 = vld [vmem:[%s1 + $0xab0] sm:$0xff]
  %v368 = vld [vmem:[%s1 + $0xab8] sm:$0xff]
  %v369 = vld [vmem:[%s1 + $0xac0] sm:$0xff]
  %v370 = vld [vmem:[%s1 + $0xac8] sm:$0xff]
  %v371 = vld [vmem:[%s1 + $0xad0] sm:$0xff]
  %v372 = vld [vmem:[%s1 + $0xad8] sm:$0xff]
  %v373 = vld [vmem:[%s1 + $0xae0] sm:$0xff]
  %v374 = vld [vmem:[%s1 + $0xae8] sm:$0xff]
  %v375 = vld [vmem:[%s1 + $0xaf0] sm:$0xff]
  %v376 = vld [vmem:[%s1 + $0xaf8] sm:$0xff]
  %v377 = vld [vmem:[%s1 + $0xb00] sm:$0xff]
  %v378 = vld [vmem:[%s1 + $0xb08] sm:$0xff]
  %v379 = vld [vmem:[%s1 + $0xb10] sm:$0xff]
  %v380 = vld [vmem:[%s1 + $0xb18] sm:$0xff]
  %v381 = vld [vmem:[%s1 + $0xb20] sm:$0xff]
  %v382 = vld [vmem:[%s1 + $0xb28] sm:$0xff]
  %v383 = vld [vmem:[%s1 + $0xb30] sm:$0xff]
  %v384 = vld [vmem:[%s1 + $0xb38] sm:$0xff]
  %v385 = vld [vmem:[%s1 + $0xb40] sm:$0xff]
  %v386 = vld [vmem:[%s1 + $0xb48] sm:$0xff]
  %v387 = vld [vmem:[%s1 + $0xb50] sm:$0xff]
  %v388 = vld [vmem:[%s1 + $0xb58] sm:$0xff]
  %v389 = vld [vmem:[%s1 + $0xb60] sm:$0xff]
  %v390 = vld [vmem:[%s1 + $0xb68] sm:$0xff]
  %v391 = vld [vmem:[%s1 + $0xb70] sm:$0xff]
  %v392 = vld [vmem:[%s1 + $0xb78] sm:$0xff]
  %v393 = vld [vmem:[%s1 + $0xb80] sm:$0xff]
  %v394 = vld [vmem:[%s1 + $0xb88] sm:$0xff]
  %v395 = vld [vmem:[%s1 + $0xb90] sm:$0xff]
  %v396 = vld [vmem:[%s1 + $0xb98] sm:$0xff]
  %v397 = vld [vmem:[%s1 + $0xba0] sm:$0xff]
  %v398 = vld [vmem:[%s1 + $0xba8] sm:$0xff]
  %v399 = vld [vmem:[%s1 + $0xbb0] sm:$0xff]
  %v400 = vld [vmem:[%s1 + $0xbb8] sm:$0xff]
  %v401 = vld [vmem:[%s1 + $0xbc0] sm:$0xff]
  %v402 = vld [vmem:[%s1 + $0xbc8] sm:$0xff]
  %v403 = vld [vmem:[%s1 + $0xbd0] sm:$0xff]
  %v404 = vld [vmem:[%s1 + $0xbd8] sm:$0xff]
  %v405 = vld [vmem:[%s1 + $0xbe0] sm:$0xff]
  %v406 = vld [vmem:[%s1 + $0xbe8] sm:$0xff]
  %v407 = vld [vmem:[%s1 + $0xbf0] sm:$0xff]
  %v408 = vld [vmem:[%s1 + $0xbf8] sm:$0xff]
  %v409 = vld [vmem:[%s1 + $0xc00] sm:$0xff]
  %v410 = vld [vmem:[%s1 + $0xc08] sm:$0xff]
  %v411 = vld [vmem:[%s1 + $0xc10] sm:$0xff]
  %v412 = vld [vmem:[%s1 + $0xc18] sm:$0xff]
  %v413 = vld [vmem:[%s1 + $0xc20] sm:$0xff]
  %v414 = vld [vmem:[%s1 + $0xc28] sm:$0xff]
  %v415 = vld [vmem:[%s1 + $0xc30] sm:$0xff]
  %v416 = vld [vmem:[%s1 + $0xc38] sm:$0xff]
  %v417 = vld [vmem:[%s1 + $0xc40] sm:$0xff]
  %v418 = vld [vmem:[%s1 + $0xc48] sm:$0xff]
  %v419 = vld [vmem:[%s1 + $0xc50] sm:$0xff]
  %v420 = vld [vmem:[%s1 + $0xc58] sm:$0xff]
  %v421 = vld [vmem:[%s1 + $0xc60] sm:$0xff]
  %v422 = vld [vmem:[%s1 + $0xc68] sm:$0xff]
  %v423 = vld [vmem:[%s1 + $0xc70] sm:$0xff]
  %v424 = vld [vmem:[%s1 + $0xc78] sm:$0xff]
  %v425 = vld [vmem:[%s1 + $0xc80] sm:$0xff]
  %v426 = vld [vmem:[%s1 + $0xc88] sm:$0xff]
  %v427 = vld [vmem:[%s1 + $0xc90] sm:$0xff]
  %v428 = vld [vmem:[%s1 + $0xc98] sm:$0xff]
  %v429 = vld [vmem:[%s1 + $0xca0] sm:$0xff]
  %v430 = vld [vmem:[%s1 + $0xca8] sm:$0xff]
  %v431 = vld [vmem:[%s1 + $0xcb0] sm:$0xff]
  %v432 = vld [vmem:[%s1 + $0xcb8] sm:$0xff]
  %v433 = vld [vmem:[%s1 + $0xcc0] sm:$0xff]
  %v434 = vld [vmem:[%s1 + $0xcc8] sm:$0xff]
  %v435 = vld [vmem:[%s1 + $0xcd0] sm:$0xff]
  %v436 = vld [vmem:[%s1 + $0xcd8] sm:$0xff]
  %v437 = vld [vmem:[%s1 + $0xce0] sm:$0xff]
  %v438 = vld [vmem:[%s1 + $0xce8] sm:$0xff]
  %v439 = vld [vmem:[%s1 + $0xcf0] sm:$0xff]
  %v440 = vld [vmem:[%s1 + $0xcf8] sm:$0xff]
  %v441 = vld [vmem:[%s1 + $0xd00] sm:$0xff]
  %v442 = vld [vmem:[%s1 + $0xd08] sm:$0xff]
  %v443 = vld [vmem:[%s1 + $0xd10] sm:$0xff]
  %v444 = vld [vmem:[%s1 + $0xd18] sm:$0xff]
  %v445 = vld [vmem:[%s1 + $0xd20] sm:$0xff]
  %v446 = vld [vmem:[%s1 + $0xd28] sm:$0xff]
  %v447 = vld [vmem:[%s1 + $0xd30] sm:$0xff]
  %v448 = vld [vmem:[%s1 + $0xd38] sm:$0xff]
  %v449 = vld [vmem:[%s1 + $0xd40] sm:$0xff]
  %v450 = vld [vmem:[%s1 + $0xd48] sm:$0xff]
  %v451 = vld [vmem:[%s1 + $0xd50] sm:$0xff]
  %v452 = vld [vmem:[%s1 + $0xd58] sm:$0xff]
  %v453 = vld [vmem:[%s1 + $0xd60] sm:$0xff]
  %v454 = vld [vmem:[%s1 + $0xd68] sm:$0xff]
  %v455 = vld [vmem:[%s1 + $0xd70] sm:$0xff]
  %v456 = vld [vmem:[%s1 + $0xd78] sm:$0xff]
  %v457 = vld [vmem:[%s1 + $0xd80] sm:$0xff]
  %v458 = vld [vmem:[%s1 + $0xd88] sm:$0xff]
  %v459 = vld [vmem:[%s1 + $0xd90] sm:$0xff]
  %v460 = vld [vmem:[%s1 + $0xd98] sm:$0xff]
  %v461 = vld [vmem:[%s1 + $0xda0] sm:$0xff]
  %v462 = vld [vmem:[%s1 + $0xda8] sm:$0xff]
  %v463 = vld [vmem:[%s1 + $0xdb0] sm:$0xff]
  %v464 = vld [vmem:[%s1 + $0xdb8] sm:$0xff]
  %v465 = vld [vmem:[%s1 + $0xdc0] sm:$0xff]
  %v466 = vld [vmem:[%s1 + $0xdc8] sm:$0xff]
  %v467 = vld [vmem:[%s1 + $0xdd0] sm:$0xff]
  %v468 = vld [vmem:[%s1 + $0xdd8] sm:$0xff]
  %v469 = vld [vmem:[%s1 + $0xde0] sm:$0xff]
  %v470 = vld [vmem:[%s1 + $0xde8] sm:$0xff]
  %v471 = vld [vmem:[%s1 + $0xdf0] sm:$0xff]
  %v472 = vld [vmem:[%s1 + $0xdf8] sm:$0xff]
  %v473 = vld [vmem:[%s1 + $0xe00] sm:$0xff]
  %v474 = vld [vmem:[%s1 + $0xe08] sm:$0xff]
  %v475 = vld [vmem:[%s1 + $0xe10] sm:$0xff]
  %v476 = vld [vmem:[%s1 + $0xe18] sm:$0xff]
  %v477 = vld [vmem:[%s1 + $0xe20] sm:$0xff]
  %v478 = vld [vmem:[%s1 + $0xe28] sm:$0xff]
  %v479 = vld [vmem:[%s1 + $0xe30] sm:$0xff]
  %v480 = vld [vmem:[%s1 + $0xe38] sm:$0xff]
  %v481 = vld [vmem:[%s1 + $0xe40] sm:$0xff]
  %v482 = vld [vmem:[%s1 + $0xe48] sm:$0xff]
  %v483 = vld [vmem:[%s1 + $0xe50] sm:$0xff]
  %v484 = vld [vmem:[%s1 + $0xe58] sm:$0xff]
  %v485 = vld [vmem:[%s1 + $0xe60] sm:$0xff]
  %v486 = vld [vmem:[%s1 + $0xe68] sm:$0xff]
  %v487 = vld [vmem:[%s1 + $0xe70] sm:$0xff]
  %v488 = vld [vmem:[%s1 + $0xe78] sm:$0xff]
  %v489 = vld [vmem:[%s1 + $0xe80] sm:$0xff]
  %v490 = vld [vmem:[%s1 + $0xe88] sm:$0xff]
  %v491 = vld [vmem:[%s1 + $0xe90] sm:$0xff]
  %v492 = vld [vmem:[%s1 + $0xe98] sm:$0xff]
  %v493 = vld [vmem:[%s1 + $0xea0] sm:$0xff]
  %v494 = vld [vmem:[%s1 + $0xea8] sm:$0xff]
  %v495 = vld [vmem:[%s1 + $0xeb0] sm:$0xff]
  %v496 = vld [vmem:[%s1 + $0xeb8] sm:$0xff]
  %v497 = vld [vmem:[%s1 + $0xec0] sm:$0xff]
  %v498 = vld [vmem:[%s1 + $0xec8] sm:$0xff]
  %v499 = vld [vmem:[%s1 + $0xed0] sm:$0xff]
  %v500 = vld [vmem:[%s1 + $0xed8] sm:$0xff]
  %v501 = vld [vmem:[%s1 + $0xee0] sm:$0xff]
  %v502 = vld [vmem:[%s1 + $0xee8] sm:$0xff]
  %v503 = vld [vmem:[%s1 + $0xef0] sm:$0xff]
  %v504 = vld [vmem:[%s1 + $0xef8] sm:$0xff]
  %v505 = vld [vmem:[%s1 + $0xf00] sm:$0xff]
  %v506 = vld [vmem:[%s1 + $0xf08] sm:$0xff]
  %v507 = vld [vmem:[%s1 + $0xf10] sm:$0xff]
  %v508 = vld [vmem:[%s1 + $0xf18] sm:$0xff]
  %v509 = vld [vmem:[%s1 + $0xf20] sm:$0xff]
  %v510 = vld [vmem:[%s1 + $0xf28] sm:$0xff]
  %v511 = vld [vmem:[%s1 + $0xf30] sm:$0xff]
  %v512 = vld [vmem:[%s1 + $0xf38] sm:$0xff]
  %v513 = vld [vmem:[%s1 + $0xf40] sm:$0xff]
  %v514 = vld [vmem:[%s1 + $0xf48] sm:$0xff]
  %v515 = vld [vmem:[%s1 + $0xf50] sm:$0xff]
  %v516 = vld [vmem:[%s1 + $0xf58] sm:$0xff]
  %v517 = vld [vmem:[%s1 + $0xf60] sm:$0xff]
  %v518 = vld [vmem:[%s1 + $0xf68] sm:$0xff]
  %v519 = vld [vmem:[%s1 + $0xf70] sm:$0xff]
  %v520 = vld [vmem:[%s1 + $0xf78] sm:$0xff]
  %v521 = vld [vmem:[%s1 + $0xf80] sm:$0xff]
  %v522 = vld [vmem:[%s1 + $0xf88] sm:$0xff]
  %v523 = vld [vmem:[%s1 + $0xf90] sm:$0xff]
  %v524 = vld [vmem:[%s1 + $0xf98] sm:$0xff]
  %v525 = vld [vmem:[%s1 + $0xfa0] sm:$0xff]
  %v526 = vld [vmem:[%s1 + $0xfa8] sm:$0xff]
  %v527 = vld [vmem:[%s1 + $0xfb0] sm:$0xff]
  %v528 = vld [vmem:[%s1 + $0xfb8] sm:$0xff]
  %v529 = vld [vmem:[%s1 + $0xfc0] sm:$0xff]
  %v530 = vld [vmem:[%s1 + $0xfc8] sm:$0xff]
  %v531 = vld [vmem:[%s1 + $0xfd0] sm:$0xff]
  %v532 = vld [vmem:[%s1 + $0xfd8] sm:$0xff]
  %v533 = vld [vmem:[%s1 + $0xfe0] sm:$0xff]
  %v534 = vld [vmem:[%s1 + $0xfe8] sm:$0xff]
  %v535 = vld [vmem:[%s1 + $0xff0] sm:$0xff]
  %v536 = vld [vmem:[%s1 + $0xff8] sm:$0xff]
  %v537 = vld [vmem:[%s1 + $0x1000] sm:$0xff]
  %v538 = vld [vmem:[%s1 + $0x1008] sm:$0xff]
  %v539 = vld [vmem:[%s1 + $0x1010] sm:$0xff]
  %v540 = vld [vmem:[%s1 + $0x1018] sm:$0xff]
  %v541 = vld [vmem:[%s1 + $0x1020] sm:$0xff]
  %v542 = vld [vmem:[%s1 + $0x1028] sm:$0xff]
  %v543 = vld [vmem:[%s1 + $0x1030] sm:$0xff]
  %v544 = vld [vmem:[%s1 + $0x1038] sm:$0xff]
  %v545 = vld [vmem:[%s1 + $0x1040] sm:$0xff]
  %v546 = vld [vmem:[%s1 + $0x1048] sm:$0xff]
  %v547 = vld [vmem:[%s1 + $0x1050] sm:$0xff]
  %v548 = vld [vmem:[%s1 + $0x1058] sm:$0xff]
  %v549 = vld [vmem:[%s1 + $0x1060] sm:$0xff]
  %v550 = vld [vmem:[%s1 + $0x1068] sm:$0xff]
  %v551 = vld [vmem:[%s1 + $0x1070] sm:$0xff]
  %v552 = vld [vmem:[%s1 + $0x1078] sm:$0xff]
  %v553 = vld [vmem:[%s1 + $0x1080] sm:$0xff]
  %v554 = vld [vmem:[%s1 + $0x1088] sm:$0xff]
  %v555 = vld [vmem:[%s1 + $0x1090] sm:$0xff]
  %v556 = vld [vmem:[%s1 + $0x1098] sm:$0xff]
  %v557 = vld [vmem:[%s1 + $0x10a0] sm:$0xff]
  %v558 = vld [vmem:[%s1 + $0x10a8] sm:$0xff]
  %v559 = vld [vmem:[%s1 + $0x10b0] sm:$0xff]
  %v560 = vld [vmem:[%s1 + $0x10b8] sm:$0xff]
  %v561 = vld [vmem:[%s1 + $0x10c0] sm:$0xff]
  %v562 = vld [vmem:[%s1 + $0x10c8] sm:$0xff]
  %v563 = vld [vmem:[%s1 + $0x10d0] sm:$0xff]
  %v564 = vld [vmem:[%s1 + $0x10d8] sm:$0xff]
  %v565 = vld [vmem:[%s1 + $0x10e0] sm:$0xff]
  %v566 = vld [vmem:[%s1 + $0x10e8] sm:$0xff]
  %v567 = vld [vmem:[%s1 + $0x10f0] sm:$0xff]
  %v568 = vld [vmem:[%s1 + $0x10f8] sm:$0xff]
  %v569 = vld [vmem:[%s1 + $0x1100] sm:$0xff]
  %v570 = vld [vmem:[%s1 + $0x1108] sm:$0xff]
  %v571 = vld [vmem:[%s1 + $0x1110] sm:$0xff]
  %v572 = vld [vmem:[%s1 + $0x1118] sm:$0xff]
  %v573 = vld [vmem:[%s1 + $0x1120] sm:$0xff]
  %v574 = vld [vmem:[%s1 + $0x1128] sm:$0xff]
  %v575 = vld [vmem:[%s1 + $0x1130] sm:$0xff]
  %v576 = vld [vmem:[%s1 + $0x1138] sm:$0xff]
  %v577 = vld [vmem:[%s1 + $0x1140] sm:$0xff]
  %v578 = vld [vmem:[%s1 + $0x1148] sm:$0xff]
  %v579 = vld [vmem:[%s1 + $0x1150] sm:$0xff]
  %v580 = vld [vmem:[%s1 + $0x1158] sm:$0xff]
  %v581 = vld [vmem:[%s1 + $0x1160] sm:$0xff]
  %v582 = vld [vmem:[%s1 + $0x1168] sm:$0xff]
  %v583 = vld [vmem:[%s1 + $0x1170] sm:$0xff]
  %v584 = vld [vmem:[%s1 + $0x1178] sm:$0xff]
  %v585 = vld [vmem:[%s1 + $0x1180] sm:$0xff]
  %v586 = vld [vmem:[%s1 + $0x1188] sm:$0xff]
  %v587 = vld [vmem:[%s1 + $0x1190] sm:$0xff]
  %v588 = vld [vmem:[%s1 + $0x1198] sm:$0xff]
  %v589 = vld [vmem:[%s1 + $0x11a0] sm:$0xff]
  %v590 = vld [vmem:[%s1 + $0x11a8] sm:$0xff]
  %v591 = vld [vmem:[%s1 + $0x11b0] sm:$0xff]
  %v592 = vld [vmem:[%s1 + $0x11b8] sm:$0xff]
  %v593 = vld [vmem:[%s1 + $0x11c0] sm:$0xff]
  %v594 = vld [vmem:[%s1 + $0x11c8] sm:$0xff]
  %v595 = vld [vmem:[%s1 + $0x11d0] sm:$0xff]
  %v596 = vld [vmem:[%s1 + $0x11d8] sm:$0xff]
  %v597 = vld [vmem:[%s1 + $0x11e0] sm:$0xff]
  %v598 = vld [vmem:[%s1 + $0x11e8] sm:$0xff]
  %v599 = vld [vmem:[%s1 + $0x11f0] sm:$0xff]
  %v600 = vld [vmem:[%s1 + $0x11f8] sm:$0xff]
  %v601 = vld [vmem:[%s1 + $0x1200] sm:$0xff]
  %v602 = vld [vmem:[%s1 + $0x1208] sm:$0xff]
  %v603 = vld [vmem:[%s1 + $0x1210] sm:$0xff]
  %v604 = vld [vmem:[%s1 + $0x1218] sm:$0xff]
  %v605 = vld [vmem:[%s1 + $0x1220] sm:$0xff]
  %v606 = vld [vmem:[%s1 + $0x1228] sm:$0xff]
  %v607 = vld [vmem:[%s1 + $0x1230] sm:$0xff]
  %v608 = vld [vmem:[%s1 + $0x1238] sm:$0xff]
  %v609 = vld [vmem:[%s1 + $0x1240] sm:$0xff]
  %v610 = vld [vmem:[%s1 + $0x1248] sm:$0xff]
  %v611 = vld [vmem:[%s1 + $0x1250] sm:$0xff]
  %v612 = vld [vmem:[%s1 + $0x1258] sm:$0xff]
  %v613 = vld [vmem:[%s1 + $0x1260] sm:$0xff]
  %v614 = vld [vmem:[%s1 + $0x1268] sm:$0xff]
  %v615 = vld [vmem:[%s1 + $0x1270] sm:$0xff]
  %v616 = vld [vmem:[%s1 + $0x1278] sm:$0xff]
  %v617 = vld [vmem:[%s1 + $0x1280] sm:$0xff]
  %v618 = vld [vmem:[%s1 + $0x1288] sm:$0xff]
  %v619 = vld [vmem:[%s1 + $0x1290] sm:$0xff]
  %v620 = vld [vmem:[%s1 + $0x1298] sm:$0xff]
  %v621 = vld [vmem:[%s1 + $0x12a0] sm:$0xff]
  %v622 = vld [vmem:[%s1 + $0x12a8] sm:$0xff]
  %v623 = vld [vmem:[%s1 + $0x12b0] sm:$0xff]
  %v624 = vld [vmem:[%s1 + $0x12b8] sm:$0xff]
  %v625 = vld [vmem:[%s1 + $0x12c0] sm:$0xff]
  %v626 = vld [vmem:[%s1 + $0x12c8] sm:$0xff]
  %v627 = vld [vmem:[%s1 + $0x12d0] sm:$0xff]
  %v628 = vld [vmem:[%s1 + $0x12d8] sm:$0xff]
  %v629 = vld [vmem:[%s1 + $0x12e0] sm:$0xff]
  %v630 = vld [vmem:[%s1 + $0x12e8] sm:$0xff]
  %v631 = vld [vmem:[%s1 + $0x12f0] sm:$0xff]
  %v632 = vld [vmem:[%s1 + $0x12f8] sm:$0xff]
  %v633 = vld [vmem:[%s1 + $0x1300] sm:$0xff]
  %v634 = vld [vmem:[%s1 + $0x1308] sm:$0xff]
  %v635 = vld [vmem:[%s1 + $0x1310] sm:$0xff]
  %v636 = vld [vmem:[%s1 + $0x1318] sm:$0xff]
  %v637 = vld [vmem:[%s1 + $0x1320] sm:$0xff]
  %v638 = vld [vmem:[%s1 + $0x1328] sm:$0xff]
  %v639 = vld [vmem:[%s1 + $0x1330] sm:$0xff]
  %v640 = vld [vmem:[%s1 + $0x1338] sm:$0xff]
  %v641 = vld [vmem:[%s1 + $0x1340] sm:$0xff]
  %v642 = vld [vmem:[%s1 + $0x1348] sm:$0xff]
  %v643 = vld [vmem:[%s1 + $0x1350] sm:$0xff]
  %v644 = vld [vmem:[%s1 + $0x1358] sm:$0xff]
  %v645 = vld [vmem:[%s1 + $0x1360] sm:$0xff]
  %v646 = vld [vmem:[%s1 + $0x1368] sm:$0xff]
  %v647 = vld [vmem:[%s1 + $0x1370] sm:$0xff]
  %v648 = vld [vmem:[%s1 + $0x1378] sm:$0xff]
  %v649 = vld [vmem:[%s1 + $0x1380] sm:$0xff]
  %v650 = vld [vmem:[%s1 + $0x1388] sm:$0xff]
  %v651 = vld [vmem:[%s1 + $0x1390] sm:$0xff]
  %v652 = vld [vmem:[%s1 + $0x1398] sm:$0xff]
  %v653 = vld [vmem:[%s1 + $0x13a0] sm:$0xff]
  %v654 = vld [vmem:[%s1 + $0x13a8] sm:$0xff]
  %v655 = vld [vmem:[%s1 + $0x13b0] sm:$0xff]
  %v656 = vld [vmem:[%s1 + $0x13b8] sm:$0xff]
  %v657 = vld [vmem:[%s1 + $0x13c0] sm:$0xff]
  %v658 = vld [vmem:[%s1 + $0x13c8] sm:$0xff]
  %v659 = vld [vmem:[%s1 + $0x13d0] sm:$0xff]
  %v660 = vld [vmem:[%s1 + $0x13d8] sm:$0xff]
  %v661 = vld [vmem:[%s1 + $0x13e0] sm:$0xff]
  %v662 = vld [vmem:[%s1 + $0x13e8] sm:$0xff]
  %v663 = vld [vmem:[%s1 + $0x13f0] sm:$0xff]
  %v664 = vld [vmem:[%s1 + $0x13f8] sm:$0xff]
  %v665 = vld [vmem:[%s1 + $0x1400] sm:$0xff]
  %v666 = vld [vmem:[%s1 + $0x1408] sm:$0xff]
  %v667 = vld [vmem:[%s1 + $0x1410] sm:$0xff]
  %v668 = vld [vmem:[%s1 + $0x1418] sm:$0xff]
  %v669 = vld [vmem:[%s1 + $0x1420] sm:$0xff]
  %v670 = vld [vmem:[%s1 + $0x1428] sm:$0xff]
  %v671 = vld [vmem:[%s1 + $0x1430] sm:$0xff]
  %v672 = vld [vmem:[%s1 + $0x1438] sm:$0xff]
  %v673 = vld [vmem:[%s1 + $0x1440] sm:$0xff]
  %v674 = vld [vmem:[%s1 + $0x1448] sm:$0xff]
  %v675 = vld [vmem:[%s1 + $0x1450] sm:$0xff]
  %v676 = vld [vmem:[%s1 + $0x1458] sm:$0xff]
  %v677 = vld [vmem:[%s1 + $0x1460] sm:$0xff]
  %v678 = vld [vmem:[%s1 + $0x1468] sm:$0xff]
  %v679 = vld [vmem:[%s1 + $0x1470] sm:$0xff]
  %v680 = vld [vmem:[%s1 + $0x1478] sm:$0xff]
  %v681 = vld [vmem:[%s1 + $0x1480] sm:$0xff]
  %v682 = vld [vmem:[%s1 + $0x1488] sm:$0xff]
  %v683 = vld [vmem:[%s1 + $0x1490] sm:$0xff]
  %v684 = vld [vmem:[%s1 + $0x1498] sm:$0xff]
  %v685 = vld [vmem:[%s1 + $0x14a0] sm:$0xff]
  %v686 = vld [vmem:[%s1 + $0x14a8] sm:$0xff]
  %v687 = vld [vmem:[%s1 + $0x14b0] sm:$0xff]
  %v688 = vld [vmem:[%s1 + $0x14b8] sm:$0xff]
  %v689 = vld [vmem:[%s1 + $0x14c0] sm:$0xff]
  %v690 = vld [vmem:[%s1 + $0x14c8] sm:$0xff]
  %v691 = vld [vmem:[%s1 + $0x14d0] sm:$0xff]
  %v692 = vld [vmem:[%s1 + $0x14d8] sm:$0xff]
  %v693 = vld [vmem:[%s1 + $0x14e0] sm:$0xff]
  %v694 = vld [vmem:[%s1 + $0x14e8] sm:$0xff]
  %v695 = vld [vmem:[%s1 + $0x14f0] sm:$0xff]
  %v696 = vld [vmem:[%s1 + $0x14f8] sm:$0xff]
  %v697 = vld [vmem:[%s1 + $0x1500] sm:$0xff]
  %v698 = vld [vmem:[%s1 + $0x1508] sm:$0xff]
  %v699 = vld [vmem:[%s1 + $0x1510] sm:$0xff]
  %v700 = vld [vmem:[%s1 + $0x1518] sm:$0xff]
  %v701 = vld [vmem:[%s1 + $0x1520] sm:$0xff]
  %v702 = vld [vmem:[%s1 + $0x1528] sm:$0xff]
  %v703 = vld [vmem:[%s1 + $0x1530] sm:$0xff]
  %v704 = vld [vmem:[%s1 + $0x1538] sm:$0xff]
  %v705 = vld [vmem:[%s1 + $0x1540] sm:$0xff]
  %v706 = vld [vmem:[%s1 + $0x1548] sm:$0xff]
  %v707 = vld [vmem:[%s1 + $0x1550] sm:$0xff]
  %v708 = vld [vmem:[%s1 + $0x1558] sm:$0xff]
  %v709 = vld [vmem:[%s1 + $0x1560] sm:$0xff]
  %v710 = vld [vmem:[%s1 + $0x1568] sm:$0xff]
  %v711 = vld [vmem:[%s1 + $0x1570] sm:$0xff]
  %v712 = vld [vmem:[%s1 + $0x1578] sm:$0xff]
  %v713 = vld [vmem:[%s1 + $0x1580] sm:$0xff]
  %v714 = vld [vmem:[%s1 + $0x1588] sm:$0xff]
  %v715 = vld [vmem:[%s1 + $0x1590] sm:$0xff]
  %v716 = vld [vmem:[%s1 + $0x1598] sm:$0xff]
  %v717 = vld [vmem:[%s1 + $0x15a0] sm:$0xff]
  %v718 = vld [vmem:[%s1 + $0x15a8] sm:$0xff]
  %v719 = vld [vmem:[%s1 + $0x15b0] sm:$0xff]
  %v720 = vld [vmem:[%s1 + $0x15b8] sm:$0xff]
  %v721 = vld [vmem:[%s1 + $0x15c0] sm:$0xff]
  %v722 = vld [vmem:[%s1 + $0x15c8] sm:$0xff]
  %v723 = vld [vmem:[%s1 + $0x15d0] sm:$0xff]
  %v724 = vld [vmem:[%s1 + $0x15d8] sm:$0xff]
  %v725 = vld [vmem:[%s1 + $0x15e0] sm:$0xff]
  %v726 = vld [vmem:[%s1 + $0x15e8] sm:$0xff]
  %v727 = vld [vmem:[%s1 + $0x15f0] sm:$0xff]
  %v728 = vld [vmem:[%s1 + $0x15f8] sm:$0xff]
  %v729 = vld [vmem:[%s1 + $0x1600] sm:$0xff]
  %v730 = vld [vmem:[%s1 + $0x1608] sm:$0xff]
  %v731 = vld [vmem:[%s1 + $0x1610] sm:$0xff]
  %v732 = vld [vmem:[%s1 + $0x1618] sm:$0xff]
  %v733 = vld [vmem:[%s1 + $0x1620] sm:$0xff]
  %v734 = vld [vmem:[%s1 + $0x1628] sm:$0xff]
  %v735 = vld [vmem:[%s1 + $0x1630] sm:$0xff]
  %v736 = vld [vmem:[%s1 + $0x1638] sm:$0xff]
  %v737 = vld [vmem:[%s1 + $0x1640] sm:$0xff]
  %v738 = vld [vmem:[%s1 + $0x1648] sm:$0xff]
  %v739 = vld [vmem:[%s1 + $0x1650] sm:$0xff]
  %v740 = vld [vmem:[%s1 + $0x1658] sm:$0xff]
  %v741 = vld [vmem:[%s1 + $0x1660] sm:$0xff]
  %v742 = vld [vmem:[%s1 + $0x1668] sm:$0xff]
  %v743 = vld [vmem:[%s1 + $0x1670] sm:$0xff]
  %v744 = vld [vmem:[%s1 + $0x1678] sm:$0xff]
  %v745 = vld [vmem:[%s1 + $0x1680] sm:$0xff]
  %v746 = vld [vmem:[%s1 + $0x1688] sm:$0xff]
  %v747 = vld [vmem:[%s1 + $0x1690] sm:$0xff]
  %v748 = vld [vmem:[%s1 + $0x1698] sm:$0xff]
  %v749 = vld [vmem:[%s1 + $0x16a0] sm:$0xff]
  %v750 = vld [vmem:[%s1 + $0x16a8] sm:$0xff]
  %v751 = vld [vmem:[%s1 + $0x16b0] sm:$0xff]
  %v752 = vld [vmem:[%s1 + $0x16b8] sm:$0xff]
  %v753 = vld [vmem:[%s1 + $0x16c0] sm:$0xff]
  %v754 = vld [vmem:[%s1 + $0x16c8] sm:$0xff]
  %v755 = vld [vmem:[%s1 + $0x16d0] sm:$0xff]
  %v756 = vld [vmem:[%s1 + $0x16d8] sm:$0xff]
  %v757 = vld [vmem:[%s1 + $0x16e0] sm:$0xff]
  %v758 = vld [vmem:[%s1 + $0x16e8] sm:$0xff]
  %v759 = vld [vmem:[%s1 + $0x16f0] sm:$0xff]
  %v760 = vld [vmem:[%s1 + $0x16f8] sm:$0xff]
  %v761 = vld [vmem:[%s1 + $0x1700] sm:$0xff]
  %v762 = vld [vmem:[%s1 + $0x1708] sm:$0xff]
  %v763 = vld [vmem:[%s1 + $0x1710] sm:$0xff]
  %v764 = vld [vmem:[%s1 + $0x1718] sm:$0xff]
  %v765 = vld [vmem:[%s1 + $0x1720] sm:$0xff]
  %v766 = vld [vmem:[%s1 + $0x1728] sm:$0xff]
  %v767 = vld [vmem:[%s1 + $0x1730] sm:$0xff]
  %v768 = vld [vmem:[%s1 + $0x1738] sm:$0xff]
  %v769 = vld [vmem:[%s1 + $0x1740] sm:$0xff]
  %v770 = vld [vmem:[%s1 + $0x1748] sm:$0xff]
  %v771 = vld [vmem:[%s1 + $0x1750] sm:$0xff]
  %v772 = vld [vmem:[%s1 + $0x1758] sm:$0xff]
  %v773 = vld [vmem:[%s1 + $0x1760] sm:$0xff]
  %v774 = vld [vmem:[%s1 + $0x1768] sm:$0xff]
  %v775 = vld [vmem:[%s1 + $0x1770] sm:$0xff]
  %v776 = vld [vmem:[%s1 + $0x1778] sm:$0xff]
  %v777 = vld [vmem:[%s1 + $0x1780] sm:$0xff]
  %v778 = vld [vmem:[%s1 + $0x1788] sm:$0xff]
  %v779 = vld [vmem:[%s1 + $0x1790] sm:$0xff]
  %v780 = vld [vmem:[%s1 + $0x1798] sm:$0xff]
  %v781 = vld [vmem:[%s1 + $0x17a0] sm:$0xff]
  %v782 = vld [vmem:[%s1 + $0x17a8] sm:$0xff]
  %v783 = vld [vmem:[%s1 + $0x17b0] sm:$0xff]
  %v784 = vld [vmem:[%s1 + $0x17b8] sm:$0xff]
  %v785 = vld [vmem:[%s1 + $0x17c0] sm:$0xff]
  %v786 = vld [vmem:[%s1 + $0x17c8] sm:$0xff]
  %v787 = vld [vmem:[%s1 + $0x17d0] sm:$0xff]
  %v788 = vld [vmem:[%s1 + $0x17d8] sm:$0xff]
  %v789 = vld [vmem:[%s1 + $0x17e0] sm:$0xff]
  %v790 = vld [vmem:[%s1 + $0x17e8] sm:$0xff]
  %v791 = vld [vmem:[%s1 + $0x17f0] sm:$0xff]
  %v792 = vld [vmem:[%s1 + $0x17f8] sm:$0xff]
  %v793 = vld [vmem:[%s1 + $0x1800] sm:$0xff]
  %v794 = vld [vmem:[%s1 + $0x1808] sm:$0xff]
  %v795 = vld [vmem:[%s1 + $0x1810] sm:$0xff]
  %v796 = vld [vmem:[%s1 + $0x1818] sm:$0xff]
  %v797 = vld [vmem:[%s1 + $0x1820] sm:$0xff]
  %v798 = vld [vmem:[%s1 + $0x1828] sm:$0xff]
  %v799 = vld [vmem:[%s1 + $0x1830] sm:$0xff]
  %v800 = vld [vmem:[%s1 + $0x1838] sm:$0xff]
  %v801 = vld [vmem:[%s1 + $0x1840] sm:$0xff]
  %v802 = vld [vmem:[%s1 + $0x1848] sm:$0xff]
  %v803 = vld [vmem:[%s1 + $0x1850] sm:$0xff]
  %v804 = vld [vmem:[%s1 + $0x1858] sm:$0xff]
  %v805 = vld [vmem:[%s1 + $0x1860] sm:$0xff]
  %v806 = vld [vmem:[%s1 + $0x1868] sm:$0xff]
  %v807 = vld [vmem:[%s1 + $0x1870] sm:$0xff]
  %v808 = vld [vmem:[%s1 + $0x1878] sm:$0xff]
  %v809 = vld [vmem:[%s2] sm:$0xf]
  %v811 = vperm.slane %v809, 0
  %v812 = vperm.slane %v809, 1
  %v813 = vperm.slane %v809, 2
  %v814 = vperm.slane %v809, 3
  %820 = vst [vmem:[#allocation1] ss:$9 sm:$0xff] %v21
  %v821 = vld [vmem:[#allocation1] sm:$0xff]
  %v822 = vld [vmem:[#allocation1 + $0x9] sm:$0xff]
  %v823 = vld [vmem:[#allocation1 + $0x12] sm:$0xff]
  %v824 = vld [vmem:[#allocation1 + $0x1b] sm:$0xff]
  %v825 = vld [vmem:[#allocation1 + $0x24] sm:$0xff]
  %v826 = vld [vmem:[#allocation1 + $0x2d] sm:$0xff]
  %v827 = vld [vmem:[#allocation1 + $0x36] sm:$0xff]
  %v828 = vld [vmem:[#allocation1 + $0x3f] sm:$0xff]
  %830 = vst [vmem:[#allocation1] ss:$9 sm:$0xff] %v22
  %v831 = vld [vmem:[#allocation1] sm:$0xff]
  %v832 = vld [vmem:[#allocation1 + $0x9] sm:$0xff]
  %v833 = vld [vmem:[#allocation1 + $0x12] sm:$0xff]
  %v834 = vld [vmem:[#allocation1 + $0x1b] sm:$0xff]
  %v835 = vld [vmem:[#allocation1 + $0x24] sm:$0xff]
  %v836 = vld [vmem:[#allocation1 + $0x2d] sm:$0xff]
  %v837 = vld [vmem:[#allocation1 + $0x36] sm:$0xff]
  %v838 = vld [vmem:[#allocation1 + $0x3f] sm:$0xff]
  %840 = vst [vmem:[#allocation1] ss:$9 sm:$0xff] %v23
  %v841 = vld [vmem:[#allocation1] sm:$0xff]
  %v842 = vld [vmem:[#allocation1 + $0x9] sm:$0xff]
  %v843 = vld [vmem:[#allocation1 + $0x12] sm:$0xff]
  %v844 = vld [vmem:[#allocation1 + $0x1b] sm:$0xff]
  %v845 = vld [vmem:[#allocation1 + $0x24] sm:$0xff]
  %v846 = vld [vmem:[#allocation1 + $0x2d] sm:$0xff]
  %v847 = vld [vmem:[#allocation1 + $0x36] sm:$0xff]
  %v848 = vld [vmem:[#allocation1 + $0x3f] sm:$0xff]
  %850 = vst [vmem:[#allocation1] ss:$9 sm:$0xff] %v24
  %v851 = vld [vmem:[#allocation1] sm:$0xff]
  %v1660 = vunpack.c.l.b16 %v25
  %v1661 = vunpack.c.h.b16 %v25
  %v1662 = vunpack.c.l.b16 %v26
  %v1663 = vunpack.c.h.b16 %v26
  %v1664 = vunpack.c.l.b16 %v27
  %v1665 = vunpack.c.h.b16 %v27
  %v1666 = vunpack.c.l.b16 %v28
  %v1667 = vunpack.c.h.b16 %v28
  %v1668 = vunpack.c.l.b16 %v29
  %v1669 = vunpack.c.h.b16 %v29
  %v1670 = vunpack.c.l.b16 %v30
  %v1671 = vunpack.c.h.b16 %v30
  %v1672 = vunpack.c.l.b16 %v31
  %v1673 = vunpack.c.h.b16 %v31
  %v1674 = vunpack.c.l.b16 %v32
  %v1675 = vunpack.c.h.b16 %v32
  %v1676 = vunpack.c.l.b16 %v33
  %v1677 = vunpack.c.h.b16 %v33
  %v1678 = vunpack.c.l.b16 %v34
  %v1679 = vunpack.c.h.b16 %v34
  %v1680 = vunpack.c.l.b16 %v35
  %v1681 = vunpack.c.h.b16 %v35
  %v1682 = vunpack.c.l.b16 %v36
  %v1683 = vunpack.c.h.b16 %v36
  %v1684 = vunpack.c.l.b16 %v37
  %v1685 = vunpack.c.h.b16 %v37
  %v1686 = vunpack.c.l.b16 %v38
  %v1687 = vunpack.c.h.b16 %v38
  %v1688 = vunpack.c.l.b16 %v39
  %v1689 = vunpack.c.h.b16 %v39
  %v1690 = vunpack.c.l.b16 %v40
  %v1691 = vunpack.c.h.b16 %v40
  %v1692 = vunpack.c.l.b16 %v41
  %v1693 = vunpack.c.h.b16 %v41
  %v1694 = vunpack.c.l.b16 %v42
  %v1695 = vunpack.c.h.b16 %v42
  %v1696 = vunpack.c.l.b16 %v43
  %v1697 = vunpack.c.h.b16 %v43
  %v1698 = vunpack.c.l.b16 %v44
  %v1699 = vunpack.c.h.b16 %v44
  %v1700 = vunpack.c.l.b16 %v45
  %v1701 = vunpack.c.h.b16 %v45
  %v1702 = vunpack.c.l.b16 %v46
  %v1703 = vunpack.c.h.b16 %v46
  %v1704 = vunpack.c.l.b16 %v47
  %v1705 = vunpack.c.h.b16 %v47
  %v1706 = vunpack.c.l.b16 %v48
  %v1707 = vunpack.c.h.b16 %v48
  %v1708 = vunpack.c.l.b16 %v49
  %v1709 = vunpack.c.h.b16 %v49
  %v1710 = vunpack.c.l.b16 %v50
  %v1711 = vunpack.c.h.b16 %v50
  %v1712 = vunpack.c.l.b16 %v51
  %v1713 = vunpack.c.h.b16 %v51
  %v1714 = vunpack.c.l.b16 %v52
  %v1715 = vunpack.c.h.b16 %v52
  %v1716 = vunpack.c.l.b16 %v53
  %v1717 = vunpack.c.h.b16 %v53
  %v1718 = vunpack.c.l.b16 %v54
  %v1719 = vunpack.c.h.b16 %v54
  %v1720 = vunpack.c.l.b16 %v55
  %v1721 = vunpack.c.h.b16 %v55
  %v1722 = vunpack.c.l.b16 %v56
  %v1723 = vunpack.c.h.b16 %v56
  %v1724 = vunpack.c.l.b16 %v57
  %v1725 = vunpack.c.h.b16 %v57
  %v1726 = vunpack.c.l.b16 %v58
  %v1727 = vunpack.c.h.b16 %v58
  %v1728 = vunpack.c.l.b16 %v59
  %v1729 = vunpack.c.h.b16 %v59
  %v1730 = vunpack.c.l.b16 %v60
  %v1731 = vunpack.c.h.b16 %v60
  %v1732 = vunpack.c.l.b16 %v61
  %v1733 = vunpack.c.h.b16 %v61
  %v1734 = vunpack.c.l.b16 %v62
  %v1735 = vunpack.c.h.b16 %v62
  %v1736 = vunpack.c.l.b16 %v63
  %v1737 = vunpack.c.h.b16 %v63
  %v1738 = vunpack.c.l.b16 %v64
  %v1739 = vunpack.c.h.b16 %v64
  %v1740 = vunpack.c.l.b16 %v65
  %v1741 = vunpack.c.h.b16 %v65
  %v1742 = vunpack.c.l.b16 %v66
  %v1743 = vunpack.c.h.b16 %v66
  %v1744 = vunpack.c.l.b16 %v67
  %v1745 = vunpack.c.h.b16 %v67
  %v1746 = vunpack.c.l.b16 %v68
  %v1747 = vunpack.c.h.b16 %v68
  %v1748 = vunpack.c.l.b16 %v69
  %v1749 = vunpack.c.h.b16 %v69
  %v1750 = vunpack.c.l.b16 %v70
  %v1751 = vunpack.c.h.b16 %v70
  %v1752 = vunpack.c.l.b16 %v71
  %v1753 = vunpack.c.h.b16 %v71
  %v1754 = vunpack.c.l.b16 %v72
  %v1755 = vunpack.c.h.b16 %v72
  %v1756 = vunpack.c.l.b16 %v73
  %v1757 = vunpack.c.h.b16 %v73
  %v1758 = vunpack.c.l.b16 %v74
  %v1759 = vunpack.c.h.b16 %v74
  %v1760 = vunpack.c.l.b16 %v75
  %v1761 = vunpack.c.h.b16 %v75
  %v1762 = vunpack.c.l.b16 %v76
  %v1763 = vunpack.c.h.b16 %v76
  %v1764 = vunpack.c.l.b16 %v77
  %v1765 = vunpack.c.h.b16 %v77
  %v1766 = vunpack.c.l.b16 %v78
  %v1767 = vunpack.c.h.b16 %v78
  %v1768 = vunpack.c.l.b16 %v79
  %v1769 = vunpack.c.h.b16 %v79
  %v1770 = vunpack.c.l.b16 %v80
  %v1771 = vunpack.c.h.b16 %v80
  %v1772 = vunpack.c.l.b16 %v81
  %v1773 = vunpack.c.h.b16 %v81
  %v1774 = vunpack.c.l.b16 %v82
  %v1775 = vunpack.c.h.b16 %v82
  %v1776 = vunpack.c.l.b16 %v83
  %v1777 = vunpack.c.h.b16 %v83
  %v1778 = vunpack.c.l.b16 %v84
  %v1779 = vunpack.c.h.b16 %v84
  %v1780 = vunpack.c.l.b16 %v85
  %v1781 = vunpack.c.h.b16 %v85
  %v1782 = vunpack.c.l.b16 %v86
  %v1783 = vunpack.c.h.b16 %v86
  %v1784 = vunpack.c.l.b16 %v87
  %v1785 = vunpack.c.h.b16 %v87
  %v1786 = vunpack.c.l.b16 %v88
  %v1787 = vunpack.c.h.b16 %v88
  %v1788 = vunpack.c.l.b16 %v89
  %v1789 = vunpack.c.h.b16 %v89
  %v1790 = vunpack.c.l.b16 %v90
  %v1791 = vunpack.c.h.b16 %v90
  %v1792 = vunpack.c.l.b16 %v91
  %v1793 = vunpack.c.h.b16 %v91
  %v1794 = vunpack.c.l.b16 %v92
  %v1795 = vunpack.c.h.b16 %v92
  %v1796 = vunpack.c.l.b16 %v93
  %v1797 = vunpack.c.h.b16 %v93
  %v1798 = vunpack.c.l.b16 %v94
  %v1799 = vunpack.c.h.b16 %v94
  %v1800 = vunpack.c.l.b16 %v95
  %v1801 = vunpack.c.h.b16 %v95
  %v1802 = vunpack.c.l.b16 %v96
  %v1803 = vunpack.c.h.b16 %v96
  %v1804 = vunpack.c.l.b16 %v97
  %v1805 = vunpack.c.h.b16 %v97
  %v1806 = vunpack.c.l.b16 %v98
  %v1807 = vunpack.c.h.b16 %v98
  %v1808 = vunpack.c.l.b16 %v99
  %v1809 = vunpack.c.h.b16 %v99
  %v1810 = vunpack.c.l.b16 %v100
  %v1811 = vunpack.c.h.b16 %v100
  %v1812 = vunpack.c.l.b16 %v101
  %v1813 = vunpack.c.h.b16 %v101
  %v1814 = vunpack.c.l.b16 %v102
  %v1815 = vunpack.c.h.b16 %v102
  %v1816 = vunpack.c.l.b16 %v103
  %v1817 = vunpack.c.h.b16 %v103
  %v1818 = vunpack.c.l.b16 %v104
  %v1819 = vunpack.c.h.b16 %v104
  %v1820 = vunpack.c.l.b16 %v105
  %v1821 = vunpack.c.h.b16 %v105
  %v1822 = vunpack.c.l.b16 %v106
  %v1823 = vunpack.c.h.b16 %v106
  %v1824 = vunpack.c.l.b16 %v107
  %v1825 = vunpack.c.h.b16 %v107
  %v1826 = vunpack.c.l.b16 %v108
  %v1827 = vunpack.c.h.b16 %v108
  %v1828 = vunpack.c.l.b16 %v109
  %v1829 = vunpack.c.h.b16 %v109
  %v1830 = vunpack.c.l.b16 %v110
  %v1831 = vunpack.c.h.b16 %v110
  %v1832 = vunpack.c.l.b16 %v111
  %v1833 = vunpack.c.h.b16 %v111
  %v1834 = vunpack.c.l.b16 %v112
  %v1835 = vunpack.c.h.b16 %v112
  %v1836 = vunpack.c.l.b16 %v113
  %v1837 = vunpack.c.h.b16 %v113
  %v1838 = vunpack.c.l.b16 %v114
  %v1839 = vunpack.c.h.b16 %v114
  %v1840 = vunpack.c.l.b16 %v115
  %v1841 = vunpack.c.h.b16 %v115
  %v1842 = vunpack.c.l.b16 %v116
  %v1843 = vunpack.c.h.b16 %v116
  %v1844 = vunpack.c.l.b16 %v117
  %v1845 = vunpack.c.h.b16 %v117
  %v1846 = vunpack.c.l.b16 %v118
  %v1847 = vunpack.c.h.b16 %v118
  %v1848 = vunpack.c.l.b16 %v119
  %v1849 = vunpack.c.h.b16 %v119
  %v1850 = vunpack.c.l.b16 %v120
  %v1851 = vunpack.c.h.b16 %v120
  %v1852 = vunpack.c.l.b16 %v121
  %v1853 = vunpack.c.h.b16 %v121
  %v1854 = vunpack.c.l.b16 %v122
  %v1855 = vunpack.c.h.b16 %v122
  %v1856 = vunpack.c.l.b16 %v123
  %v1857 = vunpack.c.h.b16 %v123
  %v1858 = vunpack.c.l.b16 %v124
  %v1859 = vunpack.c.h.b16 %v124
  %v1860 = vunpack.c.l.b16 %v125
  %v1861 = vunpack.c.h.b16 %v125
  %v1862 = vunpack.c.l.b16 %v126
  %v1863 = vunpack.c.h.b16 %v126
  %v1864 = vunpack.c.l.b16 %v127
  %v1865 = vunpack.c.h.b16 %v127
  %v1866 = vunpack.c.l.b16 %v128
  %v1867 = vunpack.c.h.b16 %v128
  %v1868 = vunpack.c.l.b16 %v129
  %v1869 = vunpack.c.h.b16 %v129
  %v1870 = vunpack.c.l.b16 %v130
  %v1871 = vunpack.c.h.b16 %v130
  %v1872 = vunpack.c.l.b16 %v131
  %v1873 = vunpack.c.h.b16 %v131
  %v1874 = vunpack.c.l.b16 %v132
  %v1875 = vunpack.c.h.b16 %v132
  %v1876 = vunpack.c.l.b16 %v133
  %v1877 = vunpack.c.h.b16 %v133
  %v1878 = vunpack.c.l.b16 %v134
  %v1879 = vunpack.c.h.b16 %v134
  %v1880 = vunpack.c.l.b16 %v135
  %v1881 = vunpack.c.h.b16 %v135
  %v1882 = vunpack.c.l.b16 %v136
  %v1883 = vunpack.c.h.b16 %v136
  %v1884 = vunpack.c.l.b16 %v137
  %v1885 = vunpack.c.h.b16 %v137
  %v1886 = vunpack.c.l.b16 %v138
  %v1887 = vunpack.c.h.b16 %v138
  %v1888 = vunpack.c.l.b16 %v139
  %v1889 = vunpack.c.h.b16 %v139
  %v1890 = vunpack.c.l.b16 %v140
  %v1891 = vunpack.c.h.b16 %v140
  %v1892 = vunpack.c.l.b16 %v141
  %v1893 = vunpack.c.h.b16 %v141
  %v1894 = vunpack.c.l.b16 %v142
  %v1895 = vunpack.c.h.b16 %v142
  %v1896 = vunpack.c.l.b16 %v143
  %v1897 = vunpack.c.h.b16 %v143
  %v1898 = vunpack.c.l.b16 %v144
  %v1899 = vunpack.c.h.b16 %v144
  %v1900 = vunpack.c.l.b16 %v145
  %v1901 = vunpack.c.h.b16 %v145
  %v1902 = vunpack.c.l.b16 %v146
  %v1903 = vunpack.c.h.b16 %v146
  %v1904 = vunpack.c.l.b16 %v147
  %v1905 = vunpack.c.h.b16 %v147
  %v1906 = vunpack.c.l.b16 %v148
  %v1907 = vunpack.c.h.b16 %v148
  %v1908 = vunpack.c.l.b16 %v149
  %v1909 = vunpack.c.h.b16 %v149
  %v1910 = vunpack.c.l.b16 %v150
  %v1911 = vunpack.c.h.b16 %v150
  %v1912 = vunpack.c.l.b16 %v151
  %v1913 = vunpack.c.h.b16 %v151
  %v1914 = vunpack.c.l.b16 %v152
  %v1915 = vunpack.c.h.b16 %v152
  %v1916 = vunpack.c.l.b16 %v153
  %v1917 = vunpack.c.h.b16 %v153
  %v1918 = vunpack.c.l.b16 %v154
  %v1919 = vunpack.c.h.b16 %v154
  %v1920 = vunpack.c.l.b16 %v155
  %v1921 = vunpack.c.h.b16 %v155
  %v1922 = vunpack.c.l.b16 %v156
  %v1923 = vunpack.c.h.b16 %v156
  %v1924 = vunpack.c.l.b16 %v157
  %v1925 = vunpack.c.h.b16 %v157
  %v1926 = vunpack.c.l.b16 %v158
  %v1927 = vunpack.c.h.b16 %v158
  %v1928 = vunpack.c.l.b16 %v159
  %v1929 = vunpack.c.h.b16 %v159
  %v1930 = vunpack.c.l.b16 %v160
  %v1931 = vunpack.c.h.b16 %v160
  %v1932 = vunpack.c.l.b16 %v161
  %v1933 = vunpack.c.h.b16 %v161
  %v1934 = vunpack.c.l.b16 %v162
  %v1935 = vunpack.c.h.b16 %v162
  %v1936 = vunpack.c.l.b16 %v163
  %v1937 = vunpack.c.h.b16 %v163
  %v1938 = vunpack.c.l.b16 %v164
  %v1939 = vunpack.c.h.b16 %v164
  %v1940 = vunpack.c.l.b16 %v165
  %v1941 = vunpack.c.h.b16 %v165
  %v1942 = vunpack.c.l.b16 %v166
  %v1943 = vunpack.c.h.b16 %v166
  %v1944 = vunpack.c.l.b16 %v167
  %v1945 = vunpack.c.h.b16 %v167
  %v1946 = vunpack.c.l.b16 %v168
  %v1947 = vunpack.c.h.b16 %v168
  %v1948 = vunpack.c.l.b16 %v169
  %v1949 = vunpack.c.h.b16 %v169
  %v1950 = vunpack.c.l.b16 %v170
  %v1951 = vunpack.c.h.b16 %v170
  %v1952 = vunpack.c.l.b16 %v171
  %v1953 = vunpack.c.h.b16 %v171
  %v1954 = vunpack.c.l.b16 %v172
  %v1955 = vunpack.c.h.b16 %v172
  %v1956 = vunpack.c.l.b16 %v173
  %v1957 = vunpack.c.h.b16 %v173
  %v1958 = vunpack.c.l.b16 %v174
  %v1959 = vunpack.c.h.b16 %v174
  %v1960 = vunpack.c.l.b16 %v175
  %v1961 = vunpack.c.h.b16 %v175
  %v1962 = vunpack.c.l.b16 %v176
  %v1963 = vunpack.c.h.b16 %v176
  %v1964 = vunpack.c.l.b16 %v177
  %v1965 = vunpack.c.h.b16 %v177
  %v1966 = vunpack.c.l.b16 %v178
  %v1967 = vunpack.c.h.b16 %v178
  %v1968 = vunpack.c.l.b16 %v179
  %v1969 = vunpack.c.h.b16 %v179
  %v1970 = vunpack.c.l.b16 %v180
  %v1971 = vunpack.c.h.b16 %v180
  %v1972 = vunpack.c.l.b16 %v181
  %v1973 = vunpack.c.h.b16 %v181
  %v1974 = vunpack.c.l.b16 %v182
  %v1975 = vunpack.c.h.b16 %v182
  %v1976 = vunpack.c.l.b16 %v183
  %v1977 = vunpack.c.h.b16 %v183
  %v1978 = vunpack.c.l.b16 %v184
  %v1979 = vunpack.c.h.b16 %v184
  %v1980 = vunpack.c.l.b16 %v185
  %v1981 = vunpack.c.h.b16 %v185
  %v1982 = vunpack.c.l.b16 %v186
  %v1983 = vunpack.c.h.b16 %v186
  %v1984 = vunpack.c.l.b16 %v187
  %v1985 = vunpack.c.h.b16 %v187
  %v1986 = vunpack.c.l.b16 %v188
  %v1987 = vunpack.c.h.b16 %v188
  %v1988 = vunpack.c.l.b16 %v189
  %v1989 = vunpack.c.h.b16 %v189
  %v1990 = vunpack.c.l.b16 %v190
  %v1991 = vunpack.c.h.b16 %v190
  %v1992 = vunpack.c.l.b16 %v191
  %v1993 = vunpack.c.h.b16 %v191
  %v1994 = vunpack.c.l.b16 %v192
  %v1995 = vunpack.c.h.b16 %v192
  %v1996 = vunpack.c.l.b16 %v193
  %v1997 = vunpack.c.h.b16 %v193
  %v1998 = vunpack.c.l.b16 %v194
  %v1999 = vunpack.c.h.b16 %v194
  %v2000 = vunpack.c.l.b16 %v195
  %v2001 = vunpack.c.h.b16 %v195
  %v2002 = vunpack.c.l.b16 %v196
  %v2003 = vunpack.c.h.b16 %v196
  %v2004 = vunpack.c.l.b16 %v197
  %v2005 = vunpack.c.h.b16 %v197
  %v2006 = vunpack.c.l.b16 %v198
  %v2007 = vunpack.c.h.b16 %v198
  %v2008 = vunpack.c.l.b16 %v199
  %v2009 = vunpack.c.h.b16 %v199
  %v2010 = vunpack.c.l.b16 %v200
  %v2011 = vunpack.c.h.b16 %v200
  %v2012 = vunpack.c.l.b16 %v201
  %v2013 = vunpack.c.h.b16 %v201
  %v2014 = vunpack.c.l.b16 %v202
  %v2015 = vunpack.c.h.b16 %v202
  %v2016 = vunpack.c.l.b16 %v203
  %v2017 = vunpack.c.h.b16 %v203
  %v2018 = vunpack.c.l.b16 %v204
  %v2019 = vunpack.c.h.b16 %v204
  %v2020 = vunpack.c.l.b16 %v205
  %v2021 = vunpack.c.h.b16 %v205
  %v2022 = vunpack.c.l.b16 %v206
  %v2023 = vunpack.c.h.b16 %v206
  %v2024 = vunpack.c.l.b16 %v207
  %v2025 = vunpack.c.h.b16 %v207
  %v2026 = vunpack.c.l.b16 %v208
  %v2027 = vunpack.c.h.b16 %v208
  %v2028 = vunpack.c.l.b16 %v209
  %v2029 = vunpack.c.h.b16 %v209
  %v2030 = vunpack.c.l.b16 %v210
  %v2031 = vunpack.c.h.b16 %v210
  %v2032 = vunpack.c.l.b16 %v211
  %v2033 = vunpack.c.h.b16 %v211
  %v2034 = vunpack.c.l.b16 %v212
  %v2035 = vunpack.c.h.b16 %v212
  %v2036 = vunpack.c.l.b16 %v213
  %v2037 = vunpack.c.h.b16 %v213
  %v2038 = vunpack.c.l.b16 %v214
  %v2039 = vunpack.c.h.b16 %v214
  %v2040 = vunpack.c.l.b16 %v215
  %v2041 = vunpack.c.h.b16 %v215
  %v2042 = vunpack.c.l.b16 %v216
  %v2043 = vunpack.c.h.b16 %v216
  %v2044 = vunpack.c.l.b16 %v217
  %v2045 = vunpack.c.h.b16 %v217
  %v2046 = vunpack.c.l.b16 %v218
  %v2047 = vunpack.c.h.b16 %v218
  %v2048 = vunpack.c.l.b16 %v219
  %v2049 = vunpack.c.h.b16 %v219
  %v2050 = vunpack.c.l.b16 %v220
  %v2051 = vunpack.c.h.b16 %v220
  %v2052 = vunpack.c.l.b16 %v221
  %v2053 = vunpack.c.h.b16 %v221
  %v2054 = vunpack.c.l.b16 %v222
  %v2055 = vunpack.c.h.b16 %v222
  %v2056 = vunpack.c.l.b16 %v223
  %v2057 = vunpack.c.h.b16 %v223
  %v2058 = vunpack.c.l.b16 %v224
  %v2059 = vunpack.c.h.b16 %v224
  %v2060 = vunpack.c.l.b16 %v225
  %v2061 = vunpack.c.h.b16 %v225
  %v2062 = vunpack.c.l.b16 %v226
  %v2063 = vunpack.c.h.b16 %v226
  %v2064 = vunpack.c.l.b16 %v227
  %v2065 = vunpack.c.h.b16 %v227
  %v2066 = vunpack.c.l.b16 %v228
  %v2067 = vunpack.c.h.b16 %v228
  %v2068 = vunpack.c.l.b16 %v229
  %v2069 = vunpack.c.h.b16 %v229
  %v2070 = vunpack.c.l.b16 %v230
  %v2071 = vunpack.c.h.b16 %v230
  %v2072 = vunpack.c.l.b16 %v231
  %v2073 = vunpack.c.h.b16 %v231
  %v2074 = vunpack.c.l.b16 %v232
  %v2075 = vunpack.c.h.b16 %v232
  %v2076 = vunpack.c.l.b16 %v233
  %v2077 = vunpack.c.h.b16 %v233
  %v2078 = vunpack.c.l.b16 %v234
  %v2079 = vunpack.c.h.b16 %v234
  %v2080 = vunpack.c.l.b16 %v235
  %v2081 = vunpack.c.h.b16 %v235
  %v2082 = vunpack.c.l.b16 %v236
  %v2083 = vunpack.c.h.b16 %v236
  %v2084 = vunpack.c.l.b16 %v237
  %v2085 = vunpack.c.h.b16 %v237
  %v2086 = vunpack.c.l.b16 %v238
  %v2087 = vunpack.c.h.b16 %v238
  %v2088 = vunpack.c.l.b16 %v239
  %v2089 = vunpack.c.h.b16 %v239
  %v2090 = vunpack.c.l.b16 %v240
  %v2091 = vunpack.c.h.b16 %v240
  %v2092 = vunpack.c.l.b16 %v241
  %v2093 = vunpack.c.h.b16 %v241
  %v2094 = vunpack.c.l.b16 %v242
  %v2095 = vunpack.c.h.b16 %v242
  %v2096 = vunpack.c.l.b16 %v243
  %v2097 = vunpack.c.h.b16 %v243
  %v2098 = vunpack.c.l.b16 %v244
  %v2099 = vunpack.c.h.b16 %v244
  %v2100 = vunpack.c.l.b16 %v245
  %v2101 = vunpack.c.h.b16 %v245
  %v2102 = vunpack.c.l.b16 %v246
  %v2103 = vunpack.c.h.b16 %v246
  %v2104 = vunpack.c.l.b16 %v247
  %v2105 = vunpack.c.h.b16 %v247
  %v2106 = vunpack.c.l.b16 %v248
  %v2107 = vunpack.c.h.b16 %v248
  %v2108 = vunpack.c.l.b16 %v249
  %v2109 = vunpack.c.h.b16 %v249
  %v2110 = vunpack.c.l.b16 %v250
  %v2111 = vunpack.c.h.b16 %v250
  %v2112 = vunpack.c.l.b16 %v251
  %v2113 = vunpack.c.h.b16 %v251
  %v2114 = vunpack.c.l.b16 %v252
  %v2115 = vunpack.c.h.b16 %v252
  %v2116 = vunpack.c.l.b16 %v253
  %v2117 = vunpack.c.h.b16 %v253
  %v2118 = vunpack.c.l.b16 %v254
  %v2119 = vunpack.c.h.b16 %v254
  %v2120 = vunpack.c.l.b16 %v255
  %v2121 = vunpack.c.h.b16 %v255
  %v2122 = vunpack.c.l.b16 %v256
  %v2123 = vunpack.c.h.b16 %v256
  %v2124 = vunpack.c.l.b16 %v257
  %v2125 = vunpack.c.h.b16 %v257
  %v2126 = vunpack.c.l.b16 %v258
  %v2127 = vunpack.c.h.b16 %v258
  %v2128 = vunpack.c.l.b16 %v259
  %v2129 = vunpack.c.h.b16 %v259
  %v2130 = vunpack.c.l.b16 %v260
  %v2131 = vunpack.c.h.b16 %v260
  %v2132 = vunpack.c.l.b16 %v261
  %v2133 = vunpack.c.h.b16 %v261
  %v2134 = vunpack.c.l.b16 %v262
  %v2135 = vunpack.c.h.b16 %v262
  %v2136 = vunpack.c.l.b16 %v263
  %v2137 = vunpack.c.h.b16 %v263
  %v2138 = vunpack.c.l.b16 %v264
  %v2139 = vunpack.c.h.b16 %v264
  %v2140 = vunpack.c.l.b16 %v265
  %v2141 = vunpack.c.h.b16 %v265
  %v2142 = vunpack.c.l.b16 %v266
  %v2143 = vunpack.c.h.b16 %v266
  %v2144 = vunpack.c.l.b16 %v267
  %v2145 = vunpack.c.h.b16 %v267
  %v2146 = vunpack.c.l.b16 %v268
  %v2147 = vunpack.c.h.b16 %v268
  %v2148 = vunpack.c.l.b16 %v269
  %v2149 = vunpack.c.h.b16 %v269
  %v2150 = vunpack.c.l.b16 %v270
  %v2151 = vunpack.c.h.b16 %v270
  %v2152 = vunpack.c.l.b16 %v271
  %v2153 = vunpack.c.h.b16 %v271
  %v2154 = vunpack.c.l.b16 %v272
  %v2155 = vunpack.c.h.b16 %v272
  %v2156 = vunpack.c.l.b16 %v273
  %v2157 = vunpack.c.h.b16 %v273
  %v2158 = vunpack.c.l.b16 %v274
  %v2159 = vunpack.c.h.b16 %v274
  %v2160 = vunpack.c.l.b16 %v275
  %v2161 = vunpack.c.h.b16 %v275
  %v2162 = vunpack.c.l.b16 %v276
  %v2163 = vunpack.c.h.b16 %v276
  %v2164 = vunpack.c.l.b16 %v277
  %v2165 = vunpack.c.h.b16 %v277
  %v2166 = vunpack.c.l.b16 %v278
  %v2167 = vunpack.c.h.b16 %v278
  %v2168 = vunpack.c.l.b16 %v279
  %v2169 = vunpack.c.h.b16 %v279
  %v2170 = vunpack.c.l.b16 %v280
  %v2171 = vunpack.c.h.b16 %v280
  %v2172 = vunpack.c.l.b16 %v281
  %v2173 = vunpack.c.h.b16 %v281
  %v2174 = vunpack.c.l.b16 %v282
  %v2175 = vunpack.c.h.b16 %v282
  %v2176 = vunpack.c.l.b16 %v283
  %v2177 = vunpack.c.h.b16 %v283
  %v2178 = vunpack.c.l.b16 %v284
  %v2179 = vunpack.c.h.b16 %v284
  %v2180 = vunpack.c.l.b16 %v285
  %v2181 = vunpack.c.h.b16 %v285
  %v2182 = vunpack.c.l.b16 %v286
  %v2183 = vunpack.c.h.b16 %v286
  %v2184 = vunpack.c.l.b16 %v287
  %v2185 = vunpack.c.h.b16 %v287
  %v2186 = vunpack.c.l.b16 %v288
  %v2187 = vunpack.c.h.b16 %v288
  %v2188 = vunpack.c.l.b16 %v289
  %v2189 = vunpack.c.h.b16 %v289
  %v2190 = vunpack.c.l.b16 %v290
  %v2191 = vunpack.c.h.b16 %v290
  %v2192 = vunpack.c.l.b16 %v291
  %v2193 = vunpack.c.h.b16 %v291
  %v2194 = vunpack.c.l.b16 %v292
  %v2195 = vunpack.c.h.b16 %v292
  %v2196 = vunpack.c.l.b16 %v293
  %v2197 = vunpack.c.h.b16 %v293
  %v2198 = vunpack.c.l.b16 %v294
  %v2199 = vunpack.c.h.b16 %v294
  %v2200 = vunpack.c.l.b16 %v295
  %v2201 = vunpack.c.h.b16 %v295
  %v2202 = vunpack.c.l.b16 %v296
  %v2203 = vunpack.c.h.b16 %v296
  %v2204 = vunpack.c.l.b16 %v297
  %v2205 = vunpack.c.h.b16 %v297
  %v2206 = vunpack.c.l.b16 %v298
  %v2207 = vunpack.c.h.b16 %v298
  %v2208 = vunpack.c.l.b16 %v299
  %v2209 = vunpack.c.h.b16 %v299
  %v2210 = vunpack.c.l.b16 %v300
  %v2211 = vunpack.c.h.b16 %v300
  %v2212 = vunpack.c.l.b16 %v301
  %v2213 = vunpack.c.h.b16 %v301
  %v2214 = vunpack.c.l.b16 %v302
  %v2215 = vunpack.c.h.b16 %v302
  %v2216 = vunpack.c.l.b16 %v303
  %v2217 = vunpack.c.h.b16 %v303
  %v2218 = vunpack.c.l.b16 %v304
  %v2219 = vunpack.c.h.b16 %v304
  %v2220 = vunpack.c.l.b16 %v305
  %v2221 = vunpack.c.h.b16 %v305
  %v2222 = vunpack.c.l.b16 %v306
  %v2223 = vunpack.c.h.b16 %v306
  %v2224 = vunpack.c.l.b16 %v307
  %v2225 = vunpack.c.h.b16 %v307
  %v2226 = vunpack.c.l.b16 %v308
  %v2227 = vunpack.c.h.b16 %v308
  %v2228 = vunpack.c.l.b16 %v309
  %v2229 = vunpack.c.h.b16 %v309
  %v2230 = vunpack.c.l.b16 %v310
  %v2231 = vunpack.c.h.b16 %v310
  %v2232 = vunpack.c.l.b16 %v311
  %v2233 = vunpack.c.h.b16 %v311
  %v2234 = vunpack.c.l.b16 %v312
  %v2235 = vunpack.c.h.b16 %v312
  %v2236 = vunpack.c.l.b16 %v313
  %v2237 = vunpack.c.h.b16 %v313
  %v2238 = vunpack.c.l.b16 %v314
  %v2239 = vunpack.c.h.b16 %v314
  %v2240 = vunpack.c.l.b16 %v315
  %v2241 = vunpack.c.h.b16 %v315
  %v2242 = vunpack.c.l.b16 %v316
  %v2243 = vunpack.c.h.b16 %v316
  %v2244 = vunpack.c.l.b16 %v317
  %v2245 = vunpack.c.h.b16 %v317
  %v2246 = vunpack.c.l.b16 %v318
  %v2247 = vunpack.c.h.b16 %v318
  %v2248 = vunpack.c.l.b16 %v319
  %v2249 = vunpack.c.h.b16 %v319
  %v2250 = vunpack.c.l.b16 %v320
  %v2251 = vunpack.c.h.b16 %v320
  %v2252 = vunpack.c.l.b16 %v321
  %v2253 = vunpack.c.h.b16 %v321
  %v2254 = vunpack.c.l.b16 %v322
  %v2255 = vunpack.c.h.b16 %v322
  %v2256 = vunpack.c.l.b16 %v323
  %v2257 = vunpack.c.h.b16 %v323
  %v2258 = vunpack.c.l.b16 %v324
  %v2259 = vunpack.c.h.b16 %v324
  %v2260 = vunpack.c.l.b16 %v325
  %v2261 = vunpack.c.h.b16 %v325
  %v2262 = vunpack.c.l.b16 %v326
  %v2263 = vunpack.c.h.b16 %v326
  %v2264 = vunpack.c.l.b16 %v327
  %v2265 = vunpack.c.h.b16 %v327
  %v2266 = vunpack.c.l.b16 %v328
  %v2267 = vunpack.c.h.b16 %v328
  %v2268 = vunpack.c.l.b16 %v329
  %v2269 = vunpack.c.h.b16 %v329
  %v2270 = vunpack.c.l.b16 %v330
  %v2271 = vunpack.c.h.b16 %v330
  %v2272 = vunpack.c.l.b16 %v331
  %v2273 = vunpack.c.h.b16 %v331
  %v2274 = vunpack.c.l.b16 %v332
  %v2275 = vunpack.c.h.b16 %v332
  %v2276 = vunpack.c.l.b16 %v333
  %v2277 = vunpack.c.h.b16 %v333
  %v2278 = vunpack.c.l.b16 %v334
  %v2279 = vunpack.c.h.b16 %v334
  %v2280 = vunpack.c.l.b16 %v335
  %v2281 = vunpack.c.h.b16 %v335
  %v2282 = vunpack.c.l.b16 %v336
  %v2283 = vunpack.c.h.b16 %v336
  %v2284 = vunpack.c.l.b16 %v337
  %v2285 = vunpack.c.h.b16 %v337
  %v2286 = vunpack.c.l.b16 %v338
  %v2287 = vunpack.c.h.b16 %v338
  %v2288 = vunpack.c.l.b16 %v339
  %v2289 = vunpack.c.h.b16 %v339
  %v2290 = vunpack.c.l.b16 %v340
  %v2291 = vunpack.c.h.b16 %v340
  %v2292 = vunpack.c.l.b16 %v341
  %v2293 = vunpack.c.h.b16 %v341
  %v2294 = vunpack.c.l.b16 %v342
  %v2295 = vunpack.c.h.b16 %v342
  %v2296 = vunpack.c.l.b16 %v343
  %v2297 = vunpack.c.h.b16 %v343
  %v2298 = vunpack.c.l.b16 %v344
  %v2299 = vunpack.c.h.b16 %v344
  %v2300 = vunpack.c.l.b16 %v345
  %v2301 = vunpack.c.h.b16 %v345
  %v2302 = vunpack.c.l.b16 %v346
  %v2303 = vunpack.c.h.b16 %v346
  %v2304 = vunpack.c.l.b16 %v347
  %v2305 = vunpack.c.h.b16 %v347
  %v2306 = vunpack.c.l.b16 %v348
  %v2307 = vunpack.c.h.b16 %v348
  %v2308 = vunpack.c.l.b16 %v349
  %v2309 = vunpack.c.h.b16 %v349
  %v2310 = vunpack.c.l.b16 %v350
  %v2311 = vunpack.c.h.b16 %v350
  %v2312 = vunpack.c.l.b16 %v351
  %v2313 = vunpack.c.h.b16 %v351
  %v2314 = vunpack.c.l.b16 %v352
  %v2315 = vunpack.c.h.b16 %v352
  %v2316 = vunpack.c.l.b16 %v353
  %v2317 = vunpack.c.h.b16 %v353
  %v2318 = vunpack.c.l.b16 %v354
  %v2319 = vunpack.c.h.b16 %v354
  %v2320 = vunpack.c.l.b16 %v355
  %v2321 = vunpack.c.h.b16 %v355
  %v2322 = vunpack.c.l.b16 %v356
  %v2323 = vunpack.c.h.b16 %v356
  %v2324 = vunpack.c.l.b16 %v357
  %v2325 = vunpack.c.h.b16 %v357
  %v2326 = vunpack.c.l.b16 %v358
  %v2327 = vunpack.c.h.b16 %v358
  %v2328 = vunpack.c.l.b16 %v359
  %v2329 = vunpack.c.h.b16 %v359
  %v2330 = vunpack.c.l.b16 %v360
  %v2331 = vunpack.c.h.b16 %v360
  %v2332 = vunpack.c.l.b16 %v361
  %v2333 = vunpack.c.h.b16 %v361
  %v2334 = vunpack.c.l.b16 %v362
  %v2335 = vunpack.c.h.b16 %v362
  %v2336 = vunpack.c.l.b16 %v363
  %v2337 = vunpack.c.h.b16 %v363
  %v2338 = vunpack.c.l.b16 %v364
  %v2339 = vunpack.c.h.b16 %v364
  %v2340 = vunpack.c.l.b16 %v365
  %v2341 = vunpack.c.h.b16 %v365
  %v2342 = vunpack.c.l.b16 %v366
  %v2343 = vunpack.c.h.b16 %v366
  %v2344 = vunpack.c.l.b16 %v367
  %v2345 = vunpack.c.h.b16 %v367
  %v2346 = vunpack.c.l.b16 %v368
  %v2347 = vunpack.c.h.b16 %v368
  %v2348 = vunpack.c.l.b16 %v369
  %v2349 = vunpack.c.h.b16 %v369
  %v2350 = vunpack.c.l.b16 %v370
  %v2351 = vunpack.c.h.b16 %v370
  %v2352 = vunpack.c.l.b16 %v371
  %v2353 = vunpack.c.h.b16 %v371
  %v2354 = vunpack.c.l.b16 %v372
  %v2355 = vunpack.c.h.b16 %v372
  %v2356 = vunpack.c.l.b16 %v373
  %v2357 = vunpack.c.h.b16 %v373
  %v2358 = vunpack.c.l.b16 %v374
  %v2359 = vunpack.c.h.b16 %v374
  %v2360 = vunpack.c.l.b16 %v375
  %v2361 = vunpack.c.h.b16 %v375
  %v2362 = vunpack.c.l.b16 %v376
  %v2363 = vunpack.c.h.b16 %v376
  %v2364 = vunpack.c.l.b16 %v377
  %v2365 = vunpack.c.h.b16 %v377
  %v2366 = vunpack.c.l.b16 %v378
  %v2367 = vunpack.c.h.b16 %v378
  %v2368 = vunpack.c.l.b16 %v379
  %v2369 = vunpack.c.h.b16 %v379
  %v2370 = vunpack.c.l.b16 %v380
  %v2371 = vunpack.c.h.b16 %v380
  %v2372 = vunpack.c.l.b16 %v381
  %v2373 = vunpack.c.h.b16 %v381
  %v2374 = vunpack.c.l.b16 %v382
  %v2375 = vunpack.c.h.b16 %v382
  %v2376 = vunpack.c.l.b16 %v383
  %v2377 = vunpack.c.h.b16 %v383
  %v2378 = vunpack.c.l.b16 %v384
  %v2379 = vunpack.c.h.b16 %v384
  %v2380 = vunpack.c.l.b16 %v385
  %v2381 = vunpack.c.h.b16 %v385
  %v2382 = vunpack.c.l.b16 %v386
  %v2383 = vunpack.c.h.b16 %v386
  %v2384 = vunpack.c.l.b16 %v387
  %v2385 = vunpack.c.h.b16 %v387
  %v2386 = vunpack.c.l.b16 %v388
  %v2387 = vunpack.c.h.b16 %v388
  %v2388 = vunpack.c.l.b16 %v389
  %v2389 = vunpack.c.h.b16 %v389
  %v2390 = vunpack.c.l.b16 %v390
  %v2391 = vunpack.c.h.b16 %v390
  %v2392 = vunpack.c.l.b16 %v391
  %v2393 = vunpack.c.h.b16 %v391
  %v2394 = vunpack.c.l.b16 %v392
  %v2395 = vunpack.c.h.b16 %v392
  %v2396 = vunpack.c.l.b16 %v393
  %v2397 = vunpack.c.h.b16 %v393
  %v2398 = vunpack.c.l.b16 %v394
  %v2399 = vunpack.c.h.b16 %v394
  %v2400 = vunpack.c.l.b16 %v395
  %v2401 = vunpack.c.h.b16 %v395
  %v2402 = vunpack.c.l.b16 %v396
  %v2403 = vunpack.c.h.b16 %v396
  %v2404 = vunpack.c.l.b16 %v397
  %v2405 = vunpack.c.h.b16 %v397
  %v2406 = vunpack.c.l.b16 %v398
  %v2407 = vunpack.c.h.b16 %v398
  %v2408 = vunpack.c.l.b16 %v399
  %v2409 = vunpack.c.h.b16 %v399
  %v2410 = vunpack.c.l.b16 %v400
  %v2411 = vunpack.c.h.b16 %v400
  %v2412 = vunpack.c.l.b16 %v401
  %v2413 = vunpack.c.h.b16 %v401
  %v2414 = vunpack.c.l.b16 %v402
  %v2415 = vunpack.c.h.b16 %v402
  %v2416 = vunpack.c.l.b16 %v403
  %v2417 = vunpack.c.h.b16 %v403
  %v2418 = vunpack.c.l.b16 %v404
  %v2419 = vunpack.c.h.b16 %v404
  %v2420 = vunpack.c.l.b16 %v405
  %v2421 = vunpack.c.h.b16 %v405
  %v2422 = vunpack.c.l.b16 %v406
  %v2423 = vunpack.c.h.b16 %v406
  %v2424 = vunpack.c.l.b16 %v407
  %v2425 = vunpack.c.h.b16 %v407
  %v2426 = vunpack.c.l.b16 %v408
  %v2427 = vunpack.c.h.b16 %v408
  %v2428 = vunpack.c.l.b16 %v409
  %v2429 = vunpack.c.h.b16 %v409
  %v2430 = vunpack.c.l.b16 %v410
  %v2431 = vunpack.c.h.b16 %v410
  %v2432 = vunpack.c.l.b16 %v411
  %v2433 = vunpack.c.h.b16 %v411
  %v2434 = vunpack.c.l.b16 %v412
  %v2435 = vunpack.c.h.b16 %v412
  %v2436 = vunpack.c.l.b16 %v413
  %v2437 = vunpack.c.h.b16 %v413
  %v2438 = vunpack.c.l.b16 %v414
  %v2439 = vunpack.c.h.b16 %v414
  %v2440 = vunpack.c.l.b16 %v415
  %v2441 = vunpack.c.h.b16 %v415
  %v2442 = vunpack.c.l.b16 %v416
  %v2443 = vunpack.c.h.b16 %v416
  %v2444 = vunpack.c.l.b16 %v417
  %v2445 = vunpack.c.h.b16 %v417
  %v2446 = vunpack.c.l.b16 %v418
  %v2447 = vunpack.c.h.b16 %v418
  %v2448 = vunpack.c.l.b16 %v419
  %v2449 = vunpack.c.h.b16 %v419
  %v2450 = vunpack.c.l.b16 %v420
  %v2451 = vunpack.c.h.b16 %v420
  %v2452 = vunpack.c.l.b16 %v421
  %v2453 = vunpack.c.h.b16 %v421
  %v2454 = vunpack.c.l.b16 %v422
  %v2455 = vunpack.c.h.b16 %v422
  %v2456 = vunpack.c.l.b16 %v423
  %v2457 = vunpack.c.h.b16 %v423
  %v2458 = vunpack.c.l.b16 %v424
  %v2459 = vunpack.c.h.b16 %v424
  %v2460 = vunpack.c.l.b16 %v425
  %v2461 = vunpack.c.h.b16 %v425
  %v2462 = vunpack.c.l.b16 %v426
  %v2463 = vunpack.c.h.b16 %v426
  %v2464 = vunpack.c.l.b16 %v427
  %v2465 = vunpack.c.h.b16 %v427
  %v2466 = vunpack.c.l.b16 %v428
  %v2467 = vunpack.c.h.b16 %v428
  %v2468 = vunpack.c.l.b16 %v429
  %v2469 = vunpack.c.h.b16 %v429
  %v2470 = vunpack.c.l.b16 %v430
  %v2471 = vunpack.c.h.b16 %v430
  %v2472 = vunpack.c.l.b16 %v431
  %v2473 = vunpack.c.h.b16 %v431
  %v2474 = vunpack.c.l.b16 %v432
  %v2475 = vunpack.c.h.b16 %v432
  %v2476 = vunpack.c.l.b16 %v433
  %v2477 = vunpack.c.h.b16 %v433
  %v2478 = vunpack.c.l.b16 %v434
  %v2479 = vunpack.c.h.b16 %v434
  %v2480 = vunpack.c.l.b16 %v435
  %v2481 = vunpack.c.h.b16 %v435
  %v2482 = vunpack.c.l.b16 %v436
  %v2483 = vunpack.c.h.b16 %v436
  %v2484 = vunpack.c.l.b16 %v437
  %v2485 = vunpack.c.h.b16 %v437
  %v2486 = vunpack.c.l.b16 %v438
  %v2487 = vunpack.c.h.b16 %v438
  %v2488 = vunpack.c.l.b16 %v439
  %v2489 = vunpack.c.h.b16 %v439
  %v2490 = vunpack.c.l.b16 %v440
  %v2491 = vunpack.c.h.b16 %v440
  %v2492 = vunpack.c.l.b16 %v441
  %v2493 = vunpack.c.h.b16 %v441
  %v2494 = vunpack.c.l.b16 %v442
  %v2495 = vunpack.c.h.b16 %v442
  %v2496 = vunpack.c.l.b16 %v443
  %v2497 = vunpack.c.h.b16 %v443
  %v2498 = vunpack.c.l.b16 %v444
  %v2499 = vunpack.c.h.b16 %v444
  %v2500 = vunpack.c.l.b16 %v445
  %v2501 = vunpack.c.h.b16 %v445
  %v2502 = vunpack.c.l.b16 %v446
  %v2503 = vunpack.c.h.b16 %v446
  %v2504 = vunpack.c.l.b16 %v447
  %v2505 = vunpack.c.h.b16 %v447
  %v2506 = vunpack.c.l.b16 %v448
  %v2507 = vunpack.c.h.b16 %v448
  %v2508 = vunpack.c.l.b16 %v449
  %v2509 = vunpack.c.h.b16 %v449
  %v2510 = vunpack.c.l.b16 %v450
  %v2511 = vunpack.c.h.b16 %v450
  %v2512 = vunpack.c.l.b16 %v451
  %v2513 = vunpack.c.h.b16 %v451
  %v2514 = vunpack.c.l.b16 %v452
  %v2515 = vunpack.c.h.b16 %v452
  %v2516 = vunpack.c.l.b16 %v453
  %v2517 = vunpack.c.h.b16 %v453
  %v2518 = vunpack.c.l.b16 %v454
  %v2519 = vunpack.c.h.b16 %v454
  %v2520 = vunpack.c.l.b16 %v455
  %v2521 = vunpack.c.h.b16 %v455
  %v2522 = vunpack.c.l.b16 %v456
  %v2523 = vunpack.c.h.b16 %v456
  %v2524 = vunpack.c.l.b16 %v457
  %v2525 = vunpack.c.h.b16 %v457
  %v2526 = vunpack.c.l.b16 %v458
  %v2527 = vunpack.c.h.b16 %v458
  %v2528 = vunpack.c.l.b16 %v459
  %v2529 = vunpack.c.h.b16 %v459
  %v2530 = vunpack.c.l.b16 %v460
  %v2531 = vunpack.c.h.b16 %v460
  %v2532 = vunpack.c.l.b16 %v461
  %v2533 = vunpack.c.h.b16 %v461
  %v2534 = vunpack.c.l.b16 %v462
  %v2535 = vunpack.c.h.b16 %v462
  %v2536 = vunpack.c.l.b16 %v463
  %v2537 = vunpack.c.h.b16 %v463
  %v2538 = vunpack.c.l.b16 %v464
  %v2539 = vunpack.c.h.b16 %v464
  %v2540 = vunpack.c.l.b16 %v465
  %v2541 = vunpack.c.h.b16 %v465
  %v2542 = vunpack.c.l.b16 %v466
  %v2543 = vunpack.c.h.b16 %v466
  %v2544 = vunpack.c.l.b16 %v467
  %v2545 = vunpack.c.h.b16 %v467
  %v2546 = vunpack.c.l.b16 %v468
  %v2547 = vunpack.c.h.b16 %v468
  %v2548 = vunpack.c.l.b16 %v469
  %v2549 = vunpack.c.h.b16 %v469
  %v2550 = vunpack.c.l.b16 %v470
  %v2551 = vunpack.c.h.b16 %v470
  %v2552 = vunpack.c.l.b16 %v471
  %v2553 = vunpack.c.h.b16 %v471
  %v2554 = vunpack.c.l.b16 %v472
  %v2555 = vunpack.c.h.b16 %v472
  %v2556 = vunpack.c.l.b16 %v473
  %v2557 = vunpack.c.h.b16 %v473
  %v2558 = vunpack.c.l.b16 %v474
  %v2559 = vunpack.c.h.b16 %v474
  %v2560 = vunpack.c.l.b16 %v475
  %v2561 = vunpack.c.h.b16 %v475
  %v2562 = vunpack.c.l.b16 %v476
  %v2563 = vunpack.c.h.b16 %v476
  %v2564 = vunpack.c.l.b16 %v477
  %v2565 = vunpack.c.h.b16 %v477
  %v2566 = vunpack.c.l.b16 %v478
  %v2567 = vunpack.c.h.b16 %v478
  %v2568 = vunpack.c.l.b16 %v479
  %v2569 = vunpack.c.h.b16 %v479
  %v2570 = vunpack.c.l.b16 %v480
  %v2571 = vunpack.c.h.b16 %v480
  %v2572 = vunpack.c.l.b16 %v481
  %v2573 = vunpack.c.h.b16 %v481
  %v2574 = vunpack.c.l.b16 %v482
  %v2575 = vunpack.c.h.b16 %v482
  %v2576 = vunpack.c.l.b16 %v483
  %v2577 = vunpack.c.h.b16 %v483
  %v2578 = vunpack.c.l.b16 %v484
  %v2579 = vunpack.c.h.b16 %v484
  %v2580 = vunpack.c.l.b16 %v485
  %v2581 = vunpack.c.h.b16 %v485
  %v2582 = vunpack.c.l.b16 %v486
  %v2583 = vunpack.c.h.b16 %v486
  %v2584 = vunpack.c.l.b16 %v487
  %v2585 = vunpack.c.h.b16 %v487
  %v2586 = vunpack.c.l.b16 %v488
  %v2587 = vunpack.c.h.b16 %v488
  %v2588 = vunpack.c.l.b16 %v489
  %v2589 = vunpack.c.h.b16 %v489
  %v2590 = vunpack.c.l.b16 %v490
  %v2591 = vunpack.c.h.b16 %v490
  %v2592 = vunpack.c.l.b16 %v491
  %v2593 = vunpack.c.h.b16 %v491
  %v2594 = vunpack.c.l.b16 %v492
  %v2595 = vunpack.c.h.b16 %v492
  %v2596 = vunpack.c.l.b16 %v493
  %v2597 = vunpack.c.h.b16 %v493
  %v2598 = vunpack.c.l.b16 %v494
  %v2599 = vunpack.c.h.b16 %v494
  %v2600 = vunpack.c.l.b16 %v495
  %v2601 = vunpack.c.h.b16 %v495
  %v2602 = vunpack.c.l.b16 %v496
  %v2603 = vunpack.c.h.b16 %v496
  %v2604 = vunpack.c.l.b16 %v497
  %v2605 = vunpack.c.h.b16 %v497
  %v2606 = vunpack.c.l.b16 %v498
  %v2607 = vunpack.c.h.b16 %v498
  %v2608 = vunpack.c.l.b16 %v499
  %v2609 = vunpack.c.h.b16 %v499
  %v2610 = vunpack.c.l.b16 %v500
  %v2611 = vunpack.c.h.b16 %v500
  %v2612 = vunpack.c.l.b16 %v501
  %v2613 = vunpack.c.h.b16 %v501
  %v2614 = vunpack.c.l.b16 %v502
  %v2615 = vunpack.c.h.b16 %v502
  %v2616 = vunpack.c.l.b16 %v503
  %v2617 = vunpack.c.h.b16 %v503
  %v2618 = vunpack.c.l.b16 %v504
  %v2619 = vunpack.c.h.b16 %v504
  %v2620 = vunpack.c.l.b16 %v505
  %v2621 = vunpack.c.h.b16 %v505
  %v2622 = vunpack.c.l.b16 %v506
  %v2623 = vunpack.c.h.b16 %v506
  %v2624 = vunpack.c.l.b16 %v507
  %v2625 = vunpack.c.h.b16 %v507
  %v2626 = vunpack.c.l.b16 %v508
  %v2627 = vunpack.c.h.b16 %v508
  %v2628 = vunpack.c.l.b16 %v509
  %v2629 = vunpack.c.h.b16 %v509
  %v2630 = vunpack.c.l.b16 %v510
  %v2631 = vunpack.c.h.b16 %v510
  %v2632 = vunpack.c.l.b16 %v511
  %v2633 = vunpack.c.h.b16 %v511
  %v2634 = vunpack.c.l.b16 %v512
  %v2635 = vunpack.c.h.b16 %v512
  %v2636 = vunpack.c.l.b16 %v513
  %v2637 = vunpack.c.h.b16 %v513
  %v2638 = vunpack.c.l.b16 %v514
  %v2639 = vunpack.c.h.b16 %v514
  %v2640 = vunpack.c.l.b16 %v515
  %v2641 = vunpack.c.h.b16 %v515
  %v2642 = vunpack.c.l.b16 %v516
  %v2643 = vunpack.c.h.b16 %v516
  %v2644 = vunpack.c.l.b16 %v517
  %v2645 = vunpack.c.h.b16 %v517
  %v2646 = vunpack.c.l.b16 %v518
  %v2647 = vunpack.c.h.b16 %v518
  %v2648 = vunpack.c.l.b16 %v519
  %v2649 = vunpack.c.h.b16 %v519
  %v2650 = vunpack.c.l.b16 %v520
  %v2651 = vunpack.c.h.b16 %v520
  %v2652 = vunpack.c.l.b16 %v521
  %v2653 = vunpack.c.h.b16 %v521
  %v2654 = vunpack.c.l.b16 %v522
  %v2655 = vunpack.c.h.b16 %v522
  %v2656 = vunpack.c.l.b16 %v523
  %v2657 = vunpack.c.h.b16 %v523
  %v2658 = vunpack.c.l.b16 %v524
  %v2659 = vunpack.c.h.b16 %v524
  %v2660 = vunpack.c.l.b16 %v525
  %v2661 = vunpack.c.h.b16 %v525
  %v2662 = vunpack.c.l.b16 %v526
  %v2663 = vunpack.c.h.b16 %v526
  %v2664 = vunpack.c.l.b16 %v527
  %v2665 = vunpack.c.h.b16 %v527
  %v2666 = vunpack.c.l.b16 %v528
  %v2667 = vunpack.c.h.b16 %v528
  %v2668 = vunpack.c.l.b16 %v529
  %v2669 = vunpack.c.h.b16 %v529
  %v2670 = vunpack.c.l.b16 %v530
  %v2671 = vunpack.c.h.b16 %v530
  %v2672 = vunpack.c.l.b16 %v531
  %v2673 = vunpack.c.h.b16 %v531
  %v2674 = vunpack.c.l.b16 %v532
  %v2675 = vunpack.c.h.b16 %v532
  %v2676 = vunpack.c.l.b16 %v533
  %v2677 = vunpack.c.h.b16 %v533
  %v2678 = vunpack.c.l.b16 %v534
  %v2679 = vunpack.c.h.b16 %v534
  %v2680 = vunpack.c.l.b16 %v535
  %v2681 = vunpack.c.h.b16 %v535
  %v2682 = vunpack.c.l.b16 %v536
  %v2683 = vunpack.c.h.b16 %v536
  %v2684 = vunpack.c.l.b16 %v537
  %v2685 = vunpack.c.h.b16 %v537
  %v2686 = vunpack.c.l.b16 %v538
  %v2687 = vunpack.c.h.b16 %v538
  %v2688 = vunpack.c.l.b16 %v539
  %v2689 = vunpack.c.h.b16 %v539
  %v2690 = vunpack.c.l.b16 %v540
  %v2691 = vunpack.c.h.b16 %v540
  %v2692 = vunpack.c.l.b16 %v541
  %v2693 = vunpack.c.h.b16 %v541
  %v2694 = vunpack.c.l.b16 %v542
  %v2695 = vunpack.c.h.b16 %v542
  %v2696 = vunpack.c.l.b16 %v543
  %v2697 = vunpack.c.h.b16 %v543
  %v2698 = vunpack.c.l.b16 %v544
  %v2699 = vunpack.c.h.b16 %v544
  %v2700 = vunpack.c.l.b16 %v545
  %v2701 = vunpack.c.h.b16 %v545
  %v2702 = vunpack.c.l.b16 %v546
  %v2703 = vunpack.c.h.b16 %v546
  %v2704 = vunpack.c.l.b16 %v547
  %v2705 = vunpack.c.h.b16 %v547
  %v2706 = vunpack.c.l.b16 %v548
  %v2707 = vunpack.c.h.b16 %v548
  %v2708 = vunpack.c.l.b16 %v549
  %v2709 = vunpack.c.h.b16 %v549
  %v2710 = vunpack.c.l.b16 %v550
  %v2711 = vunpack.c.h.b16 %v550
  %v2712 = vunpack.c.l.b16 %v551
  %v2713 = vunpack.c.h.b16 %v551
  %v2714 = vunpack.c.l.b16 %v552
  %v2715 = vunpack.c.h.b16 %v552
  %v2716 = vunpack.c.l.b16 %v553
  %v2717 = vunpack.c.h.b16 %v553
  %v2718 = vunpack.c.l.b16 %v554
  %v2719 = vunpack.c.h.b16 %v554
  %v2720 = vunpack.c.l.b16 %v555
  %v2721 = vunpack.c.h.b16 %v555
  %v2722 = vunpack.c.l.b16 %v556
  %v2723 = vunpack.c.h.b16 %v556
  %v2724 = vunpack.c.l.b16 %v557
  %v2725 = vunpack.c.h.b16 %v557
  %v2726 = vunpack.c.l.b16 %v558
  %v2727 = vunpack.c.h.b16 %v558
  %v2728 = vunpack.c.l.b16 %v559
  %v2729 = vunpack.c.h.b16 %v559
  %v2730 = vunpack.c.l.b16 %v560
  %v2731 = vunpack.c.h.b16 %v560
  %v2732 = vunpack.c.l.b16 %v561
  %v2733 = vunpack.c.h.b16 %v561
  %v2734 = vunpack.c.l.b16 %v562
  %v2735 = vunpack.c.h.b16 %v562
  %v2736 = vunpack.c.l.b16 %v563
  %v2737 = vunpack.c.h.b16 %v563
  %v2738 = vunpack.c.l.b16 %v564
  %v2739 = vunpack.c.h.b16 %v564
  %v2740 = vunpack.c.l.b16 %v565
  %v2741 = vunpack.c.h.b16 %v565
  %v2742 = vunpack.c.l.b16 %v566
  %v2743 = vunpack.c.h.b16 %v566
  %v2744 = vunpack.c.l.b16 %v567
  %v2745 = vunpack.c.h.b16 %v567
  %v2746 = vunpack.c.l.b16 %v568
  %v2747 = vunpack.c.h.b16 %v568
  %v2748 = vunpack.c.l.b16 %v569
  %v2749 = vunpack.c.h.b16 %v569
  %v2750 = vunpack.c.l.b16 %v570
  %v2751 = vunpack.c.h.b16 %v570
  %v2752 = vunpack.c.l.b16 %v571
  %v2753 = vunpack.c.h.b16 %v571
  %v2754 = vunpack.c.l.b16 %v572
  %v2755 = vunpack.c.h.b16 %v572
  %v2756 = vunpack.c.l.b16 %v573
  %v2757 = vunpack.c.h.b16 %v573
  %v2758 = vunpack.c.l.b16 %v574
  %v2759 = vunpack.c.h.b16 %v574
  %v2760 = vunpack.c.l.b16 %v575
  %v2761 = vunpack.c.h.b16 %v575
  %v2762 = vunpack.c.l.b16 %v576
  %v2763 = vunpack.c.h.b16 %v576
  %v2764 = vunpack.c.l.b16 %v577
  %v2765 = vunpack.c.h.b16 %v577
  %v2766 = vunpack.c.l.b16 %v578
  %v2767 = vunpack.c.h.b16 %v578
  %v2768 = vunpack.c.l.b16 %v579
  %v2769 = vunpack.c.h.b16 %v579
  %v2770 = vunpack.c.l.b16 %v580
  %v2771 = vunpack.c.h.b16 %v580
  %v2772 = vunpack.c.l.b16 %v581
  %v2773 = vunpack.c.h.b16 %v581
  %v2774 = vunpack.c.l.b16 %v582
  %v2775 = vunpack.c.h.b16 %v582
  %v2776 = vunpack.c.l.b16 %v583
  %v2777 = vunpack.c.h.b16 %v583
  %v2778 = vunpack.c.l.b16 %v584
  %v2779 = vunpack.c.h.b16 %v584
  %v2780 = vunpack.c.l.b16 %v585
  %v2781 = vunpack.c.h.b16 %v585
  %v2782 = vunpack.c.l.b16 %v586
  %v2783 = vunpack.c.h.b16 %v586
  %v2784 = vunpack.c.l.b16 %v587
  %v2785 = vunpack.c.h.b16 %v587
  %v2786 = vunpack.c.l.b16 %v588
  %v2787 = vunpack.c.h.b16 %v588
  %v2788 = vunpack.c.l.b16 %v589
  %v2789 = vunpack.c.h.b16 %v589
  %v2790 = vunpack.c.l.b16 %v590
  %v2791 = vunpack.c.h.b16 %v590
  %v2792 = vunpack.c.l.b16 %v591
  %v2793 = vunpack.c.h.b16 %v591
  %v2794 = vunpack.c.l.b16 %v592
  %v2795 = vunpack.c.h.b16 %v592
  %v2796 = vunpack.c.l.b16 %v593
  %v2797 = vunpack.c.h.b16 %v593
  %v2798 = vunpack.c.l.b16 %v594
  %v2799 = vunpack.c.h.b16 %v594
  %v2800 = vunpack.c.l.b16 %v595
  %v2801 = vunpack.c.h.b16 %v595
  %v2802 = vunpack.c.l.b16 %v596
  %v2803 = vunpack.c.h.b16 %v596
  %v2804 = vunpack.c.l.b16 %v597
  %v2805 = vunpack.c.h.b16 %v597
  %v2806 = vunpack.c.l.b16 %v598
  %v2807 = vunpack.c.h.b16 %v598
  %v2808 = vunpack.c.l.b16 %v599
  %v2809 = vunpack.c.h.b16 %v599
  %v2810 = vunpack.c.l.b16 %v600
  %v2811 = vunpack.c.h.b16 %v600
  %v2812 = vunpack.c.l.b16 %v601
  %v2813 = vunpack.c.h.b16 %v601
  %v2814 = vunpack.c.l.b16 %v602
  %v2815 = vunpack.c.h.b16 %v602
  %v2816 = vunpack.c.l.b16 %v603
  %v2817 = vunpack.c.h.b16 %v603
  %v2818 = vunpack.c.l.b16 %v604
  %v2819 = vunpack.c.h.b16 %v604
  %v2820 = vunpack.c.l.b16 %v605
  %v2821 = vunpack.c.h.b16 %v605
  %v2822 = vunpack.c.l.b16 %v606
  %v2823 = vunpack.c.h.b16 %v606
  %v2824 = vunpack.c.l.b16 %v607
  %v2825 = vunpack.c.h.b16 %v607
  %v2826 = vunpack.c.l.b16 %v608
  %v2827 = vunpack.c.h.b16 %v608
  %v2828 = vunpack.c.l.b16 %v609
  %v2829 = vunpack.c.h.b16 %v609
  %v2830 = vunpack.c.l.b16 %v610
  %v2831 = vunpack.c.h.b16 %v610
  %v2832 = vunpack.c.l.b16 %v611
  %v2833 = vunpack.c.h.b16 %v611
  %v2834 = vunpack.c.l.b16 %v612
  %v2835 = vunpack.c.h.b16 %v612
  %v2836 = vunpack.c.l.b16 %v613
  %v2837 = vunpack.c.h.b16 %v613
  %v2838 = vunpack.c.l.b16 %v614
  %v2839 = vunpack.c.h.b16 %v614
  %v2840 = vunpack.c.l.b16 %v615
  %v2841 = vunpack.c.h.b16 %v615
  %v2842 = vunpack.c.l.b16 %v616
  %v2843 = vunpack.c.h.b16 %v616
  %v2844 = vunpack.c.l.b16 %v617
  %v2845 = vunpack.c.h.b16 %v617
  %v2846 = vunpack.c.l.b16 %v618
  %v2847 = vunpack.c.h.b16 %v618
  %v2848 = vunpack.c.l.b16 %v619
  %v2849 = vunpack.c.h.b16 %v619
  %v2850 = vunpack.c.l.b16 %v620
  %v2851 = vunpack.c.h.b16 %v620
  %v2852 = vunpack.c.l.b16 %v621
  %v2853 = vunpack.c.h.b16 %v621
  %v2854 = vunpack.c.l.b16 %v622
  %v2855 = vunpack.c.h.b16 %v622
  %v2856 = vunpack.c.l.b16 %v623
  %v2857 = vunpack.c.h.b16 %v623
  %v2858 = vunpack.c.l.b16 %v624
  %v2859 = vunpack.c.h.b16 %v624
  %v2860 = vunpack.c.l.b16 %v625
  %v2861 = vunpack.c.h.b16 %v625
  %v2862 = vunpack.c.l.b16 %v626
  %v2863 = vunpack.c.h.b16 %v626
  %v2864 = vunpack.c.l.b16 %v627
  %v2865 = vunpack.c.h.b16 %v627
  %v2866 = vunpack.c.l.b16 %v628
  %v2867 = vunpack.c.h.b16 %v628
  %v2868 = vunpack.c.l.b16 %v629
  %v2869 = vunpack.c.h.b16 %v629
  %v2870 = vunpack.c.l.b16 %v630
  %v2871 = vunpack.c.h.b16 %v630
  %v2872 = vunpack.c.l.b16 %v631
  %v2873 = vunpack.c.h.b16 %v631
  %v2874 = vunpack.c.l.b16 %v632
  %v2875 = vunpack.c.h.b16 %v632
  %v2876 = vunpack.c.l.b16 %v633
  %v2877 = vunpack.c.h.b16 %v633
  %v2878 = vunpack.c.l.b16 %v634
  %v2879 = vunpack.c.h.b16 %v634
  %v2880 = vunpack.c.l.b16 %v635
  %v2881 = vunpack.c.h.b16 %v635
  %v2882 = vunpack.c.l.b16 %v636
  %v2883 = vunpack.c.h.b16 %v636
  %v2884 = vunpack.c.l.b16 %v637
  %v2885 = vunpack.c.h.b16 %v637
  %v2886 = vunpack.c.l.b16 %v638
  %v2887 = vunpack.c.h.b16 %v638
  %v2888 = vunpack.c.l.b16 %v639
  %v2889 = vunpack.c.h.b16 %v639
  %v2890 = vunpack.c.l.b16 %v640
  %v2891 = vunpack.c.h.b16 %v640
  %v2892 = vunpack.c.l.b16 %v641
  %v2893 = vunpack.c.h.b16 %v641
  %v2894 = vunpack.c.l.b16 %v642
  %v2895 = vunpack.c.h.b16 %v642
  %v2896 = vunpack.c.l.b16 %v643
  %v2897 = vunpack.c.h.b16 %v643
  %v2898 = vunpack.c.l.b16 %v644
  %v2899 = vunpack.c.h.b16 %v644
  %v2900 = vunpack.c.l.b16 %v645
  %v2901 = vunpack.c.h.b16 %v645
  %v2902 = vunpack.c.l.b16 %v646
  %v2903 = vunpack.c.h.b16 %v646
  %v2904 = vunpack.c.l.b16 %v647
  %v2905 = vunpack.c.h.b16 %v647
  %v2906 = vunpack.c.l.b16 %v648
  %v2907 = vunpack.c.h.b16 %v648
  %v2908 = vunpack.c.l.b16 %v649
  %v2909 = vunpack.c.h.b16 %v649
  %v2910 = vunpack.c.l.b16 %v650
  %v2911 = vunpack.c.h.b16 %v650
  %v2912 = vunpack.c.l.b16 %v651
  %v2913 = vunpack.c.h.b16 %v651
  %v2914 = vunpack.c.l.b16 %v652
  %v2915 = vunpack.c.h.b16 %v652
  %v2916 = vunpack.c.l.b16 %v653
  %v2917 = vunpack.c.h.b16 %v653
  %v2918 = vunpack.c.l.b16 %v654
  %v2919 = vunpack.c.h.b16 %v654
  %v2920 = vunpack.c.l.b16 %v655
  %v2921 = vunpack.c.h.b16 %v655
  %v2922 = vunpack.c.l.b16 %v656
  %v2923 = vunpack.c.h.b16 %v656
  %v2924 = vunpack.c.l.b16 %v657
  %v2925 = vunpack.c.h.b16 %v657
  %v2926 = vunpack.c.l.b16 %v658
  %v2927 = vunpack.c.h.b16 %v658
  %v2928 = vunpack.c.l.b16 %v659
  %v2929 = vunpack.c.h.b16 %v659
  %v2930 = vunpack.c.l.b16 %v660
  %v2931 = vunpack.c.h.b16 %v660
  %v2932 = vunpack.c.l.b16 %v661
  %v2933 = vunpack.c.h.b16 %v661
  %v2934 = vunpack.c.l.b16 %v662
  %v2935 = vunpack.c.h.b16 %v662
  %v2936 = vunpack.c.l.b16 %v663
  %v2937 = vunpack.c.h.b16 %v663
  %v2938 = vunpack.c.l.b16 %v664
  %v2939 = vunpack.c.h.b16 %v664
  %v2940 = vunpack.c.l.b16 %v665
  %v2941 = vunpack.c.h.b16 %v665
  %v2942 = vunpack.c.l.b16 %v666
  %v2943 = vunpack.c.h.b16 %v666
  %v2944 = vunpack.c.l.b16 %v667
  %v2945 = vunpack.c.h.b16 %v667
  %v2946 = vunpack.c.l.b16 %v668
  %v2947 = vunpack.c.h.b16 %v668
  %v2948 = vunpack.c.l.b16 %v669
  %v2949 = vunpack.c.h.b16 %v669
  %v2950 = vunpack.c.l.b16 %v670
  %v2951 = vunpack.c.h.b16 %v670
  %v2952 = vunpack.c.l.b16 %v671
  %v2953 = vunpack.c.h.b16 %v671
  %v2954 = vunpack.c.l.b16 %v672
  %v2955 = vunpack.c.h.b16 %v672
  %v2956 = vunpack.c.l.b16 %v673
  %v2957 = vunpack.c.h.b16 %v673
  %v2958 = vunpack.c.l.b16 %v674
  %v2959 = vunpack.c.h.b16 %v674
  %v2960 = vunpack.c.l.b16 %v675
  %v2961 = vunpack.c.h.b16 %v675
  %v2962 = vunpack.c.l.b16 %v676
  %v2963 = vunpack.c.h.b16 %v676
  %v2964 = vunpack.c.l.b16 %v677
  %v2965 = vunpack.c.h.b16 %v677
  %v2966 = vunpack.c.l.b16 %v678
  %v2967 = vunpack.c.h.b16 %v678
  %v2968 = vunpack.c.l.b16 %v679
  %v2969 = vunpack.c.h.b16 %v679
  %v2970 = vunpack.c.l.b16 %v680
  %v2971 = vunpack.c.h.b16 %v680
  %v2972 = vunpack.c.l.b16 %v681
  %v2973 = vunpack.c.h.b16 %v681
  %v2974 = vunpack.c.l.b16 %v682
  %v2975 = vunpack.c.h.b16 %v682
  %v2976 = vunpack.c.l.b16 %v683
  %v2977 = vunpack.c.h.b16 %v683
  %v2978 = vunpack.c.l.b16 %v684
  %v2979 = vunpack.c.h.b16 %v684
  %v2980 = vunpack.c.l.b16 %v685
  %v2981 = vunpack.c.h.b16 %v685
  %v2982 = vunpack.c.l.b16 %v686
  %v2983 = vunpack.c.h.b16 %v686
  %v2984 = vunpack.c.l.b16 %v687
  %v2985 = vunpack.c.h.b16 %v687
  %v2986 = vunpack.c.l.b16 %v688
  %v2987 = vunpack.c.h.b16 %v688
  %v2988 = vunpack.c.l.b16 %v689
  %v2989 = vunpack.c.h.b16 %v689
  %v2990 = vunpack.c.l.b16 %v690
  %v2991 = vunpack.c.h.b16 %v690
  %v2992 = vunpack.c.l.b16 %v691
  %v2993 = vunpack.c.h.b16 %v691
  %v2994 = vunpack.c.l.b16 %v692
  %v2995 = vunpack.c.h.b16 %v692
  %v2996 = vunpack.c.l.b16 %v693
  %v2997 = vunpack.c.h.b16 %v693
  %v2998 = vunpack.c.l.b16 %v694
  %v2999 = vunpack.c.h.b16 %v694
  %v3000 = vunpack.c.l.b16 %v695
  %v3001 = vunpack.c.h.b16 %v695
  %v3002 = vunpack.c.l.b16 %v696
  %v3003 = vunpack.c.h.b16 %v696
  %v3004 = vunpack.c.l.b16 %v697
  %v3005 = vunpack.c.h.b16 %v697
  %v3006 = vunpack.c.l.b16 %v698
  %v3007 = vunpack.c.h.b16 %v698
  %v3008 = vunpack.c.l.b16 %v699
  %v3009 = vunpack.c.h.b16 %v699
  %v3010 = vunpack.c.l.b16 %v700
  %v3011 = vunpack.c.h.b16 %v700
  %v3012 = vunpack.c.l.b16 %v701
  %v3013 = vunpack.c.h.b16 %v701
  %v3014 = vunpack.c.l.b16 %v702
  %v3015 = vunpack.c.h.b16 %v702
  %v3016 = vunpack.c.l.b16 %v703
  %v3017 = vunpack.c.h.b16 %v703
  %v3018 = vunpack.c.l.b16 %v704
  %v3019 = vunpack.c.h.b16 %v704
  %v3020 = vunpack.c.l.b16 %v705
  %v3021 = vunpack.c.h.b16 %v705
  %v3022 = vunpack.c.l.b16 %v706
  %v3023 = vunpack.c.h.b16 %v706
  %v3024 = vunpack.c.l.b16 %v707
  %v3025 = vunpack.c.h.b16 %v707
  %v3026 = vunpack.c.l.b16 %v708
  %v3027 = vunpack.c.h.b16 %v708
  %v3028 = vunpack.c.l.b16 %v709
  %v3029 = vunpack.c.h.b16 %v709
  %v3030 = vunpack.c.l.b16 %v710
  %v3031 = vunpack.c.h.b16 %v710
  %v3032 = vunpack.c.l.b16 %v711
  %v3033 = vunpack.c.h.b16 %v711
  %v3034 = vunpack.c.l.b16 %v712
  %v3035 = vunpack.c.h.b16 %v712
  %v3036 = vunpack.c.l.b16 %v713
  %v3037 = vunpack.c.h.b16 %v713
  %v3038 = vunpack.c.l.b16 %v714
  %v3039 = vunpack.c.h.b16 %v714
  %v3040 = vunpack.c.l.b16 %v715
  %v3041 = vunpack.c.h.b16 %v715
  %v3042 = vunpack.c.l.b16 %v716
  %v3043 = vunpack.c.h.b16 %v716
  %v3044 = vunpack.c.l.b16 %v717
  %v3045 = vunpack.c.h.b16 %v717
  %v3046 = vunpack.c.l.b16 %v718
  %v3047 = vunpack.c.h.b16 %v718
  %v3048 = vunpack.c.l.b16 %v719
  %v3049 = vunpack.c.h.b16 %v719
  %v3050 = vunpack.c.l.b16 %v720
  %v3051 = vunpack.c.h.b16 %v720
  %v3052 = vunpack.c.l.b16 %v721
  %v3053 = vunpack.c.h.b16 %v721
  %v3054 = vunpack.c.l.b16 %v722
  %v3055 = vunpack.c.h.b16 %v722
  %v3056 = vunpack.c.l.b16 %v723
  %v3057 = vunpack.c.h.b16 %v723
  %v3058 = vunpack.c.l.b16 %v724
  %v3059 = vunpack.c.h.b16 %v724
  %v3060 = vunpack.c.l.b16 %v725
  %v3061 = vunpack.c.h.b16 %v725
  %v3062 = vunpack.c.l.b16 %v726
  %v3063 = vunpack.c.h.b16 %v726
  %v3064 = vunpack.c.l.b16 %v727
  %v3065 = vunpack.c.h.b16 %v727
  %v3066 = vunpack.c.l.b16 %v728
  %v3067 = vunpack.c.h.b16 %v728
  %v3068 = vunpack.c.l.b16 %v729
  %v3069 = vunpack.c.h.b16 %v729
  %v3070 = vunpack.c.l.b16 %v730
  %v3071 = vunpack.c.h.b16 %v730
  %v3072 = vunpack.c.l.b16 %v731
  %v3073 = vunpack.c.h.b16 %v731
  %v3074 = vunpack.c.l.b16 %v732
  %v3075 = vunpack.c.h.b16 %v732
  %v3076 = vunpack.c.l.b16 %v733
  %v3077 = vunpack.c.h.b16 %v733
  %v3078 = vunpack.c.l.b16 %v734
  %v3079 = vunpack.c.h.b16 %v734
  %v3080 = vunpack.c.l.b16 %v735
  %v3081 = vunpack.c.h.b16 %v735
  %v3082 = vunpack.c.l.b16 %v736
  %v3083 = vunpack.c.h.b16 %v736
  %v3084 = vunpack.c.l.b16 %v737
  %v3085 = vunpack.c.h.b16 %v737
  %v3086 = vunpack.c.l.b16 %v738
  %v3087 = vunpack.c.h.b16 %v738
  %v3088 = vunpack.c.l.b16 %v739
  %v3089 = vunpack.c.h.b16 %v739
  %v3090 = vunpack.c.l.b16 %v740
  %v3091 = vunpack.c.h.b16 %v740
  %v3092 = vunpack.c.l.b16 %v741
  %v3093 = vunpack.c.h.b16 %v741
  %v3094 = vunpack.c.l.b16 %v742
  %v3095 = vunpack.c.h.b16 %v742
  %v3096 = vunpack.c.l.b16 %v743
  %v3097 = vunpack.c.h.b16 %v743
  %v3098 = vunpack.c.l.b16 %v744
  %v3099 = vunpack.c.h.b16 %v744
  %v3100 = vunpack.c.l.b16 %v745
  %v3101 = vunpack.c.h.b16 %v745
  %v3102 = vunpack.c.l.b16 %v746
  %v3103 = vunpack.c.h.b16 %v746
  %v3104 = vunpack.c.l.b16 %v747
  %v3105 = vunpack.c.h.b16 %v747
  %v3106 = vunpack.c.l.b16 %v748
  %v3107 = vunpack.c.h.b16 %v748
  %v3108 = vunpack.c.l.b16 %v749
  %v3109 = vunpack.c.h.b16 %v749
  %v3110 = vunpack.c.l.b16 %v750
  %v3111 = vunpack.c.h.b16 %v750
  %v3112 = vunpack.c.l.b16 %v751
  %v3113 = vunpack.c.h.b16 %v751
  %v3114 = vunpack.c.l.b16 %v752
  %v3115 = vunpack.c.h.b16 %v752
  %v3116 = vunpack.c.l.b16 %v753
  %v3117 = vunpack.c.h.b16 %v753
  %v3118 = vunpack.c.l.b16 %v754
  %v3119 = vunpack.c.h.b16 %v754
  %v3120 = vunpack.c.l.b16 %v755
  %v3121 = vunpack.c.h.b16 %v755
  %v3122 = vunpack.c.l.b16 %v756
  %v3123 = vunpack.c.h.b16 %v756
  %v3124 = vunpack.c.l.b16 %v757
  %v3125 = vunpack.c.h.b16 %v757
  %v3126 = vunpack.c.l.b16 %v758
  %v3127 = vunpack.c.h.b16 %v758
  %v3128 = vunpack.c.l.b16 %v759
  %v3129 = vunpack.c.h.b16 %v759
  %v3130 = vunpack.c.l.b16 %v760
  %v3131 = vunpack.c.h.b16 %v760
  %v3132 = vunpack.c.l.b16 %v761
  %v3133 = vunpack.c.h.b16 %v761
  %v3134 = vunpack.c.l.b16 %v762
  %v3135 = vunpack.c.h.b16 %v762
  %v3136 = vunpack.c.l.b16 %v763
  %v3137 = vunpack.c.h.b16 %v763
  %v3138 = vunpack.c.l.b16 %v764
  %v3139 = vunpack.c.h.b16 %v764
  %v3140 = vunpack.c.l.b16 %v765
  %v3141 = vunpack.c.h.b16 %v765
  %v3142 = vunpack.c.l.b16 %v766
  %v3143 = vunpack.c.h.b16 %v766
  %v3144 = vunpack.c.l.b16 %v767
  %v3145 = vunpack.c.h.b16 %v767
  %v3146 = vunpack.c.l.b16 %v768
  %v3147 = vunpack.c.h.b16 %v768
  %v3148 = vunpack.c.l.b16 %v769
  %v3149 = vunpack.c.h.b16 %v769
  %v3150 = vunpack.c.l.b16 %v770
  %v3151 = vunpack.c.h.b16 %v770
  %v3152 = vunpack.c.l.b16 %v771
  %v3153 = vunpack.c.h.b16 %v771
  %v3154 = vunpack.c.l.b16 %v772
  %v3155 = vunpack.c.h.b16 %v772
  %v3156 = vunpack.c.l.b16 %v773
  %v3157 = vunpack.c.h.b16 %v773
  %v3158 = vunpack.c.l.b16 %v774
  %v3159 = vunpack.c.h.b16 %v774
  %v3160 = vunpack.c.l.b16 %v775
  %v3161 = vunpack.c.h.b16 %v775
  %v3162 = vunpack.c.l.b16 %v776
  %v3163 = vunpack.c.h.b16 %v776
  %v3164 = vunpack.c.l.b16 %v777
  %v3165 = vunpack.c.h.b16 %v777
  %v3166 = vunpack.c.l.b16 %v778
  %v3167 = vunpack.c.h.b16 %v778
  %v3168 = vunpack.c.l.b16 %v779
  %v3169 = vunpack.c.h.b16 %v779
  %v3170 = vunpack.c.l.b16 %v780
  %v3171 = vunpack.c.h.b16 %v780
  %v3172 = vunpack.c.l.b16 %v781
  %v3173 = vunpack.c.h.b16 %v781
  %v3174 = vunpack.c.l.b16 %v782
  %v3175 = vunpack.c.h.b16 %v782
  %v3176 = vunpack.c.l.b16 %v783
  %v3177 = vunpack.c.h.b16 %v783
  %v3178 = vunpack.c.l.b16 %v784
  %v3179 = vunpack.c.h.b16 %v784
  %v3180 = vunpack.c.l.b16 %v785
  %v3181 = vunpack.c.h.b16 %v785
  %v3182 = vunpack.c.l.b16 %v786
  %v3183 = vunpack.c.h.b16 %v786
  %v3184 = vunpack.c.l.b16 %v787
  %v3185 = vunpack.c.h.b16 %v787
  %v3186 = vunpack.c.l.b16 %v788
  %v3187 = vunpack.c.h.b16 %v788
  %v3188 = vunpack.c.l.b16 %v789
  %v3189 = vunpack.c.h.b16 %v789
  %v3190 = vunpack.c.l.b16 %v790
  %v3191 = vunpack.c.h.b16 %v790
  %v3192 = vunpack.c.l.b16 %v791
  %v3193 = vunpack.c.h.b16 %v791
  %v3194 = vunpack.c.l.b16 %v792
  %v3195 = vunpack.c.h.b16 %v792
  %v3196 = vunpack.c.l.b16 %v793
  %v3197 = vunpack.c.h.b16 %v793
  %v3198 = vunpack.c.l.b16 %v794
  %v3199 = vunpack.c.h.b16 %v794
  %v3200 = vunpack.c.l.b16 %v795
  %v3201 = vunpack.c.h.b16 %v795
  %v3202 = vunpack.c.l.b16 %v796
  %v3203 = vunpack.c.h.b16 %v796
  %v3204 = vunpack.c.l.b16 %v797
  %v3205 = vunpack.c.h.b16 %v797
  %v3206 = vunpack.c.l.b16 %v798
  %v3207 = vunpack.c.h.b16 %v798
  %v3208 = vunpack.c.l.b16 %v799
  %v3209 = vunpack.c.h.b16 %v799
  %v3210 = vunpack.c.l.b16 %v800
  %v3211 = vunpack.c.h.b16 %v800
  %v3212 = vunpack.c.l.b16 %v801
  %v3213 = vunpack.c.h.b16 %v801
  %v3214 = vunpack.c.l.b16 %v802
  %v3215 = vunpack.c.h.b16 %v802
  %v3216 = vunpack.c.l.b16 %v803
  %v3217 = vunpack.c.h.b16 %v803
  %v3218 = vunpack.c.l.b16 %v804
  %v3219 = vunpack.c.h.b16 %v804
  %v3220 = vunpack.c.l.b16 %v805
  %v3221 = vunpack.c.h.b16 %v805
  %v3222 = vunpack.c.l.b16 %v806
  %v3223 = vunpack.c.h.b16 %v806
  %v3224 = vunpack.c.l.b16 %v807
  %v3225 = vunpack.c.h.b16 %v807
  %v3226 = vunpack.c.l.b16 %v808
  %v3227 = vunpack.c.h.b16 %v808
  %v3228 = vpack.c.b16 %v1664, %v1660
  %v3229 = vpack.c.b16 %v1665, %v1661
  %v3230 = vpack.c.b16 %v1666, %v1662
  %v3231 = vpack.c.b16 %v1667, %v1663
  %v3232 = vpack.c.b16 %v1672, %v1668
  %v3233 = vpack.c.b16 %v1673, %v1669
  %v3234 = vpack.c.b16 %v1674, %v1670
  %v3235 = vpack.c.b16 %v1675, %v1671
  %v3236 = vpack.c.b16 %v1680, %v1676
  %v3237 = vpack.c.b16 %v1681, %v1677
  %v3238 = vpack.c.b16 %v1682, %v1678
  %v3239 = vpack.c.b16 %v1683, %v1679
  %v3240 = vpack.c.b16 %v1688, %v1684
  %v3241 = vpack.c.b16 %v1689, %v1685
  %v3242 = vpack.c.b16 %v1690, %v1686
  %v3243 = vpack.c.b16 %v1691, %v1687
  %v3244 = vpack.c.b16 %v1696, %v1692
  %v3245 = vpack.c.b16 %v1697, %v1693
  %v3246 = vpack.c.b16 %v1698, %v1694
  %v3247 = vpack.c.b16 %v1699, %v1695
  %v3248 = vpack.c.b16 %v1704, %v1700
  %v3249 = vpack.c.b16 %v1705, %v1701
  %v3250 = vpack.c.b16 %v1706, %v1702
  %v3251 = vpack.c.b16 %v1707, %v1703
  %v3252 = vpack.c.b16 %v1712, %v1708
  %v3253 = vpack.c.b16 %v1713, %v1709
  %v3254 = vpack.c.b16 %v1714, %v1710
  %v3255 = vpack.c.b16 %v1715, %v1711
  %v3256 = vpack.c.b16 %v1720, %v1716
  %v3257 = vpack.c.b16 %v1721, %v1717
  %v3258 = vpack.c.b16 %v1722, %v1718
  %v3259 = vpack.c.b16 %v1723, %v1719
  %v3260 = vpack.c.b16 %v1728, %v1724
  %v3261 = vpack.c.b16 %v1729, %v1725
  %v3262 = vpack.c.b16 %v1730, %v1726
  %v3263 = vpack.c.b16 %v1731, %v1727
  %v3264 = vpack.c.b16 %v1736, %v1732
  %v3265 = vpack.c.b16 %v1737, %v1733
  %v3266 = vpack.c.b16 %v1738, %v1734
  %v3267 = vpack.c.b16 %v1739, %v1735
  %v3268 = vpack.c.b16 %v1744, %v1740
  %v3269 = vpack.c.b16 %v1745, %v1741
  %v3270 = vpack.c.b16 %v1746, %v1742
  %v3271 = vpack.c.b16 %v1747, %v1743
  %v3272 = vpack.c.b16 %v1752, %v1748
  %v3273 = vpack.c.b16 %v1753, %v1749
  %v3274 = vpack.c.b16 %v1754, %v1750
  %v3275 = vpack.c.b16 %v1755, %v1751
  %v3276 = vpack.c.b16 %v1760, %v1756
  %v3277 = vpack.c.b16 %v1761, %v1757
  %v3278 = vpack.c.b16 %v1762, %v1758
  %v3279 = vpack.c.b16 %v1763, %v1759
  %v3280 = vpack.c.b16 %v1768, %v1764
  %v3281 = vpack.c.b16 %v1769, %v1765
  %v3282 = vpack.c.b16 %v1770, %v1766
  %v3283 = vpack.c.b16 %v1771, %v1767
  %v3284 = vpack.c.b16 %v1776, %v1772
  %v3285 = vpack.c.b16 %v1777, %v1773
  %v3286 = vpack.c.b16 %v1778, %v1774
  %v3287 = vpack.c.b16 %v1779, %v1775
  %v3288 = vpack.c.b16 %v1784, %v1780
  %v3289 = vpack.c.b16 %v1785, %v1781
  %v3290 = vpack.c.b16 %v1786, %v1782
  %v3291 = vpack.c.b16 %v1787, %v1783
  %v3292 = vpack.c.b16 %v1792, %v1788
  %v3293 = vpack.c.b16 %v1793, %v1789
  %v3294 = vpack.c.b16 %v1794, %v1790
  %v3295 = vpack.c.b16 %v1795, %v1791
  %v3296 = vpack.c.b16 %v1800, %v1796
  %v3297 = vpack.c.b16 %v1801, %v1797
  %v3298 = vpack.c.b16 %v1802, %v1798
  %v3299 = vpack.c.b16 %v1803, %v1799
  %v3300 = vpack.c.b16 %v1808, %v1804
  %v3301 = vpack.c.b16 %v1809, %v1805
  %v3302 = vpack.c.b16 %v1810, %v1806
  %v3303 = vpack.c.b16 %v1811, %v1807
  %v3304 = vpack.c.b16 %v1816, %v1812
  %v3305 = vpack.c.b16 %v1817, %v1813
  %v3306 = vpack.c.b16 %v1818, %v1814
  %v3307 = vpack.c.b16 %v1819, %v1815
  %v3308 = vpack.c.b16 %v1824, %v1820
  %v3309 = vpack.c.b16 %v1825, %v1821
  %v3310 = vpack.c.b16 %v1826, %v1822
  %v3311 = vpack.c.b16 %v1827, %v1823
  %v3312 = vpack.c.b16 %v1832, %v1828
  %v3313 = vpack.c.b16 %v1833, %v1829
  %v3314 = vpack.c.b16 %v1834, %v1830
  %v3315 = vpack.c.b16 %v1835, %v1831
  %v3316 = vpack.c.b16 %v1840, %v1836
  %v3317 = vpack.c.b16 %v1841, %v1837
  %v3318 = vpack.c.b16 %v1842, %v1838
  %v3319 = vpack.c.b16 %v1843, %v1839
  %v3320 = vpack.c.b16 %v1848, %v1844
  %v3321 = vpack.c.b16 %v1849, %v1845
  %v3322 = vpack.c.b16 %v1850, %v1846
  %v3323 = vpack.c.b16 %v1851, %v1847
  %v3324 = vpack.c.b16 %v1856, %v1852
  %v3325 = vpack.c.b16 %v1857, %v1853
  %v3326 = vpack.c.b16 %v1858, %v1854
  %v3327 = vpack.c.b16 %v1859, %v1855
  %v3328 = vpack.c.b16 %v1864, %v1860
  %v3329 = vpack.c.b16 %v1865, %v1861
  %v3330 = vpack.c.b16 %v1866, %v1862
  %v3331 = vpack.c.b16 %v1867, %v1863
  %v3332 = vpack.c.b16 %v1872, %v1868
  %v3333 = vpack.c.b16 %v1873, %v1869
  %v3334 = vpack.c.b16 %v1874, %v1870
  %v3335 = vpack.c.b16 %v1875, %v1871
  %v3336 = vpack.c.b16 %v1880, %v1876
  %v3337 = vpack.c.b16 %v1881, %v1877
  %v3338 = vpack.c.b16 %v1882, %v1878
  %v3339 = vpack.c.b16 %v1883, %v1879
  %v3340 = vpack.c.b16 %v1888, %v1884
  %v3341 = vpack.c.b16 %v1889, %v1885
  %v3342 = vpack.c.b16 %v1890, %v1886
  %v3343 = vpack.c.b16 %v1891, %v1887
  %v3344 = vpack.c.b16 %v1896, %v1892
  %v3345 = vpack.c.b16 %v1897, %v1893
  %v3346 = vpack.c.b16 %v1898, %v1894
  %v3347 = vpack.c.b16 %v1899, %v1895
  %v3348 = vpack.c.b16 %v1904, %v1900
  %v3349 = vpack.c.b16 %v1905, %v1901
  %v3350 = vpack.c.b16 %v1906, %v1902
  %v3351 = vpack.c.b16 %v1907, %v1903
  %v3352 = vpack.c.b16 %v1912, %v1908
  %v3353 = vpack.c.b16 %v1913, %v1909
  %v3354 = vpack.c.b16 %v1914, %v1910
  %v3355 = vpack.c.b16 %v1915, %v1911
  %v3356 = vpack.c.b16 %v1920, %v1916
  %v3357 = vpack.c.b16 %v1921, %v1917
  %v3358 = vpack.c.b16 %v1922, %v1918
  %v3359 = vpack.c.b16 %v1923, %v1919
  %v3360 = vpack.c.b16 %v1928, %v1924
  %v3361 = vpack.c.b16 %v1929, %v1925
  %v3362 = vpack.c.b16 %v1930, %v1926
  %v3363 = vpack.c.b16 %v1931, %v1927
  %v3364 = vpack.c.b16 %v1936, %v1932
  %v3365 = vpack.c.b16 %v1937, %v1933
  %v3366 = vpack.c.b16 %v1938, %v1934
  %v3367 = vpack.c.b16 %v1939, %v1935
  %v3368 = vpack.c.b16 %v1944, %v1940
  %v3369 = vpack.c.b16 %v1945, %v1941
  %v3370 = vpack.c.b16 %v1946, %v1942
  %v3371 = vpack.c.b16 %v1947, %v1943
  %v3372 = vpack.c.b16 %v1952, %v1948
  %v3373 = vpack.c.b16 %v1953, %v1949
  %v3374 = vpack.c.b16 %v1954, %v1950
  %v3375 = vpack.c.b16 %v1955, %v1951
  %v3376 = vpack.c.b16 %v1960, %v1956
  %v3377 = vpack.c.b16 %v1961, %v1957
  %v3378 = vpack.c.b16 %v1962, %v1958
  %v3379 = vpack.c.b16 %v1963, %v1959
  %v3380 = vpack.c.b16 %v1968, %v1964
  %v3381 = vpack.c.b16 %v1969, %v1965
  %v3382 = vpack.c.b16 %v1970, %v1966
  %v3383 = vpack.c.b16 %v1971, %v1967
  %v3384 = vpack.c.b16 %v1976, %v1972
  %v3385 = vpack.c.b16 %v1977, %v1973
  %v3386 = vpack.c.b16 %v1978, %v1974
  %v3387 = vpack.c.b16 %v1979, %v1975
  %v3388 = vpack.c.b16 %v1984, %v1980
  %v3389 = vpack.c.b16 %v1985, %v1981
  %v3390 = vpack.c.b16 %v1986, %v1982
  %v3391 = vpack.c.b16 %v1987, %v1983
  %v3392 = vpack.c.b16 %v1992, %v1988
  %v3393 = vpack.c.b16 %v1993, %v1989
  %v3394 = vpack.c.b16 %v1994, %v1990
  %v3395 = vpack.c.b16 %v1995, %v1991
  %v3396 = vpack.c.b16 %v2000, %v1996
  %v3397 = vpack.c.b16 %v2001, %v1997
  %v3398 = vpack.c.b16 %v2002, %v1998
  %v3399 = vpack.c.b16 %v2003, %v1999
  %v3400 = vpack.c.b16 %v2008, %v2004
  %v3401 = vpack.c.b16 %v2009, %v2005
  %v3402 = vpack.c.b16 %v2010, %v2006
  %v3403 = vpack.c.b16 %v2011, %v2007
  %v3404 = vpack.c.b16 %v2016, %v2012
  %v3405 = vpack.c.b16 %v2017, %v2013
  %v3406 = vpack.c.b16 %v2018, %v2014
  %v3407 = vpack.c.b16 %v2019, %v2015
  %v3408 = vpack.c.b16 %v2024, %v2020
  %v3409 = vpack.c.b16 %v2025, %v2021
  %v3410 = vpack.c.b16 %v2026, %v2022
  %v3411 = vpack.c.b16 %v2027, %v2023
  %v3412 = vpack.c.b16 %v2032, %v2028
  %v3413 = vpack.c.b16 %v2033, %v2029
  %v3414 = vpack.c.b16 %v2034, %v2030
  %v3415 = vpack.c.b16 %v2035, %v2031
  %v3416 = vpack.c.b16 %v2040, %v2036
  %v3417 = vpack.c.b16 %v2041, %v2037
  %v3418 = vpack.c.b16 %v2042, %v2038
  %v3419 = vpack.c.b16 %v2043, %v2039
  %v3420 = vpack.c.b16 %v2048, %v2044
  %v3421 = vpack.c.b16 %v2049, %v2045
  %v3422 = vpack.c.b16 %v2050, %v2046
  %v3423 = vpack.c.b16 %v2051, %v2047
  %v3424 = vpack.c.b16 %v2056, %v2052
  %v3425 = vpack.c.b16 %v2057, %v2053
  %v3426 = vpack.c.b16 %v2058, %v2054
  %v3427 = vpack.c.b16 %v2059, %v2055
  %v3428 = vpack.c.b16 %v2064, %v2060
  %v3429 = vpack.c.b16 %v2065, %v2061
  %v3430 = vpack.c.b16 %v2066, %v2062
  %v3431 = vpack.c.b16 %v2067, %v2063
  %v3432 = vpack.c.b16 %v2072, %v2068
  %v3433 = vpack.c.b16 %v2073, %v2069
  %v3434 = vpack.c.b16 %v2074, %v2070
  %v3435 = vpack.c.b16 %v2075, %v2071
  %v3436 = vpack.c.b16 %v2080, %v2076
  %v3437 = vpack.c.b16 %v2081, %v2077
  %v3438 = vpack.c.b16 %v2082, %v2078
  %v3439 = vpack.c.b16 %v2083, %v2079
  %v3440 = vpack.c.b16 %v2088, %v2084
  %v3441 = vpack.c.b16 %v2089, %v2085
  %v3442 = vpack.c.b16 %v2090, %v2086
  %v3443 = vpack.c.b16 %v2091, %v2087
  %v3444 = vpack.c.b16 %v2096, %v2092
  %v3445 = vpack.c.b16 %v2097, %v2093
  %v3446 = vpack.c.b16 %v2098, %v2094
  %v3447 = vpack.c.b16 %v2099, %v2095
  %v3448 = vpack.c.b16 %v2104, %v2100
  %v3449 = vpack.c.b16 %v2105, %v2101
  %v3450 = vpack.c.b16 %v2106, %v2102
  %v3451 = vpack.c.b16 %v2107, %v2103
  %v3452 = vpack.c.b16 %v2112, %v2108
  %v3453 = vpack.c.b16 %v2113, %v2109
  %v3454 = vpack.c.b16 %v2114, %v2110
  %v3455 = vpack.c.b16 %v2115, %v2111
  %v3456 = vpack.c.b16 %v2120, %v2116
  %v3457 = vpack.c.b16 %v2121, %v2117
  %v3458 = vpack.c.b16 %v2122, %v2118
  %v3459 = vpack.c.b16 %v2123, %v2119
  %v3460 = vpack.c.b16 %v2128, %v2124
  %v3461 = vpack.c.b16 %v2129, %v2125
  %v3462 = vpack.c.b16 %v2130, %v2126
  %v3463 = vpack.c.b16 %v2131, %v2127
  %v3464 = vpack.c.b16 %v2136, %v2132
  %v3465 = vpack.c.b16 %v2137, %v2133
  %v3466 = vpack.c.b16 %v2138, %v2134
  %v3467 = vpack.c.b16 %v2139, %v2135
  %v3468 = vpack.c.b16 %v2144, %v2140
  %v3469 = vpack.c.b16 %v2145, %v2141
  %v3470 = vpack.c.b16 %v2146, %v2142
  %v3471 = vpack.c.b16 %v2147, %v2143
  %v3472 = vpack.c.b16 %v2152, %v2148
  %v3473 = vpack.c.b16 %v2153, %v2149
  %v3474 = vpack.c.b16 %v2154, %v2150
  %v3475 = vpack.c.b16 %v2155, %v2151
  %v3476 = vpack.c.b16 %v2160, %v2156
  %v3477 = vpack.c.b16 %v2161, %v2157
  %v3478 = vpack.c.b16 %v2162, %v2158
  %v3479 = vpack.c.b16 %v2163, %v2159
  %v3480 = vpack.c.b16 %v2168, %v2164
  %v3481 = vpack.c.b16 %v2169, %v2165
  %v3482 = vpack.c.b16 %v2170, %v2166
  %v3483 = vpack.c.b16 %v2171, %v2167
  %v3484 = vpack.c.b16 %v2176, %v2172
  %v3485 = vpack.c.b16 %v2177, %v2173
  %v3486 = vpack.c.b16 %v2178, %v2174
  %v3487 = vpack.c.b16 %v2179, %v2175
  %v3488 = vpack.c.b16 %v2184, %v2180
  %v3489 = vpack.c.b16 %v2185, %v2181
  %v3490 = vpack.c.b16 %v2186, %v2182
  %v3491 = vpack.c.b16 %v2187, %v2183
  %v3492 = vpack.c.b16 %v2192, %v2188
  %v3493 = vpack.c.b16 %v2193, %v2189
  %v3494 = vpack.c.b16 %v2194, %v2190
  %v3495 = vpack.c.b16 %v2195, %v2191
  %v3496 = vpack.c.b16 %v2200, %v2196
  %v3497 = vpack.c.b16 %v2201, %v2197
  %v3498 = vpack.c.b16 %v2202, %v2198
  %v3499 = vpack.c.b16 %v2203, %v2199
  %v3500 = vpack.c.b16 %v2208, %v2204
  %v3501 = vpack.c.b16 %v2209, %v2205
  %v3502 = vpack.c.b16 %v2210, %v2206
  %v3503 = vpack.c.b16 %v2211, %v2207
  %v3504 = vpack.c.b16 %v2216, %v2212
  %v3505 = vpack.c.b16 %v2217, %v2213
  %v3506 = vpack.c.b16 %v2218, %v2214
  %v3507 = vpack.c.b16 %v2219, %v2215
  %v3508 = vpack.c.b16 %v2224, %v2220
  %v3509 = vpack.c.b16 %v2225, %v2221
  %v3510 = vpack.c.b16 %v2226, %v2222
  %v3511 = vpack.c.b16 %v2227, %v2223
  %v3512 = vpack.c.b16 %v2232, %v2228
  %v3513 = vpack.c.b16 %v2233, %v2229
  %v3514 = vpack.c.b16 %v2234, %v2230
  %v3515 = vpack.c.b16 %v2235, %v2231
  %v3516 = vpack.c.b16 %v2240, %v2236
  %v3517 = vpack.c.b16 %v2241, %v2237
  %v3518 = vpack.c.b16 %v2242, %v2238
  %v3519 = vpack.c.b16 %v2243, %v2239
  %v3520 = vpack.c.b16 %v2248, %v2244
  %v3521 = vpack.c.b16 %v2249, %v2245
  %v3522 = vpack.c.b16 %v2250, %v2246
  %v3523 = vpack.c.b16 %v2251, %v2247
  %v3524 = vpack.c.b16 %v2256, %v2252
  %v3525 = vpack.c.b16 %v2257, %v2253
  %v3526 = vpack.c.b16 %v2258, %v2254
  %v3527 = vpack.c.b16 %v2259, %v2255
  %v3528 = vpack.c.b16 %v2264, %v2260
  %v3529 = vpack.c.b16 %v2265, %v2261
  %v3530 = vpack.c.b16 %v2266, %v2262
  %v3531 = vpack.c.b16 %v2267, %v2263
  %v3532 = vpack.c.b16 %v2272, %v2268
  %v3533 = vpack.c.b16 %v2273, %v2269
  %v3534 = vpack.c.b16 %v2274, %v2270
  %v3535 = vpack.c.b16 %v2275, %v2271
  %v3536 = vpack.c.b16 %v2280, %v2276
  %v3537 = vpack.c.b16 %v2281, %v2277
  %v3538 = vpack.c.b16 %v2282, %v2278
  %v3539 = vpack.c.b16 %v2283, %v2279
  %v3540 = vpack.c.b16 %v2288, %v2284
  %v3541 = vpack.c.b16 %v2289, %v2285
  %v3542 = vpack.c.b16 %v2290, %v2286
  %v3543 = vpack.c.b16 %v2291, %v2287
  %v3544 = vpack.c.b16 %v2296, %v2292
  %v3545 = vpack.c.b16 %v2297, %v2293
  %v3546 = vpack.c.b16 %v2298, %v2294
  %v3547 = vpack.c.b16 %v2299, %v2295
  %v3548 = vpack.c.b16 %v2304, %v2300
  %v3549 = vpack.c.b16 %v2305, %v2301
  %v3550 = vpack.c.b16 %v2306, %v2302
  %v3551 = vpack.c.b16 %v2307, %v2303
  %v3552 = vpack.c.b16 %v2312, %v2308
  %v3553 = vpack.c.b16 %v2313, %v2309
  %v3554 = vpack.c.b16 %v2314, %v2310
  %v3555 = vpack.c.b16 %v2315, %v2311
  %v3556 = vpack.c.b16 %v2320, %v2316
  %v3557 = vpack.c.b16 %v2321, %v2317
  %v3558 = vpack.c.b16 %v2322, %v2318
  %v3559 = vpack.c.b16 %v2323, %v2319
  %v3560 = vpack.c.b16 %v2328, %v2324
  %v3561 = vpack.c.b16 %v2329, %v2325
  %v3562 = vpack.c.b16 %v2330, %v2326
  %v3563 = vpack.c.b16 %v2331, %v2327
  %v3564 = vpack.c.b16 %v2336, %v2332
  %v3565 = vpack.c.b16 %v2337, %v2333
  %v3566 = vpack.c.b16 %v2338, %v2334
  %v3567 = vpack.c.b16 %v2339, %v2335
  %v3568 = vpack.c.b16 %v2344, %v2340
  %v3569 = vpack.c.b16 %v2345, %v2341
  %v3570 = vpack.c.b16 %v2346, %v2342
  %v3571 = vpack.c.b16 %v2347, %v2343
  %v3572 = vpack.c.b16 %v2352, %v2348
  %v3573 = vpack.c.b16 %v2353, %v2349
  %v3574 = vpack.c.b16 %v2354, %v2350
  %v3575 = vpack.c.b16 %v2355, %v2351
  %v3576 = vpack.c.b16 %v2360, %v2356
  %v3577 = vpack.c.b16 %v2361, %v2357
  %v3578 = vpack.c.b16 %v2362, %v2358
  %v3579 = vpack.c.b16 %v2363, %v2359
  %v3580 = vpack.c.b16 %v2368, %v2364
  %v3581 = vpack.c.b16 %v2369, %v2365
  %v3582 = vpack.c.b16 %v2370, %v2366
  %v3583 = vpack.c.b16 %v2371, %v2367
  %v3584 = vpack.c.b16 %v2376, %v2372
  %v3585 = vpack.c.b16 %v2377, %v2373
  %v3586 = vpack.c.b16 %v2378, %v2374
  %v3587 = vpack.c.b16 %v2379, %v2375
  %v3588 = vpack.c.b16 %v2384, %v2380
  %v3589 = vpack.c.b16 %v2385, %v2381
  %v3590 = vpack.c.b16 %v2386, %v2382
  %v3591 = vpack.c.b16 %v2387, %v2383
  %v3592 = vpack.c.b16 %v2392, %v2388
  %v3593 = vpack.c.b16 %v2393, %v2389
  %v3594 = vpack.c.b16 %v2394, %v2390
  %v3595 = vpack.c.b16 %v2395, %v2391
  %v3596 = vpack.c.b16 %v2400, %v2396
  %v3597 = vpack.c.b16 %v2401, %v2397
  %v3598 = vpack.c.b16 %v2402, %v2398
  %v3599 = vpack.c.b16 %v2403, %v2399
  %v3600 = vpack.c.b16 %v2408, %v2404
  %v3601 = vpack.c.b16 %v2409, %v2405
  %v3602 = vpack.c.b16 %v2410, %v2406
  %v3603 = vpack.c.b16 %v2411, %v2407
  %v3604 = vpack.c.b16 %v2416, %v2412
  %v3605 = vpack.c.b16 %v2417, %v2413
  %v3606 = vpack.c.b16 %v2418, %v2414
  %v3607 = vpack.c.b16 %v2419, %v2415
  %v3608 = vpack.c.b16 %v2424, %v2420
  %v3609 = vpack.c.b16 %v2425, %v2421
  %v3610 = vpack.c.b16 %v2426, %v2422
  %v3611 = vpack.c.b16 %v2427, %v2423
  %v3612 = vpack.c.b16 %v2432, %v2428
  %v3613 = vpack.c.b16 %v2433, %v2429
  %v3614 = vpack.c.b16 %v2434, %v2430
  %v3615 = vpack.c.b16 %v2435, %v2431
  %v3616 = vpack.c.b16 %v2440, %v2436
  %v3617 = vpack.c.b16 %v2441, %v2437
  %v3618 = vpack.c.b16 %v2442, %v2438
  %v3619 = vpack.c.b16 %v2443, %v2439
  %v3620 = vpack.c.b16 %v2448, %v2444
  %v3621 = vpack.c.b16 %v2449, %v2445
  %v3622 = vpack.c.b16 %v2450, %v2446
  %v3623 = vpack.c.b16 %v2451, %v2447
  %v3624 = vpack.c.b16 %v2456, %v2452
  %v3625 = vpack.c.b16 %v2457, %v2453
  %v3626 = vpack.c.b16 %v2458, %v2454
  %v3627 = vpack.c.b16 %v2459, %v2455
  %v3628 = vpack.c.b16 %v2464, %v2460
  %v3629 = vpack.c.b16 %v2465, %v2461
  %v3630 = vpack.c.b16 %v2466, %v2462
  %v3631 = vpack.c.b16 %v2467, %v2463
  %v3632 = vpack.c.b16 %v2472, %v2468
  %v3633 = vpack.c.b16 %v2473, %v2469
  %v3634 = vpack.c.b16 %v2474, %v2470
  %v3635 = vpack.c.b16 %v2475, %v2471
  %v3636 = vpack.c.b16 %v2480, %v2476
  %v3637 = vpack.c.b16 %v2481, %v2477
  %v3638 = vpack.c.b16 %v2482, %v2478
  %v3639 = vpack.c.b16 %v2483, %v2479
  %v3640 = vpack.c.b16 %v2488, %v2484
  %v3641 = vpack.c.b16 %v2489, %v2485
  %v3642 = vpack.c.b16 %v2490, %v2486
  %v3643 = vpack.c.b16 %v2491, %v2487
  %v3644 = vpack.c.b16 %v2496, %v2492
  %v3645 = vpack.c.b16 %v2497, %v2493
  %v3646 = vpack.c.b16 %v2498, %v2494
  %v3647 = vpack.c.b16 %v2499, %v2495
  %v3648 = vpack.c.b16 %v2504, %v2500
  %v3649 = vpack.c.b16 %v2505, %v2501
  %v3650 = vpack.c.b16 %v2506, %v2502
  %v3651 = vpack.c.b16 %v2507, %v2503
  %v3652 = vpack.c.b16 %v2512, %v2508
  %v3653 = vpack.c.b16 %v2513, %v2509
  %v3654 = vpack.c.b16 %v2514, %v2510
  %v3655 = vpack.c.b16 %v2515, %v2511
  %v3656 = vpack.c.b16 %v2520, %v2516
  %v3657 = vpack.c.b16 %v2521, %v2517
  %v3658 = vpack.c.b16 %v2522, %v2518
  %v3659 = vpack.c.b16 %v2523, %v2519
  %v3660 = vpack.c.b16 %v2528, %v2524
  %v3661 = vpack.c.b16 %v2529, %v2525
  %v3662 = vpack.c.b16 %v2530, %v2526
  %v3663 = vpack.c.b16 %v2531, %v2527
  %v3664 = vpack.c.b16 %v2536, %v2532
  %v3665 = vpack.c.b16 %v2537, %v2533
  %v3666 = vpack.c.b16 %v2538, %v2534
  %v3667 = vpack.c.b16 %v2539, %v2535
  %v3668 = vpack.c.b16 %v2544, %v2540
  %v3669 = vpack.c.b16 %v2545, %v2541
  %v3670 = vpack.c.b16 %v2546, %v2542
  %v3671 = vpack.c.b16 %v2547, %v2543
  %v3672 = vpack.c.b16 %v2552, %v2548
  %v3673 = vpack.c.b16 %v2553, %v2549
  %v3674 = vpack.c.b16 %v2554, %v2550
  %v3675 = vpack.c.b16 %v2555, %v2551
  %v3676 = vpack.c.b16 %v2560, %v2556
  %v3677 = vpack.c.b16 %v2561, %v2557
  %v3678 = vpack.c.b16 %v2562, %v2558
  %v3679 = vpack.c.b16 %v2563, %v2559
  %v3680 = vpack.c.b16 %v2568, %v2564
  %v3681 = vpack.c.b16 %v2569, %v2565
  %v3682 = vpack.c.b16 %v2570, %v2566
  %v3683 = vpack.c.b16 %v2571, %v2567
  %v3684 = vpack.c.b16 %v2576, %v2572
  %v3685 = vpack.c.b16 %v2577, %v2573
  %v3686 = vpack.c.b16 %v2578, %v2574
  %v3687 = vpack.c.b16 %v2579, %v2575
  %v3688 = vpack.c.b16 %v2584, %v2580
  %v3689 = vpack.c.b16 %v2585, %v2581
  %v3690 = vpack.c.b16 %v2586, %v2582
  %v3691 = vpack.c.b16 %v2587, %v2583
  %v3692 = vpack.c.b16 %v2592, %v2588
  %v3693 = vpack.c.b16 %v2593, %v2589
  %v3694 = vpack.c.b16 %v2594, %v2590
  %v3695 = vpack.c.b16 %v2595, %v2591
  %v3696 = vpack.c.b16 %v2600, %v2596
  %v3697 = vpack.c.b16 %v2601, %v2597
  %v3698 = vpack.c.b16 %v2602, %v2598
  %v3699 = vpack.c.b16 %v2603, %v2599
  %v3700 = vpack.c.b16 %v2608, %v2604
  %v3701 = vpack.c.b16 %v2609, %v2605
  %v3702 = vpack.c.b16 %v2610, %v2606
  %v3703 = vpack.c.b16 %v2611, %v2607
  %v3704 = vpack.c.b16 %v2616, %v2612
  %v3705 = vpack.c.b16 %v2617, %v2613
  %v3706 = vpack.c.b16 %v2618, %v2614
  %v3707 = vpack.c.b16 %v2619, %v2615
  %v3708 = vpack.c.b16 %v2624, %v2620
  %v3709 = vpack.c.b16 %v2625, %v2621
  %v3710 = vpack.c.b16 %v2626, %v2622
  %v3711 = vpack.c.b16 %v2627, %v2623
  %v3712 = vpack.c.b16 %v2632, %v2628
  %v3713 = vpack.c.b16 %v2633, %v2629
  %v3714 = vpack.c.b16 %v2634, %v2630
  %v3715 = vpack.c.b16 %v2635, %v2631
  %v3716 = vpack.c.b16 %v2640, %v2636
  %v3717 = vpack.c.b16 %v2641, %v2637
  %v3718 = vpack.c.b16 %v2642, %v2638
  %v3719 = vpack.c.b16 %v2643, %v2639
  %v3720 = vpack.c.b16 %v2648, %v2644
  %v3721 = vpack.c.b16 %v2649, %v2645
  %v3722 = vpack.c.b16 %v2650, %v2646
  %v3723 = vpack.c.b16 %v2651, %v2647
  %v3724 = vpack.c.b16 %v2656, %v2652
  %v3725 = vpack.c.b16 %v2657, %v2653
  %v3726 = vpack.c.b16 %v2658, %v2654
  %v3727 = vpack.c.b16 %v2659, %v2655
  %v3728 = vpack.c.b16 %v2664, %v2660
  %v3729 = vpack.c.b16 %v2665, %v2661
  %v3730 = vpack.c.b16 %v2666, %v2662
  %v3731 = vpack.c.b16 %v2667, %v2663
  %v3732 = vpack.c.b16 %v2672, %v2668
  %v3733 = vpack.c.b16 %v2673, %v2669
  %v3734 = vpack.c.b16 %v2674, %v2670
  %v3735 = vpack.c.b16 %v2675, %v2671
  %v3736 = vpack.c.b16 %v2680, %v2676
  %v3737 = vpack.c.b16 %v2681, %v2677
  %v3738 = vpack.c.b16 %v2682, %v2678
  %v3739 = vpack.c.b16 %v2683, %v2679
  %v3740 = vpack.c.b16 %v2688, %v2684
  %v3741 = vpack.c.b16 %v2689, %v2685
  %v3742 = vpack.c.b16 %v2690, %v2686
  %v3743 = vpack.c.b16 %v2691, %v2687
  %v3744 = vpack.c.b16 %v2696, %v2692
  %v3745 = vpack.c.b16 %v2697, %v2693
  %v3746 = vpack.c.b16 %v2698, %v2694
  %v3747 = vpack.c.b16 %v2699, %v2695
  %v3748 = vpack.c.b16 %v2704, %v2700
  %v3749 = vpack.c.b16 %v2705, %v2701
  %v3750 = vpack.c.b16 %v2706, %v2702
  %v3751 = vpack.c.b16 %v2707, %v2703
  %v3752 = vpack.c.b16 %v2712, %v2708
  %v3753 = vpack.c.b16 %v2713, %v2709
  %v3754 = vpack.c.b16 %v2714, %v2710
  %v3755 = vpack.c.b16 %v2715, %v2711
  %v3756 = vpack.c.b16 %v2720, %v2716
  %v3757 = vpack.c.b16 %v2721, %v2717
  %v3758 = vpack.c.b16 %v2722, %v2718
  %v3759 = vpack.c.b16 %v2723, %v2719
  %v3760 = vpack.c.b16 %v2728, %v2724
  %v3761 = vpack.c.b16 %v2729, %v2725
  %v3762 = vpack.c.b16 %v2730, %v2726
  %v3763 = vpack.c.b16 %v2731, %v2727
  %v3764 = vpack.c.b16 %v2736, %v2732
  %v3765 = vpack.c.b16 %v2737, %v2733
  %v3766 = vpack.c.b16 %v2738, %v2734
  %v3767 = vpack.c.b16 %v2739, %v2735
  %v3768 = vpack.c.b16 %v2744, %v2740
  %v3769 = vpack.c.b16 %v2745, %v2741
  %v3770 = vpack.c.b16 %v2746, %v2742
  %v3771 = vpack.c.b16 %v2747, %v2743
  %v3772 = vpack.c.b16 %v2752, %v2748
  %v3773 = vpack.c.b16 %v2753, %v2749
  %v3774 = vpack.c.b16 %v2754, %v2750
  %v3775 = vpack.c.b16 %v2755, %v2751
  %v3776 = vpack.c.b16 %v2760, %v2756
  %v3777 = vpack.c.b16 %v2761, %v2757
  %v3778 = vpack.c.b16 %v2762, %v2758
  %v3779 = vpack.c.b16 %v2763, %v2759
  %v3780 = vpack.c.b16 %v2768, %v2764
  %v3781 = vpack.c.b16 %v2769, %v2765
  %v3782 = vpack.c.b16 %v2770, %v2766
  %v3783 = vpack.c.b16 %v2771, %v2767
  %v3784 = vpack.c.b16 %v2776, %v2772
  %v3785 = vpack.c.b16 %v2777, %v2773
  %v3786 = vpack.c.b16 %v2778, %v2774
  %v3787 = vpack.c.b16 %v2779, %v2775
  %v3788 = vpack.c.b16 %v2784, %v2780
  %v3789 = vpack.c.b16 %v2785, %v2781
  %v3790 = vpack.c.b16 %v2786, %v2782
  %v3791 = vpack.c.b16 %v2787, %v2783
  %v3792 = vpack.c.b16 %v2792, %v2788
  %v3793 = vpack.c.b16 %v2793, %v2789
  %v3794 = vpack.c.b16 %v2794, %v2790
  %v3795 = vpack.c.b16 %v2795, %v2791
  %v3796 = vpack.c.b16 %v2800, %v2796
  %v3797 = vpack.c.b16 %v2801, %v2797
  %v3798 = vpack.c.b16 %v2802, %v2798
  %v3799 = vpack.c.b16 %v2803, %v2799
  %v3800 = vpack.c.b16 %v2808, %v2804
  %v3801 = vpack.c.b16 %v2809, %v2805
  %v3802 = vpack.c.b16 %v2810, %v2806
  %v3803 = vpack.c.b16 %v2811, %v2807
  %v3804 = vpack.c.b16 %v2816, %v2812
  %v3805 = vpack.c.b16 %v2817, %v2813
  %v3806 = vpack.c.b16 %v2818, %v2814
  %v3807 = vpack.c.b16 %v2819, %v2815
  %v3808 = vpack.c.b16 %v2824, %v2820
  %v3809 = vpack.c.b16 %v2825, %v2821
  %v3810 = vpack.c.b16 %v2826, %v2822
  %v3811 = vpack.c.b16 %v2827, %v2823
  %v3812 = vpack.c.b16 %v2832, %v2828
  %v3813 = vpack.c.b16 %v2833, %v2829
  %v3814 = vpack.c.b16 %v2834, %v2830
  %v3815 = vpack.c.b16 %v2835, %v2831
  %v3816 = vpack.c.b16 %v2840, %v2836
  %v3817 = vpack.c.b16 %v2841, %v2837
  %v3818 = vpack.c.b16 %v2842, %v2838
  %v3819 = vpack.c.b16 %v2843, %v2839
  %v3820 = vpack.c.b16 %v2848, %v2844
  %v3821 = vpack.c.b16 %v2849, %v2845
  %v3822 = vpack.c.b16 %v2850, %v2846
  %v3823 = vpack.c.b16 %v2851, %v2847
  %v3824 = vpack.c.b16 %v2856, %v2852
  %v3825 = vpack.c.b16 %v2857, %v2853
  %v3826 = vpack.c.b16 %v2858, %v2854
  %v3827 = vpack.c.b16 %v2859, %v2855
  %v3828 = vpack.c.b16 %v2864, %v2860
  %v3829 = vpack.c.b16 %v2865, %v2861
  %v3830 = vpack.c.b16 %v2866, %v2862
  %v3831 = vpack.c.b16 %v2867, %v2863
  %v3832 = vpack.c.b16 %v2872, %v2868
  %v3833 = vpack.c.b16 %v2873, %v2869
  %v3834 = vpack.c.b16 %v2874, %v2870
  %v3835 = vpack.c.b16 %v2875, %v2871
  %v3836 = vpack.c.b16 %v2880, %v2876
  %v3837 = vpack.c.b16 %v2881, %v2877
  %v3838 = vpack.c.b16 %v2882, %v2878
  %v3839 = vpack.c.b16 %v2883, %v2879
  %v3840 = vpack.c.b16 %v2888, %v2884
  %v3841 = vpack.c.b16 %v2889, %v2885
  %v3842 = vpack.c.b16 %v2890, %v2886
  %v3843 = vpack.c.b16 %v2891, %v2887
  %v3844 = vpack.c.b16 %v2896, %v2892
  %v3845 = vpack.c.b16 %v2897, %v2893
  %v3846 = vpack.c.b16 %v2898, %v2894
  %v3847 = vpack.c.b16 %v2899, %v2895
  %v3848 = vpack.c.b16 %v2904, %v2900
  %v3849 = vpack.c.b16 %v2905, %v2901
  %v3850 = vpack.c.b16 %v2906, %v2902
  %v3851 = vpack.c.b16 %v2907, %v2903
  %v3852 = vpack.c.b16 %v2912, %v2908
  %v3853 = vpack.c.b16 %v2913, %v2909
  %v3854 = vpack.c.b16 %v2914, %v2910
  %v3855 = vpack.c.b16 %v2915, %v2911
  %v3856 = vpack.c.b16 %v2920, %v2916
  %v3857 = vpack.c.b16 %v2921, %v2917
  %v3858 = vpack.c.b16 %v2922, %v2918
  %v3859 = vpack.c.b16 %v2923, %v2919
  %v3860 = vpack.c.b16 %v2928, %v2924
  %v3861 = vpack.c.b16 %v2929, %v2925
  %v3862 = vpack.c.b16 %v2930, %v2926
  %v3863 = vpack.c.b16 %v2931, %v2927
  %v3864 = vpack.c.b16 %v2936, %v2932
  %v3865 = vpack.c.b16 %v2937, %v2933
  %v3866 = vpack.c.b16 %v2938, %v2934
  %v3867 = vpack.c.b16 %v2939, %v2935
  %v3868 = vpack.c.b16 %v2944, %v2940
  %v3869 = vpack.c.b16 %v2945, %v2941
  %v3870 = vpack.c.b16 %v2946, %v2942
  %v3871 = vpack.c.b16 %v2947, %v2943
  %v3872 = vpack.c.b16 %v2952, %v2948
  %v3873 = vpack.c.b16 %v2953, %v2949
  %v3874 = vpack.c.b16 %v2954, %v2950
  %v3875 = vpack.c.b16 %v2955, %v2951
  %v3876 = vpack.c.b16 %v2960, %v2956
  %v3877 = vpack.c.b16 %v2961, %v2957
  %v3878 = vpack.c.b16 %v2962, %v2958
  %v3879 = vpack.c.b16 %v2963, %v2959
  %v3880 = vpack.c.b16 %v2968, %v2964
  %v3881 = vpack.c.b16 %v2969, %v2965
  %v3882 = vpack.c.b16 %v2970, %v2966
  %v3883 = vpack.c.b16 %v2971, %v2967
  %v3884 = vpack.c.b16 %v2976, %v2972
  %v3885 = vpack.c.b16 %v2977, %v2973
  %v3886 = vpack.c.b16 %v2978, %v2974
  %v3887 = vpack.c.b16 %v2979, %v2975
  %v3888 = vpack.c.b16 %v2984, %v2980
  %v3889 = vpack.c.b16 %v2985, %v2981
  %v3890 = vpack.c.b16 %v2986, %v2982
  %v3891 = vpack.c.b16 %v2987, %v2983
  %v3892 = vpack.c.b16 %v2992, %v2988
  %v3893 = vpack.c.b16 %v2993, %v2989
  %v3894 = vpack.c.b16 %v2994, %v2990
  %v3895 = vpack.c.b16 %v2995, %v2991
  %v3896 = vpack.c.b16 %v3000, %v2996
  %v3897 = vpack.c.b16 %v3001, %v2997
  %v3898 = vpack.c.b16 %v3002, %v2998
  %v3899 = vpack.c.b16 %v3003, %v2999
  %v3900 = vpack.c.b16 %v3008, %v3004
  %v3901 = vpack.c.b16 %v3009, %v3005
  %v3902 = vpack.c.b16 %v3010, %v3006
  %v3903 = vpack.c.b16 %v3011, %v3007
  %v3904 = vpack.c.b16 %v3016, %v3012
  %v3905 = vpack.c.b16 %v3017, %v3013
  %v3906 = vpack.c.b16 %v3018, %v3014
  %v3907 = vpack.c.b16 %v3019, %v3015
  %v3908 = vpack.c.b16 %v3024, %v3020
  %v3909 = vpack.c.b16 %v3025, %v3021
  %v3910 = vpack.c.b16 %v3026, %v3022
  %v3911 = vpack.c.b16 %v3027, %v3023
  %v3912 = vpack.c.b16 %v3032, %v3028
  %v3913 = vpack.c.b16 %v3033, %v3029
  %v3914 = vpack.c.b16 %v3034, %v3030
  %v3915 = vpack.c.b16 %v3035, %v3031
  %v3916 = vpack.c.b16 %v3040, %v3036
  %v3917 = vpack.c.b16 %v3041, %v3037
  %v3918 = vpack.c.b16 %v3042, %v3038
  %v3919 = vpack.c.b16 %v3043, %v3039
  %v3920 = vpack.c.b16 %v3048, %v3044
  %v3921 = vpack.c.b16 %v3049, %v3045
  %v3922 = vpack.c.b16 %v3050, %v3046
  %v3923 = vpack.c.b16 %v3051, %v3047
  %v3924 = vpack.c.b16 %v3056, %v3052
  %v3925 = vpack.c.b16 %v3057, %v3053
  %v3926 = vpack.c.b16 %v3058, %v3054
  %v3927 = vpack.c.b16 %v3059, %v3055
  %v3928 = vpack.c.b16 %v3064, %v3060
  %v3929 = vpack.c.b16 %v3065, %v3061
  %v3930 = vpack.c.b16 %v3066, %v3062
  %v3931 = vpack.c.b16 %v3067, %v3063
  %v3932 = vpack.c.b16 %v3072, %v3068
  %v3933 = vpack.c.b16 %v3073, %v3069
  %v3934 = vpack.c.b16 %v3074, %v3070
  %v3935 = vpack.c.b16 %v3075, %v3071
  %v3936 = vpack.c.b16 %v3080, %v3076
  %v3937 = vpack.c.b16 %v3081, %v3077
  %v3938 = vpack.c.b16 %v3082, %v3078
  %v3939 = vpack.c.b16 %v3083, %v3079
  %v3940 = vpack.c.b16 %v3088, %v3084
  %v3941 = vpack.c.b16 %v3089, %v3085
  %v3942 = vpack.c.b16 %v3090, %v3086
  %v3943 = vpack.c.b16 %v3091, %v3087
  %v3944 = vpack.c.b16 %v3096, %v3092
  %v3945 = vpack.c.b16 %v3097, %v3093
  %v3946 = vpack.c.b16 %v3098, %v3094
  %v3947 = vpack.c.b16 %v3099, %v3095
  %v3948 = vpack.c.b16 %v3104, %v3100
  %v3949 = vpack.c.b16 %v3105, %v3101
  %v3950 = vpack.c.b16 %v3106, %v3102
  %v3951 = vpack.c.b16 %v3107, %v3103
  %v3952 = vpack.c.b16 %v3112, %v3108
  %v3953 = vpack.c.b16 %v3113, %v3109
  %v3954 = vpack.c.b16 %v3114, %v3110
  %v3955 = vpack.c.b16 %v3115, %v3111
  %v3956 = vpack.c.b16 %v3120, %v3116
  %v3957 = vpack.c.b16 %v3121, %v3117
  %v3958 = vpack.c.b16 %v3122, %v3118
  %v3959 = vpack.c.b16 %v3123, %v3119
  %v3960 = vpack.c.b16 %v3128, %v3124
  %v3961 = vpack.c.b16 %v3129, %v3125
  %v3962 = vpack.c.b16 %v3130, %v3126
  %v3963 = vpack.c.b16 %v3131, %v3127
  %v3964 = vpack.c.b16 %v3136, %v3132
  %v3965 = vpack.c.b16 %v3137, %v3133
  %v3966 = vpack.c.b16 %v3138, %v3134
  %v3967 = vpack.c.b16 %v3139, %v3135
  %v3968 = vpack.c.b16 %v3144, %v3140
  %v3969 = vpack.c.b16 %v3145, %v3141
  %v3970 = vpack.c.b16 %v3146, %v3142
  %v3971 = vpack.c.b16 %v3147, %v3143
  %v3972 = vpack.c.b16 %v3152, %v3148
  %v3973 = vpack.c.b16 %v3153, %v3149
  %v3974 = vpack.c.b16 %v3154, %v3150
  %v3975 = vpack.c.b16 %v3155, %v3151
  %v3976 = vpack.c.b16 %v3160, %v3156
  %v3977 = vpack.c.b16 %v3161, %v3157
  %v3978 = vpack.c.b16 %v3162, %v3158
  %v3979 = vpack.c.b16 %v3163, %v3159
  %v3980 = vpack.c.b16 %v3168, %v3164
  %v3981 = vpack.c.b16 %v3169, %v3165
  %v3982 = vpack.c.b16 %v3170, %v3166
  %v3983 = vpack.c.b16 %v3171, %v3167
  %v3984 = vpack.c.b16 %v3176, %v3172
  %v3985 = vpack.c.b16 %v3177, %v3173
  %v3986 = vpack.c.b16 %v3178, %v3174
  %v3987 = vpack.c.b16 %v3179, %v3175
  %v3988 = vpack.c.b16 %v3184, %v3180
  %v3989 = vpack.c.b16 %v3185, %v3181
  %v3990 = vpack.c.b16 %v3186, %v3182
  %v3991 = vpack.c.b16 %v3187, %v3183
  %v3992 = vpack.c.b16 %v3192, %v3188
  %v3993 = vpack.c.b16 %v3193, %v3189
  %v3994 = vpack.c.b16 %v3194, %v3190
  %v3995 = vpack.c.b16 %v3195, %v3191
  %v3996 = vpack.c.b16 %v3200, %v3196
  %v3997 = vpack.c.b16 %v3201, %v3197
  %v3998 = vpack.c.b16 %v3202, %v3198
  %v3999 = vpack.c.b16 %v3203, %v3199
  %v4000 = vpack.c.b16 %v3208, %v3204
  %v4001 = vpack.c.b16 %v3209, %v3205
  %v4002 = vpack.c.b16 %v3210, %v3206
  %v4003 = vpack.c.b16 %v3211, %v3207
  %v4004 = vpack.c.b16 %v3216, %v3212
  %v4005 = vpack.c.b16 %v3217, %v3213
  %v4006 = vpack.c.b16 %v3218, %v3214
  %v4007 = vpack.c.b16 %v3219, %v3215
  %v4008 = vpack.c.b16 %v3224, %v3220
  %v4009 = vpack.c.b16 %v3225, %v3221
  %v4010 = vpack.c.b16 %v3226, %v3222
  %v4011 = vpack.c.b16 %v3227, %v3223
  %vm4796 = vcmask 523264
  %v4797 = vsel %vm4796, %v851, 0
  %4799 = vmatpush.bf16.msra.mxu0 %v3256
  %4800 = vmatpush.bf16.msra.mxu0 %v3252
  %4801 = vmatpush.bf16.msra.mxu0 %v3248
  %4802 = vmatpush.bf16.msra.mxu0 %v3244
  %4803 = vmatpush.bf16.msra.mxu0 %v3240
  %4804 = vmatpush.bf16.msra.mxu0 %v3236
  %4805 = vmatpush.bf16.msra.mxu0 %v3232
  %4806 = vmatpush.bf16.msra.mxu0 %v3228
  %4807 = vmatmul.bf16.gmra.mxu0 %v821
  %v4808 = vpop.f32.mrf.mxu0
  %v4809 = vadd.f32 %v811, %v4808
  %v4810 = vpop.f32.mrf.mxu0
  %4811 = vdwg.mxu0
  %4812 = vmatpush.bf16.msra.mxu0 %v3288
  %4813 = vmatpush.bf16.msra.mxu0 %v3284
  %4814 = vmatpush.bf16.msra.mxu0 %v3280
  %4815 = vmatpush.bf16.msra.mxu0 %v3276
  %4816 = vmatpush.bf16.msra.mxu0 %v3272
  %4817 = vmatpush.bf16.msra.mxu0 %v3268
  %4818 = vmatpush.bf16.msra.mxu0 %v3264
  %4819 = vmatpush.bf16.msra.mxu0 %v3260
  %4820 = vmatmul.bf16.gmra.mxu0 %v822
  %v4821 = vpop.f32.mrf.mxu0
  %v4822 = vadd.f32 %v4809, %v4821
  %v4823 = vpop.f32.mrf.mxu0
  %4824 = vdwg.mxu0
  %4825 = vmatpush.bf16.msra.mxu0 %v3320
  %4826 = vmatpush.bf16.msra.mxu0 %v3316
  %4827 = vmatpush.bf16.msra.mxu0 %v3312
  %4828 = vmatpush.bf16.msra.mxu0 %v3308
  %4829 = vmatpush.bf16.msra.mxu0 %v3304
  %4830 = vmatpush.bf16.msra.mxu0 %v3300
  %4831 = vmatpush.bf16.msra.mxu0 %v3296
  %4832 = vmatpush.bf16.msra.mxu0 %v3292
  %4833 = vmatmul.bf16.gmra.mxu0 %v823
  %v4834 = vpop.f32.mrf.mxu0
  %v4835 = vadd.f32 %v4822, %v4834
  %v4836 = vpop.f32.mrf.mxu0
  %4837 = vdwg.mxu0
  %4838 = vmatpush.bf16.msra.mxu0 %v3352
  %4839 = vmatpush.bf16.msra.mxu0 %v3348
  %4840 = vmatpush.bf16.msra.mxu0 %v3344
  %4841 = vmatpush.bf16.msra.mxu0 %v3340
  %4842 = vmatpush.bf16.msra.mxu0 %v3336
  %4843 = vmatpush.bf16.msra.mxu0 %v3332
  %4844 = vmatpush.bf16.msra.mxu0 %v3328
  %4845 = vmatpush.bf16.msra.mxu0 %v3324
  %4846 = vmatmul.bf16.gmra.mxu0 %v824
  %v4847 = vpop.f32.mrf.mxu0
  %v4848 = vadd.f32 %v4835, %v4847
  %v4849 = vpop.f32.mrf.mxu0
  %4850 = vdwg.mxu0
  %4851 = vmatpush.bf16.msra.mxu0 %v3384
  %4852 = vmatpush.bf16.msra.mxu0 %v3380
  %4853 = vmatpush.bf16.msra.mxu0 %v3376
  %4854 = vmatpush.bf16.msra.mxu0 %v3372
  %4855 = vmatpush.bf16.msra.mxu0 %v3368
  %4856 = vmatpush.bf16.msra.mxu0 %v3364
  %4857 = vmatpush.bf16.msra.mxu0 %v3360
  %4858 = vmatpush.bf16.msra.mxu0 %v3356
  %4859 = vmatmul.bf16.gmra.mxu0 %v825
  %v4860 = vpop.f32.mrf.mxu0
  %v4861 = vadd.f32 %v4848, %v4860
  %v4862 = vpop.f32.mrf.mxu0
  %4863 = vdwg.mxu0
  %4864 = vmatpush.bf16.msra.mxu0 %v3416
  %4865 = vmatpush.bf16.msra.mxu0 %v3412
  %4866 = vmatpush.bf16.msra.mxu0 %v3408
  %4867 = vmatpush.bf16.msra.mxu0 %v3404
  %4868 = vmatpush.bf16.msra.mxu0 %v3400
  %4869 = vmatpush.bf16.msra.mxu0 %v3396
  %4870 = vmatpush.bf16.msra.mxu0 %v3392
  %4871 = vmatpush.bf16.msra.mxu0 %v3388
  %4872 = vmatmul.bf16.gmra.mxu0 %v826
  %v4873 = vpop.f32.mrf.mxu0
  %v4874 = vadd.f32 %v4861, %v4873
  %v4875 = vpop.f32.mrf.mxu0
  %4876 = vdwg.mxu0
  %4877 = vmatpush.bf16.msra.mxu0 %v3448
  %4878 = vmatpush.bf16.msra.mxu0 %v3444
  %4879 = vmatpush.bf16.msra.mxu0 %v3440
  %4880 = vmatpush.bf16.msra.mxu0 %v3436
  %4881 = vmatpush.bf16.msra.mxu0 %v3432
  %4882 = vmatpush.bf16.msra.mxu0 %v3428
  %4883 = vmatpush.bf16.msra.mxu0 %v3424
  %4884 = vmatpush.bf16.msra.mxu0 %v3420
  %4885 = vmatmul.bf16.gmra.mxu0 %v827
  %v4886 = vpop.f32.mrf.mxu0
  %v4887 = vadd.f32 %v4874, %v4886
  %v4888 = vpop.f32.mrf.mxu0
  %4889 = vdwg.mxu0
  %4890 = vmatpush.bf16.msra.mxu0 %v3480
  %4891 = vmatpush.bf16.msra.mxu0 %v3476
  %4892 = vmatpush.bf16.msra.mxu0 %v3472
  %4893 = vmatpush.bf16.msra.mxu0 %v3468
  %4894 = vmatpush.bf16.msra.mxu0 %v3464
  %4895 = vmatpush.bf16.msra.mxu0 %v3460
  %4896 = vmatpush.bf16.msra.mxu0 %v3456
  %4897 = vmatpush.bf16.msra.mxu0 %v3452
  %4898 = vmatmul.bf16.gmra.mxu0 %v828
  %v4899 = vpop.f32.mrf.mxu0
  %v4900 = vadd.f32 %v4887, %v4899
  %v4901 = vpop.f32.mrf.mxu0
  %4902 = vdwg.mxu0
  %4903 = vmatpush.bf16.msra.mxu0 %v3512
  %4904 = vmatpush.bf16.msra.mxu0 %v3508
  %4905 = vmatpush.bf16.msra.mxu0 %v3504
  %4906 = vmatpush.bf16.msra.mxu0 %v3500
  %4907 = vmatpush.bf16.msra.mxu0 %v3496
  %4908 = vmatpush.bf16.msra.mxu0 %v3492
  %4909 = vmatpush.bf16.msra.mxu0 %v3488
  %4910 = vmatpush.bf16.msra.mxu0 %v3484
  %4911 = vmatmul.bf16.gmra.mxu0 %v831
  %v4912 = vpop.f32.mrf.mxu0
  %v4913 = vadd.f32 %v4900, %v4912
  %v4914 = vpop.f32.mrf.mxu0
  %4915 = vdwg.mxu0
  %4916 = vmatpush.bf16.msra.mxu0 %v3544
  %4917 = vmatpush.bf16.msra.mxu0 %v3540
  %4918 = vmatpush.bf16.msra.mxu0 %v3536
  %4919 = vmatpush.bf16.msra.mxu0 %v3532
  %4920 = vmatpush.bf16.msra.mxu0 %v3528
  %4921 = vmatpush.bf16.msra.mxu0 %v3524
  %4922 = vmatpush.bf16.msra.mxu0 %v3520
  %4923 = vmatpush.bf16.msra.mxu0 %v3516
  %4924 = vmatmul.bf16.gmra.mxu0 %v832
  %v4925 = vpop.f32.mrf.mxu0
  %v4926 = vadd.f32 %v4913, %v4925
  %v4927 = vpop.f32.mrf.mxu0
  %4928 = vdwg.mxu0
  %4929 = vmatpush.bf16.msra.mxu0 %v3576
  %4930 = vmatpush.bf16.msra.mxu0 %v3572
  %4931 = vmatpush.bf16.msra.mxu0 %v3568
  %4932 = vmatpush.bf16.msra.mxu0 %v3564
  %4933 = vmatpush.bf16.msra.mxu0 %v3560
  %4934 = vmatpush.bf16.msra.mxu0 %v3556
  %4935 = vmatpush.bf16.msra.mxu0 %v3552
  %4936 = vmatpush.bf16.msra.mxu0 %v3548
  %4937 = vmatmul.bf16.gmra.mxu0 %v833
  %v4938 = vpop.f32.mrf.mxu0
  %v4939 = vadd.f32 %v4926, %v4938
  %v4940 = vpop.f32.mrf.mxu0
  %4941 = vdwg.mxu0
  %4942 = vmatpush.bf16.msra.mxu0 %v3608
  %4943 = vmatpush.bf16.msra.mxu0 %v3604
  %4944 = vmatpush.bf16.msra.mxu0 %v3600
  %4945 = vmatpush.bf16.msra.mxu0 %v3596
  %4946 = vmatpush.bf16.msra.mxu0 %v3592
  %4947 = vmatpush.bf16.msra.mxu0 %v3588
  %4948 = vmatpush.bf16.msra.mxu0 %v3584
  %4949 = vmatpush.bf16.msra.mxu0 %v3580
  %4950 = vmatmul.bf16.gmra.mxu0 %v834
  %v4951 = vpop.f32.mrf.mxu0
  %v4952 = vadd.f32 %v4939, %v4951
  %v4953 = vpop.f32.mrf.mxu0
  %4954 = vdwg.mxu0
  %4955 = vmatpush.bf16.msra.mxu0 %v3640
  %4956 = vmatpush.bf16.msra.mxu0 %v3636
  %4957 = vmatpush.bf16.msra.mxu0 %v3632
  %4958 = vmatpush.bf16.msra.mxu0 %v3628
  %4959 = vmatpush.bf16.msra.mxu0 %v3624
  %4960 = vmatpush.bf16.msra.mxu0 %v3620
  %4961 = vmatpush.bf16.msra.mxu0 %v3616
  %4962 = vmatpush.bf16.msra.mxu0 %v3612
  %4963 = vmatmul.bf16.gmra.mxu0 %v835
  %v4964 = vpop.f32.mrf.mxu0
  %v4965 = vadd.f32 %v4952, %v4964
  %v4966 = vpop.f32.mrf.mxu0
  %4967 = vdwg.mxu0
  %4968 = vmatpush.bf16.msra.mxu0 %v3672
  %4969 = vmatpush.bf16.msra.mxu0 %v3668
  %4970 = vmatpush.bf16.msra.mxu0 %v3664
  %4971 = vmatpush.bf16.msra.mxu0 %v3660
  %4972 = vmatpush.bf16.msra.mxu0 %v3656
  %4973 = vmatpush.bf16.msra.mxu0 %v3652
  %4974 = vmatpush.bf16.msra.mxu0 %v3648
  %4975 = vmatpush.bf16.msra.mxu0 %v3644
  %4976 = vmatmul.bf16.gmra.mxu0 %v836
  %v4977 = vpop.f32.mrf.mxu0
  %v4978 = vadd.f32 %v4965, %v4977
  %v4979 = vpop.f32.mrf.mxu0
  %4980 = vdwg.mxu0
  %4981 = vmatpush.bf16.msra.mxu0 %v3704
  %4982 = vmatpush.bf16.msra.mxu0 %v3700
  %4983 = vmatpush.bf16.msra.mxu0 %v3696
  %4984 = vmatpush.bf16.msra.mxu0 %v3692
  %4985 = vmatpush.bf16.msra.mxu0 %v3688
  %4986 = vmatpush.bf16.msra.mxu0 %v3684
  %4987 = vmatpush.bf16.msra.mxu0 %v3680
  %4988 = vmatpush.bf16.msra.mxu0 %v3676
  %4989 = vmatmul.bf16.gmra.mxu0 %v837
  %v4990 = vpop.f32.mrf.mxu0
  %v4991 = vadd.f32 %v4978, %v4990
  %v4992 = vpop.f32.mrf.mxu0
  %4993 = vdwg.mxu0
  %4994 = vmatpush.bf16.msra.mxu0 %v3736
  %4995 = vmatpush.bf16.msra.mxu0 %v3732
  %4996 = vmatpush.bf16.msra.mxu0 %v3728
  %4997 = vmatpush.bf16.msra.mxu0 %v3724
  %4998 = vmatpush.bf16.msra.mxu0 %v3720
  %4999 = vmatpush.bf16.msra.mxu0 %v3716
  %5000 = vmatpush.bf16.msra.mxu0 %v3712
  %5001 = vmatpush.bf16.msra.mxu0 %v3708
  %5002 = vmatmul.bf16.gmra.mxu0 %v838
  %v5003 = vpop.f32.mrf.mxu0
  %v5004 = vadd.f32 %v4991, %v5003
  %v5005 = vpop.f32.mrf.mxu0
  %5006 = vdwg.mxu0
  %5007 = vmatpush.bf16.msra.mxu0 %v3768
  %5008 = vmatpush.bf16.msra.mxu0 %v3764
  %5009 = vmatpush.bf16.msra.mxu0 %v3760
  %5010 = vmatpush.bf16.msra.mxu0 %v3756
  %5011 = vmatpush.bf16.msra.mxu0 %v3752
  %5012 = vmatpush.bf16.msra.mxu0 %v3748
  %5013 = vmatpush.bf16.msra.mxu0 %v3744
  %5014 = vmatpush.bf16.msra.mxu0 %v3740
  %5015 = vmatmul.bf16.gmra.mxu0 %v841
  %v5016 = vpop.f32.mrf.mxu0
  %v5017 = vadd.f32 %v5004, %v5016
  %v5018 = vpop.f32.mrf.mxu0
  %5019 = vdwg.mxu0
  %5020 = vmatpush.bf16.msra.mxu0 %v3800
  %5021 = vmatpush.bf16.msra.mxu0 %v3796
  %5022 = vmatpush.bf16.msra.mxu0 %v3792
  %5023 = vmatpush.bf16.msra.mxu0 %v3788
  %5024 = vmatpush.bf16.msra.mxu0 %v3784
  %5025 = vmatpush.bf16.msra.mxu0 %v3780
  %5026 = vmatpush.bf16.msra.mxu0 %v3776
  %5027 = vmatpush.bf16.msra.mxu0 %v3772
  %5028 = vmatmul.bf16.gmra.mxu0 %v842
  %v5029 = vpop.f32.mrf.mxu0
  %v5030 = vadd.f32 %v5017, %v5029
  %v5031 = vpop.f32.mrf.mxu0
  %5032 = vdwg.mxu0
  %5033 = vmatpush.bf16.msra.mxu0 %v3832
  %5034 = vmatpush.bf16.msra.mxu0 %v3828
  %5035 = vmatpush.bf16.msra.mxu0 %v3824
  %5036 = vmatpush.bf16.msra.mxu0 %v3820
  %5037 = vmatpush.bf16.msra.mxu0 %v3816
  %5038 = vmatpush.bf16.msra.mxu0 %v3812
  %5039 = vmatpush.bf16.msra.mxu0 %v3808
  %5040 = vmatpush.bf16.msra.mxu0 %v3804
  %5041 = vmatmul.bf16.gmra.mxu0 %v843
  %v5042 = vpop.f32.mrf.mxu0
  %v5043 = vadd.f32 %v5030, %v5042
  %v5044 = vpop.f32.mrf.mxu0
  %5045 = vdwg.mxu0
  %5046 = vmatpush.bf16.msra.mxu0 %v3864
  %5047 = vmatpush.bf16.msra.mxu0 %v3860
  %5048 = vmatpush.bf16.msra.mxu0 %v3856
  %5049 = vmatpush.bf16.msra.mxu0 %v3852
  %5050 = vmatpush.bf16.msra.mxu0 %v3848
  %5051 = vmatpush.bf16.msra.mxu0 %v3844
  %5052 = vmatpush.bf16.msra.mxu0 %v3840
  %5053 = vmatpush.bf16.msra.mxu0 %v3836
  %5054 = vmatmul.bf16.gmra.mxu0 %v844
  %v5055 = vpop.f32.mrf.mxu0
  %v5056 = vadd.f32 %v5043, %v5055
  %v5057 = vpop.f32.mrf.mxu0
  %5058 = vdwg.mxu0
  %5059 = vmatpush.bf16.msra.mxu0 %v3896
  %5060 = vmatpush.bf16.msra.mxu0 %v3892
  %5061 = vmatpush.bf16.msra.mxu0 %v3888
  %5062 = vmatpush.bf16.msra.mxu0 %v3884
  %5063 = vmatpush.bf16.msra.mxu0 %v3880
  %5064 = vmatpush.bf16.msra.mxu0 %v3876
  %5065 = vmatpush.bf16.msra.mxu0 %v3872
  %5066 = vmatpush.bf16.msra.mxu0 %v3868
  %5067 = vmatmul.bf16.gmra.mxu0 %v845
  %v5068 = vpop.f32.mrf.mxu0
  %v5069 = vadd.f32 %v5056, %v5068
  %v5070 = vpop.f32.mrf.mxu0
  %5071 = vdwg.mxu0
  %5072 = vmatpush.bf16.msra.mxu0 %v3928
  %5073 = vmatpush.bf16.msra.mxu0 %v3924
  %5074 = vmatpush.bf16.msra.mxu0 %v3920
  %5075 = vmatpush.bf16.msra.mxu0 %v3916
  %5076 = vmatpush.bf16.msra.mxu0 %v3912
  %5077 = vmatpush.bf16.msra.mxu0 %v3908
  %5078 = vmatpush.bf16.msra.mxu0 %v3904
  %5079 = vmatpush.bf16.msra.mxu0 %v3900
  %5080 = vmatmul.bf16.gmra.mxu0 %v846
  %v5081 = vpop.f32.mrf.mxu0
  %v5082 = vadd.f32 %v5069, %v5081
  %v5083 = vpop.f32.mrf.mxu0
  %5084 = vdwg.mxu0
  %5085 = vmatpush.bf16.msra.mxu0 %v3960
  %5086 = vmatpush.bf16.msra.mxu0 %v3956
  %5087 = vmatpush.bf16.msra.mxu0 %v3952
  %5088 = vmatpush.bf16.msra.mxu0 %v3948
  %5089 = vmatpush.bf16.msra.mxu0 %v3944
  %5090 = vmatpush.bf16.msra.mxu0 %v3940
  %5091 = vmatpush.bf16.msra.mxu0 %v3936
  %5092 = vmatpush.bf16.msra.mxu0 %v3932
  %5093 = vmatmul.bf16.gmra.mxu0 %v847
  %v5094 = vpop.f32.mrf.mxu0
  %v5095 = vadd.f32 %v5082, %v5094
  %v5096 = vpop.f32.mrf.mxu0
  %5097 = vdwg.mxu0
  %5098 = vmatpush.bf16.msra.mxu0 %v3992
  %5099 = vmatpush.bf16.msra.mxu0 %v3988
  %5100 = vmatpush.bf16.msra.mxu0 %v3984
  %5101 = vmatpush.bf16.msra.mxu0 %v3980
  %5102 = vmatpush.bf16.msra.mxu0 %v3976
  %5103 = vmatpush.bf16.msra.mxu0 %v3972
  %5104 = vmatpush.bf16.msra.mxu0 %v3968
  %5105 = vmatpush.bf16.msra.mxu0 %v3964
  %5106 = vmatmul.bf16.gmra.mxu0 %v848
  %v5107 = vpop.f32.mrf.mxu0
  %v5108 = vadd.f32 %v5095, %v5107
  %v5109 = vpop.f32.mrf.mxu0
  %5110 = vdwg.mxu0
  %5111 = vmatpush.bf16.msra.mxu0 0
  %5112 = vmatpush.bf16.msra.mxu0 0
  %5113 = vmatpush.bf16.msra.mxu0 0
  %5114 = vmatpush.bf16.msra.mxu0 0
  %5115 = vmatpush.bf16.msra.mxu0 %v4008
  %5116 = vmatpush.bf16.msra.mxu0 %v4004
  %5117 = vmatpush.bf16.msra.mxu0 %v4000
  %5118 = vmatpush.bf16.msra.mxu0 %v3996
  %5119 = vmatmul.bf16.gmra.mxu0 %v4797
  %v5120 = vpop.f32.mrf.mxu0
  %v5121 = vadd.f32 %v5108, %v5120
  %v5122 = vpop.f32.mrf.mxu0
  %5123 = vdwg.mxu0
  %5124 = vmatpush.bf16.msra.mxu0 %v3257
  %5125 = vmatpush.bf16.msra.mxu0 %v3253
  %5126 = vmatpush.bf16.msra.mxu0 %v3249
  %5127 = vmatpush.bf16.msra.mxu0 %v3245
  %5128 = vmatpush.bf16.msra.mxu0 %v3241
  %5129 = vmatpush.bf16.msra.mxu0 %v3237
  %5130 = vmatpush.bf16.msra.mxu0 %v3233
  %5131 = vmatpush.bf16.msra.mxu0 %v3229
  %5132 = vmatmul.bf16.gmra.mxu0 %v821
  %v5133 = vpop.f32.mrf.mxu0
  %v5134 = vadd.f32 %v812, %v5133
  %v5135 = vpop.f32.mrf.mxu0
  %5136 = vdwg.mxu0
  %5137 = vmatpush.bf16.msra.mxu0 %v3289
  %5138 = vmatpush.bf16.msra.mxu0 %v3285
  %5139 = vmatpush.bf16.msra.mxu0 %v3281
  %5140 = vmatpush.bf16.msra.mxu0 %v3277
  %5141 = vmatpush.bf16.msra.mxu0 %v3273
  %5142 = vmatpush.bf16.msra.mxu0 %v3269
  %5143 = vmatpush.bf16.msra.mxu0 %v3265
  %5144 = vmatpush.bf16.msra.mxu0 %v3261
  %5145 = vmatmul.bf16.gmra.mxu0 %v822
  %v5146 = vpop.f32.mrf.mxu0
  %v5147 = vadd.f32 %v5134, %v5146
  %v5148 = vpop.f32.mrf.mxu0
  %5149 = vdwg.mxu0
  %5150 = vmatpush.bf16.msra.mxu0 %v3321
  %5151 = vmatpush.bf16.msra.mxu0 %v3317
  %5152 = vmatpush.bf16.msra.mxu0 %v3313
  %5153 = vmatpush.bf16.msra.mxu0 %v3309
  %5154 = vmatpush.bf16.msra.mxu0 %v3305
  %5155 = vmatpush.bf16.msra.mxu0 %v3301
  %5156 = vmatpush.bf16.msra.mxu0 %v3297
  %5157 = vmatpush.bf16.msra.mxu0 %v3293
  %5158 = vmatmul.bf16.gmra.mxu0 %v823
  %v5159 = vpop.f32.mrf.mxu0
  %v5160 = vadd.f32 %v5147, %v5159
  %v5161 = vpop.f32.mrf.mxu0
  %5162 = vdwg.mxu0
  %5163 = vmatpush.bf16.msra.mxu0 %v3353
  %5164 = vmatpush.bf16.msra.mxu0 %v3349
  %5165 = vmatpush.bf16.msra.mxu0 %v3345
  %5166 = vmatpush.bf16.msra.mxu0 %v3341
  %5167 = vmatpush.bf16.msra.mxu0 %v3337
  %5168 = vmatpush.bf16.msra.mxu0 %v3333
  %5169 = vmatpush.bf16.msra.mxu0 %v3329
  %5170 = vmatpush.bf16.msra.mxu0 %v3325
  %5171 = vmatmul.bf16.gmra.mxu0 %v824
  %v5172 = vpop.f32.mrf.mxu0
  %v5173 = vadd.f32 %v5160, %v5172
  %v5174 = vpop.f32.mrf.mxu0
  %5175 = vdwg.mxu0
  %5176 = vmatpush.bf16.msra.mxu0 %v3385
  %5177 = vmatpush.bf16.msra.mxu0 %v3381
  %5178 = vmatpush.bf16.msra.mxu0 %v3377
  %5179 = vmatpush.bf16.msra.mxu0 %v3373
  %5180 = vmatpush.bf16.msra.mxu0 %v3369
  %5181 = vmatpush.bf16.msra.mxu0 %v3365
  %5182 = vmatpush.bf16.msra.mxu0 %v3361
  %5183 = vmatpush.bf16.msra.mxu0 %v3357
  %5184 = vmatmul.bf16.gmra.mxu0 %v825
  %v5185 = vpop.f32.mrf.mxu0
  %v5186 = vadd.f32 %v5173, %v5185
  %v5187 = vpop.f32.mrf.mxu0
  %5188 = vdwg.mxu0
  %5189 = vmatpush.bf16.msra.mxu0 %v3417
  %5190 = vmatpush.bf16.msra.mxu0 %v3413
  %5191 = vmatpush.bf16.msra.mxu0 %v3409
  %5192 = vmatpush.bf16.msra.mxu0 %v3405
  %5193 = vmatpush.bf16.msra.mxu0 %v3401
  %5194 = vmatpush.bf16.msra.mxu0 %v3397
  %5195 = vmatpush.bf16.msra.mxu0 %v3393
  %5196 = vmatpush.bf16.msra.mxu0 %v3389
  %5197 = vmatmul.bf16.gmra.mxu0 %v826
  %v5198 = vpop.f32.mrf.mxu0
  %v5199 = vadd.f32 %v5186, %v5198
  %v5200 = vpop.f32.mrf.mxu0
  %5201 = vdwg.mxu0
  %5202 = vmatpush.bf16.msra.mxu0 %v3449
  %5203 = vmatpush.bf16.msra.mxu0 %v3445
  %5204 = vmatpush.bf16.msra.mxu0 %v3441
  %5205 = vmatpush.bf16.msra.mxu0 %v3437
  %5206 = vmatpush.bf16.msra.mxu0 %v3433
  %5207 = vmatpush.bf16.msra.mxu0 %v3429
  %5208 = vmatpush.bf16.msra.mxu0 %v3425
  %5209 = vmatpush.bf16.msra.mxu0 %v3421
  %5210 = vmatmul.bf16.gmra.mxu0 %v827
  %v5211 = vpop.f32.mrf.mxu0
  %v5212 = vadd.f32 %v5199, %v5211
  %v5213 = vpop.f32.mrf.mxu0
  %5214 = vdwg.mxu0
  %5215 = vmatpush.bf16.msra.mxu0 %v3481
  %5216 = vmatpush.bf16.msra.mxu0 %v3477
  %5217 = vmatpush.bf16.msra.mxu0 %v3473
  %5218 = vmatpush.bf16.msra.mxu0 %v3469
  %5219 = vmatpush.bf16.msra.mxu0 %v3465
  %5220 = vmatpush.bf16.msra.mxu0 %v3461
  %5221 = vmatpush.bf16.msra.mxu0 %v3457
  %5222 = vmatpush.bf16.msra.mxu0 %v3453
  %5223 = vmatmul.bf16.gmra.mxu0 %v828
  %v5224 = vpop.f32.mrf.mxu0
  %v5225 = vadd.f32 %v5212, %v5224
  %v5226 = vpop.f32.mrf.mxu0
  %5227 = vdwg.mxu0
  %5228 = vmatpush.bf16.msra.mxu0 %v3513
  %5229 = vmatpush.bf16.msra.mxu0 %v3509
  %5230 = vmatpush.bf16.msra.mxu0 %v3505
  %5231 = vmatpush.bf16.msra.mxu0 %v3501
  %5232 = vmatpush.bf16.msra.mxu0 %v3497
  %5233 = vmatpush.bf16.msra.mxu0 %v3493
  %5234 = vmatpush.bf16.msra.mxu0 %v3489
  %5235 = vmatpush.bf16.msra.mxu0 %v3485
  %5236 = vmatmul.bf16.gmra.mxu0 %v831
  %v5237 = vpop.f32.mrf.mxu0
  %v5238 = vadd.f32 %v5225, %v5237
  %v5239 = vpop.f32.mrf.mxu0
  %5240 = vdwg.mxu0
  %5241 = vmatpush.bf16.msra.mxu0 %v3545
  %5242 = vmatpush.bf16.msra.mxu0 %v3541
  %5243 = vmatpush.bf16.msra.mxu0 %v3537
  %5244 = vmatpush.bf16.msra.mxu0 %v3533
  %5245 = vmatpush.bf16.msra.mxu0 %v3529
  %5246 = vmatpush.bf16.msra.mxu0 %v3525
  %5247 = vmatpush.bf16.msra.mxu0 %v3521
  %5248 = vmatpush.bf16.msra.mxu0 %v3517
  %5249 = vmatmul.bf16.gmra.mxu0 %v832
  %v5250 = vpop.f32.mrf.mxu0
  %v5251 = vadd.f32 %v5238, %v5250
  %v5252 = vpop.f32.mrf.mxu0
  %5253 = vdwg.mxu0
  %5254 = vmatpush.bf16.msra.mxu0 %v3577
  %5255 = vmatpush.bf16.msra.mxu0 %v3573
  %5256 = vmatpush.bf16.msra.mxu0 %v3569
  %5257 = vmatpush.bf16.msra.mxu0 %v3565
  %5258 = vmatpush.bf16.msra.mxu0 %v3561
  %5259 = vmatpush.bf16.msra.mxu0 %v3557
  %5260 = vmatpush.bf16.msra.mxu0 %v3553
  %5261 = vmatpush.bf16.msra.mxu0 %v3549
  %5262 = vmatmul.bf16.gmra.mxu0 %v833
  %v5263 = vpop.f32.mrf.mxu0
  %v5264 = vadd.f32 %v5251, %v5263
  %v5265 = vpop.f32.mrf.mxu0
  %5266 = vdwg.mxu0
  %5267 = vmatpush.bf16.msra.mxu0 %v3609
  %5268 = vmatpush.bf16.msra.mxu0 %v3605
  %5269 = vmatpush.bf16.msra.mxu0 %v3601
  %5270 = vmatpush.bf16.msra.mxu0 %v3597
  %5271 = vmatpush.bf16.msra.mxu0 %v3593
  %5272 = vmatpush.bf16.msra.mxu0 %v3589
  %5273 = vmatpush.bf16.msra.mxu0 %v3585
  %5274 = vmatpush.bf16.msra.mxu0 %v3581
  %5275 = vmatmul.bf16.gmra.mxu0 %v834
  %v5276 = vpop.f32.mrf.mxu0
  %v5277 = vadd.f32 %v5264, %v5276
  %v5278 = vpop.f32.mrf.mxu0
  %5279 = vdwg.mxu0
  %5280 = vmatpush.bf16.msra.mxu0 %v3641
  %5281 = vmatpush.bf16.msra.mxu0 %v3637
  %5282 = vmatpush.bf16.msra.mxu0 %v3633
  %5283 = vmatpush.bf16.msra.mxu0 %v3629
  %5284 = vmatpush.bf16.msra.mxu0 %v3625
  %5285 = vmatpush.bf16.msra.mxu0 %v3621
  %5286 = vmatpush.bf16.msra.mxu0 %v3617
  %5287 = vmatpush.bf16.msra.mxu0 %v3613
  %5288 = vmatmul.bf16.gmra.mxu0 %v835
  %v5289 = vpop.f32.mrf.mxu0
  %v5290 = vadd.f32 %v5277, %v5289
  %v5291 = vpop.f32.mrf.mxu0
  %5292 = vdwg.mxu0
  %5293 = vmatpush.bf16.msra.mxu0 %v3673
  %5294 = vmatpush.bf16.msra.mxu0 %v3669
  %5295 = vmatpush.bf16.msra.mxu0 %v3665
  %5296 = vmatpush.bf16.msra.mxu0 %v3661
  %5297 = vmatpush.bf16.msra.mxu0 %v3657
  %5298 = vmatpush.bf16.msra.mxu0 %v3653
  %5299 = vmatpush.bf16.msra.mxu0 %v3649
  %5300 = vmatpush.bf16.msra.mxu0 %v3645
  %5301 = vmatmul.bf16.gmra.mxu0 %v836
  %v5302 = vpop.f32.mrf.mxu0
  %v5303 = vadd.f32 %v5290, %v5302
  %v5304 = vpop.f32.mrf.mxu0
  %5305 = vdwg.mxu0
  %5306 = vmatpush.bf16.msra.mxu0 %v3705
  %5307 = vmatpush.bf16.msra.mxu0 %v3701
  %5308 = vmatpush.bf16.msra.mxu0 %v3697
  %5309 = vmatpush.bf16.msra.mxu0 %v3693
  %5310 = vmatpush.bf16.msra.mxu0 %v3689
  %5311 = vmatpush.bf16.msra.mxu0 %v3685
  %5312 = vmatpush.bf16.msra.mxu0 %v3681
  %5313 = vmatpush.bf16.msra.mxu0 %v3677
  %5314 = vmatmul.bf16.gmra.mxu0 %v837
  %v5315 = vpop.f32.mrf.mxu0
  %v5316 = vadd.f32 %v5303, %v5315
  %v5317 = vpop.f32.mrf.mxu0
  %5318 = vdwg.mxu0
  %5319 = vmatpush.bf16.msra.mxu0 %v3737
  %5320 = vmatpush.bf16.msra.mxu0 %v3733
  %5321 = vmatpush.bf16.msra.mxu0 %v3729
  %5322 = vmatpush.bf16.msra.mxu0 %v3725
  %5323 = vmatpush.bf16.msra.mxu0 %v3721
  %5324 = vmatpush.bf16.msra.mxu0 %v3717
  %5325 = vmatpush.bf16.msra.mxu0 %v3713
  %5326 = vmatpush.bf16.msra.mxu0 %v3709
  %5327 = vmatmul.bf16.gmra.mxu0 %v838
  %v5328 = vpop.f32.mrf.mxu0
  %v5329 = vadd.f32 %v5316, %v5328
  %v5330 = vpop.f32.mrf.mxu0
  %5331 = vdwg.mxu0
  %5332 = vmatpush.bf16.msra.mxu0 %v3769
  %5333 = vmatpush.bf16.msra.mxu0 %v3765
  %5334 = vmatpush.bf16.msra.mxu0 %v3761
  %5335 = vmatpush.bf16.msra.mxu0 %v3757
  %5336 = vmatpush.bf16.msra.mxu0 %v3753
  %5337 = vmatpush.bf16.msra.mxu0 %v3749
  %5338 = vmatpush.bf16.msra.mxu0 %v3745
  %5339 = vmatpush.bf16.msra.mxu0 %v3741
  %5340 = vmatmul.bf16.gmra.mxu0 %v841
  %v5341 = vpop.f32.mrf.mxu0
  %v5342 = vadd.f32 %v5329, %v5341
  %v5343 = vpop.f32.mrf.mxu0
  %5344 = vdwg.mxu0
  %5345 = vmatpush.bf16.msra.mxu0 %v3801
  %5346 = vmatpush.bf16.msra.mxu0 %v3797
  %5347 = vmatpush.bf16.msra.mxu0 %v3793
  %5348 = vmatpush.bf16.msra.mxu0 %v3789
  %5349 = vmatpush.bf16.msra.mxu0 %v3785
  %5350 = vmatpush.bf16.msra.mxu0 %v3781
  %5351 = vmatpush.bf16.msra.mxu0 %v3777
  %5352 = vmatpush.bf16.msra.mxu0 %v3773
  %5353 = vmatmul.bf16.gmra.mxu0 %v842
  %v5354 = vpop.f32.mrf.mxu0
  %v5355 = vadd.f32 %v5342, %v5354
  %v5356 = vpop.f32.mrf.mxu0
  %5357 = vdwg.mxu0
  %5358 = vmatpush.bf16.msra.mxu0 %v3833
  %5359 = vmatpush.bf16.msra.mxu0 %v3829
  %5360 = vmatpush.bf16.msra.mxu0 %v3825
  %5361 = vmatpush.bf16.msra.mxu0 %v3821
  %5362 = vmatpush.bf16.msra.mxu0 %v3817
  %5363 = vmatpush.bf16.msra.mxu0 %v3813
  %5364 = vmatpush.bf16.msra.mxu0 %v3809
  %5365 = vmatpush.bf16.msra.mxu0 %v3805
  %5366 = vmatmul.bf16.gmra.mxu0 %v843
  %v5367 = vpop.f32.mrf.mxu0
  %v5368 = vadd.f32 %v5355, %v5367
  %v5369 = vpop.f32.mrf.mxu0
  %5370 = vdwg.mxu0
  %5371 = vmatpush.bf16.msra.mxu0 %v3865
  %5372 = vmatpush.bf16.msra.mxu0 %v3861
  %5373 = vmatpush.bf16.msra.mxu0 %v3857
  %5374 = vmatpush.bf16.msra.mxu0 %v3853
  %5375 = vmatpush.bf16.msra.mxu0 %v3849
  %5376 = vmatpush.bf16.msra.mxu0 %v3845
  %5377 = vmatpush.bf16.msra.mxu0 %v3841
  %5378 = vmatpush.bf16.msra.mxu0 %v3837
  %5379 = vmatmul.bf16.gmra.mxu0 %v844
  %v5380 = vpop.f32.mrf.mxu0
  %v5381 = vadd.f32 %v5368, %v5380
  %v5382 = vpop.f32.mrf.mxu0
  %5383 = vdwg.mxu0
  %5384 = vmatpush.bf16.msra.mxu0 %v3897
  %5385 = vmatpush.bf16.msra.mxu0 %v3893
  %5386 = vmatpush.bf16.msra.mxu0 %v3889
  %5387 = vmatpush.bf16.msra.mxu0 %v3885
  %5388 = vmatpush.bf16.msra.mxu0 %v3881
  %5389 = vmatpush.bf16.msra.mxu0 %v3877
  %5390 = vmatpush.bf16.msra.mxu0 %v3873
  %5391 = vmatpush.bf16.msra.mxu0 %v3869
  %5392 = vmatmul.bf16.gmra.mxu0 %v845
  %v5393 = vpop.f32.mrf.mxu0
  %v5394 = vadd.f32 %v5381, %v5393
  %v5395 = vpop.f32.mrf.mxu0
  %5396 = vdwg.mxu0
  %5397 = vmatpush.bf16.msra.mxu0 %v3929
  %5398 = vmatpush.bf16.msra.mxu0 %v3925
  %5399 = vmatpush.bf16.msra.mxu0 %v3921
  %5400 = vmatpush.bf16.msra.mxu0 %v3917
  %5401 = vmatpush.bf16.msra.mxu0 %v3913
  %5402 = vmatpush.bf16.msra.mxu0 %v3909
  %5403 = vmatpush.bf16.msra.mxu0 %v3905
  %5404 = vmatpush.bf16.msra.mxu0 %v3901
  %5405 = vmatmul.bf16.gmra.mxu0 %v846
  %v5406 = vpop.f32.mrf.mxu0
  %v5407 = vadd.f32 %v5394, %v5406
  %v5408 = vpop.f32.mrf.mxu0
  %5409 = vdwg.mxu0
  %5410 = vmatpush.bf16.msra.mxu0 %v3961
  %5411 = vmatpush.bf16.msra.mxu0 %v3957
  %5412 = vmatpush.bf16.msra.mxu0 %v3953
  %5413 = vmatpush.bf16.msra.mxu0 %v3949
  %5414 = vmatpush.bf16.msra.mxu0 %v3945
  %5415 = vmatpush.bf16.msra.mxu0 %v3941
  %5416 = vmatpush.bf16.msra.mxu0 %v3937
  %5417 = vmatpush.bf16.msra.mxu0 %v3933
  %5418 = vmatmul.bf16.gmra.mxu0 %v847
  %v5419 = vpop.f32.mrf.mxu0
  %v5420 = vadd.f32 %v5407, %v5419
  %v5421 = vpop.f32.mrf.mxu0
  %5422 = vdwg.mxu0
  %5423 = vmatpush.bf16.msra.mxu0 %v3993
  %5424 = vmatpush.bf16.msra.mxu0 %v3989
  %5425 = vmatpush.bf16.msra.mxu0 %v3985
  %5426 = vmatpush.bf16.msra.mxu0 %v3981
  %5427 = vmatpush.bf16.msra.mxu0 %v3977
  %5428 = vmatpush.bf16.msra.mxu0 %v3973
  %5429 = vmatpush.bf16.msra.mxu0 %v3969
  %5430 = vmatpush.bf16.msra.mxu0 %v3965
  %5431 = vmatmul.bf16.gmra.mxu0 %v848
  %v5432 = vpop.f32.mrf.mxu0
  %v5433 = vadd.f32 %v5420, %v5432
  %v5434 = vpop.f32.mrf.mxu0
  %5435 = vdwg.mxu0
  %5436 = vmatpush.bf16.msra.mxu0 0
  %5437 = vmatpush.bf16.msra.mxu0 0
  %5438 = vmatpush.bf16.msra.mxu0 0
  %5439 = vmatpush.bf16.msra.mxu0 0
  %5440 = vmatpush.bf16.msra.mxu0 %v4009
  %5441 = vmatpush.bf16.msra.mxu0 %v4005
  %5442 = vmatpush.bf16.msra.mxu0 %v4001
  %5443 = vmatpush.bf16.msra.mxu0 %v3997
  %5444 = vmatmul.bf16.gmra.mxu0 %v4797
  %v5445 = vpop.f32.mrf.mxu0
  %v5446 = vadd.f32 %v5433, %v5445
  %v5447 = vpop.f32.mrf.mxu0
  %5448 = vdwg.mxu0
  %5449 = vmatpush.bf16.msra.mxu0 %v3258
  %5450 = vmatpush.bf16.msra.mxu0 %v3254
  %5451 = vmatpush.bf16.msra.mxu0 %v3250
  %5452 = vmatpush.bf16.msra.mxu0 %v3246
  %5453 = vmatpush.bf16.msra.mxu0 %v3242
  %5454 = vmatpush.bf16.msra.mxu0 %v3238
  %5455 = vmatpush.bf16.msra.mxu0 %v3234
  %5456 = vmatpush.bf16.msra.mxu0 %v3230
  %5457 = vmatmul.bf16.gmra.mxu0 %v821
  %v5458 = vpop.f32.mrf.mxu0
  %v5459 = vadd.f32 %v813, %v5458
  %v5460 = vpop.f32.mrf.mxu0
  %5461 = vdwg.mxu0
  %5462 = vmatpush.bf16.msra.mxu0 %v3290
  %5463 = vmatpush.bf16.msra.mxu0 %v3286
  %5464 = vmatpush.bf16.msra.mxu0 %v3282
  %5465 = vmatpush.bf16.msra.mxu0 %v3278
  %5466 = vmatpush.bf16.msra.mxu0 %v3274
  %5467 = vmatpush.bf16.msra.mxu0 %v3270
  %5468 = vmatpush.bf16.msra.mxu0 %v3266
  %5469 = vmatpush.bf16.msra.mxu0 %v3262
  %5470 = vmatmul.bf16.gmra.mxu0 %v822
  %v5471 = vpop.f32.mrf.mxu0
  %v5472 = vadd.f32 %v5459, %v5471
  %v5473 = vpop.f32.mrf.mxu0
  %5474 = vdwg.mxu0
  %5475 = vmatpush.bf16.msra.mxu0 %v3322
  %5476 = vmatpush.bf16.msra.mxu0 %v3318
  %5477 = vmatpush.bf16.msra.mxu0 %v3314
  %5478 = vmatpush.bf16.msra.mxu0 %v3310
  %5479 = vmatpush.bf16.msra.mxu0 %v3306
  %5480 = vmatpush.bf16.msra.mxu0 %v3302
  %5481 = vmatpush.bf16.msra.mxu0 %v3298
  %5482 = vmatpush.bf16.msra.mxu0 %v3294
  %5483 = vmatmul.bf16.gmra.mxu0 %v823
  %v5484 = vpop.f32.mrf.mxu0
  %v5485 = vadd.f32 %v5472, %v5484
  %v5486 = vpop.f32.mrf.mxu0
  %5487 = vdwg.mxu0
  %5488 = vmatpush.bf16.msra.mxu0 %v3354
  %5489 = vmatpush.bf16.msra.mxu0 %v3350
  %5490 = vmatpush.bf16.msra.mxu0 %v3346
  %5491 = vmatpush.bf16.msra.mxu0 %v3342
  %5492 = vmatpush.bf16.msra.mxu0 %v3338
  %5493 = vmatpush.bf16.msra.mxu0 %v3334
  %5494 = vmatpush.bf16.msra.mxu0 %v3330
  %5495 = vmatpush.bf16.msra.mxu0 %v3326
  %5496 = vmatmul.bf16.gmra.mxu0 %v824
  %v5497 = vpop.f32.mrf.mxu0
  %v5498 = vadd.f32 %v5485, %v5497
  %v5499 = vpop.f32.mrf.mxu0
  %5500 = vdwg.mxu0
  %5501 = vmatpush.bf16.msra.mxu0 %v3386
  %5502 = vmatpush.bf16.msra.mxu0 %v3382
  %5503 = vmatpush.bf16.msra.mxu0 %v3378
  %5504 = vmatpush.bf16.msra.mxu0 %v3374
  %5505 = vmatpush.bf16.msra.mxu0 %v3370
  %5506 = vmatpush.bf16.msra.mxu0 %v3366
  %5507 = vmatpush.bf16.msra.mxu0 %v3362
  %5508 = vmatpush.bf16.msra.mxu0 %v3358
  %5509 = vmatmul.bf16.gmra.mxu0 %v825
  %v5510 = vpop.f32.mrf.mxu0
  %v5511 = vadd.f32 %v5498, %v5510
  %v5512 = vpop.f32.mrf.mxu0
  %5513 = vdwg.mxu0
  %5514 = vmatpush.bf16.msra.mxu0 %v3418
  %5515 = vmatpush.bf16.msra.mxu0 %v3414
  %5516 = vmatpush.bf16.msra.mxu0 %v3410
  %5517 = vmatpush.bf16.msra.mxu0 %v3406
  %5518 = vmatpush.bf16.msra.mxu0 %v3402
  %5519 = vmatpush.bf16.msra.mxu0 %v3398
  %5520 = vmatpush.bf16.msra.mxu0 %v3394
  %5521 = vmatpush.bf16.msra.mxu0 %v3390
  %5522 = vmatmul.bf16.gmra.mxu0 %v826
  %v5523 = vpop.f32.mrf.mxu0
  %v5524 = vadd.f32 %v5511, %v5523
  %v5525 = vpop.f32.mrf.mxu0
  %5526 = vdwg.mxu0
  %5527 = vmatpush.bf16.msra.mxu0 %v3450
  %5528 = vmatpush.bf16.msra.mxu0 %v3446
  %5529 = vmatpush.bf16.msra.mxu0 %v3442
  %5530 = vmatpush.bf16.msra.mxu0 %v3438
  %5531 = vmatpush.bf16.msra.mxu0 %v3434
  %5532 = vmatpush.bf16.msra.mxu0 %v3430
  %5533 = vmatpush.bf16.msra.mxu0 %v3426
  %5534 = vmatpush.bf16.msra.mxu0 %v3422
  %5535 = vmatmul.bf16.gmra.mxu0 %v827
  %v5536 = vpop.f32.mrf.mxu0
  %v5537 = vadd.f32 %v5524, %v5536
  %v5538 = vpop.f32.mrf.mxu0
  %5539 = vdwg.mxu0
  %5540 = vmatpush.bf16.msra.mxu0 %v3482
  %5541 = vmatpush.bf16.msra.mxu0 %v3478
  %5542 = vmatpush.bf16.msra.mxu0 %v3474
  %5543 = vmatpush.bf16.msra.mxu0 %v3470
  %5544 = vmatpush.bf16.msra.mxu0 %v3466
  %5545 = vmatpush.bf16.msra.mxu0 %v3462
  %5546 = vmatpush.bf16.msra.mxu0 %v3458
  %5547 = vmatpush.bf16.msra.mxu0 %v3454
  %5548 = vmatmul.bf16.gmra.mxu0 %v828
  %v5549 = vpop.f32.mrf.mxu0
  %v5550 = vadd.f32 %v5537, %v5549
  %v5551 = vpop.f32.mrf.mxu0
  %5552 = vdwg.mxu0
  %5553 = vmatpush.bf16.msra.mxu0 %v3514
  %5554 = vmatpush.bf16.msra.mxu0 %v3510
  %5555 = vmatpush.bf16.msra.mxu0 %v3506
  %5556 = vmatpush.bf16.msra.mxu0 %v3502
  %5557 = vmatpush.bf16.msra.mxu0 %v3498
  %5558 = vmatpush.bf16.msra.mxu0 %v3494
  %5559 = vmatpush.bf16.msra.mxu0 %v3490
  %5560 = vmatpush.bf16.msra.mxu0 %v3486
  %5561 = vmatmul.bf16.gmra.mxu0 %v831
  %v5562 = vpop.f32.mrf.mxu0
  %v5563 = vadd.f32 %v5550, %v5562
  %v5564 = vpop.f32.mrf.mxu0
  %5565 = vdwg.mxu0
  %5566 = vmatpush.bf16.msra.mxu0 %v3546
  %5567 = vmatpush.bf16.msra.mxu0 %v3542
  %5568 = vmatpush.bf16.msra.mxu0 %v3538
  %5569 = vmatpush.bf16.msra.mxu0 %v3534
  %5570 = vmatpush.bf16.msra.mxu0 %v3530
  %5571 = vmatpush.bf16.msra.mxu0 %v3526
  %5572 = vmatpush.bf16.msra.mxu0 %v3522
  %5573 = vmatpush.bf16.msra.mxu0 %v3518
  %5574 = vmatmul.bf16.gmra.mxu0 %v832
  %v5575 = vpop.f32.mrf.mxu0
  %v5576 = vadd.f32 %v5563, %v5575
  %v5577 = vpop.f32.mrf.mxu0
  %5578 = vdwg.mxu0
  %5579 = vmatpush.bf16.msra.mxu0 %v3578
  %5580 = vmatpush.bf16.msra.mxu0 %v3574
  %5581 = vmatpush.bf16.msra.mxu0 %v3570
  %5582 = vmatpush.bf16.msra.mxu0 %v3566
  %5583 = vmatpush.bf16.msra.mxu0 %v3562
  %5584 = vmatpush.bf16.msra.mxu0 %v3558
  %5585 = vmatpush.bf16.msra.mxu0 %v3554
  %5586 = vmatpush.bf16.msra.mxu0 %v3550
  %5587 = vmatmul.bf16.gmra.mxu0 %v833
  %v5588 = vpop.f32.mrf.mxu0
  %v5589 = vadd.f32 %v5576, %v5588
  %v5590 = vpop.f32.mrf.mxu0
  %5591 = vdwg.mxu0
  %5592 = vmatpush.bf16.msra.mxu0 %v3610
  %5593 = vmatpush.bf16.msra.mxu0 %v3606
  %5594 = vmatpush.bf16.msra.mxu0 %v3602
  %5595 = vmatpush.bf16.msra.mxu0 %v3598
  %5596 = vmatpush.bf16.msra.mxu0 %v3594
  %5597 = vmatpush.bf16.msra.mxu0 %v3590
  %5598 = vmatpush.bf16.msra.mxu0 %v3586
  %5599 = vmatpush.bf16.msra.mxu0 %v3582
  %5600 = vmatmul.bf16.gmra.mxu0 %v834
  %v5601 = vpop.f32.mrf.mxu0
  %v5602 = vadd.f32 %v5589, %v5601
  %v5603 = vpop.f32.mrf.mxu0
  %5604 = vdwg.mxu0
  %5605 = vmatpush.bf16.msra.mxu0 %v3642
  %5606 = vmatpush.bf16.msra.mxu0 %v3638
  %5607 = vmatpush.bf16.msra.mxu0 %v3634
  %5608 = vmatpush.bf16.msra.mxu0 %v3630
  %5609 = vmatpush.bf16.msra.mxu0 %v3626
  %5610 = vmatpush.bf16.msra.mxu0 %v3622
  %5611 = vmatpush.bf16.msra.mxu0 %v3618
  %5612 = vmatpush.bf16.msra.mxu0 %v3614
  %5613 = vmatmul.bf16.gmra.mxu0 %v835
  %v5614 = vpop.f32.mrf.mxu0
  %v5615 = vadd.f32 %v5602, %v5614
  %v5616 = vpop.f32.mrf.mxu0
  %5617 = vdwg.mxu0
  %5618 = vmatpush.bf16.msra.mxu0 %v3674
  %5619 = vmatpush.bf16.msra.mxu0 %v3670
  %5620 = vmatpush.bf16.msra.mxu0 %v3666
  %5621 = vmatpush.bf16.msra.mxu0 %v3662
  %5622 = vmatpush.bf16.msra.mxu0 %v3658
  %5623 = vmatpush.bf16.msra.mxu0 %v3654
  %5624 = vmatpush.bf16.msra.mxu0 %v3650
  %5625 = vmatpush.bf16.msra.mxu0 %v3646
  %5626 = vmatmul.bf16.gmra.mxu0 %v836
  %v5627 = vpop.f32.mrf.mxu0
  %v5628 = vadd.f32 %v5615, %v5627
  %v5629 = vpop.f32.mrf.mxu0
  %5630 = vdwg.mxu0
  %5631 = vmatpush.bf16.msra.mxu0 %v3706
  %5632 = vmatpush.bf16.msra.mxu0 %v3702
  %5633 = vmatpush.bf16.msra.mxu0 %v3698
  %5634 = vmatpush.bf16.msra.mxu0 %v3694
  %5635 = vmatpush.bf16.msra.mxu0 %v3690
  %5636 = vmatpush.bf16.msra.mxu0 %v3686
  %5637 = vmatpush.bf16.msra.mxu0 %v3682
  %5638 = vmatpush.bf16.msra.mxu0 %v3678
  %5639 = vmatmul.bf16.gmra.mxu0 %v837
  %v5640 = vpop.f32.mrf.mxu0
  %v5641 = vadd.f32 %v5628, %v5640
  %v5642 = vpop.f32.mrf.mxu0
  %5643 = vdwg.mxu0
  %5644 = vmatpush.bf16.msra.mxu0 %v3738
  %5645 = vmatpush.bf16.msra.mxu0 %v3734
  %5646 = vmatpush.bf16.msra.mxu0 %v3730
  %5647 = vmatpush.bf16.msra.mxu0 %v3726
  %5648 = vmatpush.bf16.msra.mxu0 %v3722
  %5649 = vmatpush.bf16.msra.mxu0 %v3718
  %5650 = vmatpush.bf16.msra.mxu0 %v3714
  %5651 = vmatpush.bf16.msra.mxu0 %v3710
  %5652 = vmatmul.bf16.gmra.mxu0 %v838
  %v5653 = vpop.f32.mrf.mxu0
  %v5654 = vadd.f32 %v5641, %v5653
  %v5655 = vpop.f32.mrf.mxu0
  %5656 = vdwg.mxu0
  %5657 = vmatpush.bf16.msra.mxu0 %v3770
  %5658 = vmatpush.bf16.msra.mxu0 %v3766
  %5659 = vmatpush.bf16.msra.mxu0 %v3762
  %5660 = vmatpush.bf16.msra.mxu0 %v3758
  %5661 = vmatpush.bf16.msra.mxu0 %v3754
  %5662 = vmatpush.bf16.msra.mxu0 %v3750
  %5663 = vmatpush.bf16.msra.mxu0 %v3746
  %5664 = vmatpush.bf16.msra.mxu0 %v3742
  %5665 = vmatmul.bf16.gmra.mxu0 %v841
  %v5666 = vpop.f32.mrf.mxu0
  %v5667 = vadd.f32 %v5654, %v5666
  %v5668 = vpop.f32.mrf.mxu0
  %5669 = vdwg.mxu0
  %5670 = vmatpush.bf16.msra.mxu0 %v3802
  %5671 = vmatpush.bf16.msra.mxu0 %v3798
  %5672 = vmatpush.bf16.msra.mxu0 %v3794
  %5673 = vmatpush.bf16.msra.mxu0 %v3790
  %5674 = vmatpush.bf16.msra.mxu0 %v3786
  %5675 = vmatpush.bf16.msra.mxu0 %v3782
  %5676 = vmatpush.bf16.msra.mxu0 %v3778
  %5677 = vmatpush.bf16.msra.mxu0 %v3774
  %5678 = vmatmul.bf16.gmra.mxu0 %v842
  %v5679 = vpop.f32.mrf.mxu0
  %v5680 = vadd.f32 %v5667, %v5679
  %v5681 = vpop.f32.mrf.mxu0
  %5682 = vdwg.mxu0
  %5683 = vmatpush.bf16.msra.mxu0 %v3834
  %5684 = vmatpush.bf16.msra.mxu0 %v3830
  %5685 = vmatpush.bf16.msra.mxu0 %v3826
  %5686 = vmatpush.bf16.msra.mxu0 %v3822
  %5687 = vmatpush.bf16.msra.mxu0 %v3818
  %5688 = vmatpush.bf16.msra.mxu0 %v3814
  %5689 = vmatpush.bf16.msra.mxu0 %v3810
  %5690 = vmatpush.bf16.msra.mxu0 %v3806
  %5691 = vmatmul.bf16.gmra.mxu0 %v843
  %v5692 = vpop.f32.mrf.mxu0
  %v5693 = vadd.f32 %v5680, %v5692
  %v5694 = vpop.f32.mrf.mxu0
  %5695 = vdwg.mxu0
  %5696 = vmatpush.bf16.msra.mxu0 %v3866
  %5697 = vmatpush.bf16.msra.mxu0 %v3862
  %5698 = vmatpush.bf16.msra.mxu0 %v3858
  %5699 = vmatpush.bf16.msra.mxu0 %v3854
  %5700 = vmatpush.bf16.msra.mxu0 %v3850
  %5701 = vmatpush.bf16.msra.mxu0 %v3846
  %5702 = vmatpush.bf16.msra.mxu0 %v3842
  %5703 = vmatpush.bf16.msra.mxu0 %v3838
  %5704 = vmatmul.bf16.gmra.mxu0 %v844
  %v5705 = vpop.f32.mrf.mxu0
  %v5706 = vadd.f32 %v5693, %v5705
  %v5707 = vpop.f32.mrf.mxu0
  %5708 = vdwg.mxu0
  %5709 = vmatpush.bf16.msra.mxu0 %v3898
  %5710 = vmatpush.bf16.msra.mxu0 %v3894
  %5711 = vmatpush.bf16.msra.mxu0 %v3890
  %5712 = vmatpush.bf16.msra.mxu0 %v3886
  %5713 = vmatpush.bf16.msra.mxu0 %v3882
  %5714 = vmatpush.bf16.msra.mxu0 %v3878
  %5715 = vmatpush.bf16.msra.mxu0 %v3874
  %5716 = vmatpush.bf16.msra.mxu0 %v3870
  %5717 = vmatmul.bf16.gmra.mxu0 %v845
  %v5718 = vpop.f32.mrf.mxu0
  %v5719 = vadd.f32 %v5706, %v5718
  %v5720 = vpop.f32.mrf.mxu0
  %5721 = vdwg.mxu0
  %5722 = vmatpush.bf16.msra.mxu0 %v3930
  %5723 = vmatpush.bf16.msra.mxu0 %v3926
  %5724 = vmatpush.bf16.msra.mxu0 %v3922
  %5725 = vmatpush.bf16.msra.mxu0 %v3918
  %5726 = vmatpush.bf16.msra.mxu0 %v3914
  %5727 = vmatpush.bf16.msra.mxu0 %v3910
  %5728 = vmatpush.bf16.msra.mxu0 %v3906
  %5729 = vmatpush.bf16.msra.mxu0 %v3902
  %5730 = vmatmul.bf16.gmra.mxu0 %v846
  %v5731 = vpop.f32.mrf.mxu0
  %v5732 = vadd.f32 %v5719, %v5731
  %v5733 = vpop.f32.mrf.mxu0
  %5734 = vdwg.mxu0
  %5735 = vmatpush.bf16.msra.mxu0 %v3962
  %5736 = vmatpush.bf16.msra.mxu0 %v3958
  %5737 = vmatpush.bf16.msra.mxu0 %v3954
  %5738 = vmatpush.bf16.msra.mxu0 %v3950
  %5739 = vmatpush.bf16.msra.mxu0 %v3946
  %5740 = vmatpush.bf16.msra.mxu0 %v3942
  %5741 = vmatpush.bf16.msra.mxu0 %v3938
  %5742 = vmatpush.bf16.msra.mxu0 %v3934
  %5743 = vmatmul.bf16.gmra.mxu0 %v847
  %v5744 = vpop.f32.mrf.mxu0
  %v5745 = vadd.f32 %v5732, %v5744
  %v5746 = vpop.f32.mrf.mxu0
  %5747 = vdwg.mxu0
  %5748 = vmatpush.bf16.msra.mxu0 %v3994
  %5749 = vmatpush.bf16.msra.mxu0 %v3990
  %5750 = vmatpush.bf16.msra.mxu0 %v3986
  %5751 = vmatpush.bf16.msra.mxu0 %v3982
  %5752 = vmatpush.bf16.msra.mxu0 %v3978
  %5753 = vmatpush.bf16.msra.mxu0 %v3974
  %5754 = vmatpush.bf16.msra.mxu0 %v3970
  %5755 = vmatpush.bf16.msra.mxu0 %v3966
  %5756 = vmatmul.bf16.gmra.mxu0 %v848
  %v5757 = vpop.f32.mrf.mxu0
  %v5758 = vadd.f32 %v5745, %v5757
  %v5759 = vpop.f32.mrf.mxu0
  %5760 = vdwg.mxu0
  %5761 = vmatpush.bf16.msra.mxu0 0
  %5762 = vmatpush.bf16.msra.mxu0 0
  %5763 = vmatpush.bf16.msra.mxu0 0
  %5764 = vmatpush.bf16.msra.mxu0 0
  %5765 = vmatpush.bf16.msra.mxu0 %v4010
  %5766 = vmatpush.bf16.msra.mxu0 %v4006
  %5767 = vmatpush.bf16.msra.mxu0 %v4002
  %5768 = vmatpush.bf16.msra.mxu0 %v3998
  %5769 = vmatmul.bf16.gmra.mxu0 %v4797
  %v5770 = vpop.f32.mrf.mxu0
  %v5771 = vadd.f32 %v5758, %v5770
  %v5772 = vpop.f32.mrf.mxu0
  %5773 = vdwg.mxu0
  %5774 = vmatpush.bf16.msra.mxu0 %v3259
  %5775 = vmatpush.bf16.msra.mxu0 %v3255
  %5776 = vmatpush.bf16.msra.mxu0 %v3251
  %5777 = vmatpush.bf16.msra.mxu0 %v3247
  %5778 = vmatpush.bf16.msra.mxu0 %v3243
  %5779 = vmatpush.bf16.msra.mxu0 %v3239
  %5780 = vmatpush.bf16.msra.mxu0 %v3235
  %5781 = vmatpush.bf16.msra.mxu0 %v3231
  %5782 = vmatmul.bf16.gmra.mxu0 %v821
  %v5783 = vpop.f32.mrf.mxu0
  %v5784 = vadd.f32 %v814, %v5783
  %v5785 = vpop.f32.mrf.mxu0
  %5786 = vdwg.mxu0
  %5787 = vmatpush.bf16.msra.mxu0 %v3291
  %5788 = vmatpush.bf16.msra.mxu0 %v3287
  %5789 = vmatpush.bf16.msra.mxu0 %v3283
  %5790 = vmatpush.bf16.msra.mxu0 %v3279
  %5791 = vmatpush.bf16.msra.mxu0 %v3275
  %5792 = vmatpush.bf16.msra.mxu0 %v3271
  %5793 = vmatpush.bf16.msra.mxu0 %v3267
  %5794 = vmatpush.bf16.msra.mxu0 %v3263
  %5795 = vmatmul.bf16.gmra.mxu0 %v822
  %v5796 = vpop.f32.mrf.mxu0
  %v5797 = vadd.f32 %v5784, %v5796
  %v5798 = vpop.f32.mrf.mxu0
  %5799 = vdwg.mxu0
  %5800 = vmatpush.bf16.msra.mxu0 %v3323
  %5801 = vmatpush.bf16.msra.mxu0 %v3319
  %5802 = vmatpush.bf16.msra.mxu0 %v3315
  %5803 = vmatpush.bf16.msra.mxu0 %v3311
  %5804 = vmatpush.bf16.msra.mxu0 %v3307
  %5805 = vmatpush.bf16.msra.mxu0 %v3303
  %5806 = vmatpush.bf16.msra.mxu0 %v3299
  %5807 = vmatpush.bf16.msra.mxu0 %v3295
  %5808 = vmatmul.bf16.gmra.mxu0 %v823
  %v5809 = vpop.f32.mrf.mxu0
  %v5810 = vadd.f32 %v5797, %v5809
  %v5811 = vpop.f32.mrf.mxu0
  %5812 = vdwg.mxu0
  %5813 = vmatpush.bf16.msra.mxu0 %v3355
  %5814 = vmatpush.bf16.msra.mxu0 %v3351
  %5815 = vmatpush.bf16.msra.mxu0 %v3347
  %5816 = vmatpush.bf16.msra.mxu0 %v3343
  %5817 = vmatpush.bf16.msra.mxu0 %v3339
  %5818 = vmatpush.bf16.msra.mxu0 %v3335
  %5819 = vmatpush.bf16.msra.mxu0 %v3331
  %5820 = vmatpush.bf16.msra.mxu0 %v3327
  %5821 = vmatmul.bf16.gmra.mxu0 %v824
  %v5822 = vpop.f32.mrf.mxu0
  %v5823 = vadd.f32 %v5810, %v5822
  %v5824 = vpop.f32.mrf.mxu0
  %5825 = vdwg.mxu0
  %5826 = vmatpush.bf16.msra.mxu0 %v3387
  %5827 = vmatpush.bf16.msra.mxu0 %v3383
  %5828 = vmatpush.bf16.msra.mxu0 %v3379
  %5829 = vmatpush.bf16.msra.mxu0 %v3375
  %5830 = vmatpush.bf16.msra.mxu0 %v3371
  %5831 = vmatpush.bf16.msra.mxu0 %v3367
  %5832 = vmatpush.bf16.msra.mxu0 %v3363
  %5833 = vmatpush.bf16.msra.mxu0 %v3359
  %5834 = vmatmul.bf16.gmra.mxu0 %v825
  %v5835 = vpop.f32.mrf.mxu0
  %v5836 = vadd.f32 %v5823, %v5835
  %v5837 = vpop.f32.mrf.mxu0
  %5838 = vdwg.mxu0
  %5839 = vmatpush.bf16.msra.mxu0 %v3419
  %5840 = vmatpush.bf16.msra.mxu0 %v3415
  %5841 = vmatpush.bf16.msra.mxu0 %v3411
  %5842 = vmatpush.bf16.msra.mxu0 %v3407
  %5843 = vmatpush.bf16.msra.mxu0 %v3403
  %5844 = vmatpush.bf16.msra.mxu0 %v3399
  %5845 = vmatpush.bf16.msra.mxu0 %v3395
  %5846 = vmatpush.bf16.msra.mxu0 %v3391
  %5847 = vmatmul.bf16.gmra.mxu0 %v826
  %v5848 = vpop.f32.mrf.mxu0
  %v5849 = vadd.f32 %v5836, %v5848
  %v5850 = vpop.f32.mrf.mxu0
  %5851 = vdwg.mxu0
  %5852 = vmatpush.bf16.msra.mxu0 %v3451
  %5853 = vmatpush.bf16.msra.mxu0 %v3447
  %5854 = vmatpush.bf16.msra.mxu0 %v3443
  %5855 = vmatpush.bf16.msra.mxu0 %v3439
  %5856 = vmatpush.bf16.msra.mxu0 %v3435
  %5857 = vmatpush.bf16.msra.mxu0 %v3431
  %5858 = vmatpush.bf16.msra.mxu0 %v3427
  %5859 = vmatpush.bf16.msra.mxu0 %v3423
  %5860 = vmatmul.bf16.gmra.mxu0 %v827
  %v5861 = vpop.f32.mrf.mxu0
  %v5862 = vadd.f32 %v5849, %v5861
  %v5863 = vpop.f32.mrf.mxu0
  %5864 = vdwg.mxu0
  %5865 = vmatpush.bf16.msra.mxu0 %v3483
  %5866 = vmatpush.bf16.msra.mxu0 %v3479
  %5867 = vmatpush.bf16.msra.mxu0 %v3475
  %5868 = vmatpush.bf16.msra.mxu0 %v3471
  %5869 = vmatpush.bf16.msra.mxu0 %v3467
  %5870 = vmatpush.bf16.msra.mxu0 %v3463
  %5871 = vmatpush.bf16.msra.mxu0 %v3459
  %5872 = vmatpush.bf16.msra.mxu0 %v3455
  %5873 = vmatmul.bf16.gmra.mxu0 %v828
  %v5874 = vpop.f32.mrf.mxu0
  %v5875 = vadd.f32 %v5862, %v5874
  %v5876 = vpop.f32.mrf.mxu0
  %5877 = vdwg.mxu0
  %5878 = vmatpush.bf16.msra.mxu0 %v3515
  %5879 = vmatpush.bf16.msra.mxu0 %v3511
  %5880 = vmatpush.bf16.msra.mxu0 %v3507
  %5881 = vmatpush.bf16.msra.mxu0 %v3503
  %5882 = vmatpush.bf16.msra.mxu0 %v3499
  %5883 = vmatpush.bf16.msra.mxu0 %v3495
  %5884 = vmatpush.bf16.msra.mxu0 %v3491
  %5885 = vmatpush.bf16.msra.mxu0 %v3487
  %5886 = vmatmul.bf16.gmra.mxu0 %v831
  %v5887 = vpop.f32.mrf.mxu0
  %v5888 = vadd.f32 %v5875, %v5887
  %v5889 = vpop.f32.mrf.mxu0
  %5890 = vdwg.mxu0
  %5891 = vmatpush.bf16.msra.mxu0 %v3547
  %5892 = vmatpush.bf16.msra.mxu0 %v3543
  %5893 = vmatpush.bf16.msra.mxu0 %v3539
  %5894 = vmatpush.bf16.msra.mxu0 %v3535
  %5895 = vmatpush.bf16.msra.mxu0 %v3531
  %5896 = vmatpush.bf16.msra.mxu0 %v3527
  %5897 = vmatpush.bf16.msra.mxu0 %v3523
  %5898 = vmatpush.bf16.msra.mxu0 %v3519
  %5899 = vmatmul.bf16.gmra.mxu0 %v832
  %v5900 = vpop.f32.mrf.mxu0
  %v5901 = vadd.f32 %v5888, %v5900
  %v5902 = vpop.f32.mrf.mxu0
  %5903 = vdwg.mxu0
  %5904 = vmatpush.bf16.msra.mxu0 %v3579
  %5905 = vmatpush.bf16.msra.mxu0 %v3575
  %5906 = vmatpush.bf16.msra.mxu0 %v3571
  %5907 = vmatpush.bf16.msra.mxu0 %v3567
  %5908 = vmatpush.bf16.msra.mxu0 %v3563
  %5909 = vmatpush.bf16.msra.mxu0 %v3559
  %5910 = vmatpush.bf16.msra.mxu0 %v3555
  %5911 = vmatpush.bf16.msra.mxu0 %v3551
  %5912 = vmatmul.bf16.gmra.mxu0 %v833
  %v5913 = vpop.f32.mrf.mxu0
  %v5914 = vadd.f32 %v5901, %v5913
  %v5915 = vpop.f32.mrf.mxu0
  %5916 = vdwg.mxu0
  %5917 = vmatpush.bf16.msra.mxu0 %v3611
  %5918 = vmatpush.bf16.msra.mxu0 %v3607
  %5919 = vmatpush.bf16.msra.mxu0 %v3603
  %5920 = vmatpush.bf16.msra.mxu0 %v3599
  %5921 = vmatpush.bf16.msra.mxu0 %v3595
  %5922 = vmatpush.bf16.msra.mxu0 %v3591
  %5923 = vmatpush.bf16.msra.mxu0 %v3587
  %5924 = vmatpush.bf16.msra.mxu0 %v3583
  %5925 = vmatmul.bf16.gmra.mxu0 %v834
  %v5926 = vpop.f32.mrf.mxu0
  %v5927 = vadd.f32 %v5914, %v5926
  %v5928 = vpop.f32.mrf.mxu0
  %5929 = vdwg.mxu0
  %5930 = vmatpush.bf16.msra.mxu0 %v3643
  %5931 = vmatpush.bf16.msra.mxu0 %v3639
  %5932 = vmatpush.bf16.msra.mxu0 %v3635
  %5933 = vmatpush.bf16.msra.mxu0 %v3631
  %5934 = vmatpush.bf16.msra.mxu0 %v3627
  %5935 = vmatpush.bf16.msra.mxu0 %v3623
  %5936 = vmatpush.bf16.msra.mxu0 %v3619
  %5937 = vmatpush.bf16.msra.mxu0 %v3615
  %5938 = vmatmul.bf16.gmra.mxu0 %v835
  %v5939 = vpop.f32.mrf.mxu0
  %v5940 = vadd.f32 %v5927, %v5939
  %v5941 = vpop.f32.mrf.mxu0
  %5942 = vdwg.mxu0
  %5943 = vmatpush.bf16.msra.mxu0 %v3675
  %5944 = vmatpush.bf16.msra.mxu0 %v3671
  %5945 = vmatpush.bf16.msra.mxu0 %v3667
  %5946 = vmatpush.bf16.msra.mxu0 %v3663
  %5947 = vmatpush.bf16.msra.mxu0 %v3659
  %5948 = vmatpush.bf16.msra.mxu0 %v3655
  %5949 = vmatpush.bf16.msra.mxu0 %v3651
  %5950 = vmatpush.bf16.msra.mxu0 %v3647
  %5951 = vmatmul.bf16.gmra.mxu0 %v836
  %v5952 = vpop.f32.mrf.mxu0
  %v5953 = vadd.f32 %v5940, %v5952
  %v5954 = vpop.f32.mrf.mxu0
  %5955 = vdwg.mxu0
  %5956 = vmatpush.bf16.msra.mxu0 %v3707
  %5957 = vmatpush.bf16.msra.mxu0 %v3703
  %5958 = vmatpush.bf16.msra.mxu0 %v3699
  %5959 = vmatpush.bf16.msra.mxu0 %v3695
  %5960 = vmatpush.bf16.msra.mxu0 %v3691
  %5961 = vmatpush.bf16.msra.mxu0 %v3687
  %5962 = vmatpush.bf16.msra.mxu0 %v3683
  %5963 = vmatpush.bf16.msra.mxu0 %v3679
  %5964 = vmatmul.bf16.gmra.mxu0 %v837
  %v5965 = vpop.f32.mrf.mxu0
  %v5966 = vadd.f32 %v5953, %v5965
  %v5967 = vpop.f32.mrf.mxu0
  %5968 = vdwg.mxu0
  %5969 = vmatpush.bf16.msra.mxu0 %v3739
  %5970 = vmatpush.bf16.msra.mxu0 %v3735
  %5971 = vmatpush.bf16.msra.mxu0 %v3731
  %5972 = vmatpush.bf16.msra.mxu0 %v3727
  %5973 = vmatpush.bf16.msra.mxu0 %v3723
  %5974 = vmatpush.bf16.msra.mxu0 %v3719
  %5975 = vmatpush.bf16.msra.mxu0 %v3715
  %5976 = vmatpush.bf16.msra.mxu0 %v3711
  %5977 = vmatmul.bf16.gmra.mxu0 %v838
  %v5978 = vpop.f32.mrf.mxu0
  %v5979 = vadd.f32 %v5966, %v5978
  %v5980 = vpop.f32.mrf.mxu0
  %5981 = vdwg.mxu0
  %5982 = vmatpush.bf16.msra.mxu0 %v3771
  %5983 = vmatpush.bf16.msra.mxu0 %v3767
  %5984 = vmatpush.bf16.msra.mxu0 %v3763
  %5985 = vmatpush.bf16.msra.mxu0 %v3759
  %5986 = vmatpush.bf16.msra.mxu0 %v3755
  %5987 = vmatpush.bf16.msra.mxu0 %v3751
  %5988 = vmatpush.bf16.msra.mxu0 %v3747
  %5989 = vmatpush.bf16.msra.mxu0 %v3743
  %5990 = vmatmul.bf16.gmra.mxu0 %v841
  %v5991 = vpop.f32.mrf.mxu0
  %v5992 = vadd.f32 %v5979, %v5991
  %v5993 = vpop.f32.mrf.mxu0
  %5994 = vdwg.mxu0
  %5995 = vmatpush.bf16.msra.mxu0 %v3803
  %5996 = vmatpush.bf16.msra.mxu0 %v3799
  %5997 = vmatpush.bf16.msra.mxu0 %v3795
  %5998 = vmatpush.bf16.msra.mxu0 %v3791
  %5999 = vmatpush.bf16.msra.mxu0 %v3787
  %6000 = vmatpush.bf16.msra.mxu0 %v3783
  %6001 = vmatpush.bf16.msra.mxu0 %v3779
  %6002 = vmatpush.bf16.msra.mxu0 %v3775
  %6003 = vmatmul.bf16.gmra.mxu0 %v842
  %v6004 = vpop.f32.mrf.mxu0
  %v6005 = vadd.f32 %v5992, %v6004
  %v6006 = vpop.f32.mrf.mxu0
  %6007 = vdwg.mxu0
  %6008 = vmatpush.bf16.msra.mxu0 %v3835
  %6009 = vmatpush.bf16.msra.mxu0 %v3831
  %6010 = vmatpush.bf16.msra.mxu0 %v3827
  %6011 = vmatpush.bf16.msra.mxu0 %v3823
  %6012 = vmatpush.bf16.msra.mxu0 %v3819
  %6013 = vmatpush.bf16.msra.mxu0 %v3815
  %6014 = vmatpush.bf16.msra.mxu0 %v3811
  %6015 = vmatpush.bf16.msra.mxu0 %v3807
  %6016 = vmatmul.bf16.gmra.mxu0 %v843
  %v6017 = vpop.f32.mrf.mxu0
  %v6018 = vadd.f32 %v6005, %v6017
  %v6019 = vpop.f32.mrf.mxu0
  %6020 = vdwg.mxu0
  %6021 = vmatpush.bf16.msra.mxu0 %v3867
  %6022 = vmatpush.bf16.msra.mxu0 %v3863
  %6023 = vmatpush.bf16.msra.mxu0 %v3859
  %6024 = vmatpush.bf16.msra.mxu0 %v3855
  %6025 = vmatpush.bf16.msra.mxu0 %v3851
  %6026 = vmatpush.bf16.msra.mxu0 %v3847
  %6027 = vmatpush.bf16.msra.mxu0 %v3843
  %6028 = vmatpush.bf16.msra.mxu0 %v3839
  %6029 = vmatmul.bf16.gmra.mxu0 %v844
  %v6030 = vpop.f32.mrf.mxu0
  %v6031 = vadd.f32 %v6018, %v6030
  %v6032 = vpop.f32.mrf.mxu0
  %6033 = vdwg.mxu0
  %6034 = vmatpush.bf16.msra.mxu0 %v3899
  %6035 = vmatpush.bf16.msra.mxu0 %v3895
  %6036 = vmatpush.bf16.msra.mxu0 %v3891
  %6037 = vmatpush.bf16.msra.mxu0 %v3887
  %6038 = vmatpush.bf16.msra.mxu0 %v3883
  %6039 = vmatpush.bf16.msra.mxu0 %v3879
  %6040 = vmatpush.bf16.msra.mxu0 %v3875
  %6041 = vmatpush.bf16.msra.mxu0 %v3871
  %6042 = vmatmul.bf16.gmra.mxu0 %v845
  %v6043 = vpop.f32.mrf.mxu0
  %v6044 = vadd.f32 %v6031, %v6043
  %v6045 = vpop.f32.mrf.mxu0
  %6046 = vdwg.mxu0
  %6047 = vmatpush.bf16.msra.mxu0 %v3931
  %6048 = vmatpush.bf16.msra.mxu0 %v3927
  %6049 = vmatpush.bf16.msra.mxu0 %v3923
  %6050 = vmatpush.bf16.msra.mxu0 %v3919
  %6051 = vmatpush.bf16.msra.mxu0 %v3915
  %6052 = vmatpush.bf16.msra.mxu0 %v3911
  %6053 = vmatpush.bf16.msra.mxu0 %v3907
  %6054 = vmatpush.bf16.msra.mxu0 %v3903
  %6055 = vmatmul.bf16.gmra.mxu0 %v846
  %v6056 = vpop.f32.mrf.mxu0
  %v6057 = vadd.f32 %v6044, %v6056
  %v6058 = vpop.f32.mrf.mxu0
  %6059 = vdwg.mxu0
  %6060 = vmatpush.bf16.msra.mxu0 %v3963
  %6061 = vmatpush.bf16.msra.mxu0 %v3959
  %6062 = vmatpush.bf16.msra.mxu0 %v3955
  %6063 = vmatpush.bf16.msra.mxu0 %v3951
  %6064 = vmatpush.bf16.msra.mxu0 %v3947
  %6065 = vmatpush.bf16.msra.mxu0 %v3943
  %6066 = vmatpush.bf16.msra.mxu0 %v3939
  %6067 = vmatpush.bf16.msra.mxu0 %v3935
  %6068 = vmatmul.bf16.gmra.mxu0 %v847
  %v6069 = vpop.f32.mrf.mxu0
  %v6070 = vadd.f32 %v6057, %v6069
  %v6071 = vpop.f32.mrf.mxu0
  %6072 = vdwg.mxu0
  %6073 = vmatpush.bf16.msra.mxu0 %v3995
  %6074 = vmatpush.bf16.msra.mxu0 %v3991
  %6075 = vmatpush.bf16.msra.mxu0 %v3987
  %6076 = vmatpush.bf16.msra.mxu0 %v3983
  %6077 = vmatpush.bf16.msra.mxu0 %v3979
  %6078 = vmatpush.bf16.msra.mxu0 %v3975
  %6079 = vmatpush.bf16.msra.mxu0 %v3971
  %6080 = vmatpush.bf16.msra.mxu0 %v3967
  %6081 = vmatmul.bf16.gmra.mxu0 %v848
  %v6082 = vpop.f32.mrf.mxu0
  %v6083 = vadd.f32 %v6070, %v6082
  %v6084 = vpop.f32.mrf.mxu0
  %6085 = vdwg.mxu0
  %6086 = vmatpush.bf16.msra.mxu0 0
  %6087 = vmatpush.bf16.msra.mxu0 0
  %6088 = vmatpush.bf16.msra.mxu0 0
  %6089 = vmatpush.bf16.msra.mxu0 0
  %6090 = vmatpush.bf16.msra.mxu0 %v4011
  %6091 = vmatpush.bf16.msra.mxu0 %v4007
  %6092 = vmatpush.bf16.msra.mxu0 %v4003
  %6093 = vmatpush.bf16.msra.mxu0 %v3999
  %6094 = vmatmul.bf16.gmra.mxu0 %v4797
  %v6095 = vpop.f32.mrf.mxu0
  %v6096 = vadd.f32 %v6083, %v6095
  %v6097 = vpop.f32.mrf.mxu0
  %6098 = vdwg.mxu0
  %v6099 = vmax.f32 %v5121, 0.0
  %v6100 = vmax.f32 %v5446, 0.0
  %v6101 = vmax.f32 %v5771, 0.0
  %v6102 = vmax.f32 %v6096, 0.0
  %vm6103 = vcmask 1041408
  %v6104 = vsel %vm6103, %v6099, 0.0
  %v6105 = vrot.slane %v6104, 4
  %v6106 = vadd.f32 %v6104, %v6105
  %v6107 = vrot.slane %v6106, 2
  %v6108 = vadd.f32 %v6106, %v6107
  %v6109 = vrot.slane %v6108, 1
  %v6110 = vadd.f32 %v6108, %v6109
  %v6111 = vsel %vm6103, %v6100, 0.0
  %v6112 = vrot.slane %v6111, 4
  %v6113 = vadd.f32 %v6111, %v6112
  %v6114 = vrot.slane %v6113, 2
  %v6115 = vadd.f32 %v6113, %v6114
  %v6116 = vrot.slane %v6115, 1
  %v6117 = vadd.f32 %v6115, %v6116
  %v6118 = vsel %vm6103, %v6101, 0.0
  %v6119 = vrot.slane %v6118, 4
  %v6120 = vadd.f32 %v6118, %v6119
  %v6121 = vrot.slane %v6120, 2
  %v6122 = vadd.f32 %v6120, %v6121
  %v6123 = vrot.slane %v6122, 1
  %v6124 = vadd.f32 %v6122, %v6123
  %v6125 = vsel %vm6103, %v6102, 0.0
  %v6126 = vrot.slane %v6125, 4
  %v6127 = vadd.f32 %v6125, %v6126
  %v6128 = vrot.slane %v6127, 2
  %v6129 = vadd.f32 %v6127, %v6128
  %v6130 = vrot.slane %v6129, 1
  %v6131 = vadd.f32 %v6129, %v6130
  %v6132 = vmul.f32 %v6110, 0.5
  %v6133 = vmul.f32 %v6117, 0.5
  %v6134 = vmul.f32 %v6124, 0.5
  %v6135 = vmul.f32 %v6131, 0.5
  %v6136 = vmul.f32 %v6099, %v6099
  %v6137 = vmul.f32 %v6100, %v6100
  %v6138 = vmul.f32 %v6101, %v6101
  %v6139 = vmul.f32 %v6102, %v6102
  %v6140 = vsel %vm6103, %v6136, 0.0
  %v6141 = vrot.slane %v6140, 4
  %v6142 = vadd.f32 %v6140, %v6141
  %v6143 = vrot.slane %v6142, 2
  %v6144 = vadd.f32 %v6142, %v6143
  %v6145 = vrot.slane %v6144, 1
  %v6146 = vadd.f32 %v6144, %v6145
  %v6147 = vsel %vm6103, %v6137, 0.0
  %v6148 = vrot.slane %v6147, 4
  %v6149 = vadd.f32 %v6147, %v6148
  %v6150 = vrot.slane %v6149, 2
  %v6151 = vadd.f32 %v6149, %v6150
  %v6152 = vrot.slane %v6151, 1
  %v6153 = vadd.f32 %v6151, %v6152
  %v6154 = vsel %vm6103, %v6138, 0.0
  %v6155 = vrot.slane %v6154, 4
  %v6156 = vadd.f32 %v6154, %v6155
  %v6157 = vrot.slane %v6156, 2
  %v6158 = vadd.f32 %v6156, %v6157
  %v6159 = vrot.slane %v6158, 1
  %v6160 = vadd.f32 %v6158, %v6159
  %v6161 = vsel %vm6103, %v6139, 0.0
  %v6162 = vrot.slane %v6161, 4
  %v6163 = vadd.f32 %v6161, %v6162
  %v6164 = vrot.slane %v6163, 2
  %v6165 = vadd.f32 %v6163, %v6164
  %v6166 = vrot.slane %v6165, 1
  %v6167 = vadd.f32 %v6165, %v6166
  %v6168 = vmul.f32 %v6146, 0.5
  %v6169 = vmul.f32 %v6153, 0.5
  %v6170 = vmul.f32 %v6160, 0.5
  %v6171 = vmul.f32 %v6167, 0.5
  %v6172 = vmul.f32 %v6132, %v6132
  %v6173 = vmul.f32 %v6133, %v6133
  %v6174 = vmul.f32 %v6134, %v6134
  %v6175 = vmul.f32 %v6135, %v6135
  %v6176 = vsub.f32 %v6168, %v6172
  %v6177 = vsub.f32 %v6169, %v6173
  %v6178 = vsub.f32 %v6170, %v6174
  %v6179 = vsub.f32 %v6171, %v6175
  %v6180 = vadd.f32 %v6176, 1e-05
  %v6181 = vadd.f32 %v6177, 1e-05
  %v6182 = vadd.f32 %v6178, 1e-05
  %v6183 = vadd.f32 %v6179, 1e-05
  %v6184 = vrsqrt.pop %v6180
  %v6185 = vmul.f32 %v6184, %v6180
  %v6186 = vmul.f32 %v6185, %v6184
  %v6187 = vmul.f32 0.5, %v6186
  %v6188 = vsub.f32 1.5, %v6187
  %v6189 = vmul.f32 %v6184, %v6188
  %vm6190 = vweird.f32 %v6180
  %vm6191 = vweird.f32 %v6184
  %vm6192 = vmor %vm6190, %vm6191
  %v6193 = vsel %vm6192, %v6184, %v6189
  %v6194 = vrsqrt.pop %v6181
  %v6195 = vmul.f32 %v6194, %v6181
  %v6196 = vmul.f32 %v6195, %v6194
  %v6197 = vmul.f32 0.5, %v6196
  %v6198 = vsub.f32 1.5, %v6197
  %v6199 = vmul.f32 %v6194, %v6198
  %vm6200 = vweird.f32 %v6181
  %vm6201 = vweird.f32 %v6194
  %vm6202 = vmor %vm6200, %vm6201
  %v6203 = vsel %vm6202, %v6194, %v6199
  %v6204 = vrsqrt.pop %v6182
  %v6205 = vmul.f32 %v6204, %v6182
  %v6206 = vmul.f32 %v6205, %v6204
  %v6207 = vmul.f32 0.5, %v6206
  %v6208 = vsub.f32 1.5, %v6207
  %v6209 = vmul.f32 %v6204, %v6208
  %vm6210 = vweird.f32 %v6182
  %vm6211 = vweird.f32 %v6204
  %vm6212 = vmor %vm6210, %vm6211
  %v6213 = vsel %vm6212, %v6204, %v6209
  %v6214 = vrsqrt.pop %v6183
  %v6215 = vmul.f32 %v6214, %v6183
  %v6216 = vmul.f32 %v6215, %v6214
  %v6217 = vmul.f32 0.5, %v6216
  %v6218 = vsub.f32 1.5, %v6217
  %v6219 = vmul.f32 %v6214, %v6218
  %vm6220 = vweird.f32 %v6183
  %vm6221 = vweird.f32 %v6214
  %vm6222 = vmor %vm6220, %vm6221
  %v6223 = vsel %vm6222, %v6214, %v6219
  %v6224 = vsub.f32 %v6099, %v6132
  %v6225 = vsub.f32 %v6100, %v6133
  %v6226 = vsub.f32 %v6101, %v6134
  %v6227 = vsub.f32 %v6102, %v6135
  %v6228 = vld [vmem:[%s3] sm:$0xf]
  %v6230 = vperm.slane %v6228, 0
  %v6231 = vperm.slane %v6228, 1
  %v6232 = vperm.slane %v6228, 2
  %v6233 = vperm.slane %v6228, 3
  %v6238 = vmul.f32 %v6193, %v6230
  %v6239 = vmul.f32 %v6203, %v6231
  %v6240 = vmul.f32 %v6213, %v6232
  %v6241 = vmul.f32 %v6223, %v6233
  %v6242 = vperm.slane %v6238, 0
  %v6243 = vperm.slane %v6239, 0
  %v6244 = vperm.slane %v6240, 0
  %v6245 = vperm.slane %v6241, 0
  %v6246 = vmul.f32 %v6224, %v6242
  %v6247 = vmul.f32 %v6225, %v6243
  %v6248 = vmul.f32 %v6226, %v6244
  %v6249 = vmul.f32 %v6227, %v6245
  %v6250 = vld [vmem:[%s4] sm:$0xf]
  %v6252 = vperm.slane %v6250, 0
  %v6253 = vperm.slane %v6250, 1
  %v6254 = vperm.slane %v6250, 2
  %v6255 = vperm.slane %v6250, 3
  %v6260 = vadd.f32 %v6246, %v6252
  %v6261 = vadd.f32 %v6247, %v6253
  %v6262 = vadd.f32 %v6248, %v6254
  %v6263 = vadd.f32 %v6249, %v6255
  %v6264 = vpack.c.bf16 %v6261, %v6260
  %v6265 = vpack.c.bf16 %v6263, %v6262
  %v6268 = vrot.slane %v6264, 3
  %v6269 = vrot.slane %v6265, 6
  %v6270 = vrot.slane %v6265, 1
  %vm6271 = vcmask 1040384
  %v6274 = vsel %vm6271, %v6264, %v6268
  %vm6275 = vcmask 1042434
  %v6278 = vsel %vm6275, %v6269, %v6270
  %v6279 = vsel %vm6103, %v6274, %v6278
  %6281 = vst [vmem:[%s5] sm:$0xf] %v6279
  // Predicated region
  $region22: #{net_forward.8} parent=0 // pred_check
    _
  $region23: #{net_forward.8} parent=0 // pred_check_branch
    %6283 = sbr.rel (0) target = $region25
  $region24: #{net_forward.8} parent=0 // pred_region
    _
  $region25: #{net_forward.8} parent=0 // pred_fallthru
    _
  // Predicated region
  $region26: #{net_forward.8} parent=0 // pred_check
    _
  $region27: #{net_forward.8} parent=0 // pred_check_branch
    %6285 = sbr.rel (0) target = $region29
  $region28: #{net_forward.8} parent=0 // pred_region
    _
  $region29: #{net_forward.8} parent=0 // pred_fallthru
    _

</llo_original>
